<compile_context>
chip_gen: v7x
topology: tpu7x:2x2x1
jax: 0.10.0
libtpu: 0.0.40
codegen_flags: <defaults>
</compile_context>

<pallas_src>
import jax
import jax.numpy as jnp
from jax import lax
from jax.experimental import pallas as pl
from jax.experimental.pallas import tpu as pltpu


def _graphs_per_block(batch, cap=8):
    """Largest divisor of `batch` that is <= cap, so every grid block is full."""
    for bt in range(min(batch, cap), 0, -1):
        if batch % bt == 0:
            return bt
    return 1


def gnn_kernel(a_ref, h_ref, w1_ref, b1_ref, w2_ref, b2_ref, o_ref):
    bt, n, _ = a_ref.shape

    a = a_ref[...]                                    # (Bt, N, N) f32, a[g, u, v] = edge u -> v
    # Aggregation layout via one in-block XLU transpose (XLU slot is otherwise idle).
    at = jnp.swapaxes(a, -1, -2)                      # (Bt, N_v, N_u)

    # Degrees via lane (last-axis) reductions on the loaded blocks: no N^2 casts, no MXU matvec.
    out_deg = jnp.sum(a, axis=-1, keepdims=True)      # (Bt, N_u, 1) out-degree of source u
    in_deg = jnp.sum(at, axis=-1, keepdims=True)      # (Bt, N_v, 1) in-degree of destination v
    norm_src = lax.rsqrt(jnp.maximum(out_deg, 1.0))   # D_out^{-1/2}
    norm_dst = lax.rsqrt(jnp.maximum(in_deg, 1.0))    # D_in^{-1/2}

    def graph_conv(x, w_ref, b_ref):
        # X @ W as one flattened (Bt*N, F) matmul -> fills more MXU rows per issue.
        fout = w_ref.shape[-1]
        xw = jnp.dot(x.reshape(bt * n, -1), w_ref[...],
                     preferred_element_type=jnp.float32).reshape(bt, n, fout)
        # Fold the normalization into the O(N*F) feature side (no N^2 a_hat / VPU passes).
        msg = xw * norm_src                           # (Bt, N, F)
        agg = jnp.einsum('gvu,guf->gvf', at, msg,
                         preferred_element_type=jnp.float32)
        return agg * norm_dst + b_ref[...]

    h1 = jnp.maximum(graph_conv(h_ref[...], w1_ref, b1_ref), 0.0)   # relu(conv1)
    out = graph_conv(h1, w2_ref, b2_ref)                            # conv2
    o_ref[...] = out.astype(o_ref.dtype)              # bf16 store: halves output HBM traffic


def gnn_forward(a, h, w1, b1, w2, b2, *, graphs_per_block=None):
    """Two-layer GraphConv forward for a batch of dense graphs.

    a:  (B, N, N) dense adjacency (float32), a[g, u, v] = 1 for edge u -> v
    h:  (B, N, in_feats) node features (float32)
    w1: (in_feats, hidden), b1: (hidden,), w2: (hidden, out_feats), b2: (out_feats,)
    returns (B, N, out_feats) bfloat16
    """
    B, N, _ = a.shape
    in_feats, hidden = w1.shape
    out_feats = w2.shape[1]

    bt = graphs_per_block or _graphs_per_block(B)
    assert B % bt == 0, "graphs_per_block must divide the batch"

    b1r = b1.reshape(1, hidden)
    b2r = b2.reshape(1, out_feats)

    out = pl.pallas_call(
        gnn_kernel,
        out_shape=jax.ShapeDtypeStruct((B, N, out_feats), jnp.bfloat16),
        grid=(B // bt,),
        in_specs=[
            pl.BlockSpec((bt, N, N), lambda i: (i, 0, 0)),          # A, original layout, f32
            pl.BlockSpec((bt, N, in_feats), lambda i: (i, 0, 0)),   # H, unpadded
            # Shared operands: constant block index -> not re-fetched across grid steps.
            # (pipeline_mode=pl.Buffered(1) could reclaim their few-KiB double buffers.)
            pl.BlockSpec((in_feats, hidden), lambda i: (0, 0)),     # W1
            pl.BlockSpec((1, hidden), lambda i: (0, 0)),            # b1
            pl.BlockSpec((hidden, out_feats), lambda i: (0, 0)),    # W2
            pl.BlockSpec((1, out_feats), lambda i: (0, 0)),         # b2
        ],
        out_specs=pl.BlockSpec((bt, N, out_feats), lambda i: (i, 0, 0)),
        compiler_params=pltpu.CompilerParams(
            dimension_semantics=("parallel",),        # independent graph blocks
            vmem_limit_bytes=48 * 1024 * 1024,        # explicit; stays under v7x's 64 MiB/TC
        ),
    )(a, h, w1, b1r, w2, b2r)

    # TODO(synk): on v7x, if a trace shows one TensorCore idle, switch the batch axis to
    # pltpu.CORE_PARALLEL (or an explicit pl.core_map split) to force 2-TC sharding.
    # TODO(synk): for N large enough that a dense (Bt, N, N) f32 block no longer fits VMEM,
    # tile destination rows / source columns with an accumulator (and consider 256-wide
    # block-diagonal aggregation blocks to fill the 256x256 MXU on v6e/v7x).
    return out


def glorot_uniform(key, shape):
    fan_in, fan_out = shape
    limit = (6.0 / (fan_in + fan_out)) ** 0.5
    return jax.random.uniform(key, shape, jnp.float32, -limit, limit)


def reference(a, h, w1, b1, w2, b2):
    out_deg = jnp.maximum(a.sum(axis=-1, keepdims=True), 1.0)      # (B, N, 1)
    in_deg = jnp.maximum(a.sum(axis=-2, keepdims=True), 1.0)       # (B, 1, N)
    ns = out_deg ** -0.5                                           # (B, N, 1) source norm
    nd = jnp.swapaxes(in_deg, -1, -2) ** -0.5                      # (B, N, 1) dest norm
    at = jnp.swapaxes(a, -1, -2)

    def conv(x, w, b):
        return (at @ ((x * ns) @ w)) * nd + b

    h1 = jnp.maximum(conv(h, w1, b1), 0.0)
    return conv(h1, w2, b2)


if __name__ == "__main__":
    B, N = 16, 128
    in_feats, hidden_feats, out_feats = 16, 32, 16

    key = jax.random.PRNGKey(0)
    k_adj, k_feat, k_w1, k_w2, k_b1, k_b2 = jax.random.split(key, 6)

    # Deterministic random directed graphs (dense adjacency), batch of B graphs.
    a = jax.random.bernoulli(k_adj, p=0.1, shape=(B, N, N)).astype(jnp.float32)
    h = jax.random.normal(k_feat, (B, N, in_feats), dtype=jnp.float32)

    # GraphConv params: weight (in, out) Xavier-uniform (as in DGL).
    w1 = glorot_uniform(k_w1, (in_feats, hidden_feats))
    w2 = glorot_uniform(k_w2, (hidden_feats, out_feats))
    # DGL initializes biases to zero; use small random biases here to exercise the add.
    b1 = 0.1 * jax.random.normal(k_b1, (hidden_feats,), dtype=jnp.float32)
    b2 = 0.1 * jax.random.normal(k_b2, (out_feats,), dtype=jnp.float32)

    out = jax.block_until_ready(gnn_forward(a, h, w1, b1, w2, b2))
    with jax.default_matmul_precision("float32"):
        ref = reference(a, h, w1, b1, w2, b2)

    assert out.shape == (B, N, out_feats)
    assert out.dtype == jnp.bfloat16
    # All in-kernel compute is f32; only the final store rounds to bf16 (~0.4% rel).
    assert jnp.allclose(out.astype(jnp.float32), ref, atol=3e-2, rtol=3e-2), \
        "mismatch vs JAX reference"
    print("KERNEL_OK")
</pallas_src>

<mosaic_0001>
module attributes {stable_mosaic.version = 11 : i64} {
  func.func @gnn_kernel(%arg0: i32, %arg1: memref<8x128x128xf32, #tpu.memory_space<vmem>>, %arg2: memref<8x128x16xf32, #tpu.memory_space<vmem>>, %arg3: memref<16x32xf32, #tpu.memory_space<vmem>>, %arg4: memref<1x32xf32, #tpu.memory_space<vmem>>, %arg5: memref<32x16xf32, #tpu.memory_space<vmem>>, %arg6: memref<1x16xf32, #tpu.memory_space<vmem>>, %arg7: memref<8x128x16xbf16, #tpu.memory_space<vmem>>) attributes {dimension_semantics = [#tpu.dimension_semantics<parallel>], iteration_bounds = array<i64: 2>, scalar_prefetch = 0 : i64, scratch_operands = 0 : i64, tpu.core_type = #tpu.core_type<tc>, window_params = [{transform_indices = @transform_0, window_bounds = array<i64: 8, 128, 128>}, {transform_indices = @transform_1, window_bounds = array<i64: 8, 128, 16>}, {pipeline_mode = #tpu.pipeline_mode<synchronous>, transform_indices = @transform_2, window_bounds = array<i64: 16, 32>}, {pipeline_mode = #tpu.pipeline_mode<synchronous>, transform_indices = @transform_3, window_bounds = array<i64: 1, 32>}, {pipeline_mode = #tpu.pipeline_mode<synchronous>, transform_indices = @transform_4, window_bounds = array<i64: 32, 16>}, {pipeline_mode = #tpu.pipeline_mode<synchronous>, transform_indices = @transform_5, window_bounds = array<i64: 1, 16>}, {transform_indices = @transform_6, window_bounds = array<i64: 8, 128, 16>}]} {
    %c0 = arith.constant 0 : index
    %c0_0 = arith.constant 0 : index
    %c0_1 = arith.constant 0 : index
    %0 = vector.load %arg1[%c0, %c0_0, %c0_1] : memref<8x128x128xf32, #tpu.memory_space<vmem>>, vector<8x128x128xf32>
    %1 = tpu.transpose %0, [0, 2, 1] : vector<8x128x128xf32> -> vector<8x128x128xf32>
    %cst = arith.constant dense<0.000000e+00> : vector<8x128xf32>
    %2 = vector.multi_reduction <add>, %0, %cst [2] : vector<8x128x128xf32> to vector<8x128xf32>
    %3 = vector.shape_cast %2 : vector<8x128xf32> to vector<8x128x1xf32>
    %cst_2 = arith.constant dense<0.000000e+00> : vector<8x128xf32>
    %4 = vector.multi_reduction <add>, %1, %cst_2 [2] : vector<8x128x128xf32> to vector<8x128xf32>
    %5 = vector.shape_cast %4 : vector<8x128xf32> to vector<8x128x1xf32>
    %cst_3 = arith.constant 1.000000e+00 : f32
    %6 = vector.broadcast %cst_3 : f32 to vector<8x128x1xf32>
    %7 = arith.maximumf %3, %6 : vector<8x128x1xf32>
    %8 = math.rsqrt %7 : vector<8x128x1xf32>
    %cst_4 = arith.constant 1.000000e+00 : f32
    %9 = vector.broadcast %cst_4 : f32 to vector<8x128x1xf32>
    %10 = arith.maximumf %5, %9 : vector<8x128x1xf32>
    %11 = math.rsqrt %10 : vector<8x128x1xf32>
    %c0_5 = arith.constant 0 : index
    %c0_6 = arith.constant 0 : index
    %c0_7 = arith.constant 0 : index
    %12 = vector.load %arg2[%c0_5, %c0_6, %c0_7] : memref<8x128x16xf32, #tpu.memory_space<vmem>>, vector<8x128x16xf32>
    %13 = vector.shape_cast %12 : vector<8x128x16xf32> to vector<1024x16xf32>
    %c0_8 = arith.constant 0 : index
    %c0_9 = arith.constant 0 : index
    %14 = vector.load %arg3[%c0_8, %c0_9] : memref<16x32xf32, #tpu.memory_space<vmem>>, vector<16x32xf32>
    %cst_10 = arith.constant dense<0.000000e+00> : vector<1024x32xf32>
    %15 = tpu.matmul %13, %14, %cst_10 {dimension_numbers = #tpu.dot_dimension_numbers<[1], [0], [0], [1], [0, 0, 1, 1], [], []>} : vector<1024x16xf32>, vector<16x32xf32>, vector<1024x32xf32> -> vector<1024x32xf32>
    %16 = vector.shape_cast %15 : vector<1024x32xf32> to vector<8x128x32xf32>
    %17 = vector.broadcast %8 : vector<8x128x1xf32> to vector<8x128x32xf32>
    %18 = arith.mulf %16, %17 : vector<8x128x32xf32>
    "tpu.trace_start"() <{level = 10 : i32, message = "gvu,guf->gvf"}> : () -> ()
    %cst_11 = arith.constant dense<0.000000e+00> : vector<8x128x32xf32>
    %19 = tpu.matmul %1, %18, %cst_11 {dimension_numbers = #tpu.dot_dimension_numbers<[2], [1], [1], [2], [0, 0, 0, 1, 1, 2], [0], [0]>} : vector<8x128x128xf32>, vector<8x128x32xf32>, vector<8x128x32xf32> -> vector<8x128x32xf32>
    "tpu.trace_stop"() : () -> ()
    %20 = vector.broadcast %11 : vector<8x128x1xf32> to vector<8x128x32xf32>
    %21 = arith.mulf %19, %20 : vector<8x128x32xf32>
    %c0_12 = arith.constant 0 : index
    %c0_13 = arith.constant 0 : index
    %22 = vector.load %arg4[%c0_12, %c0_13] : memref<1x32xf32, #tpu.memory_space<vmem>>, vector<1x32xf32>
    %23 = vector.shape_cast %22 : vector<1x32xf32> to vector<1x1x32xf32>
    %24 = vector.broadcast %23 : vector<1x1x32xf32> to vector<8x128x32xf32>
    %25 = arith.addf %21, %24 : vector<8x128x32xf32>
    %cst_14 = arith.constant 0.000000e+00 : f32
    %26 = vector.broadcast %cst_14 : f32 to vector<8x128x32xf32>
    %27 = arith.maximumf %25, %26 : vector<8x128x32xf32>
    %28 = vector.shape_cast %27 : vector<8x128x32xf32> to vector<1024x32xf32>
    %c0_15 = arith.constant 0 : index
    %c0_16 = arith.constant 0 : index
    %29 = vector.load %arg5[%c0_15, %c0_16] : memref<32x16xf32, #tpu.memory_space<vmem>>, vector<32x16xf32>
    %cst_17 = arith.constant dense<0.000000e+00> : vector<1024x16xf32>
    %30 = tpu.matmul %28, %29, %cst_17 {dimension_numbers = #tpu.dot_dimension_numbers<[1], [0], [0], [1], [0, 0, 1, 1], [], []>} : vector<1024x32xf32>, vector<32x16xf32>, vector<1024x16xf32> -> vector<1024x16xf32>
    %31 = vector.shape_cast %30 : vector<1024x16xf32> to vector<8x128x16xf32>
    %32 = vector.broadcast %8 : vector<8x128x1xf32> to vector<8x128x16xf32>
    %33 = arith.mulf %31, %32 : vector<8x128x16xf32>
    "tpu.trace_start"() <{level = 10 : i32, message = "gvu,guf->gvf"}> : () -> ()
    %cst_18 = arith.constant dense<0.000000e+00> : vector<8x128x16xf32>
    %34 = tpu.matmul %1, %33, %cst_18 {dimension_numbers = #tpu.dot_dimension_numbers<[2], [1], [1], [2], [0, 0, 0, 1, 1, 2], [0], [0]>} : vector<8x128x128xf32>, vector<8x128x16xf32>, vector<8x128x16xf32> -> vector<8x128x16xf32>
    "tpu.trace_stop"() : () -> ()
    %35 = vector.broadcast %11 : vector<8x128x1xf32> to vector<8x128x16xf32>
    %36 = arith.mulf %34, %35 : vector<8x128x16xf32>
    %c0_19 = arith.constant 0 : index
    %c0_20 = arith.constant 0 : index
    %37 = vector.load %arg6[%c0_19, %c0_20] : memref<1x16xf32, #tpu.memory_space<vmem>>, vector<1x16xf32>
    %38 = vector.shape_cast %37 : vector<1x16xf32> to vector<1x1x16xf32>
    %39 = vector.broadcast %38 : vector<1x1x16xf32> to vector<8x128x16xf32>
    %40 = arith.addf %36, %39 : vector<8x128x16xf32>
    %41 = arith.truncf %40 : vector<8x128x16xf32> to vector<8x128x16xbf16>
    %c0_21 = arith.constant 0 : index
    %c0_22 = arith.constant 0 : index
    %c0_23 = arith.constant 0 : index
    %42 = vector.load %arg7[%c0_21, %c0_22, %c0_23] : memref<8x128x16xbf16, #tpu.memory_space<vmem>>, vector<8x128x16xbf16>
    tpu.vector_store %arg7[%c0_21, %c0_22, %c0_23], %41 {strides = array<i32>} : memref<8x128x16xbf16, #tpu.memory_space<vmem>>, vector<8x128x16xbf16>,
    return
  }
  func.func @transform_0(%arg0: i32) -> (i32, i32, i32) {
    %c0_i32 = arith.constant 0 : i32
    %c0_i32_0 = arith.constant 0 : i32
    %c0_i32_1 = arith.constant 0 : i32
    return %arg0, %c0_i32, %c0_i32_0 : i32, i32, i32
  }
  func.func @transform_1(%arg0: i32) -> (i32, i32, i32) {
    %c0_i32 = arith.constant 0 : i32
    %c0_i32_0 = arith.constant 0 : i32
    %c0_i32_1 = arith.constant 0 : i32
    return %arg0, %c0_i32, %c0_i32_0 : i32, i32, i32
  }
  func.func @transform_2(%arg0: i32) -> (i32, i32) {
    %c0_i32 = arith.constant 0 : i32
    %c0_i32_0 = arith.constant 0 : i32
    %c0_i32_1 = arith.constant 0 : i32
    return %c0_i32, %c0_i32_0 : i32, i32
  }
  func.func @transform_3(%arg0: i32) -> (i32, i32) {
    %c0_i32 = arith.constant 0 : i32
    %c0_i32_0 = arith.constant 0 : i32
    %c0_i32_1 = arith.constant 0 : i32
    return %c0_i32, %c0_i32_0 : i32, i32
  }
  func.func @transform_4(%arg0: i32) -> (i32, i32) {
    %c0_i32 = arith.constant 0 : i32
    %c0_i32_0 = arith.constant 0 : i32
    %c0_i32_1 = arith.constant 0 : i32
    return %c0_i32, %c0_i32_0 : i32, i32
  }
  func.func @transform_5(%arg0: i32) -> (i32, i32) {
    %c0_i32 = arith.constant 0 : i32
    %c0_i32_0 = arith.constant 0 : i32
    %c0_i32_1 = arith.constant 0 : i32
    return %c0_i32, %c0_i32_0 : i32, i32
  }
  func.func @transform_6(%arg0: i32) -> (i32, i32, i32) {
    %c0_i32 = arith.constant 0 : i32
    %c0_i32_0 = arith.constant 0 : i32
    %c0_i32_1 = arith.constant 0 : i32
    return %arg0, %c0_i32, %c0_i32_0 : i32, i32, i32
  }
}

</mosaic_0001>

<llo_original>
// kernel: tpu_custom_call.1
$region0: #{tpu_custom_call.1}
  #allocation0 [shape = 'u32[]', space=smem, size = 0x4, offset = 0x4, fixed_abs, tag = 'smem constant byte address 0x4 - core index']
  #allocation1 [shape = 'u32[144,128]{1,0:T(1,128)}', space=vmem, size = 0x12000, scoped, tag = 'internal scratch']
  %s0 = inlined_call_operand.vmem [shape: f32[16,128,128], index: 0, kind: input, shape index: {}]
  %s1 = inlined_call_operand.vmem [shape: f32[16,128,16], index: 1, kind: input, shape index: {}]
  %s2 = inlined_call_operand.vmem [shape: f32[16,32], index: 2, kind: input, shape index: {}]
  %s3 = inlined_call_operand.vmem [shape: f32[1,32], index: 3, kind: input, shape index: {}]
  %s4 = inlined_call_operand.vmem [shape: f32[32,16], index: 4, kind: input, shape index: {}]
  %s5 = inlined_call_operand.vmem [shape: f32[1,16], index: 5, kind: input, shape index: {}]
  %s6 = inlined_call_operand.vmem [shape: bf16[16,128,16], index: 6, kind: output, shape index: {}]
  %s7 = sld [smem:[#allocation0]]
  $region57: #{tpu_custom_call.1} parent=0
    _
  %s9 = ssub.s32 1, %s7
  %s10 = scalar_select 0, %s9, %s7
  loop: start=0, step=1, limit=4
  $region2: #{tpu_custom_call.1} parent=0 // loop_pre_header
    _
  $region3: #{tpu_custom_call.1} parent=0 // loop_header
    %s12 = sphi 0, %s16
    %p13 = scmp.ge.s32.totalorder %s12, 4
    %s22 = sphi 0, %s24
    %s25 = sphi 0, %s22
    %s26 = sphi 0, %s25
    %s42 = sphi 0, %s26
    %s48 = sphi 0, %s50
    %s51 = sphi 0, %s48
    %s52 = sphi 0, %s51
    %s68 = sphi 0, %s52
    %s72 = sphi 0, %s72
    %s74 = sphi 0, %s72
    %s75 = sphi 0, %s74
    %s89 = sphi 0, %s75
    %s93 = sphi 0, %s93
    %s95 = sphi 0, %s93
    %s96 = sphi 0, %s95
    %s110 = sphi 0, %s96
    %s114 = sphi 0, %s114
    %s116 = sphi 0, %s114
    %s117 = sphi 0, %s116
    %s131 = sphi 0, %s117
    %s135 = sphi 0, %s135
    %s137 = sphi 0, %s135
    %s138 = sphi 0, %s137
    %s152 = sphi 0, %s138
    %s158 = sphi 0, %s160
    %s161 = sphi 0, %s158
    %s162 = sphi 0, %s161
    %s178 = sphi 0, %s162
  $region4: #{tpu_custom_call.1} parent=0 // loop_header_branch
    %15 = sbr.rel (%p13) target = $region8
  $region5: #{tpu_custom_call.1} parent=0 // loop_body
    %s17 = ssub.s32 %s12, 1
    %s18 = ssub.s32 %s12, 2
    %s19 = sadd.s32 %s12, 1
    %s20 = ssub.s32 %s12, %s19
    %p21 = scmp.eq.s32.totalorder %s20, 0
    %s23 = sadd.s32 %s22, 1
    %s24 = scalar_select %p21, %s22, %s23
    %p27 = pneg %p21
    %p28 = scmp.eq.s32.totalorder %s12, 1
    %p29 = por %p27, %p28
    %p30 = scmp.ne.s32.totalorder %s22, %s25
    %p31 = scmp.eq.s32.totalorder %s12, 0
    %p32 = por %p30, %p31
    %p33 = scmp.ne.s32.totalorder %s22, %s25
    %p34 = scmp.eq.s32.totalorder %s17, 1
    %p35 = por %p33, %p34
    %p36 = scmp.ne.s32.totalorder %s25, %s26
    %p37 = scmp.eq.s32.totalorder %s17, 0
    %p38 = por %p36, %p37
    %p39 = scmp.ne.s32.totalorder %s25, %s26
    %p40 = scmp.eq.s32.totalorder %s18, 1
    %p41 = por %p39, %p40
    %p43 = scmp.ne.s32.totalorder %s26, %s42
    %p44 = scmp.eq.s32.totalorder %s18, 0
    %p45 = por %p43, %p44
    %s46 = ssub.s32 %s12, %s19
    %p47 = scmp.eq.s32.totalorder %s46, 0
    %s49 = sadd.s32 %s48, 1
    %s50 = scalar_select %p47, %s48, %s49
    %p53 = pneg %p47
    %p54 = scmp.eq.s32.totalorder %s12, 1
    %p55 = por %p53, %p54
    %p56 = scmp.ne.s32.totalorder %s48, %s51
    %p57 = scmp.eq.s32.totalorder %s12, 0
    %p58 = por %p56, %p57
    %p59 = scmp.ne.s32.totalorder %s48, %s51
    %p60 = scmp.eq.s32.totalorder %s17, 1
    %p61 = por %p59, %p60
    %p62 = scmp.ne.s32.totalorder %s51, %s52
    %p63 = scmp.eq.s32.totalorder %s17, 0
    %p64 = por %p62, %p63
    %p65 = scmp.ne.s32.totalorder %s51, %s52
    %p66 = scmp.eq.s32.totalorder %s18, 1
    %p67 = por %p65, %p66
    %p69 = scmp.ne.s32.totalorder %s52, %s68
    %p70 = scmp.eq.s32.totalorder %s18, 0
    %p71 = por %p69, %p70
    %s73 = sadd.s32 %s72, 1
    %p76 = scmp.eq.s32.totalorder %s12, 1
    %p77 = scmp.ne.s32.totalorder %s72, %s74
    %p78 = scmp.eq.s32.totalorder %s12, 0
    %p79 = por %p77, %p78
    %p80 = scmp.ne.s32.totalorder %s72, %s74
    %p81 = scmp.eq.s32.totalorder %s17, 1
    %p82 = por %p80, %p81
    %p83 = scmp.ne.s32.totalorder %s74, %s75
    %p84 = scmp.eq.s32.totalorder %s17, 0
    %p85 = por %p83, %p84
    %p86 = scmp.ne.s32.totalorder %s74, %s75
    %p87 = scmp.eq.s32.totalorder %s18, 1
    %p88 = por %p86, %p87
    %p90 = scmp.ne.s32.totalorder %s75, %s89
    %p91 = scmp.eq.s32.totalorder %s18, 0
    %p92 = por %p90, %p91
    %s94 = sadd.s32 %s93, 1
    %p97 = scmp.eq.s32.totalorder %s12, 1
    %p98 = scmp.ne.s32.totalorder %s93, %s95
    %p99 = scmp.eq.s32.totalorder %s12, 0
    %p100 = por %p98, %p99
    %p101 = scmp.ne.s32.totalorder %s93, %s95
    %p102 = scmp.eq.s32.totalorder %s17, 1
    %p103 = por %p101, %p102
    %p104 = scmp.ne.s32.totalorder %s95, %s96
    %p105 = scmp.eq.s32.totalorder %s17, 0
    %p106 = por %p104, %p105
    %p107 = scmp.ne.s32.totalorder %s95, %s96
    %p108 = scmp.eq.s32.totalorder %s18, 1
    %p109 = por %p107, %p108
    %p111 = scmp.ne.s32.totalorder %s96, %s110
    %p112 = scmp.eq.s32.totalorder %s18, 0
    %p113 = por %p111, %p112
    %s115 = sadd.s32 %s114, 1
    %p118 = scmp.eq.s32.totalorder %s12, 1
    %p119 = scmp.ne.s32.totalorder %s114, %s116
    %p120 = scmp.eq.s32.totalorder %s12, 0
    %p121 = por %p119, %p120
    %p122 = scmp.ne.s32.totalorder %s114, %s116
    %p123 = scmp.eq.s32.totalorder %s17, 1
    %p124 = por %p122, %p123
    %p125 = scmp.ne.s32.totalorder %s116, %s117
    %p126 = scmp.eq.s32.totalorder %s17, 0
    %p127 = por %p125, %p126
    %p128 = scmp.ne.s32.totalorder %s116, %s117
    %p129 = scmp.eq.s32.totalorder %s18, 1
    %p130 = por %p128, %p129
    %p132 = scmp.ne.s32.totalorder %s117, %s131
    %p133 = scmp.eq.s32.totalorder %s18, 0
    %p134 = por %p132, %p133
    %s136 = sadd.s32 %s135, 1
    %p139 = scmp.eq.s32.totalorder %s12, 1
    %p140 = scmp.ne.s32.totalorder %s135, %s137
    %p141 = scmp.eq.s32.totalorder %s12, 0
    %p142 = por %p140, %p141
    %p143 = scmp.ne.s32.totalorder %s135, %s137
    %p144 = scmp.eq.s32.totalorder %s17, 1
    %p145 = por %p143, %p144
    %p146 = scmp.ne.s32.totalorder %s137, %s138
    %p147 = scmp.eq.s32.totalorder %s17, 0
    %p148 = por %p146, %p147
    %p149 = scmp.ne.s32.totalorder %s137, %s138
    %p150 = scmp.eq.s32.totalorder %s18, 1
    %p151 = por %p149, %p150
    %p153 = scmp.ne.s32.totalorder %s138, %s152
    %p154 = scmp.eq.s32.totalorder %s18, 0
    %p155 = por %p153, %p154
    %s156 = ssub.s32 %s12, %s19
    %p157 = scmp.eq.s32.totalorder %s156, 0
    %s159 = sadd.s32 %s158, 1
    %s160 = scalar_select %p157, %s158, %s159
    %p163 = pneg %p157
    %p164 = scmp.eq.s32.totalorder %s12, 1
    %p165 = por %p163, %p164
    %p166 = scmp.ne.s32.totalorder %s158, %s161
    %p167 = scmp.eq.s32.totalorder %s12, 0
    %p168 = por %p166, %p167
    %p169 = scmp.ne.s32.totalorder %s158, %s161
    %p170 = scmp.eq.s32.totalorder %s17, 1
    %p171 = por %p169, %p170
    %p172 = scmp.ne.s32.totalorder %s161, %s162
    %p173 = scmp.eq.s32.totalorder %s17, 0
    %p174 = por %p172, %p173
    %p175 = scmp.ne.s32.totalorder %s161, %s162
    %p176 = scmp.eq.s32.totalorder %s18, 1
    %p177 = por %p175, %p176
    %p179 = scmp.ne.s32.totalorder %s162, %s178
    %p180 = scmp.eq.s32.totalorder %s18, 0
    %p181 = por %p179, %p180
    %p182 = scmp.le.s32.totalorder 1, %s12
    %p183 = scmp.lt.s32.totalorder %s12, 3
    %p184 = pnand %p182, %p183
    %p185 = pneg %p184
    // Predicated region
    $region9: #{tpu_custom_call.1} parent=5 // pred_check
      _
    $region10: #{tpu_custom_call.1} parent=5 // pred_check_branch
      %187 = sbr.rel (%p184) target = $region12
    $region11: #{tpu_custom_call.1} parent=5 // pred_region
      %s188 = ssub.s32 %s12, 1
      // Predicated region
      $region13: #{tpu_custom_call.1} parent=11 // pred_check
        %p189 = pneg %p85
      $region14: #{tpu_custom_call.1} parent=11 // pred_check_branch
        %191 = sbr.rel (%p189) target = $region16
      $region15: #{tpu_custom_call.1} parent=11 // pred_region
        _
      $region16: #{tpu_custom_call.1} parent=11 // pred_fallthru
        _
      // Predicated region
      $region17: #{tpu_custom_call.1} parent=11 // pred_check
        %p192 = pneg %p106
      $region18: #{tpu_custom_call.1} parent=11 // pred_check_branch
        %194 = sbr.rel (%p192) target = $region20
      $region19: #{tpu_custom_call.1} parent=11 // pred_region
        _
      $region20: #{tpu_custom_call.1} parent=11 // pred_fallthru
        _
      // Predicated region
      $region21: #{tpu_custom_call.1} parent=11 // pred_check
        %p195 = pneg %p127
      $region22: #{tpu_custom_call.1} parent=11 // pred_check_branch
        %197 = sbr.rel (%p195) target = $region24
      $region23: #{tpu_custom_call.1} parent=11 // pred_region
        _
      $region24: #{tpu_custom_call.1} parent=11 // pred_fallthru
        _
      // Predicated region
      $region25: #{tpu_custom_call.1} parent=11 // pred_check
        %p198 = pneg %p148
      $region26: #{tpu_custom_call.1} parent=11 // pred_check_branch
        %200 = sbr.rel (%p198) target = $region28
      $region27: #{tpu_custom_call.1} parent=11 // pred_region
        _
      $region28: #{tpu_custom_call.1} parent=11 // pred_fallthru
        _
    $region12: #{tpu_custom_call.1} parent=5 // pred_fallthru
      _
    %p201 = scmp.lt.s32.totalorder %s12, 2
    // Predicated region
    $region29: #{tpu_custom_call.1} parent=5 // pred_check
      %p202 = pneg %p201
    $region30: #{tpu_custom_call.1} parent=5 // pred_check_branch
      %204 = sbr.rel (%p202) target = $region32
    $region31: #{tpu_custom_call.1} parent=5 // pred_region
      // Predicated region
      $region33: #{tpu_custom_call.1} parent=31 // pred_check
        %p205 = pneg %p32
      $region34: #{tpu_custom_call.1} parent=31 // pred_check_branch
        %207 = sbr.rel (%p205) target = $region36
      $region35: #{tpu_custom_call.1} parent=31 // pred_region
        %s208 = smul.u32 8, %s12
        %p209 = scmp.lt.s32.totalorder %s208, 15
        %s210 = scalar_select %p209, %s208, 15
        %s211 = smul.addr %s210, 16
        %s212 = smul.addr %s211, 8
        %s213 = scalar_lea.vmem %s0, %s212
        %s214 = smul.u32 8, %s12
      $region36: #{tpu_custom_call.1} parent=31 // pred_fallthru
        _
      // Predicated region
      $region37: #{tpu_custom_call.1} parent=31 // pred_check
        %p215 = pneg %p58
      $region38: #{tpu_custom_call.1} parent=31 // pred_check_branch
        %217 = sbr.rel (%p215) target = $region40
      $region39: #{tpu_custom_call.1} parent=31 // pred_region
        %s218 = smul.u32 8, %s12
        %p219 = scmp.lt.s32.totalorder %s218, 15
        %s220 = scalar_select %p219, %s218, 15
        %s221 = smul.addr %s220, 16
        %s222 = smul.addr %s221, 8
        %s223 = scalar_lea.vmem %s1, %s222
        %s224 = smul.u32 8, %s12
      $region40: #{tpu_custom_call.1} parent=31 // pred_fallthru
        _
    $region32: #{tpu_custom_call.1} parent=5 // pred_fallthru
      _
    %p225 = scmp.le.s32.totalorder 1, %s12
    %p226 = scmp.lt.s32.totalorder %s12, 3
    %p227 = pnand %p225, %p226
    %p228 = pneg %p227
    // Predicated region
    $region41: #{tpu_custom_call.1} parent=5 // pred_check
      _
    $region42: #{tpu_custom_call.1} parent=5 // pred_check_branch
      %230 = sbr.rel (%p227) target = $region44
    $region43: #{tpu_custom_call.1} parent=5 // pred_region
      %s231 = ssub.s32 %s12, 1
      %s232 = smul.u32 8, %s17
      %p233 = scmp.lt.s32.totalorder %s232, 15
      %s234 = scalar_select %p233, %s232, 15
      %s235 = smul.addr %s234, 16
      %s236 = smul.addr %s235, 8
      %s237 = scalar_lea.vmem %s0, %s236
      %p238 = pneg %p38
      %p239 = pneg %p35
      %s240 = smul.u32 8, %s17
      %p241 = scmp.lt.s32.totalorder %s240, 15
      %s242 = scalar_select %p241, %s240, 15
      %s243 = smul.addr %s242, 16
      %s244 = smul.addr %s243, 8
      %s245 = scalar_lea.vmem %s1, %s244
      %p246 = pneg %p64
      %p247 = pneg %p61
      %p248 = pneg %p85
      %p249 = pneg %p82
      %p250 = pneg %p106
      %p251 = pneg %p103
      %p252 = pneg %p127
      %p253 = pneg %p124
      %p254 = pneg %p148
      %p255 = pneg %p145
      %p256 = pneg %p174
      %p257 = pneg %p171
      %s258 = smul.u32 8, %s17
      %p259 = scmp.lt.s32.totalorder %s258, 15
      %s260 = scalar_select %p259, %s258, 15
      %s261 = smul.addr %s260, 16
      %s262 = smul.addr %s261, 4
      %s263 = scalar_lea.vmem %s6, %s262
      %s264 = smul.u32 8, %s17
      %p265 = scmp.lt.s32.totalorder %s264, 15
      %s266 = scalar_select %p265, %s264, 15
      %s267 = smul.addr %s266, 16
      %s268 = smul.addr %s267, 8
      %s269 = scalar_lea.vmem %s0, %s268
      %s270 = smul.u32 8, %s17
      %s271 = smul.u32 8, %s17
      %p272 = scmp.lt.s32.totalorder %s271, 15
      %s273 = scalar_select %p272, %s271, 15
      %s274 = smul.addr %s273, 16
      %s275 = smul.addr %s274, 8
      %s276 = scalar_lea.vmem %s1, %s275
      %s277 = smul.u32 8, %s17
      %s278 = smul.u32 8, %s17
      %p279 = scmp.lt.s32.totalorder %s278, 15
      %s280 = scalar_select %p279, %s278, 15
      %s281 = smul.addr %s280, 16
      %s282 = smul.addr %s281, 4
      %s283 = scalar_lea.vmem %s6, %s282
      %s284 = smul.u32 8, %s17
      %v285 = vld [vmem:[%s269] sm:$0xff]
      %v286 = vld [vmem:[%s269 + $0x8] sm:$0xff]
      %v287 = vld [vmem:[%s269 + $0x10] sm:$0xff]
      %v288 = vld [vmem:[%s269 + $0x18] sm:$0xff]
      %v289 = vld [vmem:[%s269 + $0x20] sm:$0xff]
      %v290 = vld [vmem:[%s269 + $0x28] sm:$0xff]
      %v291 = vld [vmem:[%s269 + $0x30] sm:$0xff]
      %v292 = vld [vmem:[%s269 + $0x38] sm:$0xff]
      %v293 = vld [vmem:[%s269 + $0x40] sm:$0xff]
      %v294 = vld [vmem:[%s269 + $0x48] sm:$0xff]
      %v295 = vld [vmem:[%s269 + $0x50] sm:$0xff]
      %v296 = vld [vmem:[%s269 + $0x58] sm:$0xff]
      %v297 = vld [vmem:[%s269 + $0x60] sm:$0xff]
      %v298 = vld [vmem:[%s269 + $0x68] sm:$0xff]
      %v299 = vld [vmem:[%s269 + $0x70] sm:$0xff]
      %v300 = vld [vmem:[%s269 + $0x78] sm:$0xff]
      %v301 = vld [vmem:[%s269 + $0x80] sm:$0xff]
      %v302 = vld [vmem:[%s269 + $0x88] sm:$0xff]
      %v303 = vld [vmem:[%s269 + $0x90] sm:$0xff]
      %v304 = vld [vmem:[%s269 + $0x98] sm:$0xff]
      %v305 = vld [vmem:[%s269 + $0xa0] sm:$0xff]
      %v306 = vld [vmem:[%s269 + $0xa8] sm:$0xff]
      %v307 = vld [vmem:[%s269 + $0xb0] sm:$0xff]
      %v308 = vld [vmem:[%s269 + $0xb8] sm:$0xff]
      %v309 = vld [vmem:[%s269 + $0xc0] sm:$0xff]
      %v310 = vld [vmem:[%s269 + $0xc8] sm:$0xff]
      %v311 = vld [vmem:[%s269 + $0xd0] sm:$0xff]
      %v312 = vld [vmem:[%s269 + $0xd8] sm:$0xff]
      %v313 = vld [vmem:[%s269 + $0xe0] sm:$0xff]
      %v314 = vld [vmem:[%s269 + $0xe8] sm:$0xff]
      %v315 = vld [vmem:[%s269 + $0xf0] sm:$0xff]
      %v316 = vld [vmem:[%s269 + $0xf8] sm:$0xff]
      %v317 = vld [vmem:[%s269 + $0x100] sm:$0xff]
      %v318 = vld [vmem:[%s269 + $0x108] sm:$0xff]
      %v319 = vld [vmem:[%s269 + $0x110] sm:$0xff]
      %v320 = vld [vmem:[%s269 + $0x118] sm:$0xff]
      %v321 = vld [vmem:[%s269 + $0x120] sm:$0xff]
      %v322 = vld [vmem:[%s269 + $0x128] sm:$0xff]
      %v323 = vld [vmem:[%s269 + $0x130] sm:$0xff]
      %v324 = vld [vmem:[%s269 + $0x138] sm:$0xff]
      %v325 = vld [vmem:[%s269 + $0x140] sm:$0xff]
      %v326 = vld [vmem:[%s269 + $0x148] sm:$0xff]
      %v327 = vld [vmem:[%s269 + $0x150] sm:$0xff]
      %v328 = vld [vmem:[%s269 + $0x158] sm:$0xff]
      %v329 = vld [vmem:[%s269 + $0x160] sm:$0xff]
      %v330 = vld [vmem:[%s269 + $0x168] sm:$0xff]
      %v331 = vld [vmem:[%s269 + $0x170] sm:$0xff]
      %v332 = vld [vmem:[%s269 + $0x178] sm:$0xff]
      %v333 = vld [vmem:[%s269 + $0x180] sm:$0xff]
      %v334 = vld [vmem:[%s269 + $0x188] sm:$0xff]
      %v335 = vld [vmem:[%s269 + $0x190] sm:$0xff]
      %v336 = vld [vmem:[%s269 + $0x198] sm:$0xff]
      %v337 = vld [vmem:[%s269 + $0x1a0] sm:$0xff]
      %v338 = vld [vmem:[%s269 + $0x1a8] sm:$0xff]
      %v339 = vld [vmem:[%s269 + $0x1b0] sm:$0xff]
      %v340 = vld [vmem:[%s269 + $0x1b8] sm:$0xff]
      %v341 = vld [vmem:[%s269 + $0x1c0] sm:$0xff]
      %v342 = vld [vmem:[%s269 + $0x1c8] sm:$0xff]
      %v343 = vld [vmem:[%s269 + $0x1d0] sm:$0xff]
      %v344 = vld [vmem:[%s269 + $0x1d8] sm:$0xff]
      %v345 = vld [vmem:[%s269 + $0x1e0] sm:$0xff]
      %v346 = vld [vmem:[%s269 + $0x1e8] sm:$0xff]
      %v347 = vld [vmem:[%s269 + $0x1f0] sm:$0xff]
      %v348 = vld [vmem:[%s269 + $0x1f8] sm:$0xff]
      %v349 = vld [vmem:[%s269 + $0x200] sm:$0xff]
      %v350 = vld [vmem:[%s269 + $0x208] sm:$0xff]
      %v351 = vld [vmem:[%s269 + $0x210] sm:$0xff]
      %v352 = vld [vmem:[%s269 + $0x218] sm:$0xff]
      %v353 = vld [vmem:[%s269 + $0x220] sm:$0xff]
      %v354 = vld [vmem:[%s269 + $0x228] sm:$0xff]
      %v355 = vld [vmem:[%s269 + $0x230] sm:$0xff]
      %v356 = vld [vmem:[%s269 + $0x238] sm:$0xff]
      %v357 = vld [vmem:[%s269 + $0x240] sm:$0xff]
      %v358 = vld [vmem:[%s269 + $0x248] sm:$0xff]
      %v359 = vld [vmem:[%s269 + $0x250] sm:$0xff]
      %v360 = vld [vmem:[%s269 + $0x258] sm:$0xff]
      %v361 = vld [vmem:[%s269 + $0x260] sm:$0xff]
      %v362 = vld [vmem:[%s269 + $0x268] sm:$0xff]
      %v363 = vld [vmem:[%s269 + $0x270] sm:$0xff]
      %v364 = vld [vmem:[%s269 + $0x278] sm:$0xff]
      %v365 = vld [vmem:[%s269 + $0x280] sm:$0xff]
      %v366 = vld [vmem:[%s269 + $0x288] sm:$0xff]
      %v367 = vld [vmem:[%s269 + $0x290] sm:$0xff]
      %v368 = vld [vmem:[%s269 + $0x298] sm:$0xff]
      %v369 = vld [vmem:[%s269 + $0x2a0] sm:$0xff]
      %v370 = vld [vmem:[%s269 + $0x2a8] sm:$0xff]
      %v371 = vld [vmem:[%s269 + $0x2b0] sm:$0xff]
      %v372 = vld [vmem:[%s269 + $0x2b8] sm:$0xff]
      %v373 = vld [vmem:[%s269 + $0x2c0] sm:$0xff]
      %v374 = vld [vmem:[%s269 + $0x2c8] sm:$0xff]
      %v375 = vld [vmem:[%s269 + $0x2d0] sm:$0xff]
      %v376 = vld [vmem:[%s269 + $0x2d8] sm:$0xff]
      %v377 = vld [vmem:[%s269 + $0x2e0] sm:$0xff]
      %v378 = vld [vmem:[%s269 + $0x2e8] sm:$0xff]
      %v379 = vld [vmem:[%s269 + $0x2f0] sm:$0xff]
      %v380 = vld [vmem:[%s269 + $0x2f8] sm:$0xff]
      %v381 = vld [vmem:[%s269 + $0x300] sm:$0xff]
      %v382 = vld [vmem:[%s269 + $0x308] sm:$0xff]
      %v383 = vld [vmem:[%s269 + $0x310] sm:$0xff]
      %v384 = vld [vmem:[%s269 + $0x318] sm:$0xff]
      %v385 = vld [vmem:[%s269 + $0x320] sm:$0xff]
      %v386 = vld [vmem:[%s269 + $0x328] sm:$0xff]
      %v387 = vld [vmem:[%s269 + $0x330] sm:$0xff]
      %v388 = vld [vmem:[%s269 + $0x338] sm:$0xff]
      %v389 = vld [vmem:[%s269 + $0x340] sm:$0xff]
      %v390 = vld [vmem:[%s269 + $0x348] sm:$0xff]
      %v391 = vld [vmem:[%s269 + $0x350] sm:$0xff]
      %v392 = vld [vmem:[%s269 + $0x358] sm:$0xff]
      %v393 = vld [vmem:[%s269 + $0x360] sm:$0xff]
      %v394 = vld [vmem:[%s269 + $0x368] sm:$0xff]
      %v395 = vld [vmem:[%s269 + $0x370] sm:$0xff]
      %v396 = vld [vmem:[%s269 + $0x378] sm:$0xff]
      %v397 = vld [vmem:[%s269 + $0x380] sm:$0xff]
      %v398 = vld [vmem:[%s269 + $0x388] sm:$0xff]
      %v399 = vld [vmem:[%s269 + $0x390] sm:$0xff]
      %v400 = vld [vmem:[%s269 + $0x398] sm:$0xff]
      %v401 = vld [vmem:[%s269 + $0x3a0] sm:$0xff]
      %v402 = vld [vmem:[%s269 + $0x3a8] sm:$0xff]
      %v403 = vld [vmem:[%s269 + $0x3b0] sm:$0xff]
      %v404 = vld [vmem:[%s269 + $0x3b8] sm:$0xff]
      %v405 = vld [vmem:[%s269 + $0x3c0] sm:$0xff]
      %v406 = vld [vmem:[%s269 + $0x3c8] sm:$0xff]
      %v407 = vld [vmem:[%s269 + $0x3d0] sm:$0xff]
      %v408 = vld [vmem:[%s269 + $0x3d8] sm:$0xff]
      %v409 = vld [vmem:[%s269 + $0x3e0] sm:$0xff]
      %v410 = vld [vmem:[%s269 + $0x3e8] sm:$0xff]
      %v411 = vld [vmem:[%s269 + $0x3f0] sm:$0xff]
      %v412 = vld [vmem:[%s269 + $0x3f8] sm:$0xff]
      %413 = vxpose.xlu0.b32.start [1/16] %v285, 128
      %414 = vxpose.xlu0.b32.cont [2/16] %v286, 128
      %415 = vxpose.xlu0.b32.cont [3/16] %v287, 128
      %416 = vxpose.xlu0.b32.cont [4/16] %v288, 128
      %417 = vxpose.xlu0.b32.cont [5/16] %v289, 128
      %418 = vxpose.xlu0.b32.cont [6/16] %v290, 128
      %419 = vxpose.xlu0.b32.cont [7/16] %v291, 128
      %420 = vxpose.xlu0.b32.cont [8/16] %v292, 128
      %421 = vxpose.xlu0.b32.cont [9/16] %v293, 128
      %422 = vxpose.xlu0.b32.cont [10/16] %v294, 128
      %423 = vxpose.xlu0.b32.cont [11/16] %v295, 128
      %424 = vxpose.xlu0.b32.cont [12/16] %v296, 128
      %425 = vxpose.xlu0.b32.cont [13/16] %v297, 128
      %426 = vxpose.xlu0.b32.cont [14/16] %v298, 128
      %427 = vxpose.xlu0.b32.cont [15/16] %v299, 128
      %428 = vxpose.xlu0.b32.end [16/16] %v300, 128
      %v429 = vpop.trf.xlu0
      %v430 = vpop.trf.xlu0
      %v431 = vpop.trf.xlu0
      %v432 = vpop.trf.xlu0
      %v433 = vpop.trf.xlu0
      %v434 = vpop.trf.xlu0
      %v435 = vpop.trf.xlu0
      %v436 = vpop.trf.xlu0
      %v437 = vpop.trf.xlu0
      %v438 = vpop.trf.xlu0
      %v439 = vpop.trf.xlu0
      %v440 = vpop.trf.xlu0
      %v441 = vpop.trf.xlu0
      %v442 = vpop.trf.xlu0
      %v443 = vpop.trf.xlu0
      %v444 = vpop.trf.xlu0
      %445 = vxpose.xlu0.b32.start [1/16] %v301, 128
      %446 = vxpose.xlu0.b32.cont [2/16] %v302, 128
      %447 = vxpose.xlu0.b32.cont [3/16] %v303, 128
      %448 = vxpose.xlu0.b32.cont [4/16] %v304, 128
      %449 = vxpose.xlu0.b32.cont [5/16] %v305, 128
      %450 = vxpose.xlu0.b32.cont [6/16] %v306, 128
      %451 = vxpose.xlu0.b32.cont [7/16] %v307, 128
      %452 = vxpose.xlu0.b32.cont [8/16] %v308, 128
      %453 = vxpose.xlu0.b32.cont [9/16] %v309, 128
      %454 = vxpose.xlu0.b32.cont [10/16] %v310, 128
      %455 = vxpose.xlu0.b32.cont [11/16] %v311, 128
      %456 = vxpose.xlu0.b32.cont [12/16] %v312, 128
      %457 = vxpose.xlu0.b32.cont [13/16] %v313, 128
      %458 = vxpose.xlu0.b32.cont [14/16] %v314, 128
      %459 = vxpose.xlu0.b32.cont [15/16] %v315, 128
      %460 = vxpose.xlu0.b32.end [16/16] %v316, 128
      %v461 = vpop.trf.xlu0
      %v462 = vpop.trf.xlu0
      %v463 = vpop.trf.xlu0
      %v464 = vpop.trf.xlu0
      %v465 = vpop.trf.xlu0
      %v466 = vpop.trf.xlu0
      %v467 = vpop.trf.xlu0
      %v468 = vpop.trf.xlu0
      %v469 = vpop.trf.xlu0
      %v470 = vpop.trf.xlu0
      %v471 = vpop.trf.xlu0
      %v472 = vpop.trf.xlu0
      %v473 = vpop.trf.xlu0
      %v474 = vpop.trf.xlu0
      %v475 = vpop.trf.xlu0
      %v476 = vpop.trf.xlu0
      %477 = vxpose.xlu0.b32.start [1/16] %v317, 128
      %478 = vxpose.xlu0.b32.cont [2/16] %v318, 128
      %479 = vxpose.xlu0.b32.cont [3/16] %v319, 128
      %480 = vxpose.xlu0.b32.cont [4/16] %v320, 128
      %481 = vxpose.xlu0.b32.cont [5/16] %v321, 128
      %482 = vxpose.xlu0.b32.cont [6/16] %v322, 128
      %483 = vxpose.xlu0.b32.cont [7/16] %v323, 128
      %484 = vxpose.xlu0.b32.cont [8/16] %v324, 128
      %485 = vxpose.xlu0.b32.cont [9/16] %v325, 128
      %486 = vxpose.xlu0.b32.cont [10/16] %v326, 128
      %487 = vxpose.xlu0.b32.cont [11/16] %v327, 128
      %488 = vxpose.xlu0.b32.cont [12/16] %v328, 128
      %489 = vxpose.xlu0.b32.cont [13/16] %v329, 128
      %490 = vxpose.xlu0.b32.cont [14/16] %v330, 128
      %491 = vxpose.xlu0.b32.cont [15/16] %v331, 128
      %492 = vxpose.xlu0.b32.end [16/16] %v332, 128
      %v493 = vpop.trf.xlu0
      %v494 = vpop.trf.xlu0
      %v495 = vpop.trf.xlu0
      %v496 = vpop.trf.xlu0
      %v497 = vpop.trf.xlu0
      %v498 = vpop.trf.xlu0
      %v499 = vpop.trf.xlu0
      %v500 = vpop.trf.xlu0
      %v501 = vpop.trf.xlu0
      %v502 = vpop.trf.xlu0
      %v503 = vpop.trf.xlu0
      %v504 = vpop.trf.xlu0
      %v505 = vpop.trf.xlu0
      %v506 = vpop.trf.xlu0
      %v507 = vpop.trf.xlu0
      %v508 = vpop.trf.xlu0
      %509 = vxpose.xlu0.b32.start [1/16] %v333, 128
      %510 = vxpose.xlu0.b32.cont [2/16] %v334, 128
      %511 = vxpose.xlu0.b32.cont [3/16] %v335, 128
      %512 = vxpose.xlu0.b32.cont [4/16] %v336, 128
      %513 = vxpose.xlu0.b32.cont [5/16] %v337, 128
      %514 = vxpose.xlu0.b32.cont [6/16] %v338, 128
      %515 = vxpose.xlu0.b32.cont [7/16] %v339, 128
      %516 = vxpose.xlu0.b32.cont [8/16] %v340, 128
      %517 = vxpose.xlu0.b32.cont [9/16] %v341, 128
      %518 = vxpose.xlu0.b32.cont [10/16] %v342, 128
      %519 = vxpose.xlu0.b32.cont [11/16] %v343, 128
      %520 = vxpose.xlu0.b32.cont [12/16] %v344, 128
      %521 = vxpose.xlu0.b32.cont [13/16] %v345, 128
      %522 = vxpose.xlu0.b32.cont [14/16] %v346, 128
      %523 = vxpose.xlu0.b32.cont [15/16] %v347, 128
      %524 = vxpose.xlu0.b32.end [16/16] %v348, 128
      %v525 = vpop.trf.xlu0
      %v526 = vpop.trf.xlu0
      %v527 = vpop.trf.xlu0
      %v528 = vpop.trf.xlu0
      %v529 = vpop.trf.xlu0
      %v530 = vpop.trf.xlu0
      %v531 = vpop.trf.xlu0
      %v532 = vpop.trf.xlu0
      %v533 = vpop.trf.xlu0
      %v534 = vpop.trf.xlu0
      %v535 = vpop.trf.xlu0
      %v536 = vpop.trf.xlu0
      %v537 = vpop.trf.xlu0
      %v538 = vpop.trf.xlu0
      %v539 = vpop.trf.xlu0
      %v540 = vpop.trf.xlu0
      %541 = vxpose.xlu0.b32.start [1/16] %v349, 128
      %542 = vxpose.xlu0.b32.cont [2/16] %v350, 128
      %543 = vxpose.xlu0.b32.cont [3/16] %v351, 128
      %544 = vxpose.xlu0.b32.cont [4/16] %v352, 128
      %545 = vxpose.xlu0.b32.cont [5/16] %v353, 128
      %546 = vxpose.xlu0.b32.cont [6/16] %v354, 128
      %547 = vxpose.xlu0.b32.cont [7/16] %v355, 128
      %548 = vxpose.xlu0.b32.cont [8/16] %v356, 128
      %549 = vxpose.xlu0.b32.cont [9/16] %v357, 128
      %550 = vxpose.xlu0.b32.cont [10/16] %v358, 128
      %551 = vxpose.xlu0.b32.cont [11/16] %v359, 128
      %552 = vxpose.xlu0.b32.cont [12/16] %v360, 128
      %553 = vxpose.xlu0.b32.cont [13/16] %v361, 128
      %554 = vxpose.xlu0.b32.cont [14/16] %v362, 128
      %555 = vxpose.xlu0.b32.cont [15/16] %v363, 128
      %556 = vxpose.xlu0.b32.end [16/16] %v364, 128
      %v557 = vpop.trf.xlu0
      %v558 = vpop.trf.xlu0
      %v559 = vpop.trf.xlu0
      %v560 = vpop.trf.xlu0
      %v561 = vpop.trf.xlu0
      %v562 = vpop.trf.xlu0
      %v563 = vpop.trf.xlu0
      %v564 = vpop.trf.xlu0
      %v565 = vpop.trf.xlu0
      %v566 = vpop.trf.xlu0
      %v567 = vpop.trf.xlu0
      %v568 = vpop.trf.xlu0
      %v569 = vpop.trf.xlu0
      %v570 = vpop.trf.xlu0
      %v571 = vpop.trf.xlu0
      %v572 = vpop.trf.xlu0
      %573 = vxpose.xlu0.b32.start [1/16] %v365, 128
      %574 = vxpose.xlu0.b32.cont [2/16] %v366, 128
      %575 = vxpose.xlu0.b32.cont [3/16] %v367, 128
      %576 = vxpose.xlu0.b32.cont [4/16] %v368, 128
      %577 = vxpose.xlu0.b32.cont [5/16] %v369, 128
      %578 = vxpose.xlu0.b32.cont [6/16] %v370, 128
      %579 = vxpose.xlu0.b32.cont [7/16] %v371, 128
      %580 = vxpose.xlu0.b32.cont [8/16] %v372, 128
      %581 = vxpose.xlu0.b32.cont [9/16] %v373, 128
      %582 = vxpose.xlu0.b32.cont [10/16] %v374, 128
      %583 = vxpose.xlu0.b32.cont [11/16] %v375, 128
      %584 = vxpose.xlu0.b32.cont [12/16] %v376, 128
      %585 = vxpose.xlu0.b32.cont [13/16] %v377, 128
      %586 = vxpose.xlu0.b32.cont [14/16] %v378, 128
      %587 = vxpose.xlu0.b32.cont [15/16] %v379, 128
      %588 = vxpose.xlu0.b32.end [16/16] %v380, 128
      %v589 = vpop.trf.xlu0
      %v590 = vpop.trf.xlu0
      %v591 = vpop.trf.xlu0
      %v592 = vpop.trf.xlu0
      %v593 = vpop.trf.xlu0
      %v594 = vpop.trf.xlu0
      %v595 = vpop.trf.xlu0
      %v596 = vpop.trf.xlu0
      %v597 = vpop.trf.xlu0
      %v598 = vpop.trf.xlu0
      %v599 = vpop.trf.xlu0
      %v600 = vpop.trf.xlu0
      %v601 = vpop.trf.xlu0
      %v602 = vpop.trf.xlu0
      %v603 = vpop.trf.xlu0
      %v604 = vpop.trf.xlu0
      %605 = vxpose.xlu0.b32.start [1/16] %v381, 128
      %606 = vxpose.xlu0.b32.cont [2/16] %v382, 128
      %607 = vxpose.xlu0.b32.cont [3/16] %v383, 128
      %608 = vxpose.xlu0.b32.cont [4/16] %v384, 128
      %609 = vxpose.xlu0.b32.cont [5/16] %v385, 128
      %610 = vxpose.xlu0.b32.cont [6/16] %v386, 128
      %611 = vxpose.xlu0.b32.cont [7/16] %v387, 128
      %612 = vxpose.xlu0.b32.cont [8/16] %v388, 128
      %613 = vxpose.xlu0.b32.cont [9/16] %v389, 128
      %614 = vxpose.xlu0.b32.cont [10/16] %v390, 128
      %615 = vxpose.xlu0.b32.cont [11/16] %v391, 128
      %616 = vxpose.xlu0.b32.cont [12/16] %v392, 128
      %617 = vxpose.xlu0.b32.cont [13/16] %v393, 128
      %618 = vxpose.xlu0.b32.cont [14/16] %v394, 128
      %619 = vxpose.xlu0.b32.cont [15/16] %v395, 128
      %620 = vxpose.xlu0.b32.end [16/16] %v396, 128
      %v621 = vpop.trf.xlu0
      %v622 = vpop.trf.xlu0
      %v623 = vpop.trf.xlu0
      %v624 = vpop.trf.xlu0
      %v625 = vpop.trf.xlu0
      %v626 = vpop.trf.xlu0
      %v627 = vpop.trf.xlu0
      %v628 = vpop.trf.xlu0
      %v629 = vpop.trf.xlu0
      %v630 = vpop.trf.xlu0
      %v631 = vpop.trf.xlu0
      %v632 = vpop.trf.xlu0
      %v633 = vpop.trf.xlu0
      %v634 = vpop.trf.xlu0
      %v635 = vpop.trf.xlu0
      %v636 = vpop.trf.xlu0
      %637 = vxpose.xlu0.b32.start [1/16] %v397, 128
      %638 = vxpose.xlu0.b32.cont [2/16] %v398, 128
      %639 = vxpose.xlu0.b32.cont [3/16] %v399, 128
      %640 = vxpose.xlu0.b32.cont [4/16] %v400, 128
      %641 = vxpose.xlu0.b32.cont [5/16] %v401, 128
      %642 = vxpose.xlu0.b32.cont [6/16] %v402, 128
      %643 = vxpose.xlu0.b32.cont [7/16] %v403, 128
      %644 = vxpose.xlu0.b32.cont [8/16] %v404, 128
      %645 = vxpose.xlu0.b32.cont [9/16] %v405, 128
      %646 = vxpose.xlu0.b32.cont [10/16] %v406, 128
      %647 = vxpose.xlu0.b32.cont [11/16] %v407, 128
      %648 = vxpose.xlu0.b32.cont [12/16] %v408, 128
      %649 = vxpose.xlu0.b32.cont [13/16] %v409, 128
      %650 = vxpose.xlu0.b32.cont [14/16] %v410, 128
      %651 = vxpose.xlu0.b32.cont [15/16] %v411, 128
      %652 = vxpose.xlu0.b32.end [16/16] %v412, 128
      %v653 = vpop.trf.xlu0
      %v654 = vpop.trf.xlu0
      %v655 = vpop.trf.xlu0
      %v656 = vpop.trf.xlu0
      %v657 = vpop.trf.xlu0
      %v658 = vpop.trf.xlu0
      %v659 = vpop.trf.xlu0
      %v660 = vpop.trf.xlu0
      %v661 = vpop.trf.xlu0
      %v662 = vpop.trf.xlu0
      %v663 = vpop.trf.xlu0
      %v664 = vpop.trf.xlu0
      %v665 = vpop.trf.xlu0
      %v666 = vpop.trf.xlu0
      %v667 = vpop.trf.xlu0
      %v668 = vpop.trf.xlu0
      %669 = vadd.xlane.f32.xlu0 %v285
      %v670 = vpop.xlane.xlu0 %669
      %671 = vadd.xlane.f32.xlu0 %v286
      %v672 = vpop.xlane.xlu0 %671
      %673 = vadd.xlane.f32.xlu0 %v287
      %v674 = vpop.xlane.xlu0 %673
      %675 = vadd.xlane.f32.xlu0 %v288
      %v676 = vpop.xlane.xlu0 %675
      %677 = vadd.xlane.f32.xlu0 %v289
      %v678 = vpop.xlane.xlu0 %677
      %679 = vadd.xlane.f32.xlu0 %v290
      %v680 = vpop.xlane.xlu0 %679
      %681 = vadd.xlane.f32.xlu0 %v291
      %v682 = vpop.xlane.xlu0 %681
      %683 = vadd.xlane.f32.xlu0 %v292
      %v684 = vpop.xlane.xlu0 %683
      %685 = vadd.xlane.f32.xlu0 %v293
      %v686 = vpop.xlane.xlu0 %685
      %687 = vadd.xlane.f32.xlu0 %v294
      %v688 = vpop.xlane.xlu0 %687
      %689 = vadd.xlane.f32.xlu0 %v295
      %v690 = vpop.xlane.xlu0 %689
      %691 = vadd.xlane.f32.xlu0 %v296
      %v692 = vpop.xlane.xlu0 %691
      %693 = vadd.xlane.f32.xlu0 %v297
      %v694 = vpop.xlane.xlu0 %693
      %695 = vadd.xlane.f32.xlu0 %v298
      %v696 = vpop.xlane.xlu0 %695
      %697 = vadd.xlane.f32.xlu0 %v299
      %v698 = vpop.xlane.xlu0 %697
      %699 = vadd.xlane.f32.xlu0 %v300
      %v700 = vpop.xlane.xlu0 %699
      %701 = vadd.xlane.f32.xlu0 %v301
      %v702 = vpop.xlane.xlu0 %701
      %703 = vadd.xlane.f32.xlu0 %v302
      %v704 = vpop.xlane.xlu0 %703
      %705 = vadd.xlane.f32.xlu0 %v303
      %v706 = vpop.xlane.xlu0 %705
      %707 = vadd.xlane.f32.xlu0 %v304
      %v708 = vpop.xlane.xlu0 %707
      %709 = vadd.xlane.f32.xlu0 %v305
      %v710 = vpop.xlane.xlu0 %709
      %711 = vadd.xlane.f32.xlu0 %v306
      %v712 = vpop.xlane.xlu0 %711
      %713 = vadd.xlane.f32.xlu0 %v307
      %v714 = vpop.xlane.xlu0 %713
      %715 = vadd.xlane.f32.xlu0 %v308
      %v716 = vpop.xlane.xlu0 %715
      %717 = vadd.xlane.f32.xlu0 %v309
      %v718 = vpop.xlane.xlu0 %717
      %719 = vadd.xlane.f32.xlu0 %v310
      %v720 = vpop.xlane.xlu0 %719
      %721 = vadd.xlane.f32.xlu0 %v311
      %v722 = vpop.xlane.xlu0 %721
      %723 = vadd.xlane.f32.xlu0 %v312
      %v724 = vpop.xlane.xlu0 %723
      %725 = vadd.xlane.f32.xlu0 %v313
      %v726 = vpop.xlane.xlu0 %725
      %727 = vadd.xlane.f32.xlu0 %v314
      %v728 = vpop.xlane.xlu0 %727
      %729 = vadd.xlane.f32.xlu0 %v315
      %v730 = vpop.xlane.xlu0 %729
      %731 = vadd.xlane.f32.xlu0 %v316
      %v732 = vpop.xlane.xlu0 %731
      %733 = vadd.xlane.f32.xlu0 %v317
      %v734 = vpop.xlane.xlu0 %733
      %735 = vadd.xlane.f32.xlu0 %v318
      %v736 = vpop.xlane.xlu0 %735
      %737 = vadd.xlane.f32.xlu0 %v319
      %v738 = vpop.xlane.xlu0 %737
      %739 = vadd.xlane.f32.xlu0 %v320
      %v740 = vpop.xlane.xlu0 %739
      %741 = vadd.xlane.f32.xlu0 %v321
      %v742 = vpop.xlane.xlu0 %741
      %743 = vadd.xlane.f32.xlu0 %v322
      %v744 = vpop.xlane.xlu0 %743
      %745 = vadd.xlane.f32.xlu0 %v323
      %v746 = vpop.xlane.xlu0 %745
      %747 = vadd.xlane.f32.xlu0 %v324
      %v748 = vpop.xlane.xlu0 %747
      %749 = vadd.xlane.f32.xlu0 %v325
      %v750 = vpop.xlane.xlu0 %749
      %751 = vadd.xlane.f32.xlu0 %v326
      %v752 = vpop.xlane.xlu0 %751
      %753 = vadd.xlane.f32.xlu0 %v327
      %v754 = vpop.xlane.xlu0 %753
      %755 = vadd.xlane.f32.xlu0 %v328
      %v756 = vpop.xlane.xlu0 %755
      %757 = vadd.xlane.f32.xlu0 %v329
      %v758 = vpop.xlane.xlu0 %757
      %759 = vadd.xlane.f32.xlu0 %v330
      %v760 = vpop.xlane.xlu0 %759
      %761 = vadd.xlane.f32.xlu0 %v331
      %v762 = vpop.xlane.xlu0 %761
      %763 = vadd.xlane.f32.xlu0 %v332
      %v764 = vpop.xlane.xlu0 %763
      %765 = vadd.xlane.f32.xlu0 %v333
      %v766 = vpop.xlane.xlu0 %765
      %767 = vadd.xlane.f32.xlu0 %v334
      %v768 = vpop.xlane.xlu0 %767
      %769 = vadd.xlane.f32.xlu0 %v335
      %v770 = vpop.xlane.xlu0 %769
      %771 = vadd.xlane.f32.xlu0 %v336
      %v772 = vpop.xlane.xlu0 %771
      %773 = vadd.xlane.f32.xlu0 %v337
      %v774 = vpop.xlane.xlu0 %773
      %775 = vadd.xlane.f32.xlu0 %v338
      %v776 = vpop.xlane.xlu0 %775
      %777 = vadd.xlane.f32.xlu0 %v339
      %v778 = vpop.xlane.xlu0 %777
      %779 = vadd.xlane.f32.xlu0 %v340
      %v780 = vpop.xlane.xlu0 %779
      %781 = vadd.xlane.f32.xlu0 %v341
      %v782 = vpop.xlane.xlu0 %781
      %783 = vadd.xlane.f32.xlu0 %v342
      %v784 = vpop.xlane.xlu0 %783
      %785 = vadd.xlane.f32.xlu0 %v343
      %v786 = vpop.xlane.xlu0 %785
      %787 = vadd.xlane.f32.xlu0 %v344
      %v788 = vpop.xlane.xlu0 %787
      %789 = vadd.xlane.f32.xlu0 %v345
      %v790 = vpop.xlane.xlu0 %789
      %791 = vadd.xlane.f32.xlu0 %v346
      %v792 = vpop.xlane.xlu0 %791
      %793 = vadd.xlane.f32.xlu0 %v347
      %v794 = vpop.xlane.xlu0 %793
      %795 = vadd.xlane.f32.xlu0 %v348
      %v796 = vpop.xlane.xlu0 %795
      %797 = vadd.xlane.f32.xlu0 %v349
      %v798 = vpop.xlane.xlu0 %797
      %799 = vadd.xlane.f32.xlu0 %v350
      %v800 = vpop.xlane.xlu0 %799
      %801 = vadd.xlane.f32.xlu0 %v351
      %v802 = vpop.xlane.xlu0 %801
      %803 = vadd.xlane.f32.xlu0 %v352
      %v804 = vpop.xlane.xlu0 %803
      %805 = vadd.xlane.f32.xlu0 %v353
      %v806 = vpop.xlane.xlu0 %805
      %807 = vadd.xlane.f32.xlu0 %v354
      %v808 = vpop.xlane.xlu0 %807
      %809 = vadd.xlane.f32.xlu0 %v355
      %v810 = vpop.xlane.xlu0 %809
      %811 = vadd.xlane.f32.xlu0 %v356
      %v812 = vpop.xlane.xlu0 %811
      %813 = vadd.xlane.f32.xlu0 %v357
      %v814 = vpop.xlane.xlu0 %813
      %815 = vadd.xlane.f32.xlu0 %v358
      %v816 = vpop.xlane.xlu0 %815
      %817 = vadd.xlane.f32.xlu0 %v359
      %v818 = vpop.xlane.xlu0 %817
      %819 = vadd.xlane.f32.xlu0 %v360
      %v820 = vpop.xlane.xlu0 %819
      %821 = vadd.xlane.f32.xlu0 %v361
      %v822 = vpop.xlane.xlu0 %821
      %823 = vadd.xlane.f32.xlu0 %v362
      %v824 = vpop.xlane.xlu0 %823
      %825 = vadd.xlane.f32.xlu0 %v363
      %v826 = vpop.xlane.xlu0 %825
      %827 = vadd.xlane.f32.xlu0 %v364
      %v828 = vpop.xlane.xlu0 %827
      %829 = vadd.xlane.f32.xlu0 %v365
      %v830 = vpop.xlane.xlu0 %829
      %831 = vadd.xlane.f32.xlu0 %v366
      %v832 = vpop.xlane.xlu0 %831
      %833 = vadd.xlane.f32.xlu0 %v367
      %v834 = vpop.xlane.xlu0 %833
      %835 = vadd.xlane.f32.xlu0 %v368
      %v836 = vpop.xlane.xlu0 %835
      %837 = vadd.xlane.f32.xlu0 %v369
      %v838 = vpop.xlane.xlu0 %837
      %839 = vadd.xlane.f32.xlu0 %v370
      %v840 = vpop.xlane.xlu0 %839
      %841 = vadd.xlane.f32.xlu0 %v371
      %v842 = vpop.xlane.xlu0 %841
      %843 = vadd.xlane.f32.xlu0 %v372
      %v844 = vpop.xlane.xlu0 %843
      %845 = vadd.xlane.f32.xlu0 %v373
      %v846 = vpop.xlane.xlu0 %845
      %847 = vadd.xlane.f32.xlu0 %v374
      %v848 = vpop.xlane.xlu0 %847
      %849 = vadd.xlane.f32.xlu0 %v375
      %v850 = vpop.xlane.xlu0 %849
      %851 = vadd.xlane.f32.xlu0 %v376
      %v852 = vpop.xlane.xlu0 %851
      %853 = vadd.xlane.f32.xlu0 %v377
      %v854 = vpop.xlane.xlu0 %853
      %855 = vadd.xlane.f32.xlu0 %v378
      %v856 = vpop.xlane.xlu0 %855
      %857 = vadd.xlane.f32.xlu0 %v379
      %v858 = vpop.xlane.xlu0 %857
      %859 = vadd.xlane.f32.xlu0 %v380
      %v860 = vpop.xlane.xlu0 %859
      %861 = vadd.xlane.f32.xlu0 %v381
      %v862 = vpop.xlane.xlu0 %861
      %863 = vadd.xlane.f32.xlu0 %v382
      %v864 = vpop.xlane.xlu0 %863
      %865 = vadd.xlane.f32.xlu0 %v383
      %v866 = vpop.xlane.xlu0 %865
      %867 = vadd.xlane.f32.xlu0 %v384
      %v868 = vpop.xlane.xlu0 %867
      %869 = vadd.xlane.f32.xlu0 %v385
      %v870 = vpop.xlane.xlu0 %869
      %871 = vadd.xlane.f32.xlu0 %v386
      %v872 = vpop.xlane.xlu0 %871
      %873 = vadd.xlane.f32.xlu0 %v387
      %v874 = vpop.xlane.xlu0 %873
      %875 = vadd.xlane.f32.xlu0 %v388
      %v876 = vpop.xlane.xlu0 %875
      %877 = vadd.xlane.f32.xlu0 %v389
      %v878 = vpop.xlane.xlu0 %877
      %879 = vadd.xlane.f32.xlu0 %v390
      %v880 = vpop.xlane.xlu0 %879
      %881 = vadd.xlane.f32.xlu0 %v391
      %v882 = vpop.xlane.xlu0 %881
      %883 = vadd.xlane.f32.xlu0 %v392
      %v884 = vpop.xlane.xlu0 %883
      %885 = vadd.xlane.f32.xlu0 %v393
      %v886 = vpop.xlane.xlu0 %885
      %887 = vadd.xlane.f32.xlu0 %v394
      %v888 = vpop.xlane.xlu0 %887
      %889 = vadd.xlane.f32.xlu0 %v395
      %v890 = vpop.xlane.xlu0 %889
      %891 = vadd.xlane.f32.xlu0 %v396
      %v892 = vpop.xlane.xlu0 %891
      %893 = vadd.xlane.f32.xlu0 %v397
      %v894 = vpop.xlane.xlu0 %893
      %895 = vadd.xlane.f32.xlu0 %v398
      %v896 = vpop.xlane.xlu0 %895
      %897 = vadd.xlane.f32.xlu0 %v399
      %v898 = vpop.xlane.xlu0 %897
      %899 = vadd.xlane.f32.xlu0 %v400
      %v900 = vpop.xlane.xlu0 %899
      %901 = vadd.xlane.f32.xlu0 %v401
      %v902 = vpop.xlane.xlu0 %901
      %903 = vadd.xlane.f32.xlu0 %v402
      %v904 = vpop.xlane.xlu0 %903
      %905 = vadd.xlane.f32.xlu0 %v403
      %v906 = vpop.xlane.xlu0 %905
      %907 = vadd.xlane.f32.xlu0 %v404
      %v908 = vpop.xlane.xlu0 %907
      %909 = vadd.xlane.f32.xlu0 %v405
      %v910 = vpop.xlane.xlu0 %909
      %911 = vadd.xlane.f32.xlu0 %v406
      %v912 = vpop.xlane.xlu0 %911
      %913 = vadd.xlane.f32.xlu0 %v407
      %v914 = vpop.xlane.xlu0 %913
      %915 = vadd.xlane.f32.xlu0 %v408
      %v916 = vpop.xlane.xlu0 %915
      %917 = vadd.xlane.f32.xlu0 %v409
      %v918 = vpop.xlane.xlu0 %917
      %919 = vadd.xlane.f32.xlu0 %v410
      %v920 = vpop.xlane.xlu0 %919
      %921 = vadd.xlane.f32.xlu0 %v411
      %v922 = vpop.xlane.xlu0 %921
      %923 = vadd.xlane.f32.xlu0 %v412
      %v924 = vpop.xlane.xlu0 %923
      %925 = vadd.xlane.f32.xlu0 %v429
      %v926 = vpop.xlane.xlu0 %925
      %927 = vadd.xlane.f32.xlu0 %v430
      %v928 = vpop.xlane.xlu0 %927
      %929 = vadd.xlane.f32.xlu0 %v431
      %v930 = vpop.xlane.xlu0 %929
      %931 = vadd.xlane.f32.xlu0 %v432
      %v932 = vpop.xlane.xlu0 %931
      %933 = vadd.xlane.f32.xlu0 %v433
      %v934 = vpop.xlane.xlu0 %933
      %935 = vadd.xlane.f32.xlu0 %v434
      %v936 = vpop.xlane.xlu0 %935
      %937 = vadd.xlane.f32.xlu0 %v435
      %v938 = vpop.xlane.xlu0 %937
      %939 = vadd.xlane.f32.xlu0 %v436
      %v940 = vpop.xlane.xlu0 %939
      %941 = vadd.xlane.f32.xlu0 %v437
      %v942 = vpop.xlane.xlu0 %941
      %943 = vadd.xlane.f32.xlu0 %v438
      %v944 = vpop.xlane.xlu0 %943
      %945 = vadd.xlane.f32.xlu0 %v439
      %v946 = vpop.xlane.xlu0 %945
      %947 = vadd.xlane.f32.xlu0 %v440
      %v948 = vpop.xlane.xlu0 %947
      %949 = vadd.xlane.f32.xlu0 %v441
      %v950 = vpop.xlane.xlu0 %949
      %951 = vadd.xlane.f32.xlu0 %v442
      %v952 = vpop.xlane.xlu0 %951
      %953 = vadd.xlane.f32.xlu0 %v443
      %v954 = vpop.xlane.xlu0 %953
      %955 = vadd.xlane.f32.xlu0 %v444
      %v956 = vpop.xlane.xlu0 %955
      %957 = vadd.xlane.f32.xlu0 %v461
      %v958 = vpop.xlane.xlu0 %957
      %959 = vadd.xlane.f32.xlu0 %v462
      %v960 = vpop.xlane.xlu0 %959
      %961 = vadd.xlane.f32.xlu0 %v463
      %v962 = vpop.xlane.xlu0 %961
      %963 = vadd.xlane.f32.xlu0 %v464
      %v964 = vpop.xlane.xlu0 %963
      %965 = vadd.xlane.f32.xlu0 %v465
      %v966 = vpop.xlane.xlu0 %965
      %967 = vadd.xlane.f32.xlu0 %v466
      %v968 = vpop.xlane.xlu0 %967
      %969 = vadd.xlane.f32.xlu0 %v467
      %v970 = vpop.xlane.xlu0 %969
      %971 = vadd.xlane.f32.xlu0 %v468
      %v972 = vpop.xlane.xlu0 %971
      %973 = vadd.xlane.f32.xlu0 %v469
      %v974 = vpop.xlane.xlu0 %973
      %975 = vadd.xlane.f32.xlu0 %v470
      %v976 = vpop.xlane.xlu0 %975
      %977 = vadd.xlane.f32.xlu0 %v471
      %v978 = vpop.xlane.xlu0 %977
      %979 = vadd.xlane.f32.xlu0 %v472
      %v980 = vpop.xlane.xlu0 %979
      %981 = vadd.xlane.f32.xlu0 %v473
      %v982 = vpop.xlane.xlu0 %981
      %983 = vadd.xlane.f32.xlu0 %v474
      %v984 = vpop.xlane.xlu0 %983
      %985 = vadd.xlane.f32.xlu0 %v475
      %v986 = vpop.xlane.xlu0 %985
      %987 = vadd.xlane.f32.xlu0 %v476
      %v988 = vpop.xlane.xlu0 %987
      %989 = vadd.xlane.f32.xlu0 %v493
      %v990 = vpop.xlane.xlu0 %989
      %991 = vadd.xlane.f32.xlu0 %v494
      %v992 = vpop.xlane.xlu0 %991
      %993 = vadd.xlane.f32.xlu0 %v495
      %v994 = vpop.xlane.xlu0 %993
      %995 = vadd.xlane.f32.xlu0 %v496
      %v996 = vpop.xlane.xlu0 %995
      %997 = vadd.xlane.f32.xlu0 %v497
      %v998 = vpop.xlane.xlu0 %997
      %999 = vadd.xlane.f32.xlu0 %v498
      %v1000 = vpop.xlane.xlu0 %999
      %1001 = vadd.xlane.f32.xlu0 %v499
      %v1002 = vpop.xlane.xlu0 %1001
      %1003 = vadd.xlane.f32.xlu0 %v500
      %v1004 = vpop.xlane.xlu0 %1003
      %1005 = vadd.xlane.f32.xlu0 %v501
      %v1006 = vpop.xlane.xlu0 %1005
      %1007 = vadd.xlane.f32.xlu0 %v502
      %v1008 = vpop.xlane.xlu0 %1007
      %1009 = vadd.xlane.f32.xlu0 %v503
      %v1010 = vpop.xlane.xlu0 %1009
      %1011 = vadd.xlane.f32.xlu0 %v504
      %v1012 = vpop.xlane.xlu0 %1011
      %1013 = vadd.xlane.f32.xlu0 %v505
      %v1014 = vpop.xlane.xlu0 %1013
      %1015 = vadd.xlane.f32.xlu0 %v506
      %v1016 = vpop.xlane.xlu0 %1015
      %1017 = vadd.xlane.f32.xlu0 %v507
      %v1018 = vpop.xlane.xlu0 %1017
      %1019 = vadd.xlane.f32.xlu0 %v508
      %v1020 = vpop.xlane.xlu0 %1019
      %1021 = vadd.xlane.f32.xlu0 %v525
      %v1022 = vpop.xlane.xlu0 %1021
      %1023 = vadd.xlane.f32.xlu0 %v526
      %v1024 = vpop.xlane.xlu0 %1023
      %1025 = vadd.xlane.f32.xlu0 %v527
      %v1026 = vpop.xlane.xlu0 %1025
      %1027 = vadd.xlane.f32.xlu0 %v528
      %v1028 = vpop.xlane.xlu0 %1027
      %1029 = vadd.xlane.f32.xlu0 %v529
      %v1030 = vpop.xlane.xlu0 %1029
      %1031 = vadd.xlane.f32.xlu0 %v530
      %v1032 = vpop.xlane.xlu0 %1031
      %1033 = vadd.xlane.f32.xlu0 %v531
      %v1034 = vpop.xlane.xlu0 %1033
      %1035 = vadd.xlane.f32.xlu0 %v532
      %v1036 = vpop.xlane.xlu0 %1035
      %1037 = vadd.xlane.f32.xlu0 %v533
      %v1038 = vpop.xlane.xlu0 %1037
      %1039 = vadd.xlane.f32.xlu0 %v534
      %v1040 = vpop.xlane.xlu0 %1039
      %1041 = vadd.xlane.f32.xlu0 %v535
      %v1042 = vpop.xlane.xlu0 %1041
      %1043 = vadd.xlane.f32.xlu0 %v536
      %v1044 = vpop.xlane.xlu0 %1043
      %1045 = vadd.xlane.f32.xlu0 %v537
      %v1046 = vpop.xlane.xlu0 %1045
      %1047 = vadd.xlane.f32.xlu0 %v538
      %v1048 = vpop.xlane.xlu0 %1047
      %1049 = vadd.xlane.f32.xlu0 %v539
      %v1050 = vpop.xlane.xlu0 %1049
      %1051 = vadd.xlane.f32.xlu0 %v540
      %v1052 = vpop.xlane.xlu0 %1051
      %1053 = vadd.xlane.f32.xlu0 %v557
      %v1054 = vpop.xlane.xlu0 %1053
      %1055 = vadd.xlane.f32.xlu0 %v558
      %v1056 = vpop.xlane.xlu0 %1055
      %1057 = vadd.xlane.f32.xlu0 %v559
      %v1058 = vpop.xlane.xlu0 %1057
      %1059 = vadd.xlane.f32.xlu0 %v560
      %v1060 = vpop.xlane.xlu0 %1059
      %1061 = vadd.xlane.f32.xlu0 %v561
      %v1062 = vpop.xlane.xlu0 %1061
      %1063 = vadd.xlane.f32.xlu0 %v562
      %v1064 = vpop.xlane.xlu0 %1063
      %1065 = vadd.xlane.f32.xlu0 %v563
      %v1066 = vpop.xlane.xlu0 %1065
      %1067 = vadd.xlane.f32.xlu0 %v564
      %v1068 = vpop.xlane.xlu0 %1067
      %1069 = vadd.xlane.f32.xlu0 %v565
      %v1070 = vpop.xlane.xlu0 %1069
      %1071 = vadd.xlane.f32.xlu0 %v566
      %v1072 = vpop.xlane.xlu0 %1071
      %1073 = vadd.xlane.f32.xlu0 %v567
      %v1074 = vpop.xlane.xlu0 %1073
      %1075 = vadd.xlane.f32.xlu0 %v568
      %v1076 = vpop.xlane.xlu0 %1075
      %1077 = vadd.xlane.f32.xlu0 %v569
      %v1078 = vpop.xlane.xlu0 %1077
      %1079 = vadd.xlane.f32.xlu0 %v570
      %v1080 = vpop.xlane.xlu0 %1079
      %1081 = vadd.xlane.f32.xlu0 %v571
      %v1082 = vpop.xlane.xlu0 %1081
      %1083 = vadd.xlane.f32.xlu0 %v572
      %v1084 = vpop.xlane.xlu0 %1083
      %1085 = vadd.xlane.f32.xlu0 %v589
      %v1086 = vpop.xlane.xlu0 %1085
      %1087 = vadd.xlane.f32.xlu0 %v590
      %v1088 = vpop.xlane.xlu0 %1087
      %1089 = vadd.xlane.f32.xlu0 %v591
      %v1090 = vpop.xlane.xlu0 %1089
      %1091 = vadd.xlane.f32.xlu0 %v592
      %v1092 = vpop.xlane.xlu0 %1091
      %1093 = vadd.xlane.f32.xlu0 %v593
      %v1094 = vpop.xlane.xlu0 %1093
      %1095 = vadd.xlane.f32.xlu0 %v594
      %v1096 = vpop.xlane.xlu0 %1095
      %1097 = vadd.xlane.f32.xlu0 %v595
      %v1098 = vpop.xlane.xlu0 %1097
      %1099 = vadd.xlane.f32.xlu0 %v596
      %v1100 = vpop.xlane.xlu0 %1099
      %1101 = vadd.xlane.f32.xlu0 %v597
      %v1102 = vpop.xlane.xlu0 %1101
      %1103 = vadd.xlane.f32.xlu0 %v598
      %v1104 = vpop.xlane.xlu0 %1103
      %1105 = vadd.xlane.f32.xlu0 %v599
      %v1106 = vpop.xlane.xlu0 %1105
      %1107 = vadd.xlane.f32.xlu0 %v600
      %v1108 = vpop.xlane.xlu0 %1107
      %1109 = vadd.xlane.f32.xlu0 %v601
      %v1110 = vpop.xlane.xlu0 %1109
      %1111 = vadd.xlane.f32.xlu0 %v602
      %v1112 = vpop.xlane.xlu0 %1111
      %1113 = vadd.xlane.f32.xlu0 %v603
      %v1114 = vpop.xlane.xlu0 %1113
      %1115 = vadd.xlane.f32.xlu0 %v604
      %v1116 = vpop.xlane.xlu0 %1115
      %1117 = vadd.xlane.f32.xlu0 %v621
      %v1118 = vpop.xlane.xlu0 %1117
      %1119 = vadd.xlane.f32.xlu0 %v622
      %v1120 = vpop.xlane.xlu0 %1119
      %1121 = vadd.xlane.f32.xlu0 %v623
      %v1122 = vpop.xlane.xlu0 %1121
      %1123 = vadd.xlane.f32.xlu0 %v624
      %v1124 = vpop.xlane.xlu0 %1123
      %1125 = vadd.xlane.f32.xlu0 %v625
      %v1126 = vpop.xlane.xlu0 %1125
      %1127 = vadd.xlane.f32.xlu0 %v626
      %v1128 = vpop.xlane.xlu0 %1127
      %1129 = vadd.xlane.f32.xlu0 %v627
      %v1130 = vpop.xlane.xlu0 %1129
      %1131 = vadd.xlane.f32.xlu0 %v628
      %v1132 = vpop.xlane.xlu0 %1131
      %1133 = vadd.xlane.f32.xlu0 %v629
      %v1134 = vpop.xlane.xlu0 %1133
      %1135 = vadd.xlane.f32.xlu0 %v630
      %v1136 = vpop.xlane.xlu0 %1135
      %1137 = vadd.xlane.f32.xlu0 %v631
      %v1138 = vpop.xlane.xlu0 %1137
      %1139 = vadd.xlane.f32.xlu0 %v632
      %v1140 = vpop.xlane.xlu0 %1139
      %1141 = vadd.xlane.f32.xlu0 %v633
      %v1142 = vpop.xlane.xlu0 %1141
      %1143 = vadd.xlane.f32.xlu0 %v634
      %v1144 = vpop.xlane.xlu0 %1143
      %1145 = vadd.xlane.f32.xlu0 %v635
      %v1146 = vpop.xlane.xlu0 %1145
      %1147 = vadd.xlane.f32.xlu0 %v636
      %v1148 = vpop.xlane.xlu0 %1147
      %1149 = vadd.xlane.f32.xlu0 %v653
      %v1150 = vpop.xlane.xlu0 %1149
      %1151 = vadd.xlane.f32.xlu0 %v654
      %v1152 = vpop.xlane.xlu0 %1151
      %1153 = vadd.xlane.f32.xlu0 %v655
      %v1154 = vpop.xlane.xlu0 %1153
      %1155 = vadd.xlane.f32.xlu0 %v656
      %v1156 = vpop.xlane.xlu0 %1155
      %1157 = vadd.xlane.f32.xlu0 %v657
      %v1158 = vpop.xlane.xlu0 %1157
      %1159 = vadd.xlane.f32.xlu0 %v658
      %v1160 = vpop.xlane.xlu0 %1159
      %1161 = vadd.xlane.f32.xlu0 %v659
      %v1162 = vpop.xlane.xlu0 %1161
      %1163 = vadd.xlane.f32.xlu0 %v660
      %v1164 = vpop.xlane.xlu0 %1163
      %1165 = vadd.xlane.f32.xlu0 %v661
      %v1166 = vpop.xlane.xlu0 %1165
      %1167 = vadd.xlane.f32.xlu0 %v662
      %v1168 = vpop.xlane.xlu0 %1167
      %1169 = vadd.xlane.f32.xlu0 %v663
      %v1170 = vpop.xlane.xlu0 %1169
      %1171 = vadd.xlane.f32.xlu0 %v664
      %v1172 = vpop.xlane.xlu0 %1171
      %1173 = vadd.xlane.f32.xlu0 %v665
      %v1174 = vpop.xlane.xlu0 %1173
      %1175 = vadd.xlane.f32.xlu0 %v666
      %v1176 = vpop.xlane.xlu0 %1175
      %1177 = vadd.xlane.f32.xlu0 %v667
      %v1178 = vpop.xlane.xlu0 %1177
      %1179 = vadd.xlane.f32.xlu0 %v668
      %v1180 = vpop.xlane.xlu0 %1179
      %v1181 = vmax.f32 %v670, 1.0
      %v1182 = vmax.f32 %v672, 1.0
      %v1183 = vmax.f32 %v674, 1.0
      %v1184 = vmax.f32 %v676, 1.0
      %v1185 = vmax.f32 %v678, 1.0
      %v1186 = vmax.f32 %v680, 1.0
      %v1187 = vmax.f32 %v682, 1.0
      %v1188 = vmax.f32 %v684, 1.0
      %v1189 = vmax.f32 %v686, 1.0
      %v1190 = vmax.f32 %v688, 1.0
      %v1191 = vmax.f32 %v690, 1.0
      %v1192 = vmax.f32 %v692, 1.0
      %v1193 = vmax.f32 %v694, 1.0
      %v1194 = vmax.f32 %v696, 1.0
      %v1195 = vmax.f32 %v698, 1.0
      %v1196 = vmax.f32 %v700, 1.0
      %v1197 = vmax.f32 %v702, 1.0
      %v1198 = vmax.f32 %v704, 1.0
      %v1199 = vmax.f32 %v706, 1.0
      %v1200 = vmax.f32 %v708, 1.0
      %v1201 = vmax.f32 %v710, 1.0
      %v1202 = vmax.f32 %v712, 1.0
      %v1203 = vmax.f32 %v714, 1.0
      %v1204 = vmax.f32 %v716, 1.0
      %v1205 = vmax.f32 %v718, 1.0
      %v1206 = vmax.f32 %v720, 1.0
      %v1207 = vmax.f32 %v722, 1.0
      %v1208 = vmax.f32 %v724, 1.0
      %v1209 = vmax.f32 %v726, 1.0
      %v1210 = vmax.f32 %v728, 1.0
      %v1211 = vmax.f32 %v730, 1.0
      %v1212 = vmax.f32 %v732, 1.0
      %v1213 = vmax.f32 %v734, 1.0
      %v1214 = vmax.f32 %v736, 1.0
      %v1215 = vmax.f32 %v738, 1.0
      %v1216 = vmax.f32 %v740, 1.0
      %v1217 = vmax.f32 %v742, 1.0
      %v1218 = vmax.f32 %v744, 1.0
      %v1219 = vmax.f32 %v746, 1.0
      %v1220 = vmax.f32 %v748, 1.0
      %v1221 = vmax.f32 %v750, 1.0
      %v1222 = vmax.f32 %v752, 1.0
      %v1223 = vmax.f32 %v754, 1.0
      %v1224 = vmax.f32 %v756, 1.0
      %v1225 = vmax.f32 %v758, 1.0
      %v1226 = vmax.f32 %v760, 1.0
      %v1227 = vmax.f32 %v762, 1.0
      %v1228 = vmax.f32 %v764, 1.0
      %v1229 = vmax.f32 %v766, 1.0
      %v1230 = vmax.f32 %v768, 1.0
      %v1231 = vmax.f32 %v770, 1.0
      %v1232 = vmax.f32 %v772, 1.0
      %v1233 = vmax.f32 %v774, 1.0
      %v1234 = vmax.f32 %v776, 1.0
      %v1235 = vmax.f32 %v778, 1.0
      %v1236 = vmax.f32 %v780, 1.0
      %v1237 = vmax.f32 %v782, 1.0
      %v1238 = vmax.f32 %v784, 1.0
      %v1239 = vmax.f32 %v786, 1.0
      %v1240 = vmax.f32 %v788, 1.0
      %v1241 = vmax.f32 %v790, 1.0
      %v1242 = vmax.f32 %v792, 1.0
      %v1243 = vmax.f32 %v794, 1.0
      %v1244 = vmax.f32 %v796, 1.0
      %v1245 = vmax.f32 %v798, 1.0
      %v1246 = vmax.f32 %v800, 1.0
      %v1247 = vmax.f32 %v802, 1.0
      %v1248 = vmax.f32 %v804, 1.0
      %v1249 = vmax.f32 %v806, 1.0
      %v1250 = vmax.f32 %v808, 1.0
      %v1251 = vmax.f32 %v810, 1.0
      %v1252 = vmax.f32 %v812, 1.0
      %v1253 = vmax.f32 %v814, 1.0
      %v1254 = vmax.f32 %v816, 1.0
      %v1255 = vmax.f32 %v818, 1.0
      %v1256 = vmax.f32 %v820, 1.0
      %v1257 = vmax.f32 %v822, 1.0
      %v1258 = vmax.f32 %v824, 1.0
      %v1259 = vmax.f32 %v826, 1.0
      %v1260 = vmax.f32 %v828, 1.0
      %v1261 = vmax.f32 %v830, 1.0
      %v1262 = vmax.f32 %v832, 1.0
      %v1263 = vmax.f32 %v834, 1.0
      %v1264 = vmax.f32 %v836, 1.0
      %v1265 = vmax.f32 %v838, 1.0
      %v1266 = vmax.f32 %v840, 1.0
      %v1267 = vmax.f32 %v842, 1.0
      %v1268 = vmax.f32 %v844, 1.0
      %v1269 = vmax.f32 %v846, 1.0
      %v1270 = vmax.f32 %v848, 1.0
      %v1271 = vmax.f32 %v850, 1.0
      %v1272 = vmax.f32 %v852, 1.0
      %v1273 = vmax.f32 %v854, 1.0
      %v1274 = vmax.f32 %v856, 1.0
      %v1275 = vmax.f32 %v858, 1.0
      %v1276 = vmax.f32 %v860, 1.0
      %v1277 = vmax.f32 %v862, 1.0
      %v1278 = vmax.f32 %v864, 1.0
      %v1279 = vmax.f32 %v866, 1.0
      %v1280 = vmax.f32 %v868, 1.0
      %v1281 = vmax.f32 %v870, 1.0
      %v1282 = vmax.f32 %v872, 1.0
      %v1283 = vmax.f32 %v874, 1.0
      %v1284 = vmax.f32 %v876, 1.0
      %v1285 = vmax.f32 %v878, 1.0
      %v1286 = vmax.f32 %v880, 1.0
      %v1287 = vmax.f32 %v882, 1.0
      %v1288 = vmax.f32 %v884, 1.0
      %v1289 = vmax.f32 %v886, 1.0
      %v1290 = vmax.f32 %v888, 1.0
      %v1291 = vmax.f32 %v890, 1.0
      %v1292 = vmax.f32 %v892, 1.0
      %v1293 = vmax.f32 %v894, 1.0
      %v1294 = vmax.f32 %v896, 1.0
      %v1295 = vmax.f32 %v898, 1.0
      %v1296 = vmax.f32 %v900, 1.0
      %v1297 = vmax.f32 %v902, 1.0
      %v1298 = vmax.f32 %v904, 1.0
      %v1299 = vmax.f32 %v906, 1.0
      %v1300 = vmax.f32 %v908, 1.0
      %v1301 = vmax.f32 %v910, 1.0
      %v1302 = vmax.f32 %v912, 1.0
      %v1303 = vmax.f32 %v914, 1.0
      %v1304 = vmax.f32 %v916, 1.0
      %v1305 = vmax.f32 %v918, 1.0
      %v1306 = vmax.f32 %v920, 1.0
      %v1307 = vmax.f32 %v922, 1.0
      %v1308 = vmax.f32 %v924, 1.0
      %v1309 = vrsqrt.pop %v1181
      %v1310 = vrsqrt.pop %v1182
      %v1311 = vrsqrt.pop %v1183
      %v1312 = vrsqrt.pop %v1184
      %v1313 = vrsqrt.pop %v1185
      %v1314 = vrsqrt.pop %v1186
      %v1315 = vrsqrt.pop %v1187
      %v1316 = vrsqrt.pop %v1188
      %v1317 = vrsqrt.pop %v1189
      %v1318 = vrsqrt.pop %v1190
      %v1319 = vrsqrt.pop %v1191
      %v1320 = vrsqrt.pop %v1192
      %v1321 = vrsqrt.pop %v1193
      %v1322 = vrsqrt.pop %v1194
      %v1323 = vrsqrt.pop %v1195
      %v1324 = vrsqrt.pop %v1196
      %v1325 = vrsqrt.pop %v1197
      %v1326 = vrsqrt.pop %v1198
      %v1327 = vrsqrt.pop %v1199
      %v1328 = vrsqrt.pop %v1200
      %v1329 = vrsqrt.pop %v1201
      %v1330 = vrsqrt.pop %v1202
      %v1331 = vrsqrt.pop %v1203
      %v1332 = vrsqrt.pop %v1204
      %v1333 = vrsqrt.pop %v1205
      %v1334 = vrsqrt.pop %v1206
      %v1335 = vrsqrt.pop %v1207
      %v1336 = vrsqrt.pop %v1208
      %v1337 = vrsqrt.pop %v1209
      %v1338 = vrsqrt.pop %v1210
      %v1339 = vrsqrt.pop %v1211
      %v1340 = vrsqrt.pop %v1212
      %v1341 = vrsqrt.pop %v1213
      %v1342 = vrsqrt.pop %v1214
      %v1343 = vrsqrt.pop %v1215
      %v1344 = vrsqrt.pop %v1216
      %v1345 = vrsqrt.pop %v1217
      %v1346 = vrsqrt.pop %v1218
      %v1347 = vrsqrt.pop %v1219
      %v1348 = vrsqrt.pop %v1220
      %v1349 = vrsqrt.pop %v1221
      %v1350 = vrsqrt.pop %v1222
      %v1351 = vrsqrt.pop %v1223
      %v1352 = vrsqrt.pop %v1224
      %v1353 = vrsqrt.pop %v1225
      %v1354 = vrsqrt.pop %v1226
      %v1355 = vrsqrt.pop %v1227
      %v1356 = vrsqrt.pop %v1228
      %v1357 = vrsqrt.pop %v1229
      %v1358 = vrsqrt.pop %v1230
      %v1359 = vrsqrt.pop %v1231
      %v1360 = vrsqrt.pop %v1232
      %v1361 = vrsqrt.pop %v1233
      %v1362 = vrsqrt.pop %v1234
      %v1363 = vrsqrt.pop %v1235
      %v1364 = vrsqrt.pop %v1236
      %v1365 = vrsqrt.pop %v1237
      %v1366 = vrsqrt.pop %v1238
      %v1367 = vrsqrt.pop %v1239
      %v1368 = vrsqrt.pop %v1240
      %v1369 = vrsqrt.pop %v1241
      %v1370 = vrsqrt.pop %v1242
      %v1371 = vrsqrt.pop %v1243
      %v1372 = vrsqrt.pop %v1244
      %v1373 = vrsqrt.pop %v1245
      %v1374 = vrsqrt.pop %v1246
      %v1375 = vrsqrt.pop %v1247
      %v1376 = vrsqrt.pop %v1248
      %v1377 = vrsqrt.pop %v1249
      %v1378 = vrsqrt.pop %v1250
      %v1379 = vrsqrt.pop %v1251
      %v1380 = vrsqrt.pop %v1252
      %v1381 = vrsqrt.pop %v1253
      %v1382 = vrsqrt.pop %v1254
      %v1383 = vrsqrt.pop %v1255
      %v1384 = vrsqrt.pop %v1256
      %v1385 = vrsqrt.pop %v1257
      %v1386 = vrsqrt.pop %v1258
      %v1387 = vrsqrt.pop %v1259
      %v1388 = vrsqrt.pop %v1260
      %v1389 = vrsqrt.pop %v1261
      %v1390 = vrsqrt.pop %v1262
      %v1391 = vrsqrt.pop %v1263
      %v1392 = vrsqrt.pop %v1264
      %v1393 = vrsqrt.pop %v1265
      %v1394 = vrsqrt.pop %v1266
      %v1395 = vrsqrt.pop %v1267
      %v1396 = vrsqrt.pop %v1268
      %v1397 = vrsqrt.pop %v1269
      %v1398 = vrsqrt.pop %v1270
      %v1399 = vrsqrt.pop %v1271
      %v1400 = vrsqrt.pop %v1272
      %v1401 = vrsqrt.pop %v1273
      %v1402 = vrsqrt.pop %v1274
      %v1403 = vrsqrt.pop %v1275
      %v1404 = vrsqrt.pop %v1276
      %v1405 = vrsqrt.pop %v1277
      %v1406 = vrsqrt.pop %v1278
      %v1407 = vrsqrt.pop %v1279
      %v1408 = vrsqrt.pop %v1280
      %v1409 = vrsqrt.pop %v1281
      %v1410 = vrsqrt.pop %v1282
      %v1411 = vrsqrt.pop %v1283
      %v1412 = vrsqrt.pop %v1284
      %v1413 = vrsqrt.pop %v1285
      %v1414 = vrsqrt.pop %v1286
      %v1415 = vrsqrt.pop %v1287
      %v1416 = vrsqrt.pop %v1288
      %v1417 = vrsqrt.pop %v1289
      %v1418 = vrsqrt.pop %v1290
      %v1419 = vrsqrt.pop %v1291
      %v1420 = vrsqrt.pop %v1292
      %v1421 = vrsqrt.pop %v1293
      %v1422 = vrsqrt.pop %v1294
      %v1423 = vrsqrt.pop %v1295
      %v1424 = vrsqrt.pop %v1296
      %v1425 = vrsqrt.pop %v1297
      %v1426 = vrsqrt.pop %v1298
      %v1427 = vrsqrt.pop %v1299
      %v1428 = vrsqrt.pop %v1300
      %v1429 = vrsqrt.pop %v1301
      %v1430 = vrsqrt.pop %v1302
      %v1431 = vrsqrt.pop %v1303
      %v1432 = vrsqrt.pop %v1304
      %v1433 = vrsqrt.pop %v1305
      %v1434 = vrsqrt.pop %v1306
      %v1435 = vrsqrt.pop %v1307
      %v1436 = vrsqrt.pop %v1308
      %v1437 = vmax.f32 %v926, 1.0
      %v1438 = vmax.f32 %v928, 1.0
      %v1439 = vmax.f32 %v930, 1.0
      %v1440 = vmax.f32 %v932, 1.0
      %v1441 = vmax.f32 %v934, 1.0
      %v1442 = vmax.f32 %v936, 1.0
      %v1443 = vmax.f32 %v938, 1.0
      %v1444 = vmax.f32 %v940, 1.0
      %v1445 = vmax.f32 %v942, 1.0
      %v1446 = vmax.f32 %v944, 1.0
      %v1447 = vmax.f32 %v946, 1.0
      %v1448 = vmax.f32 %v948, 1.0
      %v1449 = vmax.f32 %v950, 1.0
      %v1450 = vmax.f32 %v952, 1.0
      %v1451 = vmax.f32 %v954, 1.0
      %v1452 = vmax.f32 %v956, 1.0
      %v1453 = vmax.f32 %v958, 1.0
      %v1454 = vmax.f32 %v960, 1.0
      %v1455 = vmax.f32 %v962, 1.0
      %v1456 = vmax.f32 %v964, 1.0
      %v1457 = vmax.f32 %v966, 1.0
      %v1458 = vmax.f32 %v968, 1.0
      %v1459 = vmax.f32 %v970, 1.0
      %v1460 = vmax.f32 %v972, 1.0
      %v1461 = vmax.f32 %v974, 1.0
      %v1462 = vmax.f32 %v976, 1.0
      %v1463 = vmax.f32 %v978, 1.0
      %v1464 = vmax.f32 %v980, 1.0
      %v1465 = vmax.f32 %v982, 1.0
      %v1466 = vmax.f32 %v984, 1.0
      %v1467 = vmax.f32 %v986, 1.0
      %v1468 = vmax.f32 %v988, 1.0
      %v1469 = vmax.f32 %v990, 1.0
      %v1470 = vmax.f32 %v992, 1.0
      %v1471 = vmax.f32 %v994, 1.0
      %v1472 = vmax.f32 %v996, 1.0
      %v1473 = vmax.f32 %v998, 1.0
      %v1474 = vmax.f32 %v1000, 1.0
      %v1475 = vmax.f32 %v1002, 1.0
      %v1476 = vmax.f32 %v1004, 1.0
      %v1477 = vmax.f32 %v1006, 1.0
      %v1478 = vmax.f32 %v1008, 1.0
      %v1479 = vmax.f32 %v1010, 1.0
      %v1480 = vmax.f32 %v1012, 1.0
      %v1481 = vmax.f32 %v1014, 1.0
      %v1482 = vmax.f32 %v1016, 1.0
      %v1483 = vmax.f32 %v1018, 1.0
      %v1484 = vmax.f32 %v1020, 1.0
      %v1485 = vmax.f32 %v1022, 1.0
      %v1486 = vmax.f32 %v1024, 1.0
      %v1487 = vmax.f32 %v1026, 1.0
      %v1488 = vmax.f32 %v1028, 1.0
      %v1489 = vmax.f32 %v1030, 1.0
      %v1490 = vmax.f32 %v1032, 1.0
      %v1491 = vmax.f32 %v1034, 1.0
      %v1492 = vmax.f32 %v1036, 1.0
      %v1493 = vmax.f32 %v1038, 1.0
      %v1494 = vmax.f32 %v1040, 1.0
      %v1495 = vmax.f32 %v1042, 1.0
      %v1496 = vmax.f32 %v1044, 1.0
      %v1497 = vmax.f32 %v1046, 1.0
      %v1498 = vmax.f32 %v1048, 1.0
      %v1499 = vmax.f32 %v1050, 1.0
      %v1500 = vmax.f32 %v1052, 1.0
      %v1501 = vmax.f32 %v1054, 1.0
      %v1502 = vmax.f32 %v1056, 1.0
      %v1503 = vmax.f32 %v1058, 1.0
      %v1504 = vmax.f32 %v1060, 1.0
      %v1505 = vmax.f32 %v1062, 1.0
      %v1506 = vmax.f32 %v1064, 1.0
      %v1507 = vmax.f32 %v1066, 1.0
      %v1508 = vmax.f32 %v1068, 1.0
      %v1509 = vmax.f32 %v1070, 1.0
      %v1510 = vmax.f32 %v1072, 1.0
      %v1511 = vmax.f32 %v1074, 1.0
      %v1512 = vmax.f32 %v1076, 1.0
      %v1513 = vmax.f32 %v1078, 1.0
      %v1514 = vmax.f32 %v1080, 1.0
      %v1515 = vmax.f32 %v1082, 1.0
      %v1516 = vmax.f32 %v1084, 1.0
      %v1517 = vmax.f32 %v1086, 1.0
      %v1518 = vmax.f32 %v1088, 1.0
      %v1519 = vmax.f32 %v1090, 1.0
      %v1520 = vmax.f32 %v1092, 1.0
      %v1521 = vmax.f32 %v1094, 1.0
      %v1522 = vmax.f32 %v1096, 1.0
      %v1523 = vmax.f32 %v1098, 1.0
      %v1524 = vmax.f32 %v1100, 1.0
      %v1525 = vmax.f32 %v1102, 1.0
      %v1526 = vmax.f32 %v1104, 1.0
      %v1527 = vmax.f32 %v1106, 1.0
      %v1528 = vmax.f32 %v1108, 1.0
      %v1529 = vmax.f32 %v1110, 1.0
      %v1530 = vmax.f32 %v1112, 1.0
      %v1531 = vmax.f32 %v1114, 1.0
      %v1532 = vmax.f32 %v1116, 1.0
      %v1533 = vmax.f32 %v1118, 1.0
      %v1534 = vmax.f32 %v1120, 1.0
      %v1535 = vmax.f32 %v1122, 1.0
      %v1536 = vmax.f32 %v1124, 1.0
      %v1537 = vmax.f32 %v1126, 1.0
      %v1538 = vmax.f32 %v1128, 1.0
      %v1539 = vmax.f32 %v1130, 1.0
      %v1540 = vmax.f32 %v1132, 1.0
      %v1541 = vmax.f32 %v1134, 1.0
      %v1542 = vmax.f32 %v1136, 1.0
      %v1543 = vmax.f32 %v1138, 1.0
      %v1544 = vmax.f32 %v1140, 1.0
      %v1545 = vmax.f32 %v1142, 1.0
      %v1546 = vmax.f32 %v1144, 1.0
      %v1547 = vmax.f32 %v1146, 1.0
      %v1548 = vmax.f32 %v1148, 1.0
      %v1549 = vmax.f32 %v1150, 1.0
      %v1550 = vmax.f32 %v1152, 1.0
      %v1551 = vmax.f32 %v1154, 1.0
      %v1552 = vmax.f32 %v1156, 1.0
      %v1553 = vmax.f32 %v1158, 1.0
      %v1554 = vmax.f32 %v1160, 1.0
      %v1555 = vmax.f32 %v1162, 1.0
      %v1556 = vmax.f32 %v1164, 1.0
      %v1557 = vmax.f32 %v1166, 1.0
      %v1558 = vmax.f32 %v1168, 1.0
      %v1559 = vmax.f32 %v1170, 1.0
      %v1560 = vmax.f32 %v1172, 1.0
      %v1561 = vmax.f32 %v1174, 1.0
      %v1562 = vmax.f32 %v1176, 1.0
      %v1563 = vmax.f32 %v1178, 1.0
      %v1564 = vmax.f32 %v1180, 1.0
      %v1565 = vrsqrt.pop %v1437
      %v1566 = vrsqrt.pop %v1438
      %v1567 = vrsqrt.pop %v1439
      %v1568 = vrsqrt.pop %v1440
      %v1569 = vrsqrt.pop %v1441
      %v1570 = vrsqrt.pop %v1442
      %v1571 = vrsqrt.pop %v1443
      %v1572 = vrsqrt.pop %v1444
      %v1573 = vrsqrt.pop %v1445
      %v1574 = vrsqrt.pop %v1446
      %v1575 = vrsqrt.pop %v1447
      %v1576 = vrsqrt.pop %v1448
      %v1577 = vrsqrt.pop %v1449
      %v1578 = vrsqrt.pop %v1450
      %v1579 = vrsqrt.pop %v1451
      %v1580 = vrsqrt.pop %v1452
      %v1581 = vrsqrt.pop %v1453
      %v1582 = vrsqrt.pop %v1454
      %v1583 = vrsqrt.pop %v1455
      %v1584 = vrsqrt.pop %v1456
      %v1585 = vrsqrt.pop %v1457
      %v1586 = vrsqrt.pop %v1458
      %v1587 = vrsqrt.pop %v1459
      %v1588 = vrsqrt.pop %v1460
      %v1589 = vrsqrt.pop %v1461
      %v1590 = vrsqrt.pop %v1462
      %v1591 = vrsqrt.pop %v1463
      %v1592 = vrsqrt.pop %v1464
      %v1593 = vrsqrt.pop %v1465
      %v1594 = vrsqrt.pop %v1466
      %v1595 = vrsqrt.pop %v1467
      %v1596 = vrsqrt.pop %v1468
      %v1597 = vrsqrt.pop %v1469
      %v1598 = vrsqrt.pop %v1470
      %v1599 = vrsqrt.pop %v1471
      %v1600 = vrsqrt.pop %v1472
      %v1601 = vrsqrt.pop %v1473
      %v1602 = vrsqrt.pop %v1474
      %v1603 = vrsqrt.pop %v1475
      %v1604 = vrsqrt.pop %v1476
      %v1605 = vrsqrt.pop %v1477
      %v1606 = vrsqrt.pop %v1478
      %v1607 = vrsqrt.pop %v1479
      %v1608 = vrsqrt.pop %v1480
      %v1609 = vrsqrt.pop %v1481
      %v1610 = vrsqrt.pop %v1482
      %v1611 = vrsqrt.pop %v1483
      %v1612 = vrsqrt.pop %v1484
      %v1613 = vrsqrt.pop %v1485
      %v1614 = vrsqrt.pop %v1486
      %v1615 = vrsqrt.pop %v1487
      %v1616 = vrsqrt.pop %v1488
      %v1617 = vrsqrt.pop %v1489
      %v1618 = vrsqrt.pop %v1490
      %v1619 = vrsqrt.pop %v1491
      %v1620 = vrsqrt.pop %v1492
      %v1621 = vrsqrt.pop %v1493
      %v1622 = vrsqrt.pop %v1494
      %v1623 = vrsqrt.pop %v1495
      %v1624 = vrsqrt.pop %v1496
      %v1625 = vrsqrt.pop %v1497
      %v1626 = vrsqrt.pop %v1498
      %v1627 = vrsqrt.pop %v1499
      %v1628 = vrsqrt.pop %v1500
      %v1629 = vrsqrt.pop %v1501
      %v1630 = vrsqrt.pop %v1502
      %v1631 = vrsqrt.pop %v1503
      %v1632 = vrsqrt.pop %v1504
      %v1633 = vrsqrt.pop %v1505
      %v1634 = vrsqrt.pop %v1506
      %v1635 = vrsqrt.pop %v1507
      %v1636 = vrsqrt.pop %v1508
      %v1637 = vrsqrt.pop %v1509
      %v1638 = vrsqrt.pop %v1510
      %v1639 = vrsqrt.pop %v1511
      %v1640 = vrsqrt.pop %v1512
      %v1641 = vrsqrt.pop %v1513
      %v1642 = vrsqrt.pop %v1514
      %v1643 = vrsqrt.pop %v1515
      %v1644 = vrsqrt.pop %v1516
      %v1645 = vrsqrt.pop %v1517
      %v1646 = vrsqrt.pop %v1518
      %v1647 = vrsqrt.pop %v1519
      %v1648 = vrsqrt.pop %v1520
      %v1649 = vrsqrt.pop %v1521
      %v1650 = vrsqrt.pop %v1522
      %v1651 = vrsqrt.pop %v1523
      %v1652 = vrsqrt.pop %v1524
      %v1653 = vrsqrt.pop %v1525
      %v1654 = vrsqrt.pop %v1526
      %v1655 = vrsqrt.pop %v1527
      %v1656 = vrsqrt.pop %v1528
      %v1657 = vrsqrt.pop %v1529
      %v1658 = vrsqrt.pop %v1530
      %v1659 = vrsqrt.pop %v1531
      %v1660 = vrsqrt.pop %v1532
      %v1661 = vrsqrt.pop %v1533
      %v1662 = vrsqrt.pop %v1534
      %v1663 = vrsqrt.pop %v1535
      %v1664 = vrsqrt.pop %v1536
      %v1665 = vrsqrt.pop %v1537
      %v1666 = vrsqrt.pop %v1538
      %v1667 = vrsqrt.pop %v1539
      %v1668 = vrsqrt.pop %v1540
      %v1669 = vrsqrt.pop %v1541
      %v1670 = vrsqrt.pop %v1542
      %v1671 = vrsqrt.pop %v1543
      %v1672 = vrsqrt.pop %v1544
      %v1673 = vrsqrt.pop %v1545
      %v1674 = vrsqrt.pop %v1546
      %v1675 = vrsqrt.pop %v1547
      %v1676 = vrsqrt.pop %v1548
      %v1677 = vrsqrt.pop %v1549
      %v1678 = vrsqrt.pop %v1550
      %v1679 = vrsqrt.pop %v1551
      %v1680 = vrsqrt.pop %v1552
      %v1681 = vrsqrt.pop %v1553
      %v1682 = vrsqrt.pop %v1554
      %v1683 = vrsqrt.pop %v1555
      %v1684 = vrsqrt.pop %v1556
      %v1685 = vrsqrt.pop %v1557
      %v1686 = vrsqrt.pop %v1558
      %v1687 = vrsqrt.pop %v1559
      %v1688 = vrsqrt.pop %v1560
      %v1689 = vrsqrt.pop %v1561
      %v1690 = vrsqrt.pop %v1562
      %v1691 = vrsqrt.pop %v1563
      %v1692 = vrsqrt.pop %v1564
      %v1693 = vld [vmem:[%s276] sm:$0xff]
      %v1694 = vld [vmem:[%s276 + $0x8] sm:$0xff]
      %v1695 = vld [vmem:[%s276 + $0x10] sm:$0xff]
      %v1696 = vld [vmem:[%s276 + $0x18] sm:$0xff]
      %v1697 = vld [vmem:[%s276 + $0x20] sm:$0xff]
      %v1698 = vld [vmem:[%s276 + $0x28] sm:$0xff]
      %v1699 = vld [vmem:[%s276 + $0x30] sm:$0xff]
      %v1700 = vld [vmem:[%s276 + $0x38] sm:$0xff]
      %v1701 = vld [vmem:[%s276 + $0x40] sm:$0xff]
      %v1702 = vld [vmem:[%s276 + $0x48] sm:$0xff]
      %v1703 = vld [vmem:[%s276 + $0x50] sm:$0xff]
      %v1704 = vld [vmem:[%s276 + $0x58] sm:$0xff]
      %v1705 = vld [vmem:[%s276 + $0x60] sm:$0xff]
      %v1706 = vld [vmem:[%s276 + $0x68] sm:$0xff]
      %v1707 = vld [vmem:[%s276 + $0x70] sm:$0xff]
      %v1708 = vld [vmem:[%s276 + $0x78] sm:$0xff]
      %v1709 = vld [vmem:[%s276 + $0x80] sm:$0xff]
      %v1710 = vld [vmem:[%s276 + $0x88] sm:$0xff]
      %v1711 = vld [vmem:[%s276 + $0x90] sm:$0xff]
      %v1712 = vld [vmem:[%s276 + $0x98] sm:$0xff]
      %v1713 = vld [vmem:[%s276 + $0xa0] sm:$0xff]
      %v1714 = vld [vmem:[%s276 + $0xa8] sm:$0xff]
      %v1715 = vld [vmem:[%s276 + $0xb0] sm:$0xff]
      %v1716 = vld [vmem:[%s276 + $0xb8] sm:$0xff]
      %v1717 = vld [vmem:[%s276 + $0xc0] sm:$0xff]
      %v1718 = vld [vmem:[%s276 + $0xc8] sm:$0xff]
      %v1719 = vld [vmem:[%s276 + $0xd0] sm:$0xff]
      %v1720 = vld [vmem:[%s276 + $0xd8] sm:$0xff]
      %v1721 = vld [vmem:[%s276 + $0xe0] sm:$0xff]
      %v1722 = vld [vmem:[%s276 + $0xe8] sm:$0xff]
      %v1723 = vld [vmem:[%s276 + $0xf0] sm:$0xff]
      %v1724 = vld [vmem:[%s276 + $0xf8] sm:$0xff]
      %v1725 = vld [vmem:[%s276 + $0x100] sm:$0xff]
      %v1726 = vld [vmem:[%s276 + $0x108] sm:$0xff]
      %v1727 = vld [vmem:[%s276 + $0x110] sm:$0xff]
      %v1728 = vld [vmem:[%s276 + $0x118] sm:$0xff]
      %v1729 = vld [vmem:[%s276 + $0x120] sm:$0xff]
      %v1730 = vld [vmem:[%s276 + $0x128] sm:$0xff]
      %v1731 = vld [vmem:[%s276 + $0x130] sm:$0xff]
      %v1732 = vld [vmem:[%s276 + $0x138] sm:$0xff]
      %v1733 = vld [vmem:[%s276 + $0x140] sm:$0xff]
      %v1734 = vld [vmem:[%s276 + $0x148] sm:$0xff]
      %v1735 = vld [vmem:[%s276 + $0x150] sm:$0xff]
      %v1736 = vld [vmem:[%s276 + $0x158] sm:$0xff]
      %v1737 = vld [vmem:[%s276 + $0x160] sm:$0xff]
      %v1738 = vld [vmem:[%s276 + $0x168] sm:$0xff]
      %v1739 = vld [vmem:[%s276 + $0x170] sm:$0xff]
      %v1740 = vld [vmem:[%s276 + $0x178] sm:$0xff]
      %v1741 = vld [vmem:[%s276 + $0x180] sm:$0xff]
      %v1742 = vld [vmem:[%s276 + $0x188] sm:$0xff]
      %v1743 = vld [vmem:[%s276 + $0x190] sm:$0xff]
      %v1744 = vld [vmem:[%s276 + $0x198] sm:$0xff]
      %v1745 = vld [vmem:[%s276 + $0x1a0] sm:$0xff]
      %v1746 = vld [vmem:[%s276 + $0x1a8] sm:$0xff]
      %v1747 = vld [vmem:[%s276 + $0x1b0] sm:$0xff]
      %v1748 = vld [vmem:[%s276 + $0x1b8] sm:$0xff]
      %v1749 = vld [vmem:[%s276 + $0x1c0] sm:$0xff]
      %v1750 = vld [vmem:[%s276 + $0x1c8] sm:$0xff]
      %v1751 = vld [vmem:[%s276 + $0x1d0] sm:$0xff]
      %v1752 = vld [vmem:[%s276 + $0x1d8] sm:$0xff]
      %v1753 = vld [vmem:[%s276 + $0x1e0] sm:$0xff]
      %v1754 = vld [vmem:[%s276 + $0x1e8] sm:$0xff]
      %v1755 = vld [vmem:[%s276 + $0x1f0] sm:$0xff]
      %v1756 = vld [vmem:[%s276 + $0x1f8] sm:$0xff]
      %v1757 = vld [vmem:[%s276 + $0x200] sm:$0xff]
      %v1758 = vld [vmem:[%s276 + $0x208] sm:$0xff]
      %v1759 = vld [vmem:[%s276 + $0x210] sm:$0xff]
      %v1760 = vld [vmem:[%s276 + $0x218] sm:$0xff]
      %v1761 = vld [vmem:[%s276 + $0x220] sm:$0xff]
      %v1762 = vld [vmem:[%s276 + $0x228] sm:$0xff]
      %v1763 = vld [vmem:[%s276 + $0x230] sm:$0xff]
      %v1764 = vld [vmem:[%s276 + $0x238] sm:$0xff]
      %v1765 = vld [vmem:[%s276 + $0x240] sm:$0xff]
      %v1766 = vld [vmem:[%s276 + $0x248] sm:$0xff]
      %v1767 = vld [vmem:[%s276 + $0x250] sm:$0xff]
      %v1768 = vld [vmem:[%s276 + $0x258] sm:$0xff]
      %v1769 = vld [vmem:[%s276 + $0x260] sm:$0xff]
      %v1770 = vld [vmem:[%s276 + $0x268] sm:$0xff]
      %v1771 = vld [vmem:[%s276 + $0x270] sm:$0xff]
      %v1772 = vld [vmem:[%s276 + $0x278] sm:$0xff]
      %v1773 = vld [vmem:[%s276 + $0x280] sm:$0xff]
      %v1774 = vld [vmem:[%s276 + $0x288] sm:$0xff]
      %v1775 = vld [vmem:[%s276 + $0x290] sm:$0xff]
      %v1776 = vld [vmem:[%s276 + $0x298] sm:$0xff]
      %v1777 = vld [vmem:[%s276 + $0x2a0] sm:$0xff]
      %v1778 = vld [vmem:[%s276 + $0x2a8] sm:$0xff]
      %v1779 = vld [vmem:[%s276 + $0x2b0] sm:$0xff]
      %v1780 = vld [vmem:[%s276 + $0x2b8] sm:$0xff]
      %v1781 = vld [vmem:[%s276 + $0x2c0] sm:$0xff]
      %v1782 = vld [vmem:[%s276 + $0x2c8] sm:$0xff]
      %v1783 = vld [vmem:[%s276 + $0x2d0] sm:$0xff]
      %v1784 = vld [vmem:[%s276 + $0x2d8] sm:$0xff]
      %v1785 = vld [vmem:[%s276 + $0x2e0] sm:$0xff]
      %v1786 = vld [vmem:[%s276 + $0x2e8] sm:$0xff]
      %v1787 = vld [vmem:[%s276 + $0x2f0] sm:$0xff]
      %v1788 = vld [vmem:[%s276 + $0x2f8] sm:$0xff]
      %v1789 = vld [vmem:[%s276 + $0x300] sm:$0xff]
      %v1790 = vld [vmem:[%s276 + $0x308] sm:$0xff]
      %v1791 = vld [vmem:[%s276 + $0x310] sm:$0xff]
      %v1792 = vld [vmem:[%s276 + $0x318] sm:$0xff]
      %v1793 = vld [vmem:[%s276 + $0x320] sm:$0xff]
      %v1794 = vld [vmem:[%s276 + $0x328] sm:$0xff]
      %v1795 = vld [vmem:[%s276 + $0x330] sm:$0xff]
      %v1796 = vld [vmem:[%s276 + $0x338] sm:$0xff]
      %v1797 = vld [vmem:[%s276 + $0x340] sm:$0xff]
      %v1798 = vld [vmem:[%s276 + $0x348] sm:$0xff]
      %v1799 = vld [vmem:[%s276 + $0x350] sm:$0xff]
      %v1800 = vld [vmem:[%s276 + $0x358] sm:$0xff]
      %v1801 = vld [vmem:[%s276 + $0x360] sm:$0xff]
      %v1802 = vld [vmem:[%s276 + $0x368] sm:$0xff]
      %v1803 = vld [vmem:[%s276 + $0x370] sm:$0xff]
      %v1804 = vld [vmem:[%s276 + $0x378] sm:$0xff]
      %v1805 = vld [vmem:[%s276 + $0x380] sm:$0xff]
      %v1806 = vld [vmem:[%s276 + $0x388] sm:$0xff]
      %v1807 = vld [vmem:[%s276 + $0x390] sm:$0xff]
      %v1808 = vld [vmem:[%s276 + $0x398] sm:$0xff]
      %v1809 = vld [vmem:[%s276 + $0x3a0] sm:$0xff]
      %v1810 = vld [vmem:[%s276 + $0x3a8] sm:$0xff]
      %v1811 = vld [vmem:[%s276 + $0x3b0] sm:$0xff]
      %v1812 = vld [vmem:[%s276 + $0x3b8] sm:$0xff]
      %v1813 = vld [vmem:[%s276 + $0x3c0] sm:$0xff]
      %v1814 = vld [vmem:[%s276 + $0x3c8] sm:$0xff]
      %v1815 = vld [vmem:[%s276 + $0x3d0] sm:$0xff]
      %v1816 = vld [vmem:[%s276 + $0x3d8] sm:$0xff]
      %v1817 = vld [vmem:[%s276 + $0x3e0] sm:$0xff]
      %v1818 = vld [vmem:[%s276 + $0x3e8] sm:$0xff]
      %v1819 = vld [vmem:[%s276 + $0x3f0] sm:$0xff]
      %v1820 = vld [vmem:[%s276 + $0x3f8] sm:$0xff]
      %v1821 = vld [vmem:[%s2] sm:$0xff]
      %v1822 = vld [vmem:[%s2 + $0x8] sm:$0xff]
      %vm1823 = vcmask 130048
      %v1825 = vsel %vm1823, %v1693, 0
      %v1828 = vsel %vm1823, %v1694, 0
      %v1831 = vsel %vm1823, %v1695, 0
      %v1834 = vsel %vm1823, %v1696, 0
      %v1837 = vsel %vm1823, %v1697, 0
      %v1840 = vsel %vm1823, %v1698, 0
      %v1843 = vsel %vm1823, %v1699, 0
      %v1846 = vsel %vm1823, %v1700, 0
      %v1849 = vsel %vm1823, %v1701, 0
      %v1852 = vsel %vm1823, %v1702, 0
      %v1855 = vsel %vm1823, %v1703, 0
      %v1858 = vsel %vm1823, %v1704, 0
      %v1861 = vsel %vm1823, %v1705, 0
      %v1864 = vsel %vm1823, %v1706, 0
      %v1867 = vsel %vm1823, %v1707, 0
      %v1870 = vsel %vm1823, %v1708, 0
      %v1873 = vsel %vm1823, %v1709, 0
      %v1876 = vsel %vm1823, %v1710, 0
      %v1879 = vsel %vm1823, %v1711, 0
      %v1882 = vsel %vm1823, %v1712, 0
      %v1885 = vsel %vm1823, %v1713, 0
      %v1888 = vsel %vm1823, %v1714, 0
      %v1891 = vsel %vm1823, %v1715, 0
      %v1894 = vsel %vm1823, %v1716, 0
      %v1897 = vsel %vm1823, %v1717, 0
      %v1900 = vsel %vm1823, %v1718, 0
      %v1903 = vsel %vm1823, %v1719, 0
      %v1906 = vsel %vm1823, %v1720, 0
      %v1909 = vsel %vm1823, %v1721, 0
      %v1912 = vsel %vm1823, %v1722, 0
      %v1915 = vsel %vm1823, %v1723, 0
      %v1918 = vsel %vm1823, %v1724, 0
      %v1921 = vsel %vm1823, %v1725, 0
      %v1924 = vsel %vm1823, %v1726, 0
      %v1927 = vsel %vm1823, %v1727, 0
      %v1930 = vsel %vm1823, %v1728, 0
      %v1933 = vsel %vm1823, %v1729, 0
      %v1936 = vsel %vm1823, %v1730, 0
      %v1939 = vsel %vm1823, %v1731, 0
      %v1942 = vsel %vm1823, %v1732, 0
      %v1945 = vsel %vm1823, %v1733, 0
      %v1948 = vsel %vm1823, %v1734, 0
      %v1951 = vsel %vm1823, %v1735, 0
      %v1954 = vsel %vm1823, %v1736, 0
      %v1957 = vsel %vm1823, %v1737, 0
      %v1960 = vsel %vm1823, %v1738, 0
      %v1963 = vsel %vm1823, %v1739, 0
      %v1966 = vsel %vm1823, %v1740, 0
      %v1969 = vsel %vm1823, %v1741, 0
      %v1972 = vsel %vm1823, %v1742, 0
      %v1975 = vsel %vm1823, %v1743, 0
      %v1978 = vsel %vm1823, %v1744, 0
      %v1981 = vsel %vm1823, %v1745, 0
      %v1984 = vsel %vm1823, %v1746, 0
      %v1987 = vsel %vm1823, %v1747, 0
      %v1990 = vsel %vm1823, %v1748, 0
      %v1993 = vsel %vm1823, %v1749, 0
      %v1996 = vsel %vm1823, %v1750, 0
      %v1999 = vsel %vm1823, %v1751, 0
      %v2002 = vsel %vm1823, %v1752, 0
      %v2005 = vsel %vm1823, %v1753, 0
      %v2008 = vsel %vm1823, %v1754, 0
      %v2011 = vsel %vm1823, %v1755, 0
      %v2014 = vsel %vm1823, %v1756, 0
      %v2017 = vsel %vm1823, %v1757, 0
      %v2020 = vsel %vm1823, %v1758, 0
      %v2023 = vsel %vm1823, %v1759, 0
      %v2026 = vsel %vm1823, %v1760, 0
      %v2029 = vsel %vm1823, %v1761, 0
      %v2032 = vsel %vm1823, %v1762, 0
      %v2035 = vsel %vm1823, %v1763, 0
      %v2038 = vsel %vm1823, %v1764, 0
      %v2041 = vsel %vm1823, %v1765, 0
      %v2044 = vsel %vm1823, %v1766, 0
      %v2047 = vsel %vm1823, %v1767, 0
      %v2050 = vsel %vm1823, %v1768, 0
      %v2053 = vsel %vm1823, %v1769, 0
      %v2056 = vsel %vm1823, %v1770, 0
      %v2059 = vsel %vm1823, %v1771, 0
      %v2062 = vsel %vm1823, %v1772, 0
      %v2065 = vsel %vm1823, %v1773, 0
      %v2068 = vsel %vm1823, %v1774, 0
      %v2071 = vsel %vm1823, %v1775, 0
      %v2074 = vsel %vm1823, %v1776, 0
      %v2077 = vsel %vm1823, %v1777, 0
      %v2080 = vsel %vm1823, %v1778, 0
      %v2083 = vsel %vm1823, %v1779, 0
      %v2086 = vsel %vm1823, %v1780, 0
      %v2089 = vsel %vm1823, %v1781, 0
      %v2092 = vsel %vm1823, %v1782, 0
      %v2095 = vsel %vm1823, %v1783, 0
      %v2098 = vsel %vm1823, %v1784, 0
      %v2101 = vsel %vm1823, %v1785, 0
      %v2104 = vsel %vm1823, %v1786, 0
      %v2107 = vsel %vm1823, %v1787, 0
      %v2110 = vsel %vm1823, %v1788, 0
      %v2113 = vsel %vm1823, %v1789, 0
      %v2116 = vsel %vm1823, %v1790, 0
      %v2119 = vsel %vm1823, %v1791, 0
      %v2122 = vsel %vm1823, %v1792, 0
      %v2125 = vsel %vm1823, %v1793, 0
      %v2128 = vsel %vm1823, %v1794, 0
      %v2131 = vsel %vm1823, %v1795, 0
      %v2134 = vsel %vm1823, %v1796, 0
      %v2137 = vsel %vm1823, %v1797, 0
      %v2140 = vsel %vm1823, %v1798, 0
      %v2143 = vsel %vm1823, %v1799, 0
      %v2146 = vsel %vm1823, %v1800, 0
      %v2149 = vsel %vm1823, %v1801, 0
      %v2152 = vsel %vm1823, %v1802, 0
      %v2155 = vsel %vm1823, %v1803, 0
      %v2158 = vsel %vm1823, %v1804, 0
      %v2161 = vsel %vm1823, %v1805, 0
      %v2164 = vsel %vm1823, %v1806, 0
      %v2167 = vsel %vm1823, %v1807, 0
      %v2170 = vsel %vm1823, %v1808, 0
      %v2173 = vsel %vm1823, %v1809, 0
      %v2176 = vsel %vm1823, %v1810, 0
      %v2179 = vsel %vm1823, %v1811, 0
      %v2182 = vsel %vm1823, %v1812, 0
      %v2185 = vsel %vm1823, %v1813, 0
      %v2188 = vsel %vm1823, %v1814, 0
      %v2191 = vsel %vm1823, %v1815, 0
      %v2194 = vsel %vm1823, %v1816, 0
      %v2197 = vsel %vm1823, %v1817, 0
      %v2200 = vsel %vm1823, %v1818, 0
      %v2203 = vsel %vm1823, %v1819, 0
      %v2206 = vsel %vm1823, %v1820, 0
      %2208 = vmatprep.subr.mxu0 0.0
      %2209 = vmatpush1.msra.mxu0 %v1821
      %2210 = vmatprep.subr.mxu0 0.0
      %2211 = vmatpush1.msra.mxu0 %v1822
      %2212 = vmatprep.subr.mxu0 0.0
      %2213 = vmatpush1.msra.mxu0 0.0
      %2214 = vmatprep.subr.mxu0 0.0
      %2215 = vmatpush1.msra.mxu0 0.0
      %2216 = vmatprep.subr.mxu0 0.0
      %2217 = vmatpush1.msra.mxu0 0.0
      %2218 = vmatprep.subr.mxu0 0.0
      %2219 = vmatpush1.msra.mxu0 0.0
      %2220 = vmatprep.subr.mxu0 0.0
      %2221 = vmatpush1.msra.mxu0 0.0
      %2222 = vmatprep.subr.mxu0 0.0
      %2223 = vmatpush1.msra.mxu0 0.0
      %2224 = vmatprep.subr.mxu0 0.0
      %2225 = vmatpush1.msra.mxu0 0.0
      %2226 = vmatprep.subr.mxu0 0.0
      %2227 = vmatpush1.msra.mxu0 0.0
      %2228 = vmatprep.subr.mxu0 0.0
      %2229 = vmatpush1.msra.mxu0 0.0
      %2230 = vmatprep.subr.mxu0 0.0
      %2231 = vmatpush1.msra.mxu0 0.0
      %2232 = vmatprep.subr.mxu0 0.0
      %2233 = vmatpush1.msra.mxu0 0.0
      %2234 = vmatprep.subr.mxu0 0.0
      %2235 = vmatpush1.msra.mxu0 0.0
      %2236 = vmatprep.subr.mxu0 0.0
      %2237 = vmatpush1.msra.mxu0 0.0
      %2238 = vmatprep.subr.mxu0 0.0
      %2239 = vmatpush1.msra.mxu0 0.0
      %2240 = vmatprep.subr.mxu0 0.0
      %2241 = vmatpush1.msra.mxu0 0.0
      %2242 = vmatprep.subr.mxu0 0.0
      %2243 = vmatpush1.msra.mxu0 0.0
      %2244 = vmatprep.subr.mxu0 0.0
      %2245 = vmatpush1.msra.mxu0 0.0
      %2246 = vmatprep.subr.mxu0 0.0
      %2247 = vmatpush1.msra.mxu0 0.0
      %2248 = vmatprep.subr.mxu0 0.0
      %2249 = vmatpush1.msra.mxu0 0.0
      %2250 = vmatprep.subr.mxu0 0.0
      %2251 = vmatpush1.msra.mxu0 0.0
      %2252 = vmatprep.subr.mxu0 0.0
      %2253 = vmatpush1.msra.mxu0 0.0
      %2254 = vmatprep.subr.mxu0 0.0
      %2255 = vmatpush1.msra.mxu0 0.0
      %2256 = vmatprep.subr.mxu0 0.0
      %2257 = vmatpush1.msra.mxu0 0.0
      %2258 = vmatprep.subr.mxu0 0.0
      %2259 = vmatpush1.msra.mxu0 0.0
      %2260 = vmatprep.subr.mxu0 0.0
      %2261 = vmatpush1.msra.mxu0 0.0
      %2262 = vmatprep.subr.mxu0 0.0
      %2263 = vmatpush1.msra.mxu0 0.0
      %2264 = vmatprep.subr.mxu0 0.0
      %2265 = vmatpush1.msra.mxu0 0.0
      %2266 = vmatprep.subr.mxu0 0.0
      %2267 = vmatpush1.msra.mxu0 0.0
      %2268 = vmatprep.subr.mxu0 0.0
      %2269 = vmatpush1.msra.mxu0 0.0
      %2270 = vmatprep.subr.mxu0 0.0
      %2271 = vmatpush1.msra.mxu0 0.0
      %2272 = vmatprep.mubr.f32.mxu0 0.0
      %2273 = vmatmul.mubr.f32.gmra.mrb[0].mxu0 %v1825
      %v2274 = vpop.f32.mrb[0].mxu0
      %v2275 = vadd.f32 0.0, %v2274
      %v2276 = vpop.f32.mrb[0].mxu0
      %2277 = vmatprep.mubr.f32.mxu0 0.0
      %2278 = vmatmul.mubr.f32.gmra.mrb[0].mxu0 %v1828
      %v2279 = vpop.f32.mrb[0].mxu0
      %v2280 = vadd.f32 0.0, %v2279
      %v2281 = vpop.f32.mrb[0].mxu0
      %2282 = vmatprep.mubr.f32.mxu0 0.0
      %2283 = vmatmul.mubr.f32.gmra.mrb[0].mxu0 %v1831
      %v2284 = vpop.f32.mrb[0].mxu0
      %v2285 = vadd.f32 0.0, %v2284
      %v2286 = vpop.f32.mrb[0].mxu0
      %2287 = vmatprep.mubr.f32.mxu0 0.0
      %2288 = vmatmul.mubr.f32.gmra.mrb[0].mxu0 %v1834
      %v2289 = vpop.f32.mrb[0].mxu0
      %v2290 = vadd.f32 0.0, %v2289
      %v2291 = vpop.f32.mrb[0].mxu0
      %2292 = vmatprep.mubr.f32.mxu0 0.0
      %2293 = vmatmul.mubr.f32.gmra.mrb[0].mxu0 %v1837
      %v2294 = vpop.f32.mrb[0].mxu0
      %v2295 = vadd.f32 0.0, %v2294
      %v2296 = vpop.f32.mrb[0].mxu0
      %2297 = vmatprep.mubr.f32.mxu0 0.0
      %2298 = vmatmul.mubr.f32.gmra.mrb[0].mxu0 %v1840
      %v2299 = vpop.f32.mrb[0].mxu0
      %v2300 = vadd.f32 0.0, %v2299
      %v2301 = vpop.f32.mrb[0].mxu0
      %2302 = vmatprep.mubr.f32.mxu0 0.0
      %2303 = vmatmul.mubr.f32.gmra.mrb[0].mxu0 %v1843
      %v2304 = vpop.f32.mrb[0].mxu0
      %v2305 = vadd.f32 0.0, %v2304
      %v2306 = vpop.f32.mrb[0].mxu0
      %2307 = vmatprep.mubr.f32.mxu0 0.0
      %2308 = vmatmul.mubr.f32.gmra.mrb[0].mxu0 %v1846
      %v2309 = vpop.f32.mrb[0].mxu0
      %v2310 = vadd.f32 0.0, %v2309
      %v2311 = vpop.f32.mrb[0].mxu0
      %2312 = vmatprep.mubr.f32.mxu0 0.0
      %2313 = vmatmul.mubr.f32.gmra.mrb[0].mxu0 %v1849
      %v2314 = vpop.f32.mrb[0].mxu0
      %v2315 = vadd.f32 0.0, %v2314
      %v2316 = vpop.f32.mrb[0].mxu0
      %2317 = vmatprep.mubr.f32.mxu0 0.0
      %2318 = vmatmul.mubr.f32.gmra.mrb[0].mxu0 %v1852
      %v2319 = vpop.f32.mrb[0].mxu0
      %v2320 = vadd.f32 0.0, %v2319
      %v2321 = vpop.f32.mrb[0].mxu0
      %2322 = vmatprep.mubr.f32.mxu0 0.0
      %2323 = vmatmul.mubr.f32.gmra.mrb[0].mxu0 %v1855
      %v2324 = vpop.f32.mrb[0].mxu0
      %v2325 = vadd.f32 0.0, %v2324
      %v2326 = vpop.f32.mrb[0].mxu0
      %2327 = vmatprep.mubr.f32.mxu0 0.0
      %2328 = vmatmul.mubr.f32.gmra.mrb[0].mxu0 %v1858
      %v2329 = vpop.f32.mrb[0].mxu0
      %v2330 = vadd.f32 0.0, %v2329
      %v2331 = vpop.f32.mrb[0].mxu0
      %2332 = vmatprep.mubr.f32.mxu0 0.0
      %2333 = vmatmul.mubr.f32.gmra.mrb[0].mxu0 %v1861
      %v2334 = vpop.f32.mrb[0].mxu0
      %v2335 = vadd.f32 0.0, %v2334
      %v2336 = vpop.f32.mrb[0].mxu0
      %2337 = vmatprep.mubr.f32.mxu0 0.0
      %2338 = vmatmul.mubr.f32.gmra.mrb[0].mxu0 %v1864
      %v2339 = vpop.f32.mrb[0].mxu0
      %v2340 = vadd.f32 0.0, %v2339
      %v2341 = vpop.f32.mrb[0].mxu0
      %2342 = vmatprep.mubr.f32.mxu0 0.0
      %2343 = vmatmul.mubr.f32.gmra.mrb[0].mxu0 %v1867
      %v2344 = vpop.f32.mrb[0].mxu0
      %v2345 = vadd.f32 0.0, %v2344
      %v2346 = vpop.f32.mrb[0].mxu0
      %2347 = vmatprep.mubr.f32.mxu0 0.0
      %2348 = vmatmul.mubr.f32.gmra.mrb[0].mxu0 %v1870
      %v2349 = vpop.f32.mrb[0].mxu0
      %v2350 = vadd.f32 0.0, %v2349
      %v2351 = vpop.f32.mrb[0].mxu0
      %2352 = vmatprep.mubr.f32.mxu0 0.0
      %2353 = vmatmul.mubr.f32.gmra.mrb[0].mxu0 %v1873
      %v2354 = vpop.f32.mrb[0].mxu0
      %v2355 = vadd.f32 0.0, %v2354
      %v2356 = vpop.f32.mrb[0].mxu0
      %2357 = vmatprep.mubr.f32.mxu0 0.0
      %2358 = vmatmul.mubr.f32.gmra.mrb[0].mxu0 %v1876
      %v2359 = vpop.f32.mrb[0].mxu0
      %v2360 = vadd.f32 0.0, %v2359
      %v2361 = vpop.f32.mrb[0].mxu0
      %2362 = vmatprep.mubr.f32.mxu0 0.0
      %2363 = vmatmul.mubr.f32.gmra.mrb[0].mxu0 %v1879
      %v2364 = vpop.f32.mrb[0].mxu0
      %v2365 = vadd.f32 0.0, %v2364
      %v2366 = vpop.f32.mrb[0].mxu0
      %2367 = vmatprep.mubr.f32.mxu0 0.0
      %2368 = vmatmul.mubr.f32.gmra.mrb[0].mxu0 %v1882
      %v2369 = vpop.f32.mrb[0].mxu0
      %v2370 = vadd.f32 0.0, %v2369
      %v2371 = vpop.f32.mrb[0].mxu0
      %2372 = vmatprep.mubr.f32.mxu0 0.0
      %2373 = vmatmul.mubr.f32.gmra.mrb[0].mxu0 %v1885
      %v2374 = vpop.f32.mrb[0].mxu0
      %v2375 = vadd.f32 0.0, %v2374
      %v2376 = vpop.f32.mrb[0].mxu0
      %2377 = vmatprep.mubr.f32.mxu0 0.0
      %2378 = vmatmul.mubr.f32.gmra.mrb[0].mxu0 %v1888
      %v2379 = vpop.f32.mrb[0].mxu0
      %v2380 = vadd.f32 0.0, %v2379
      %v2381 = vpop.f32.mrb[0].mxu0
      %2382 = vmatprep.mubr.f32.mxu0 0.0
      %2383 = vmatmul.mubr.f32.gmra.mrb[0].mxu0 %v1891
      %v2384 = vpop.f32.mrb[0].mxu0
      %v2385 = vadd.f32 0.0, %v2384
      %v2386 = vpop.f32.mrb[0].mxu0
      %2387 = vmatprep.mubr.f32.mxu0 0.0
      %2388 = vmatmul.mubr.f32.gmra.mrb[0].mxu0 %v1894
      %v2389 = vpop.f32.mrb[0].mxu0
      %v2390 = vadd.f32 0.0, %v2389
      %v2391 = vpop.f32.mrb[0].mxu0
      %2392 = vmatprep.mubr.f32.mxu0 0.0
      %2393 = vmatmul.mubr.f32.gmra.mrb[0].mxu0 %v1897
      %v2394 = vpop.f32.mrb[0].mxu0
      %v2395 = vadd.f32 0.0, %v2394
      %v2396 = vpop.f32.mrb[0].mxu0
      %2397 = vmatprep.mubr.f32.mxu0 0.0
      %2398 = vmatmul.mubr.f32.gmra.mrb[0].mxu0 %v1900
      %v2399 = vpop.f32.mrb[0].mxu0
      %v2400 = vadd.f32 0.0, %v2399
      %v2401 = vpop.f32.mrb[0].mxu0
      %2402 = vmatprep.mubr.f32.mxu0 0.0
      %2403 = vmatmul.mubr.f32.gmra.mrb[0].mxu0 %v1903
      %v2404 = vpop.f32.mrb[0].mxu0
      %v2405 = vadd.f32 0.0, %v2404
      %v2406 = vpop.f32.mrb[0].mxu0
      %2407 = vmatprep.mubr.f32.mxu0 0.0
      %2408 = vmatmul.mubr.f32.gmra.mrb[0].mxu0 %v1906
      %v2409 = vpop.f32.mrb[0].mxu0
      %v2410 = vadd.f32 0.0, %v2409
      %v2411 = vpop.f32.mrb[0].mxu0
      %2412 = vmatprep.mubr.f32.mxu0 0.0
      %2413 = vmatmul.mubr.f32.gmra.mrb[0].mxu0 %v1909
      %v2414 = vpop.f32.mrb[0].mxu0
      %v2415 = vadd.f32 0.0, %v2414
      %v2416 = vpop.f32.mrb[0].mxu0
      %2417 = vmatprep.mubr.f32.mxu0 0.0
      %2418 = vmatmul.mubr.f32.gmra.mrb[0].mxu0 %v1912
      %v2419 = vpop.f32.mrb[0].mxu0
      %v2420 = vadd.f32 0.0, %v2419
      %v2421 = vpop.f32.mrb[0].mxu0
      %2422 = vmatprep.mubr.f32.mxu0 0.0
      %2423 = vmatmul.mubr.f32.gmra.mrb[0].mxu0 %v1915
      %v2424 = vpop.f32.mrb[0].mxu0
      %v2425 = vadd.f32 0.0, %v2424
      %v2426 = vpop.f32.mrb[0].mxu0
      %2427 = vmatprep.mubr.f32.mxu0 0.0
      %2428 = vmatmul.mubr.f32.gmra.mrb[0].mxu0 %v1918
      %v2429 = vpop.f32.mrb[0].mxu0
      %v2430 = vadd.f32 0.0, %v2429
      %v2431 = vpop.f32.mrb[0].mxu0
      %2432 = vmatprep.mubr.f32.mxu0 0.0
      %2433 = vmatmul.mubr.f32.gmra.mrb[0].mxu0 %v1921
      %v2434 = vpop.f32.mrb[0].mxu0
      %v2435 = vadd.f32 0.0, %v2434
      %v2436 = vpop.f32.mrb[0].mxu0
      %2437 = vmatprep.mubr.f32.mxu0 0.0
      %2438 = vmatmul.mubr.f32.gmra.mrb[0].mxu0 %v1924
      %v2439 = vpop.f32.mrb[0].mxu0
      %v2440 = vadd.f32 0.0, %v2439
      %v2441 = vpop.f32.mrb[0].mxu0
      %2442 = vmatprep.mubr.f32.mxu0 0.0
      %2443 = vmatmul.mubr.f32.gmra.mrb[0].mxu0 %v1927
      %v2444 = vpop.f32.mrb[0].mxu0
      %v2445 = vadd.f32 0.0, %v2444
      %v2446 = vpop.f32.mrb[0].mxu0
      %2447 = vmatprep.mubr.f32.mxu0 0.0
      %2448 = vmatmul.mubr.f32.gmra.mrb[0].mxu0 %v1930
      %v2449 = vpop.f32.mrb[0].mxu0
      %v2450 = vadd.f32 0.0, %v2449
      %v2451 = vpop.f32.mrb[0].mxu0
      %2452 = vmatprep.mubr.f32.mxu0 0.0
      %2453 = vmatmul.mubr.f32.gmra.mrb[0].mxu0 %v1933
      %v2454 = vpop.f32.mrb[0].mxu0
      %v2455 = vadd.f32 0.0, %v2454
      %v2456 = vpop.f32.mrb[0].mxu0
      %2457 = vmatprep.mubr.f32.mxu0 0.0
      %2458 = vmatmul.mubr.f32.gmra.mrb[0].mxu0 %v1936
      %v2459 = vpop.f32.mrb[0].mxu0
      %v2460 = vadd.f32 0.0, %v2459
      %v2461 = vpop.f32.mrb[0].mxu0
      %2462 = vmatprep.mubr.f32.mxu0 0.0
      %2463 = vmatmul.mubr.f32.gmra.mrb[0].mxu0 %v1939
      %v2464 = vpop.f32.mrb[0].mxu0
      %v2465 = vadd.f32 0.0, %v2464
      %v2466 = vpop.f32.mrb[0].mxu0
      %2467 = vmatprep.mubr.f32.mxu0 0.0
      %2468 = vmatmul.mubr.f32.gmra.mrb[0].mxu0 %v1942
      %v2469 = vpop.f32.mrb[0].mxu0
      %v2470 = vadd.f32 0.0, %v2469
      %v2471 = vpop.f32.mrb[0].mxu0
      %2472 = vmatprep.mubr.f32.mxu0 0.0
      %2473 = vmatmul.mubr.f32.gmra.mrb[0].mxu0 %v1945
      %v2474 = vpop.f32.mrb[0].mxu0
      %v2475 = vadd.f32 0.0, %v2474
      %v2476 = vpop.f32.mrb[0].mxu0
      %2477 = vmatprep.mubr.f32.mxu0 0.0
      %2478 = vmatmul.mubr.f32.gmra.mrb[0].mxu0 %v1948
      %v2479 = vpop.f32.mrb[0].mxu0
      %v2480 = vadd.f32 0.0, %v2479
      %v2481 = vpop.f32.mrb[0].mxu0
      %2482 = vmatprep.mubr.f32.mxu0 0.0
      %2483 = vmatmul.mubr.f32.gmra.mrb[0].mxu0 %v1951
      %v2484 = vpop.f32.mrb[0].mxu0
      %v2485 = vadd.f32 0.0, %v2484
      %v2486 = vpop.f32.mrb[0].mxu0
      %2487 = vmatprep.mubr.f32.mxu0 0.0
      %2488 = vmatmul.mubr.f32.gmra.mrb[0].mxu0 %v1954
      %v2489 = vpop.f32.mrb[0].mxu0
      %v2490 = vadd.f32 0.0, %v2489
      %v2491 = vpop.f32.mrb[0].mxu0
      %2492 = vmatprep.mubr.f32.mxu0 0.0
      %2493 = vmatmul.mubr.f32.gmra.mrb[0].mxu0 %v1957
      %v2494 = vpop.f32.mrb[0].mxu0
      %v2495 = vadd.f32 0.0, %v2494
      %v2496 = vpop.f32.mrb[0].mxu0
      %2497 = vmatprep.mubr.f32.mxu0 0.0
      %2498 = vmatmul.mubr.f32.gmra.mrb[0].mxu0 %v1960
      %v2499 = vpop.f32.mrb[0].mxu0
      %v2500 = vadd.f32 0.0, %v2499
      %v2501 = vpop.f32.mrb[0].mxu0
      %2502 = vmatprep.mubr.f32.mxu0 0.0
      %2503 = vmatmul.mubr.f32.gmra.mrb[0].mxu0 %v1963
      %v2504 = vpop.f32.mrb[0].mxu0
      %v2505 = vadd.f32 0.0, %v2504
      %v2506 = vpop.f32.mrb[0].mxu0
      %2507 = vmatprep.mubr.f32.mxu0 0.0
      %2508 = vmatmul.mubr.f32.gmra.mrb[0].mxu0 %v1966
      %v2509 = vpop.f32.mrb[0].mxu0
      %v2510 = vadd.f32 0.0, %v2509
      %v2511 = vpop.f32.mrb[0].mxu0
      %2512 = vmatprep.mubr.f32.mxu0 0.0
      %2513 = vmatmul.mubr.f32.gmra.mrb[0].mxu0 %v1969
      %v2514 = vpop.f32.mrb[0].mxu0
      %v2515 = vadd.f32 0.0, %v2514
      %v2516 = vpop.f32.mrb[0].mxu0
      %2517 = vmatprep.mubr.f32.mxu0 0.0
      %2518 = vmatmul.mubr.f32.gmra.mrb[0].mxu0 %v1972
      %v2519 = vpop.f32.mrb[0].mxu0
      %v2520 = vadd.f32 0.0, %v2519
      %v2521 = vpop.f32.mrb[0].mxu0
      %2522 = vmatprep.mubr.f32.mxu0 0.0
      %2523 = vmatmul.mubr.f32.gmra.mrb[0].mxu0 %v1975
      %v2524 = vpop.f32.mrb[0].mxu0
      %v2525 = vadd.f32 0.0, %v2524
      %v2526 = vpop.f32.mrb[0].mxu0
      %2527 = vmatprep.mubr.f32.mxu0 0.0
      %2528 = vmatmul.mubr.f32.gmra.mrb[0].mxu0 %v1978
      %v2529 = vpop.f32.mrb[0].mxu0
      %v2530 = vadd.f32 0.0, %v2529
      %v2531 = vpop.f32.mrb[0].mxu0
      %2532 = vmatprep.mubr.f32.mxu0 0.0
      %2533 = vmatmul.mubr.f32.gmra.mrb[0].mxu0 %v1981
      %v2534 = vpop.f32.mrb[0].mxu0
      %v2535 = vadd.f32 0.0, %v2534
      %v2536 = vpop.f32.mrb[0].mxu0
      %2537 = vmatprep.mubr.f32.mxu0 0.0
      %2538 = vmatmul.mubr.f32.gmra.mrb[0].mxu0 %v1984
      %v2539 = vpop.f32.mrb[0].mxu0
      %v2540 = vadd.f32 0.0, %v2539
      %v2541 = vpop.f32.mrb[0].mxu0
      %2542 = vmatprep.mubr.f32.mxu0 0.0
      %2543 = vmatmul.mubr.f32.gmra.mrb[0].mxu0 %v1987
      %v2544 = vpop.f32.mrb[0].mxu0
      %v2545 = vadd.f32 0.0, %v2544
      %v2546 = vpop.f32.mrb[0].mxu0
      %2547 = vmatprep.mubr.f32.mxu0 0.0
      %2548 = vmatmul.mubr.f32.gmra.mrb[0].mxu0 %v1990
      %v2549 = vpop.f32.mrb[0].mxu0
      %v2550 = vadd.f32 0.0, %v2549
      %v2551 = vpop.f32.mrb[0].mxu0
      %2552 = vmatprep.mubr.f32.mxu0 0.0
      %2553 = vmatmul.mubr.f32.gmra.mrb[0].mxu0 %v1993
      %v2554 = vpop.f32.mrb[0].mxu0
      %v2555 = vadd.f32 0.0, %v2554
      %v2556 = vpop.f32.mrb[0].mxu0
      %2557 = vmatprep.mubr.f32.mxu0 0.0
      %2558 = vmatmul.mubr.f32.gmra.mrb[0].mxu0 %v1996
      %v2559 = vpop.f32.mrb[0].mxu0
      %v2560 = vadd.f32 0.0, %v2559
      %v2561 = vpop.f32.mrb[0].mxu0
      %2562 = vmatprep.mubr.f32.mxu0 0.0
      %2563 = vmatmul.mubr.f32.gmra.mrb[0].mxu0 %v1999
      %v2564 = vpop.f32.mrb[0].mxu0
      %v2565 = vadd.f32 0.0, %v2564
      %v2566 = vpop.f32.mrb[0].mxu0
      %2567 = vmatprep.mubr.f32.mxu0 0.0
      %2568 = vmatmul.mubr.f32.gmra.mrb[0].mxu0 %v2002
      %v2569 = vpop.f32.mrb[0].mxu0
      %v2570 = vadd.f32 0.0, %v2569
      %v2571 = vpop.f32.mrb[0].mxu0
      %2572 = vmatprep.mubr.f32.mxu0 0.0
      %2573 = vmatmul.mubr.f32.gmra.mrb[0].mxu0 %v2005
      %v2574 = vpop.f32.mrb[0].mxu0
      %v2575 = vadd.f32 0.0, %v2574
      %v2576 = vpop.f32.mrb[0].mxu0
      %2577 = vmatprep.mubr.f32.mxu0 0.0
      %2578 = vmatmul.mubr.f32.gmra.mrb[0].mxu0 %v2008
      %v2579 = vpop.f32.mrb[0].mxu0
      %v2580 = vadd.f32 0.0, %v2579
      %v2581 = vpop.f32.mrb[0].mxu0
      %2582 = vmatprep.mubr.f32.mxu0 0.0
      %2583 = vmatmul.mubr.f32.gmra.mrb[0].mxu0 %v2011
      %v2584 = vpop.f32.mrb[0].mxu0
      %v2585 = vadd.f32 0.0, %v2584
      %v2586 = vpop.f32.mrb[0].mxu0
      %2587 = vmatprep.mubr.f32.mxu0 0.0
      %2588 = vmatmul.mubr.f32.gmra.mrb[0].mxu0 %v2014
      %v2589 = vpop.f32.mrb[0].mxu0
      %v2590 = vadd.f32 0.0, %v2589
      %v2591 = vpop.f32.mrb[0].mxu0
      %2592 = vmatprep.mubr.f32.mxu0 0.0
      %2593 = vmatmul.mubr.f32.gmra.mrb[0].mxu0 %v2017
      %v2594 = vpop.f32.mrb[0].mxu0
      %v2595 = vadd.f32 0.0, %v2594
      %v2596 = vpop.f32.mrb[0].mxu0
      %2597 = vmatprep.mubr.f32.mxu0 0.0
      %2598 = vmatmul.mubr.f32.gmra.mrb[0].mxu0 %v2020
      %v2599 = vpop.f32.mrb[0].mxu0
      %v2600 = vadd.f32 0.0, %v2599
      %v2601 = vpop.f32.mrb[0].mxu0
      %2602 = vmatprep.mubr.f32.mxu0 0.0
      %2603 = vmatmul.mubr.f32.gmra.mrb[0].mxu0 %v2023
      %v2604 = vpop.f32.mrb[0].mxu0
      %v2605 = vadd.f32 0.0, %v2604
      %v2606 = vpop.f32.mrb[0].mxu0
      %2607 = vmatprep.mubr.f32.mxu0 0.0
      %2608 = vmatmul.mubr.f32.gmra.mrb[0].mxu0 %v2026
      %v2609 = vpop.f32.mrb[0].mxu0
      %v2610 = vadd.f32 0.0, %v2609
      %v2611 = vpop.f32.mrb[0].mxu0
      %2612 = vmatprep.mubr.f32.mxu0 0.0
      %2613 = vmatmul.mubr.f32.gmra.mrb[0].mxu0 %v2029
      %v2614 = vpop.f32.mrb[0].mxu0
      %v2615 = vadd.f32 0.0, %v2614
      %v2616 = vpop.f32.mrb[0].mxu0
      %2617 = vmatprep.mubr.f32.mxu0 0.0
      %2618 = vmatmul.mubr.f32.gmra.mrb[0].mxu0 %v2032
      %v2619 = vpop.f32.mrb[0].mxu0
      %v2620 = vadd.f32 0.0, %v2619
      %v2621 = vpop.f32.mrb[0].mxu0
      %2622 = vmatprep.mubr.f32.mxu0 0.0
      %2623 = vmatmul.mubr.f32.gmra.mrb[0].mxu0 %v2035
      %v2624 = vpop.f32.mrb[0].mxu0
      %v2625 = vadd.f32 0.0, %v2624
      %v2626 = vpop.f32.mrb[0].mxu0
      %2627 = vmatprep.mubr.f32.mxu0 0.0
      %2628 = vmatmul.mubr.f32.gmra.mrb[0].mxu0 %v2038
      %v2629 = vpop.f32.mrb[0].mxu0
      %v2630 = vadd.f32 0.0, %v2629
      %v2631 = vpop.f32.mrb[0].mxu0
      %2632 = vmatprep.mubr.f32.mxu0 0.0
      %2633 = vmatmul.mubr.f32.gmra.mrb[0].mxu0 %v2041
      %v2634 = vpop.f32.mrb[0].mxu0
      %v2635 = vadd.f32 0.0, %v2634
      %v2636 = vpop.f32.mrb[0].mxu0
      %2637 = vmatprep.mubr.f32.mxu0 0.0
      %2638 = vmatmul.mubr.f32.gmra.mrb[0].mxu0 %v2044
      %v2639 = vpop.f32.mrb[0].mxu0
      %v2640 = vadd.f32 0.0, %v2639
      %v2641 = vpop.f32.mrb[0].mxu0
      %2642 = vmatprep.mubr.f32.mxu0 0.0
      %2643 = vmatmul.mubr.f32.gmra.mrb[0].mxu0 %v2047
      %v2644 = vpop.f32.mrb[0].mxu0
      %v2645 = vadd.f32 0.0, %v2644
      %v2646 = vpop.f32.mrb[0].mxu0
      %2647 = vmatprep.mubr.f32.mxu0 0.0
      %2648 = vmatmul.mubr.f32.gmra.mrb[0].mxu0 %v2050
      %v2649 = vpop.f32.mrb[0].mxu0
      %v2650 = vadd.f32 0.0, %v2649
      %v2651 = vpop.f32.mrb[0].mxu0
      %2652 = vmatprep.mubr.f32.mxu0 0.0
      %2653 = vmatmul.mubr.f32.gmra.mrb[0].mxu0 %v2053
      %v2654 = vpop.f32.mrb[0].mxu0
      %v2655 = vadd.f32 0.0, %v2654
      %v2656 = vpop.f32.mrb[0].mxu0
      %2657 = vmatprep.mubr.f32.mxu0 0.0
      %2658 = vmatmul.mubr.f32.gmra.mrb[0].mxu0 %v2056
      %v2659 = vpop.f32.mrb[0].mxu0
      %v2660 = vadd.f32 0.0, %v2659
      %v2661 = vpop.f32.mrb[0].mxu0
      %2662 = vmatprep.mubr.f32.mxu0 0.0
      %2663 = vmatmul.mubr.f32.gmra.mrb[0].mxu0 %v2059
      %v2664 = vpop.f32.mrb[0].mxu0
      %v2665 = vadd.f32 0.0, %v2664
      %v2666 = vpop.f32.mrb[0].mxu0
      %2667 = vmatprep.mubr.f32.mxu0 0.0
      %2668 = vmatmul.mubr.f32.gmra.mrb[0].mxu0 %v2062
      %v2669 = vpop.f32.mrb[0].mxu0
      %v2670 = vadd.f32 0.0, %v2669
      %v2671 = vpop.f32.mrb[0].mxu0
      %2672 = vmatprep.mubr.f32.mxu0 0.0
      %2673 = vmatmul.mubr.f32.gmra.mrb[0].mxu0 %v2065
      %v2674 = vpop.f32.mrb[0].mxu0
      %v2675 = vadd.f32 0.0, %v2674
      %v2676 = vpop.f32.mrb[0].mxu0
      %2677 = vmatprep.mubr.f32.mxu0 0.0
      %2678 = vmatmul.mubr.f32.gmra.mrb[0].mxu0 %v2068
      %v2679 = vpop.f32.mrb[0].mxu0
      %v2680 = vadd.f32 0.0, %v2679
      %v2681 = vpop.f32.mrb[0].mxu0
      %2682 = vmatprep.mubr.f32.mxu0 0.0
      %2683 = vmatmul.mubr.f32.gmra.mrb[0].mxu0 %v2071
      %v2684 = vpop.f32.mrb[0].mxu0
      %v2685 = vadd.f32 0.0, %v2684
      %v2686 = vpop.f32.mrb[0].mxu0
      %2687 = vmatprep.mubr.f32.mxu0 0.0
      %2688 = vmatmul.mubr.f32.gmra.mrb[0].mxu0 %v2074
      %v2689 = vpop.f32.mrb[0].mxu0
      %v2690 = vadd.f32 0.0, %v2689
      %v2691 = vpop.f32.mrb[0].mxu0
      %2692 = vmatprep.mubr.f32.mxu0 0.0
      %2693 = vmatmul.mubr.f32.gmra.mrb[0].mxu0 %v2077
      %v2694 = vpop.f32.mrb[0].mxu0
      %v2695 = vadd.f32 0.0, %v2694
      %v2696 = vpop.f32.mrb[0].mxu0
      %2697 = vmatprep.mubr.f32.mxu0 0.0
      %2698 = vmatmul.mubr.f32.gmra.mrb[0].mxu0 %v2080
      %v2699 = vpop.f32.mrb[0].mxu0
      %v2700 = vadd.f32 0.0, %v2699
      %v2701 = vpop.f32.mrb[0].mxu0
      %2702 = vmatprep.mubr.f32.mxu0 0.0
      %2703 = vmatmul.mubr.f32.gmra.mrb[0].mxu0 %v2083
      %v2704 = vpop.f32.mrb[0].mxu0
      %v2705 = vadd.f32 0.0, %v2704
      %v2706 = vpop.f32.mrb[0].mxu0
      %2707 = vmatprep.mubr.f32.mxu0 0.0
      %2708 = vmatmul.mubr.f32.gmra.mrb[0].mxu0 %v2086
      %v2709 = vpop.f32.mrb[0].mxu0
      %v2710 = vadd.f32 0.0, %v2709
      %v2711 = vpop.f32.mrb[0].mxu0
      %2712 = vmatprep.mubr.f32.mxu0 0.0
      %2713 = vmatmul.mubr.f32.gmra.mrb[0].mxu0 %v2089
      %v2714 = vpop.f32.mrb[0].mxu0
      %v2715 = vadd.f32 0.0, %v2714
      %v2716 = vpop.f32.mrb[0].mxu0
      %2717 = vmatprep.mubr.f32.mxu0 0.0
      %2718 = vmatmul.mubr.f32.gmra.mrb[0].mxu0 %v2092
      %v2719 = vpop.f32.mrb[0].mxu0
      %v2720 = vadd.f32 0.0, %v2719
      %v2721 = vpop.f32.mrb[0].mxu0
      %2722 = vmatprep.mubr.f32.mxu0 0.0
      %2723 = vmatmul.mubr.f32.gmra.mrb[0].mxu0 %v2095
      %v2724 = vpop.f32.mrb[0].mxu0
      %v2725 = vadd.f32 0.0, %v2724
      %v2726 = vpop.f32.mrb[0].mxu0
      %2727 = vmatprep.mubr.f32.mxu0 0.0
      %2728 = vmatmul.mubr.f32.gmra.mrb[0].mxu0 %v2098
      %v2729 = vpop.f32.mrb[0].mxu0
      %v2730 = vadd.f32 0.0, %v2729
      %v2731 = vpop.f32.mrb[0].mxu0
      %2732 = vmatprep.mubr.f32.mxu0 0.0
      %2733 = vmatmul.mubr.f32.gmra.mrb[0].mxu0 %v2101
      %v2734 = vpop.f32.mrb[0].mxu0
      %v2735 = vadd.f32 0.0, %v2734
      %v2736 = vpop.f32.mrb[0].mxu0
      %2737 = vmatprep.mubr.f32.mxu0 0.0
      %2738 = vmatmul.mubr.f32.gmra.mrb[0].mxu0 %v2104
      %v2739 = vpop.f32.mrb[0].mxu0
      %v2740 = vadd.f32 0.0, %v2739
      %v2741 = vpop.f32.mrb[0].mxu0
      %2742 = vmatprep.mubr.f32.mxu0 0.0
      %2743 = vmatmul.mubr.f32.gmra.mrb[0].mxu0 %v2107
      %v2744 = vpop.f32.mrb[0].mxu0
      %v2745 = vadd.f32 0.0, %v2744
      %v2746 = vpop.f32.mrb[0].mxu0
      %2747 = vmatprep.mubr.f32.mxu0 0.0
      %2748 = vmatmul.mubr.f32.gmra.mrb[0].mxu0 %v2110
      %v2749 = vpop.f32.mrb[0].mxu0
      %v2750 = vadd.f32 0.0, %v2749
      %v2751 = vpop.f32.mrb[0].mxu0
      %2752 = vmatprep.mubr.f32.mxu0 0.0
      %2753 = vmatmul.mubr.f32.gmra.mrb[0].mxu0 %v2113
      %v2754 = vpop.f32.mrb[0].mxu0
      %v2755 = vadd.f32 0.0, %v2754
      %v2756 = vpop.f32.mrb[0].mxu0
      %2757 = vmatprep.mubr.f32.mxu0 0.0
      %2758 = vmatmul.mubr.f32.gmra.mrb[0].mxu0 %v2116
      %v2759 = vpop.f32.mrb[0].mxu0
      %v2760 = vadd.f32 0.0, %v2759
      %v2761 = vpop.f32.mrb[0].mxu0
      %2762 = vmatprep.mubr.f32.mxu0 0.0
      %2763 = vmatmul.mubr.f32.gmra.mrb[0].mxu0 %v2119
      %v2764 = vpop.f32.mrb[0].mxu0
      %v2765 = vadd.f32 0.0, %v2764
      %v2766 = vpop.f32.mrb[0].mxu0
      %2767 = vmatprep.mubr.f32.mxu0 0.0
      %2768 = vmatmul.mubr.f32.gmra.mrb[0].mxu0 %v2122
      %v2769 = vpop.f32.mrb[0].mxu0
      %v2770 = vadd.f32 0.0, %v2769
      %v2771 = vpop.f32.mrb[0].mxu0
      %2772 = vmatprep.mubr.f32.mxu0 0.0
      %2773 = vmatmul.mubr.f32.gmra.mrb[0].mxu0 %v2125
      %v2774 = vpop.f32.mrb[0].mxu0
      %v2775 = vadd.f32 0.0, %v2774
      %v2776 = vpop.f32.mrb[0].mxu0
      %2777 = vmatprep.mubr.f32.mxu0 0.0
      %2778 = vmatmul.mubr.f32.gmra.mrb[0].mxu0 %v2128
      %v2779 = vpop.f32.mrb[0].mxu0
      %v2780 = vadd.f32 0.0, %v2779
      %v2781 = vpop.f32.mrb[0].mxu0
      %2782 = vmatprep.mubr.f32.mxu0 0.0
      %2783 = vmatmul.mubr.f32.gmra.mrb[0].mxu0 %v2131
      %v2784 = vpop.f32.mrb[0].mxu0
      %v2785 = vadd.f32 0.0, %v2784
      %v2786 = vpop.f32.mrb[0].mxu0
      %2787 = vmatprep.mubr.f32.mxu0 0.0
      %2788 = vmatmul.mubr.f32.gmra.mrb[0].mxu0 %v2134
      %v2789 = vpop.f32.mrb[0].mxu0
      %v2790 = vadd.f32 0.0, %v2789
      %v2791 = vpop.f32.mrb[0].mxu0
      %2792 = vmatprep.mubr.f32.mxu0 0.0
      %2793 = vmatmul.mubr.f32.gmra.mrb[0].mxu0 %v2137
      %v2794 = vpop.f32.mrb[0].mxu0
      %v2795 = vadd.f32 0.0, %v2794
      %v2796 = vpop.f32.mrb[0].mxu0
      %2797 = vmatprep.mubr.f32.mxu0 0.0
      %2798 = vmatmul.mubr.f32.gmra.mrb[0].mxu0 %v2140
      %v2799 = vpop.f32.mrb[0].mxu0
      %v2800 = vadd.f32 0.0, %v2799
      %v2801 = vpop.f32.mrb[0].mxu0
      %2802 = vmatprep.mubr.f32.mxu0 0.0
      %2803 = vmatmul.mubr.f32.gmra.mrb[0].mxu0 %v2143
      %v2804 = vpop.f32.mrb[0].mxu0
      %v2805 = vadd.f32 0.0, %v2804
      %v2806 = vpop.f32.mrb[0].mxu0
      %2807 = vmatprep.mubr.f32.mxu0 0.0
      %2808 = vmatmul.mubr.f32.gmra.mrb[0].mxu0 %v2146
      %v2809 = vpop.f32.mrb[0].mxu0
      %v2810 = vadd.f32 0.0, %v2809
      %v2811 = vpop.f32.mrb[0].mxu0
      %2812 = vmatprep.mubr.f32.mxu0 0.0
      %2813 = vmatmul.mubr.f32.gmra.mrb[0].mxu0 %v2149
      %v2814 = vpop.f32.mrb[0].mxu0
      %v2815 = vadd.f32 0.0, %v2814
      %v2816 = vpop.f32.mrb[0].mxu0
      %2817 = vmatprep.mubr.f32.mxu0 0.0
      %2818 = vmatmul.mubr.f32.gmra.mrb[0].mxu0 %v2152
      %v2819 = vpop.f32.mrb[0].mxu0
      %v2820 = vadd.f32 0.0, %v2819
      %v2821 = vpop.f32.mrb[0].mxu0
      %2822 = vmatprep.mubr.f32.mxu0 0.0
      %2823 = vmatmul.mubr.f32.gmra.mrb[0].mxu0 %v2155
      %v2824 = vpop.f32.mrb[0].mxu0
      %v2825 = vadd.f32 0.0, %v2824
      %v2826 = vpop.f32.mrb[0].mxu0
      %2827 = vmatprep.mubr.f32.mxu0 0.0
      %2828 = vmatmul.mubr.f32.gmra.mrb[0].mxu0 %v2158
      %v2829 = vpop.f32.mrb[0].mxu0
      %v2830 = vadd.f32 0.0, %v2829
      %v2831 = vpop.f32.mrb[0].mxu0
      %2832 = vmatprep.mubr.f32.mxu0 0.0
      %2833 = vmatmul.mubr.f32.gmra.mrb[0].mxu0 %v2161
      %v2834 = vpop.f32.mrb[0].mxu0
      %v2835 = vadd.f32 0.0, %v2834
      %v2836 = vpop.f32.mrb[0].mxu0
      %2837 = vmatprep.mubr.f32.mxu0 0.0
      %2838 = vmatmul.mubr.f32.gmra.mrb[0].mxu0 %v2164
      %v2839 = vpop.f32.mrb[0].mxu0
      %v2840 = vadd.f32 0.0, %v2839
      %v2841 = vpop.f32.mrb[0].mxu0
      %2842 = vmatprep.mubr.f32.mxu0 0.0
      %2843 = vmatmul.mubr.f32.gmra.mrb[0].mxu0 %v2167
      %v2844 = vpop.f32.mrb[0].mxu0
      %v2845 = vadd.f32 0.0, %v2844
      %v2846 = vpop.f32.mrb[0].mxu0
      %2847 = vmatprep.mubr.f32.mxu0 0.0
      %2848 = vmatmul.mubr.f32.gmra.mrb[0].mxu0 %v2170
      %v2849 = vpop.f32.mrb[0].mxu0
      %v2850 = vadd.f32 0.0, %v2849
      %v2851 = vpop.f32.mrb[0].mxu0
      %2852 = vmatprep.mubr.f32.mxu0 0.0
      %2853 = vmatmul.mubr.f32.gmra.mrb[0].mxu0 %v2173
      %v2854 = vpop.f32.mrb[0].mxu0
      %v2855 = vadd.f32 0.0, %v2854
      %v2856 = vpop.f32.mrb[0].mxu0
      %2857 = vmatprep.mubr.f32.mxu0 0.0
      %2858 = vmatmul.mubr.f32.gmra.mrb[0].mxu0 %v2176
      %v2859 = vpop.f32.mrb[0].mxu0
      %v2860 = vadd.f32 0.0, %v2859
      %v2861 = vpop.f32.mrb[0].mxu0
      %2862 = vmatprep.mubr.f32.mxu0 0.0
      %2863 = vmatmul.mubr.f32.gmra.mrb[0].mxu0 %v2179
      %v2864 = vpop.f32.mrb[0].mxu0
      %v2865 = vadd.f32 0.0, %v2864
      %v2866 = vpop.f32.mrb[0].mxu0
      %2867 = vmatprep.mubr.f32.mxu0 0.0
      %2868 = vmatmul.mubr.f32.gmra.mrb[0].mxu0 %v2182
      %v2869 = vpop.f32.mrb[0].mxu0
      %v2870 = vadd.f32 0.0, %v2869
      %v2871 = vpop.f32.mrb[0].mxu0
      %2872 = vmatprep.mubr.f32.mxu0 0.0
      %2873 = vmatmul.mubr.f32.gmra.mrb[0].mxu0 %v2185
      %v2874 = vpop.f32.mrb[0].mxu0
      %v2875 = vadd.f32 0.0, %v2874
      %v2876 = vpop.f32.mrb[0].mxu0
      %2877 = vmatprep.mubr.f32.mxu0 0.0
      %2878 = vmatmul.mubr.f32.gmra.mrb[0].mxu0 %v2188
      %v2879 = vpop.f32.mrb[0].mxu0
      %v2880 = vadd.f32 0.0, %v2879
      %v2881 = vpop.f32.mrb[0].mxu0
      %2882 = vmatprep.mubr.f32.mxu0 0.0
      %2883 = vmatmul.mubr.f32.gmra.mrb[0].mxu0 %v2191
      %v2884 = vpop.f32.mrb[0].mxu0
      %v2885 = vadd.f32 0.0, %v2884
      %v2886 = vpop.f32.mrb[0].mxu0
      %2887 = vmatprep.mubr.f32.mxu0 0.0
      %2888 = vmatmul.mubr.f32.gmra.mrb[0].mxu0 %v2194
      %v2889 = vpop.f32.mrb[0].mxu0
      %v2890 = vadd.f32 0.0, %v2889
      %v2891 = vpop.f32.mrb[0].mxu0
      %2892 = vmatprep.mubr.f32.mxu0 0.0
      %2893 = vmatmul.mubr.f32.gmra.mrb[0].mxu0 %v2197
      %v2894 = vpop.f32.mrb[0].mxu0
      %v2895 = vadd.f32 0.0, %v2894
      %v2896 = vpop.f32.mrb[0].mxu0
      %2897 = vmatprep.mubr.f32.mxu0 0.0
      %2898 = vmatmul.mubr.f32.gmra.mrb[0].mxu0 %v2200
      %v2899 = vpop.f32.mrb[0].mxu0
      %v2900 = vadd.f32 0.0, %v2899
      %v2901 = vpop.f32.mrb[0].mxu0
      %2902 = vmatprep.mubr.f32.mxu0 0.0
      %2903 = vmatmul.mubr.f32.gmra.mrb[0].mxu0 %v2203
      %v2904 = vpop.f32.mrb[0].mxu0
      %v2905 = vadd.f32 0.0, %v2904
      %v2906 = vpop.f32.mrb[0].mxu0
      %2907 = vmatprep.mubr.f32.mxu0 0.0
      %2908 = vmatmul.mubr.f32.gmra.mrb[0].mxu0 %v2206
      %v2909 = vpop.f32.mrb[0].mxu0
      %v2910 = vadd.f32 0.0, %v2909
      %v2911 = vpop.f32.mrb[0].mxu0
      %2912 = vdwg.mxu0
      %v2913 = vmul.f32 %v2275, %v1309
      %v2914 = vmul.f32 %v2280, %v1310
      %v2915 = vmul.f32 %v2285, %v1311
      %v2916 = vmul.f32 %v2290, %v1312
      %v2917 = vmul.f32 %v2295, %v1313
      %v2918 = vmul.f32 %v2300, %v1314
      %v2919 = vmul.f32 %v2305, %v1315
      %v2920 = vmul.f32 %v2310, %v1316
      %v2921 = vmul.f32 %v2315, %v1317
      %v2922 = vmul.f32 %v2320, %v1318
      %v2923 = vmul.f32 %v2325, %v1319
      %v2924 = vmul.f32 %v2330, %v1320
      %v2925 = vmul.f32 %v2335, %v1321
      %v2926 = vmul.f32 %v2340, %v1322
      %v2927 = vmul.f32 %v2345, %v1323
      %v2928 = vmul.f32 %v2350, %v1324
      %v2929 = vmul.f32 %v2355, %v1325
      %v2930 = vmul.f32 %v2360, %v1326
      %v2931 = vmul.f32 %v2365, %v1327
      %v2932 = vmul.f32 %v2370, %v1328
      %v2933 = vmul.f32 %v2375, %v1329
      %v2934 = vmul.f32 %v2380, %v1330
      %v2935 = vmul.f32 %v2385, %v1331
      %v2936 = vmul.f32 %v2390, %v1332
      %v2937 = vmul.f32 %v2395, %v1333
      %v2938 = vmul.f32 %v2400, %v1334
      %v2939 = vmul.f32 %v2405, %v1335
      %v2940 = vmul.f32 %v2410, %v1336
      %v2941 = vmul.f32 %v2415, %v1337
      %v2942 = vmul.f32 %v2420, %v1338
      %v2943 = vmul.f32 %v2425, %v1339
      %v2944 = vmul.f32 %v2430, %v1340
      %v2945 = vmul.f32 %v2435, %v1341
      %v2946 = vmul.f32 %v2440, %v1342
      %v2947 = vmul.f32 %v2445, %v1343
      %v2948 = vmul.f32 %v2450, %v1344
      %v2949 = vmul.f32 %v2455, %v1345
      %v2950 = vmul.f32 %v2460, %v1346
      %v2951 = vmul.f32 %v2465, %v1347
      %v2952 = vmul.f32 %v2470, %v1348
      %v2953 = vmul.f32 %v2475, %v1349
      %v2954 = vmul.f32 %v2480, %v1350
      %v2955 = vmul.f32 %v2485, %v1351
      %v2956 = vmul.f32 %v2490, %v1352
      %v2957 = vmul.f32 %v2495, %v1353
      %v2958 = vmul.f32 %v2500, %v1354
      %v2959 = vmul.f32 %v2505, %v1355
      %v2960 = vmul.f32 %v2510, %v1356
      %v2961 = vmul.f32 %v2515, %v1357
      %v2962 = vmul.f32 %v2520, %v1358
      %v2963 = vmul.f32 %v2525, %v1359
      %v2964 = vmul.f32 %v2530, %v1360
      %v2965 = vmul.f32 %v2535, %v1361
      %v2966 = vmul.f32 %v2540, %v1362
      %v2967 = vmul.f32 %v2545, %v1363
      %v2968 = vmul.f32 %v2550, %v1364
      %v2969 = vmul.f32 %v2555, %v1365
      %v2970 = vmul.f32 %v2560, %v1366
      %v2971 = vmul.f32 %v2565, %v1367
      %v2972 = vmul.f32 %v2570, %v1368
      %v2973 = vmul.f32 %v2575, %v1369
      %v2974 = vmul.f32 %v2580, %v1370
      %v2975 = vmul.f32 %v2585, %v1371
      %v2976 = vmul.f32 %v2590, %v1372
      %v2977 = vmul.f32 %v2595, %v1373
      %v2978 = vmul.f32 %v2600, %v1374
      %v2979 = vmul.f32 %v2605, %v1375
      %v2980 = vmul.f32 %v2610, %v1376
      %v2981 = vmul.f32 %v2615, %v1377
      %v2982 = vmul.f32 %v2620, %v1378
      %v2983 = vmul.f32 %v2625, %v1379
      %v2984 = vmul.f32 %v2630, %v1380
      %v2985 = vmul.f32 %v2635, %v1381
      %v2986 = vmul.f32 %v2640, %v1382
      %v2987 = vmul.f32 %v2645, %v1383
      %v2988 = vmul.f32 %v2650, %v1384
      %v2989 = vmul.f32 %v2655, %v1385
      %v2990 = vmul.f32 %v2660, %v1386
      %v2991 = vmul.f32 %v2665, %v1387
      %v2992 = vmul.f32 %v2670, %v1388
      %v2993 = vmul.f32 %v2675, %v1389
      %v2994 = vmul.f32 %v2680, %v1390
      %v2995 = vmul.f32 %v2685, %v1391
      %v2996 = vmul.f32 %v2690, %v1392
      %v2997 = vmul.f32 %v2695, %v1393
      %v2998 = vmul.f32 %v2700, %v1394
      %v2999 = vmul.f32 %v2705, %v1395
      %v3000 = vmul.f32 %v2710, %v1396
      %v3001 = vmul.f32 %v2715, %v1397
      %v3002 = vmul.f32 %v2720, %v1398
      %v3003 = vmul.f32 %v2725, %v1399
      %v3004 = vmul.f32 %v2730, %v1400
      %v3005 = vmul.f32 %v2735, %v1401
      %v3006 = vmul.f32 %v2740, %v1402
      %v3007 = vmul.f32 %v2745, %v1403
      %v3008 = vmul.f32 %v2750, %v1404
      %v3009 = vmul.f32 %v2755, %v1405
      %v3010 = vmul.f32 %v2760, %v1406
      %v3011 = vmul.f32 %v2765, %v1407
      %v3012 = vmul.f32 %v2770, %v1408
      %v3013 = vmul.f32 %v2775, %v1409
      %v3014 = vmul.f32 %v2780, %v1410
      %v3015 = vmul.f32 %v2785, %v1411
      %v3016 = vmul.f32 %v2790, %v1412
      %v3017 = vmul.f32 %v2795, %v1413
      %v3018 = vmul.f32 %v2800, %v1414
      %v3019 = vmul.f32 %v2805, %v1415
      %v3020 = vmul.f32 %v2810, %v1416
      %v3021 = vmul.f32 %v2815, %v1417
      %v3022 = vmul.f32 %v2820, %v1418
      %v3023 = vmul.f32 %v2825, %v1419
      %v3024 = vmul.f32 %v2830, %v1420
      %v3025 = vmul.f32 %v2835, %v1421
      %v3026 = vmul.f32 %v2840, %v1422
      %v3027 = vmul.f32 %v2845, %v1423
      %v3028 = vmul.f32 %v2850, %v1424
      %v3029 = vmul.f32 %v2855, %v1425
      %v3030 = vmul.f32 %v2860, %v1426
      %v3031 = vmul.f32 %v2865, %v1427
      %v3032 = vmul.f32 %v2870, %v1428
      %v3033 = vmul.f32 %v2875, %v1429
      %v3034 = vmul.f32 %v2880, %v1430
      %v3035 = vmul.f32 %v2885, %v1431
      %v3036 = vmul.f32 %v2890, %v1432
      %v3037 = vmul.f32 %v2895, %v1433
      %v3038 = vmul.f32 %v2900, %v1434
      %v3039 = vmul.f32 %v2905, %v1435
      %v3040 = vmul.f32 %v2910, %v1436
      %3041 = vmatprep.subr.mxu0 0.0
      %3042 = vmatpush1.msra.mxu0 %v2913
      %3043 = vmatprep.subr.mxu0 0.0
      %3044 = vmatpush1.msra.mxu0 %v2914
      %3045 = vmatprep.subr.mxu0 0.0
      %3046 = vmatpush1.msra.mxu0 %v2915
      %3047 = vmatprep.subr.mxu0 0.0
      %3048 = vmatpush1.msra.mxu0 %v2916
      %3049 = vmatprep.subr.mxu0 0.0
      %3050 = vmatpush1.msra.mxu0 %v2917
      %3051 = vmatprep.subr.mxu0 0.0
      %3052 = vmatpush1.msra.mxu0 %v2918
      %3053 = vmatprep.subr.mxu0 0.0
      %3054 = vmatpush1.msra.mxu0 %v2919
      %3055 = vmatprep.subr.mxu0 0.0
      %3056 = vmatpush1.msra.mxu0 %v2920
      %3057 = vmatprep.subr.mxu0 0.0
      %3058 = vmatpush1.msra.mxu0 %v2921
      %3059 = vmatprep.subr.mxu0 0.0
      %3060 = vmatpush1.msra.mxu0 %v2922
      %3061 = vmatprep.subr.mxu0 0.0
      %3062 = vmatpush1.msra.mxu0 %v2923
      %3063 = vmatprep.subr.mxu0 0.0
      %3064 = vmatpush1.msra.mxu0 %v2924
      %3065 = vmatprep.subr.mxu0 0.0
      %3066 = vmatpush1.msra.mxu0 %v2925
      %3067 = vmatprep.subr.mxu0 0.0
      %3068 = vmatpush1.msra.mxu0 %v2926
      %3069 = vmatprep.subr.mxu0 0.0
      %3070 = vmatpush1.msra.mxu0 %v2927
      %3071 = vmatprep.subr.mxu0 0.0
      %3072 = vmatpush1.msra.mxu0 %v2928
      %3073 = vmatprep.subr.mxu0 0.0
      %3074 = vmatpush1.msra.mxu0 0.0
      %3075 = vmatprep.subr.mxu0 0.0
      %3076 = vmatpush1.msra.mxu0 0.0
      %3077 = vmatprep.subr.mxu0 0.0
      %3078 = vmatpush1.msra.mxu0 0.0
      %3079 = vmatprep.subr.mxu0 0.0
      %3080 = vmatpush1.msra.mxu0 0.0
      %3081 = vmatprep.subr.mxu0 0.0
      %3082 = vmatpush1.msra.mxu0 0.0
      %3083 = vmatprep.subr.mxu0 0.0
      %3084 = vmatpush1.msra.mxu0 0.0
      %3085 = vmatprep.subr.mxu0 0.0
      %3086 = vmatpush1.msra.mxu0 0.0
      %3087 = vmatprep.subr.mxu0 0.0
      %3088 = vmatpush1.msra.mxu0 0.0
      %3089 = vmatprep.subr.mxu0 0.0
      %3090 = vmatpush1.msra.mxu0 0.0
      %3091 = vmatprep.subr.mxu0 0.0
      %3092 = vmatpush1.msra.mxu0 0.0
      %3093 = vmatprep.subr.mxu0 0.0
      %3094 = vmatpush1.msra.mxu0 0.0
      %3095 = vmatprep.subr.mxu0 0.0
      %3096 = vmatpush1.msra.mxu0 0.0
      %3097 = vmatprep.subr.mxu0 0.0
      %3098 = vmatpush1.msra.mxu0 0.0
      %3099 = vmatprep.subr.mxu0 0.0
      %3100 = vmatpush1.msra.mxu0 0.0
      %3101 = vmatprep.subr.mxu0 0.0
      %3102 = vmatpush1.msra.mxu0 0.0
      %3103 = vmatprep.subr.mxu0 0.0
      %3104 = vmatpush1.msra.mxu0 0.0
      %3105 = vmatprep.mubr.f32.mxu0 0.0
      %3106 = vmatmul.mubr.f32.gmra.mrb[0].mxu0 %v429
      %v3107 = vpop.f32.mrb[0].mxu0
      %v3108 = vadd.f32 0.0, %v3107
      %v3109 = vpop.f32.mrb[0].mxu0
      %3110 = vmatprep.mubr.f32.mxu0 0.0
      %3111 = vmatmul.mubr.f32.gmra.mrb[0].mxu0 %v430
      %v3112 = vpop.f32.mrb[0].mxu0
      %v3113 = vadd.f32 0.0, %v3112
      %v3114 = vpop.f32.mrb[0].mxu0
      %3115 = vmatprep.mubr.f32.mxu0 0.0
      %3116 = vmatmul.mubr.f32.gmra.mrb[0].mxu0 %v431
      %v3117 = vpop.f32.mrb[0].mxu0
      %v3118 = vadd.f32 0.0, %v3117
      %v3119 = vpop.f32.mrb[0].mxu0
      %3120 = vmatprep.mubr.f32.mxu0 0.0
      %3121 = vmatmul.mubr.f32.gmra.mrb[0].mxu0 %v432
      %v3122 = vpop.f32.mrb[0].mxu0
      %v3123 = vadd.f32 0.0, %v3122
      %v3124 = vpop.f32.mrb[0].mxu0
      %3125 = vmatprep.mubr.f32.mxu0 0.0
      %3126 = vmatmul.mubr.f32.gmra.mrb[0].mxu0 %v433
      %v3127 = vpop.f32.mrb[0].mxu0
      %v3128 = vadd.f32 0.0, %v3127
      %v3129 = vpop.f32.mrb[0].mxu0
      %3130 = vmatprep.mubr.f32.mxu0 0.0
      %3131 = vmatmul.mubr.f32.gmra.mrb[0].mxu0 %v434
      %v3132 = vpop.f32.mrb[0].mxu0
      %v3133 = vadd.f32 0.0, %v3132
      %v3134 = vpop.f32.mrb[0].mxu0
      %3135 = vmatprep.mubr.f32.mxu0 0.0
      %3136 = vmatmul.mubr.f32.gmra.mrb[0].mxu0 %v435
      %v3137 = vpop.f32.mrb[0].mxu0
      %v3138 = vadd.f32 0.0, %v3137
      %v3139 = vpop.f32.mrb[0].mxu0
      %3140 = vmatprep.mubr.f32.mxu0 0.0
      %3141 = vmatmul.mubr.f32.gmra.mrb[0].mxu0 %v436
      %v3142 = vpop.f32.mrb[0].mxu0
      %v3143 = vadd.f32 0.0, %v3142
      %v3144 = vpop.f32.mrb[0].mxu0
      %3145 = vmatprep.mubr.f32.mxu0 0.0
      %3146 = vmatmul.mubr.f32.gmra.mrb[0].mxu0 %v437
      %v3147 = vpop.f32.mrb[0].mxu0
      %v3148 = vadd.f32 0.0, %v3147
      %v3149 = vpop.f32.mrb[0].mxu0
      %3150 = vmatprep.mubr.f32.mxu0 0.0
      %3151 = vmatmul.mubr.f32.gmra.mrb[0].mxu0 %v438
      %v3152 = vpop.f32.mrb[0].mxu0
      %v3153 = vadd.f32 0.0, %v3152
      %v3154 = vpop.f32.mrb[0].mxu0
      %3155 = vmatprep.mubr.f32.mxu0 0.0
      %3156 = vmatmul.mubr.f32.gmra.mrb[0].mxu0 %v439
      %v3157 = vpop.f32.mrb[0].mxu0
      %v3158 = vadd.f32 0.0, %v3157
      %v3159 = vpop.f32.mrb[0].mxu0
      %3160 = vmatprep.mubr.f32.mxu0 0.0
      %3161 = vmatmul.mubr.f32.gmra.mrb[0].mxu0 %v440
      %v3162 = vpop.f32.mrb[0].mxu0
      %v3163 = vadd.f32 0.0, %v3162
      %v3164 = vpop.f32.mrb[0].mxu0
      %3165 = vmatprep.mubr.f32.mxu0 0.0
      %3166 = vmatmul.mubr.f32.gmra.mrb[0].mxu0 %v441
      %v3167 = vpop.f32.mrb[0].mxu0
      %v3168 = vadd.f32 0.0, %v3167
      %v3169 = vpop.f32.mrb[0].mxu0
      %3170 = vmatprep.mubr.f32.mxu0 0.0
      %3171 = vmatmul.mubr.f32.gmra.mrb[0].mxu0 %v442
      %v3172 = vpop.f32.mrb[0].mxu0
      %v3173 = vadd.f32 0.0, %v3172
      %v3174 = vpop.f32.mrb[0].mxu0
      %3175 = vmatprep.mubr.f32.mxu0 0.0
      %3176 = vmatmul.mubr.f32.gmra.mrb[0].mxu0 %v443
      %v3177 = vpop.f32.mrb[0].mxu0
      %v3178 = vadd.f32 0.0, %v3177
      %v3179 = vpop.f32.mrb[0].mxu0
      %3180 = vmatprep.mubr.f32.mxu0 0.0
      %3181 = vmatmul.mubr.f32.gmra.mrb[0].mxu0 %v444
      %v3182 = vpop.f32.mrb[0].mxu0
      %v3183 = vadd.f32 0.0, %v3182
      %v3184 = vpop.f32.mrb[0].mxu0
      %3185 = vdwg.mxu0
      %3186 = vmatprep.subr.mxu0 0.0
      %3187 = vmatpush1.msra.mxu0 %v2929
      %3188 = vmatprep.subr.mxu0 0.0
      %3189 = vmatpush1.msra.mxu0 %v2930
      %3190 = vmatprep.subr.mxu0 0.0
      %3191 = vmatpush1.msra.mxu0 %v2931
      %3192 = vmatprep.subr.mxu0 0.0
      %3193 = vmatpush1.msra.mxu0 %v2932
      %3194 = vmatprep.subr.mxu0 0.0
      %3195 = vmatpush1.msra.mxu0 %v2933
      %3196 = vmatprep.subr.mxu0 0.0
      %3197 = vmatpush1.msra.mxu0 %v2934
      %3198 = vmatprep.subr.mxu0 0.0
      %3199 = vmatpush1.msra.mxu0 %v2935
      %3200 = vmatprep.subr.mxu0 0.0
      %3201 = vmatpush1.msra.mxu0 %v2936
      %3202 = vmatprep.subr.mxu0 0.0
      %3203 = vmatpush1.msra.mxu0 %v2937
      %3204 = vmatprep.subr.mxu0 0.0
      %3205 = vmatpush1.msra.mxu0 %v2938
      %3206 = vmatprep.subr.mxu0 0.0
      %3207 = vmatpush1.msra.mxu0 %v2939
      %3208 = vmatprep.subr.mxu0 0.0
      %3209 = vmatpush1.msra.mxu0 %v2940
      %3210 = vmatprep.subr.mxu0 0.0
      %3211 = vmatpush1.msra.mxu0 %v2941
      %3212 = vmatprep.subr.mxu0 0.0
      %3213 = vmatpush1.msra.mxu0 %v2942
      %3214 = vmatprep.subr.mxu0 0.0
      %3215 = vmatpush1.msra.mxu0 %v2943
      %3216 = vmatprep.subr.mxu0 0.0
      %3217 = vmatpush1.msra.mxu0 %v2944
      %3218 = vmatprep.subr.mxu0 0.0
      %3219 = vmatpush1.msra.mxu0 0.0
      %3220 = vmatprep.subr.mxu0 0.0
      %3221 = vmatpush1.msra.mxu0 0.0
      %3222 = vmatprep.subr.mxu0 0.0
      %3223 = vmatpush1.msra.mxu0 0.0
      %3224 = vmatprep.subr.mxu0 0.0
      %3225 = vmatpush1.msra.mxu0 0.0
      %3226 = vmatprep.subr.mxu0 0.0
      %3227 = vmatpush1.msra.mxu0 0.0
      %3228 = vmatprep.subr.mxu0 0.0
      %3229 = vmatpush1.msra.mxu0 0.0
      %3230 = vmatprep.subr.mxu0 0.0
      %3231 = vmatpush1.msra.mxu0 0.0
      %3232 = vmatprep.subr.mxu0 0.0
      %3233 = vmatpush1.msra.mxu0 0.0
      %3234 = vmatprep.subr.mxu0 0.0
      %3235 = vmatpush1.msra.mxu0 0.0
      %3236 = vmatprep.subr.mxu0 0.0
      %3237 = vmatpush1.msra.mxu0 0.0
      %3238 = vmatprep.subr.mxu0 0.0
      %3239 = vmatpush1.msra.mxu0 0.0
      %3240 = vmatprep.subr.mxu0 0.0
      %3241 = vmatpush1.msra.mxu0 0.0
      %3242 = vmatprep.subr.mxu0 0.0
      %3243 = vmatpush1.msra.mxu0 0.0
      %3244 = vmatprep.subr.mxu0 0.0
      %3245 = vmatpush1.msra.mxu0 0.0
      %3246 = vmatprep.subr.mxu0 0.0
      %3247 = vmatpush1.msra.mxu0 0.0
      %3248 = vmatprep.subr.mxu0 0.0
      %3249 = vmatpush1.msra.mxu0 0.0
      %3250 = vmatprep.mubr.f32.mxu0 0.0
      %3251 = vmatmul.mubr.f32.gmra.mrb[0].mxu0 %v461
      %v3252 = vpop.f32.mrb[0].mxu0
      %v3253 = vadd.f32 0.0, %v3252
      %v3254 = vpop.f32.mrb[0].mxu0
      %3255 = vmatprep.mubr.f32.mxu0 0.0
      %3256 = vmatmul.mubr.f32.gmra.mrb[0].mxu0 %v462
      %v3257 = vpop.f32.mrb[0].mxu0
      %v3258 = vadd.f32 0.0, %v3257
      %v3259 = vpop.f32.mrb[0].mxu0
      %3260 = vmatprep.mubr.f32.mxu0 0.0
      %3261 = vmatmul.mubr.f32.gmra.mrb[0].mxu0 %v463
      %v3262 = vpop.f32.mrb[0].mxu0
      %v3263 = vadd.f32 0.0, %v3262
      %v3264 = vpop.f32.mrb[0].mxu0
      %3265 = vmatprep.mubr.f32.mxu0 0.0
      %3266 = vmatmul.mubr.f32.gmra.mrb[0].mxu0 %v464
      %v3267 = vpop.f32.mrb[0].mxu0
      %v3268 = vadd.f32 0.0, %v3267
      %v3269 = vpop.f32.mrb[0].mxu0
      %3270 = vmatprep.mubr.f32.mxu0 0.0
      %3271 = vmatmul.mubr.f32.gmra.mrb[0].mxu0 %v465
      %v3272 = vpop.f32.mrb[0].mxu0
      %v3273 = vadd.f32 0.0, %v3272
      %v3274 = vpop.f32.mrb[0].mxu0
      %3275 = vmatprep.mubr.f32.mxu0 0.0
      %3276 = vmatmul.mubr.f32.gmra.mrb[0].mxu0 %v466
      %v3277 = vpop.f32.mrb[0].mxu0
      %v3278 = vadd.f32 0.0, %v3277
      %v3279 = vpop.f32.mrb[0].mxu0
      %3280 = vmatprep.mubr.f32.mxu0 0.0
      %3281 = vmatmul.mubr.f32.gmra.mrb[0].mxu0 %v467
      %v3282 = vpop.f32.mrb[0].mxu0
      %v3283 = vadd.f32 0.0, %v3282
      %v3284 = vpop.f32.mrb[0].mxu0
      %3285 = vmatprep.mubr.f32.mxu0 0.0
      %3286 = vmatmul.mubr.f32.gmra.mrb[0].mxu0 %v468
      %v3287 = vpop.f32.mrb[0].mxu0
      %v3288 = vadd.f32 0.0, %v3287
      %v3289 = vpop.f32.mrb[0].mxu0
      %3290 = vmatprep.mubr.f32.mxu0 0.0
      %3291 = vmatmul.mubr.f32.gmra.mrb[0].mxu0 %v469
      %v3292 = vpop.f32.mrb[0].mxu0
      %v3293 = vadd.f32 0.0, %v3292
      %v3294 = vpop.f32.mrb[0].mxu0
      %3295 = vmatprep.mubr.f32.mxu0 0.0
      %3296 = vmatmul.mubr.f32.gmra.mrb[0].mxu0 %v470
      %v3297 = vpop.f32.mrb[0].mxu0
      %v3298 = vadd.f32 0.0, %v3297
      %v3299 = vpop.f32.mrb[0].mxu0
      %3300 = vmatprep.mubr.f32.mxu0 0.0
      %3301 = vmatmul.mubr.f32.gmra.mrb[0].mxu0 %v471
      %v3302 = vpop.f32.mrb[0].mxu0
      %v3303 = vadd.f32 0.0, %v3302
      %v3304 = vpop.f32.mrb[0].mxu0
      %3305 = vmatprep.mubr.f32.mxu0 0.0
      %3306 = vmatmul.mubr.f32.gmra.mrb[0].mxu0 %v472
      %v3307 = vpop.f32.mrb[0].mxu0
      %v3308 = vadd.f32 0.0, %v3307
      %v3309 = vpop.f32.mrb[0].mxu0
      %3310 = vmatprep.mubr.f32.mxu0 0.0
      %3311 = vmatmul.mubr.f32.gmra.mrb[0].mxu0 %v473
      %v3312 = vpop.f32.mrb[0].mxu0
      %v3313 = vadd.f32 0.0, %v3312
      %v3314 = vpop.f32.mrb[0].mxu0
      %3315 = vmatprep.mubr.f32.mxu0 0.0
      %3316 = vmatmul.mubr.f32.gmra.mrb[0].mxu0 %v474
      %v3317 = vpop.f32.mrb[0].mxu0
      %v3318 = vadd.f32 0.0, %v3317
      %v3319 = vpop.f32.mrb[0].mxu0
      %3320 = vmatprep.mubr.f32.mxu0 0.0
      %3321 = vmatmul.mubr.f32.gmra.mrb[0].mxu0 %v475
      %v3322 = vpop.f32.mrb[0].mxu0
      %v3323 = vadd.f32 0.0, %v3322
      %v3324 = vpop.f32.mrb[0].mxu0
      %3325 = vmatprep.mubr.f32.mxu0 0.0
      %3326 = vmatmul.mubr.f32.gmra.mrb[0].mxu0 %v476
      %v3327 = vpop.f32.mrb[0].mxu0
      %v3328 = vadd.f32 0.0, %v3327
      %v3329 = vpop.f32.mrb[0].mxu0
      %3330 = vdwg.mxu0
      %3331 = vmatprep.subr.mxu0 0.0
      %3332 = vmatpush1.msra.mxu0 %v2945
      %3333 = vmatprep.subr.mxu0 0.0
      %3334 = vmatpush1.msra.mxu0 %v2946
      %3335 = vmatprep.subr.mxu0 0.0
      %3336 = vmatpush1.msra.mxu0 %v2947
      %3337 = vmatprep.subr.mxu0 0.0
      %3338 = vmatpush1.msra.mxu0 %v2948
      %3339 = vmatprep.subr.mxu0 0.0
      %3340 = vmatpush1.msra.mxu0 %v2949
      %3341 = vmatprep.subr.mxu0 0.0
      %3342 = vmatpush1.msra.mxu0 %v2950
      %3343 = vmatprep.subr.mxu0 0.0
      %3344 = vmatpush1.msra.mxu0 %v2951
      %3345 = vmatprep.subr.mxu0 0.0
      %3346 = vmatpush1.msra.mxu0 %v2952
      %3347 = vmatprep.subr.mxu0 0.0
      %3348 = vmatpush1.msra.mxu0 %v2953
      %3349 = vmatprep.subr.mxu0 0.0
      %3350 = vmatpush1.msra.mxu0 %v2954
      %3351 = vmatprep.subr.mxu0 0.0
      %3352 = vmatpush1.msra.mxu0 %v2955
      %3353 = vmatprep.subr.mxu0 0.0
      %3354 = vmatpush1.msra.mxu0 %v2956
      %3355 = vmatprep.subr.mxu0 0.0
      %3356 = vmatpush1.msra.mxu0 %v2957
      %3357 = vmatprep.subr.mxu0 0.0
      %3358 = vmatpush1.msra.mxu0 %v2958
      %3359 = vmatprep.subr.mxu0 0.0
      %3360 = vmatpush1.msra.mxu0 %v2959
      %3361 = vmatprep.subr.mxu0 0.0
      %3362 = vmatpush1.msra.mxu0 %v2960
      %3363 = vmatprep.subr.mxu0 0.0
      %3364 = vmatpush1.msra.mxu0 0.0
      %3365 = vmatprep.subr.mxu0 0.0
      %3366 = vmatpush1.msra.mxu0 0.0
      %3367 = vmatprep.subr.mxu0 0.0
      %3368 = vmatpush1.msra.mxu0 0.0
      %3369 = vmatprep.subr.mxu0 0.0
      %3370 = vmatpush1.msra.mxu0 0.0
      %3371 = vmatprep.subr.mxu0 0.0
      %3372 = vmatpush1.msra.mxu0 0.0
      %3373 = vmatprep.subr.mxu0 0.0
      %3374 = vmatpush1.msra.mxu0 0.0
      %3375 = vmatprep.subr.mxu0 0.0
      %3376 = vmatpush1.msra.mxu0 0.0
      %3377 = vmatprep.subr.mxu0 0.0
      %3378 = vmatpush1.msra.mxu0 0.0
      %3379 = vmatprep.subr.mxu0 0.0
      %3380 = vmatpush1.msra.mxu0 0.0
      %3381 = vmatprep.subr.mxu0 0.0
      %3382 = vmatpush1.msra.mxu0 0.0
      %3383 = vmatprep.subr.mxu0 0.0
      %3384 = vmatpush1.msra.mxu0 0.0
      %3385 = vmatprep.subr.mxu0 0.0
      %3386 = vmatpush1.msra.mxu0 0.0
      %3387 = vmatprep.subr.mxu0 0.0
      %3388 = vmatpush1.msra.mxu0 0.0
      %3389 = vmatprep.subr.mxu0 0.0
      %3390 = vmatpush1.msra.mxu0 0.0
      %3391 = vmatprep.subr.mxu0 0.0
      %3392 = vmatpush1.msra.mxu0 0.0
      %3393 = vmatprep.subr.mxu0 0.0
      %3394 = vmatpush1.msra.mxu0 0.0
      %3395 = vmatprep.mubr.f32.mxu0 0.0
      %3396 = vmatmul.mubr.f32.gmra.mrb[0].mxu0 %v493
      %v3397 = vpop.f32.mrb[0].mxu0
      %v3398 = vadd.f32 0.0, %v3397
      %v3399 = vpop.f32.mrb[0].mxu0
      %3400 = vmatprep.mubr.f32.mxu0 0.0
      %3401 = vmatmul.mubr.f32.gmra.mrb[0].mxu0 %v494
      %v3402 = vpop.f32.mrb[0].mxu0
      %v3403 = vadd.f32 0.0, %v3402
      %v3404 = vpop.f32.mrb[0].mxu0
      %3405 = vmatprep.mubr.f32.mxu0 0.0
      %3406 = vmatmul.mubr.f32.gmra.mrb[0].mxu0 %v495
      %v3407 = vpop.f32.mrb[0].mxu0
      %v3408 = vadd.f32 0.0, %v3407
      %v3409 = vpop.f32.mrb[0].mxu0
      %3410 = vmatprep.mubr.f32.mxu0 0.0
      %3411 = vmatmul.mubr.f32.gmra.mrb[0].mxu0 %v496
      %v3412 = vpop.f32.mrb[0].mxu0
      %v3413 = vadd.f32 0.0, %v3412
      %v3414 = vpop.f32.mrb[0].mxu0
      %3415 = vmatprep.mubr.f32.mxu0 0.0
      %3416 = vmatmul.mubr.f32.gmra.mrb[0].mxu0 %v497
      %v3417 = vpop.f32.mrb[0].mxu0
      %v3418 = vadd.f32 0.0, %v3417
      %v3419 = vpop.f32.mrb[0].mxu0
      %3420 = vmatprep.mubr.f32.mxu0 0.0
      %3421 = vmatmul.mubr.f32.gmra.mrb[0].mxu0 %v498
      %v3422 = vpop.f32.mrb[0].mxu0
      %v3423 = vadd.f32 0.0, %v3422
      %v3424 = vpop.f32.mrb[0].mxu0
      %3425 = vmatprep.mubr.f32.mxu0 0.0
      %3426 = vmatmul.mubr.f32.gmra.mrb[0].mxu0 %v499
      %v3427 = vpop.f32.mrb[0].mxu0
      %v3428 = vadd.f32 0.0, %v3427
      %v3429 = vpop.f32.mrb[0].mxu0
      %3430 = vmatprep.mubr.f32.mxu0 0.0
      %3431 = vmatmul.mubr.f32.gmra.mrb[0].mxu0 %v500
      %v3432 = vpop.f32.mrb[0].mxu0
      %v3433 = vadd.f32 0.0, %v3432
      %v3434 = vpop.f32.mrb[0].mxu0
      %3435 = vmatprep.mubr.f32.mxu0 0.0
      %3436 = vmatmul.mubr.f32.gmra.mrb[0].mxu0 %v501
      %v3437 = vpop.f32.mrb[0].mxu0
      %v3438 = vadd.f32 0.0, %v3437
      %v3439 = vpop.f32.mrb[0].mxu0
      %3440 = vmatprep.mubr.f32.mxu0 0.0
      %3441 = vmatmul.mubr.f32.gmra.mrb[0].mxu0 %v502
      %v3442 = vpop.f32.mrb[0].mxu0
      %v3443 = vadd.f32 0.0, %v3442
      %v3444 = vpop.f32.mrb[0].mxu0
      %3445 = vmatprep.mubr.f32.mxu0 0.0
      %3446 = vmatmul.mubr.f32.gmra.mrb[0].mxu0 %v503
      %v3447 = vpop.f32.mrb[0].mxu0
      %v3448 = vadd.f32 0.0, %v3447
      %v3449 = vpop.f32.mrb[0].mxu0
      %3450 = vmatprep.mubr.f32.mxu0 0.0
      %3451 = vmatmul.mubr.f32.gmra.mrb[0].mxu0 %v504
      %v3452 = vpop.f32.mrb[0].mxu0
      %v3453 = vadd.f32 0.0, %v3452
      %v3454 = vpop.f32.mrb[0].mxu0
      %3455 = vmatprep.mubr.f32.mxu0 0.0
      %3456 = vmatmul.mubr.f32.gmra.mrb[0].mxu0 %v505
      %v3457 = vpop.f32.mrb[0].mxu0
      %v3458 = vadd.f32 0.0, %v3457
      %v3459 = vpop.f32.mrb[0].mxu0
      %3460 = vmatprep.mubr.f32.mxu0 0.0
      %3461 = vmatmul.mubr.f32.gmra.mrb[0].mxu0 %v506
      %v3462 = vpop.f32.mrb[0].mxu0
      %v3463 = vadd.f32 0.0, %v3462
      %v3464 = vpop.f32.mrb[0].mxu0
      %3465 = vmatprep.mubr.f32.mxu0 0.0
      %3466 = vmatmul.mubr.f32.gmra.mrb[0].mxu0 %v507
      %v3467 = vpop.f32.mrb[0].mxu0
      %v3468 = vadd.f32 0.0, %v3467
      %v3469 = vpop.f32.mrb[0].mxu0
      %3470 = vmatprep.mubr.f32.mxu0 0.0
      %3471 = vmatmul.mubr.f32.gmra.mrb[0].mxu0 %v508
      %v3472 = vpop.f32.mrb[0].mxu0
      %v3473 = vadd.f32 0.0, %v3472
      %v3474 = vpop.f32.mrb[0].mxu0
      %3475 = vdwg.mxu0
      %3476 = vmatprep.subr.mxu0 0.0
      %3477 = vmatpush1.msra.mxu0 %v2961
      %3478 = vmatprep.subr.mxu0 0.0
      %3479 = vmatpush1.msra.mxu0 %v2962
      %3480 = vmatprep.subr.mxu0 0.0
      %3481 = vmatpush1.msra.mxu0 %v2963
      %3482 = vmatprep.subr.mxu0 0.0
      %3483 = vmatpush1.msra.mxu0 %v2964
      %3484 = vmatprep.subr.mxu0 0.0
      %3485 = vmatpush1.msra.mxu0 %v2965
      %3486 = vmatprep.subr.mxu0 0.0
      %3487 = vmatpush1.msra.mxu0 %v2966
      %3488 = vmatprep.subr.mxu0 0.0
      %3489 = vmatpush1.msra.mxu0 %v2967
      %3490 = vmatprep.subr.mxu0 0.0
      %3491 = vmatpush1.msra.mxu0 %v2968
      %3492 = vmatprep.subr.mxu0 0.0
      %3493 = vmatpush1.msra.mxu0 %v2969
      %3494 = vmatprep.subr.mxu0 0.0
      %3495 = vmatpush1.msra.mxu0 %v2970
      %3496 = vmatprep.subr.mxu0 0.0
      %3497 = vmatpush1.msra.mxu0 %v2971
      %3498 = vmatprep.subr.mxu0 0.0
      %3499 = vmatpush1.msra.mxu0 %v2972
      %3500 = vmatprep.subr.mxu0 0.0
      %3501 = vmatpush1.msra.mxu0 %v2973
      %3502 = vmatprep.subr.mxu0 0.0
      %3503 = vmatpush1.msra.mxu0 %v2974
      %3504 = vmatprep.subr.mxu0 0.0
      %3505 = vmatpush1.msra.mxu0 %v2975
      %3506 = vmatprep.subr.mxu0 0.0
      %3507 = vmatpush1.msra.mxu0 %v2976
      %3508 = vmatprep.subr.mxu0 0.0
      %3509 = vmatpush1.msra.mxu0 0.0
      %3510 = vmatprep.subr.mxu0 0.0
      %3511 = vmatpush1.msra.mxu0 0.0
      %3512 = vmatprep.subr.mxu0 0.0
      %3513 = vmatpush1.msra.mxu0 0.0
      %3514 = vmatprep.subr.mxu0 0.0
      %3515 = vmatpush1.msra.mxu0 0.0
      %3516 = vmatprep.subr.mxu0 0.0
      %3517 = vmatpush1.msra.mxu0 0.0
      %3518 = vmatprep.subr.mxu0 0.0
      %3519 = vmatpush1.msra.mxu0 0.0
      %3520 = vmatprep.subr.mxu0 0.0
      %3521 = vmatpush1.msra.mxu0 0.0
      %3522 = vmatprep.subr.mxu0 0.0
      %3523 = vmatpush1.msra.mxu0 0.0
      %3524 = vmatprep.subr.mxu0 0.0
      %3525 = vmatpush1.msra.mxu0 0.0
      %3526 = vmatprep.subr.mxu0 0.0
      %3527 = vmatpush1.msra.mxu0 0.0
      %3528 = vmatprep.subr.mxu0 0.0
      %3529 = vmatpush1.msra.mxu0 0.0
      %3530 = vmatprep.subr.mxu0 0.0
      %3531 = vmatpush1.msra.mxu0 0.0
      %3532 = vmatprep.subr.mxu0 0.0
      %3533 = vmatpush1.msra.mxu0 0.0
      %3534 = vmatprep.subr.mxu0 0.0
      %3535 = vmatpush1.msra.mxu0 0.0
      %3536 = vmatprep.subr.mxu0 0.0
      %3537 = vmatpush1.msra.mxu0 0.0
      %3538 = vmatprep.subr.mxu0 0.0
      %3539 = vmatpush1.msra.mxu0 0.0
      %3540 = vmatprep.mubr.f32.mxu0 0.0
      %3541 = vmatmul.mubr.f32.gmra.mrb[0].mxu0 %v525
      %v3542 = vpop.f32.mrb[0].mxu0
      %v3543 = vadd.f32 0.0, %v3542
      %v3544 = vpop.f32.mrb[0].mxu0
      %3545 = vmatprep.mubr.f32.mxu0 0.0
      %3546 = vmatmul.mubr.f32.gmra.mrb[0].mxu0 %v526
      %v3547 = vpop.f32.mrb[0].mxu0
      %v3548 = vadd.f32 0.0, %v3547
      %v3549 = vpop.f32.mrb[0].mxu0
      %3550 = vmatprep.mubr.f32.mxu0 0.0
      %3551 = vmatmul.mubr.f32.gmra.mrb[0].mxu0 %v527
      %v3552 = vpop.f32.mrb[0].mxu0
      %v3553 = vadd.f32 0.0, %v3552
      %v3554 = vpop.f32.mrb[0].mxu0
      %3555 = vmatprep.mubr.f32.mxu0 0.0
      %3556 = vmatmul.mubr.f32.gmra.mrb[0].mxu0 %v528
      %v3557 = vpop.f32.mrb[0].mxu0
      %v3558 = vadd.f32 0.0, %v3557
      %v3559 = vpop.f32.mrb[0].mxu0
      %3560 = vmatprep.mubr.f32.mxu0 0.0
      %3561 = vmatmul.mubr.f32.gmra.mrb[0].mxu0 %v529
      %v3562 = vpop.f32.mrb[0].mxu0
      %v3563 = vadd.f32 0.0, %v3562
      %v3564 = vpop.f32.mrb[0].mxu0
      %3565 = vmatprep.mubr.f32.mxu0 0.0
      %3566 = vmatmul.mubr.f32.gmra.mrb[0].mxu0 %v530
      %v3567 = vpop.f32.mrb[0].mxu0
      %v3568 = vadd.f32 0.0, %v3567
      %v3569 = vpop.f32.mrb[0].mxu0
      %3570 = vmatprep.mubr.f32.mxu0 0.0
      %3571 = vmatmul.mubr.f32.gmra.mrb[0].mxu0 %v531
      %v3572 = vpop.f32.mrb[0].mxu0
      %v3573 = vadd.f32 0.0, %v3572
      %v3574 = vpop.f32.mrb[0].mxu0
      %3575 = vmatprep.mubr.f32.mxu0 0.0
      %3576 = vmatmul.mubr.f32.gmra.mrb[0].mxu0 %v532
      %v3577 = vpop.f32.mrb[0].mxu0
      %v3578 = vadd.f32 0.0, %v3577
      %v3579 = vpop.f32.mrb[0].mxu0
      %3580 = vmatprep.mubr.f32.mxu0 0.0
      %3581 = vmatmul.mubr.f32.gmra.mrb[0].mxu0 %v533
      %v3582 = vpop.f32.mrb[0].mxu0
      %v3583 = vadd.f32 0.0, %v3582
      %v3584 = vpop.f32.mrb[0].mxu0
      %3585 = vmatprep.mubr.f32.mxu0 0.0
      %3586 = vmatmul.mubr.f32.gmra.mrb[0].mxu0 %v534
      %v3587 = vpop.f32.mrb[0].mxu0
      %v3588 = vadd.f32 0.0, %v3587
      %v3589 = vpop.f32.mrb[0].mxu0
      %3590 = vmatprep.mubr.f32.mxu0 0.0
      %3591 = vmatmul.mubr.f32.gmra.mrb[0].mxu0 %v535
      %v3592 = vpop.f32.mrb[0].mxu0
      %v3593 = vadd.f32 0.0, %v3592
      %v3594 = vpop.f32.mrb[0].mxu0
      %3595 = vmatprep.mubr.f32.mxu0 0.0
      %3596 = vmatmul.mubr.f32.gmra.mrb[0].mxu0 %v536
      %v3597 = vpop.f32.mrb[0].mxu0
      %v3598 = vadd.f32 0.0, %v3597
      %v3599 = vpop.f32.mrb[0].mxu0
      %3600 = vmatprep.mubr.f32.mxu0 0.0
      %3601 = vmatmul.mubr.f32.gmra.mrb[0].mxu0 %v537
      %v3602 = vpop.f32.mrb[0].mxu0
      %v3603 = vadd.f32 0.0, %v3602
      %v3604 = vpop.f32.mrb[0].mxu0
      %3605 = vmatprep.mubr.f32.mxu0 0.0
      %3606 = vmatmul.mubr.f32.gmra.mrb[0].mxu0 %v538
      %v3607 = vpop.f32.mrb[0].mxu0
      %v3608 = vadd.f32 0.0, %v3607
      %v3609 = vpop.f32.mrb[0].mxu0
      %3610 = vmatprep.mubr.f32.mxu0 0.0
      %3611 = vmatmul.mubr.f32.gmra.mrb[0].mxu0 %v539
      %v3612 = vpop.f32.mrb[0].mxu0
      %v3613 = vadd.f32 0.0, %v3612
      %v3614 = vpop.f32.mrb[0].mxu0
      %3615 = vmatprep.mubr.f32.mxu0 0.0
      %3616 = vmatmul.mubr.f32.gmra.mrb[0].mxu0 %v540
      %v3617 = vpop.f32.mrb[0].mxu0
      %v3618 = vadd.f32 0.0, %v3617
      %v3619 = vpop.f32.mrb[0].mxu0
      %3620 = vdwg.mxu0
      %3621 = vmatprep.subr.mxu0 0.0
      %3622 = vmatpush1.msra.mxu0 %v2977
      %3623 = vmatprep.subr.mxu0 0.0
      %3624 = vmatpush1.msra.mxu0 %v2978
      %3625 = vmatprep.subr.mxu0 0.0
      %3626 = vmatpush1.msra.mxu0 %v2979
      %3627 = vmatprep.subr.mxu0 0.0
      %3628 = vmatpush1.msra.mxu0 %v2980
      %3629 = vmatprep.subr.mxu0 0.0
      %3630 = vmatpush1.msra.mxu0 %v2981
      %3631 = vmatprep.subr.mxu0 0.0
      %3632 = vmatpush1.msra.mxu0 %v2982
      %3633 = vmatprep.subr.mxu0 0.0
      %3634 = vmatpush1.msra.mxu0 %v2983
      %3635 = vmatprep.subr.mxu0 0.0
      %3636 = vmatpush1.msra.mxu0 %v2984
      %3637 = vmatprep.subr.mxu0 0.0
      %3638 = vmatpush1.msra.mxu0 %v2985
      %3639 = vmatprep.subr.mxu0 0.0
      %3640 = vmatpush1.msra.mxu0 %v2986
      %3641 = vmatprep.subr.mxu0 0.0
      %3642 = vmatpush1.msra.mxu0 %v2987
      %3643 = vmatprep.subr.mxu0 0.0
      %3644 = vmatpush1.msra.mxu0 %v2988
      %3645 = vmatprep.subr.mxu0 0.0
      %3646 = vmatpush1.msra.mxu0 %v2989
      %3647 = vmatprep.subr.mxu0 0.0
      %3648 = vmatpush1.msra.mxu0 %v2990
      %3649 = vmatprep.subr.mxu0 0.0
      %3650 = vmatpush1.msra.mxu0 %v2991
      %3651 = vmatprep.subr.mxu0 0.0
      %3652 = vmatpush1.msra.mxu0 %v2992
      %3653 = vmatprep.subr.mxu0 0.0
      %3654 = vmatpush1.msra.mxu0 0.0
      %3655 = vmatprep.subr.mxu0 0.0
      %3656 = vmatpush1.msra.mxu0 0.0
      %3657 = vmatprep.subr.mxu0 0.0
      %3658 = vmatpush1.msra.mxu0 0.0
      %3659 = vmatprep.subr.mxu0 0.0
      %3660 = vmatpush1.msra.mxu0 0.0
      %3661 = vmatprep.subr.mxu0 0.0
      %3662 = vmatpush1.msra.mxu0 0.0
      %3663 = vmatprep.subr.mxu0 0.0
      %3664 = vmatpush1.msra.mxu0 0.0
      %3665 = vmatprep.subr.mxu0 0.0
      %3666 = vmatpush1.msra.mxu0 0.0
      %3667 = vmatprep.subr.mxu0 0.0
      %3668 = vmatpush1.msra.mxu0 0.0
      %3669 = vmatprep.subr.mxu0 0.0
      %3670 = vmatpush1.msra.mxu0 0.0
      %3671 = vmatprep.subr.mxu0 0.0
      %3672 = vmatpush1.msra.mxu0 0.0
      %3673 = vmatprep.subr.mxu0 0.0
      %3674 = vmatpush1.msra.mxu0 0.0
      %3675 = vmatprep.subr.mxu0 0.0
      %3676 = vmatpush1.msra.mxu0 0.0
      %3677 = vmatprep.subr.mxu0 0.0
      %3678 = vmatpush1.msra.mxu0 0.0
      %3679 = vmatprep.subr.mxu0 0.0
      %3680 = vmatpush1.msra.mxu0 0.0
      %3681 = vmatprep.subr.mxu0 0.0
      %3682 = vmatpush1.msra.mxu0 0.0
      %3683 = vmatprep.subr.mxu0 0.0
      %3684 = vmatpush1.msra.mxu0 0.0
      %3685 = vmatprep.mubr.f32.mxu0 0.0
      %3686 = vmatmul.mubr.f32.gmra.mrb[0].mxu0 %v557
      %v3687 = vpop.f32.mrb[0].mxu0
      %v3688 = vadd.f32 0.0, %v3687
      %v3689 = vpop.f32.mrb[0].mxu0
      %3690 = vmatprep.mubr.f32.mxu0 0.0
      %3691 = vmatmul.mubr.f32.gmra.mrb[0].mxu0 %v558
      %v3692 = vpop.f32.mrb[0].mxu0
      %v3693 = vadd.f32 0.0, %v3692
      %v3694 = vpop.f32.mrb[0].mxu0
      %3695 = vmatprep.mubr.f32.mxu0 0.0
      %3696 = vmatmul.mubr.f32.gmra.mrb[0].mxu0 %v559
      %v3697 = vpop.f32.mrb[0].mxu0
      %v3698 = vadd.f32 0.0, %v3697
      %v3699 = vpop.f32.mrb[0].mxu0
      %3700 = vmatprep.mubr.f32.mxu0 0.0
      %3701 = vmatmul.mubr.f32.gmra.mrb[0].mxu0 %v560
      %v3702 = vpop.f32.mrb[0].mxu0
      %v3703 = vadd.f32 0.0, %v3702
      %v3704 = vpop.f32.mrb[0].mxu0
      %3705 = vmatprep.mubr.f32.mxu0 0.0
      %3706 = vmatmul.mubr.f32.gmra.mrb[0].mxu0 %v561
      %v3707 = vpop.f32.mrb[0].mxu0
      %v3708 = vadd.f32 0.0, %v3707
      %v3709 = vpop.f32.mrb[0].mxu0
      %3710 = vmatprep.mubr.f32.mxu0 0.0
      %3711 = vmatmul.mubr.f32.gmra.mrb[0].mxu0 %v562
      %v3712 = vpop.f32.mrb[0].mxu0
      %v3713 = vadd.f32 0.0, %v3712
      %v3714 = vpop.f32.mrb[0].mxu0
      %3715 = vmatprep.mubr.f32.mxu0 0.0
      %3716 = vmatmul.mubr.f32.gmra.mrb[0].mxu0 %v563
      %v3717 = vpop.f32.mrb[0].mxu0
      %v3718 = vadd.f32 0.0, %v3717
      %v3719 = vpop.f32.mrb[0].mxu0
      %3720 = vmatprep.mubr.f32.mxu0 0.0
      %3721 = vmatmul.mubr.f32.gmra.mrb[0].mxu0 %v564
      %v3722 = vpop.f32.mrb[0].mxu0
      %v3723 = vadd.f32 0.0, %v3722
      %v3724 = vpop.f32.mrb[0].mxu0
      %3725 = vmatprep.mubr.f32.mxu0 0.0
      %3726 = vmatmul.mubr.f32.gmra.mrb[0].mxu0 %v565
      %v3727 = vpop.f32.mrb[0].mxu0
      %v3728 = vadd.f32 0.0, %v3727
      %v3729 = vpop.f32.mrb[0].mxu0
      %3730 = vmatprep.mubr.f32.mxu0 0.0
      %3731 = vmatmul.mubr.f32.gmra.mrb[0].mxu0 %v566
      %v3732 = vpop.f32.mrb[0].mxu0
      %v3733 = vadd.f32 0.0, %v3732
      %v3734 = vpop.f32.mrb[0].mxu0
      %3735 = vmatprep.mubr.f32.mxu0 0.0
      %3736 = vmatmul.mubr.f32.gmra.mrb[0].mxu0 %v567
      %v3737 = vpop.f32.mrb[0].mxu0
      %v3738 = vadd.f32 0.0, %v3737
      %v3739 = vpop.f32.mrb[0].mxu0
      %3740 = vmatprep.mubr.f32.mxu0 0.0
      %3741 = vmatmul.mubr.f32.gmra.mrb[0].mxu0 %v568
      %v3742 = vpop.f32.mrb[0].mxu0
      %v3743 = vadd.f32 0.0, %v3742
      %v3744 = vpop.f32.mrb[0].mxu0
      %3745 = vmatprep.mubr.f32.mxu0 0.0
      %3746 = vmatmul.mubr.f32.gmra.mrb[0].mxu0 %v569
      %v3747 = vpop.f32.mrb[0].mxu0
      %v3748 = vadd.f32 0.0, %v3747
      %v3749 = vpop.f32.mrb[0].mxu0
      %3750 = vmatprep.mubr.f32.mxu0 0.0
      %3751 = vmatmul.mubr.f32.gmra.mrb[0].mxu0 %v570
      %v3752 = vpop.f32.mrb[0].mxu0
      %v3753 = vadd.f32 0.0, %v3752
      %v3754 = vpop.f32.mrb[0].mxu0
      %3755 = vmatprep.mubr.f32.mxu0 0.0
      %3756 = vmatmul.mubr.f32.gmra.mrb[0].mxu0 %v571
      %v3757 = vpop.f32.mrb[0].mxu0
      %v3758 = vadd.f32 0.0, %v3757
      %v3759 = vpop.f32.mrb[0].mxu0
      %3760 = vmatprep.mubr.f32.mxu0 0.0
      %3761 = vmatmul.mubr.f32.gmra.mrb[0].mxu0 %v572
      %v3762 = vpop.f32.mrb[0].mxu0
      %v3763 = vadd.f32 0.0, %v3762
      %v3764 = vpop.f32.mrb[0].mxu0
      %3765 = vdwg.mxu0
      %3766 = vmatprep.subr.mxu0 0.0
      %3767 = vmatpush1.msra.mxu0 %v2993
      %3768 = vmatprep.subr.mxu0 0.0
      %3769 = vmatpush1.msra.mxu0 %v2994
      %3770 = vmatprep.subr.mxu0 0.0
      %3771 = vmatpush1.msra.mxu0 %v2995
      %3772 = vmatprep.subr.mxu0 0.0
      %3773 = vmatpush1.msra.mxu0 %v2996
      %3774 = vmatprep.subr.mxu0 0.0
      %3775 = vmatpush1.msra.mxu0 %v2997
      %3776 = vmatprep.subr.mxu0 0.0
      %3777 = vmatpush1.msra.mxu0 %v2998
      %3778 = vmatprep.subr.mxu0 0.0
      %3779 = vmatpush1.msra.mxu0 %v2999
      %3780 = vmatprep.subr.mxu0 0.0
      %3781 = vmatpush1.msra.mxu0 %v3000
      %3782 = vmatprep.subr.mxu0 0.0
      %3783 = vmatpush1.msra.mxu0 %v3001
      %3784 = vmatprep.subr.mxu0 0.0
      %3785 = vmatpush1.msra.mxu0 %v3002
      %3786 = vmatprep.subr.mxu0 0.0
      %3787 = vmatpush1.msra.mxu0 %v3003
      %3788 = vmatprep.subr.mxu0 0.0
      %3789 = vmatpush1.msra.mxu0 %v3004
      %3790 = vmatprep.subr.mxu0 0.0
      %3791 = vmatpush1.msra.mxu0 %v3005
      %3792 = vmatprep.subr.mxu0 0.0
      %3793 = vmatpush1.msra.mxu0 %v3006
      %3794 = vmatprep.subr.mxu0 0.0
      %3795 = vmatpush1.msra.mxu0 %v3007
      %3796 = vmatprep.subr.mxu0 0.0
      %3797 = vmatpush1.msra.mxu0 %v3008
      %3798 = vmatprep.subr.mxu0 0.0
      %3799 = vmatpush1.msra.mxu0 0.0
      %3800 = vmatprep.subr.mxu0 0.0
      %3801 = vmatpush1.msra.mxu0 0.0
      %3802 = vmatprep.subr.mxu0 0.0
      %3803 = vmatpush1.msra.mxu0 0.0
      %3804 = vmatprep.subr.mxu0 0.0
      %3805 = vmatpush1.msra.mxu0 0.0
      %3806 = vmatprep.subr.mxu0 0.0
      %3807 = vmatpush1.msra.mxu0 0.0
      %3808 = vmatprep.subr.mxu0 0.0
      %3809 = vmatpush1.msra.mxu0 0.0
      %3810 = vmatprep.subr.mxu0 0.0
      %3811 = vmatpush1.msra.mxu0 0.0
      %3812 = vmatprep.subr.mxu0 0.0
      %3813 = vmatpush1.msra.mxu0 0.0
      %3814 = vmatprep.subr.mxu0 0.0
      %3815 = vmatpush1.msra.mxu0 0.0
      %3816 = vmatprep.subr.mxu0 0.0
      %3817 = vmatpush1.msra.mxu0 0.0
      %3818 = vmatprep.subr.mxu0 0.0
      %3819 = vmatpush1.msra.mxu0 0.0
      %3820 = vmatprep.subr.mxu0 0.0
      %3821 = vmatpush1.msra.mxu0 0.0
      %3822 = vmatprep.subr.mxu0 0.0
      %3823 = vmatpush1.msra.mxu0 0.0
      %3824 = vmatprep.subr.mxu0 0.0
      %3825 = vmatpush1.msra.mxu0 0.0
      %3826 = vmatprep.subr.mxu0 0.0
      %3827 = vmatpush1.msra.mxu0 0.0
      %3828 = vmatprep.subr.mxu0 0.0
      %3829 = vmatpush1.msra.mxu0 0.0
      %3830 = vmatprep.mubr.f32.mxu0 0.0
      %3831 = vmatmul.mubr.f32.gmra.mrb[0].mxu0 %v589
      %v3832 = vpop.f32.mrb[0].mxu0
      %v3833 = vadd.f32 0.0, %v3832
      %v3834 = vpop.f32.mrb[0].mxu0
      %3835 = vmatprep.mubr.f32.mxu0 0.0
      %3836 = vmatmul.mubr.f32.gmra.mrb[0].mxu0 %v590
      %v3837 = vpop.f32.mrb[0].mxu0
      %v3838 = vadd.f32 0.0, %v3837
      %v3839 = vpop.f32.mrb[0].mxu0
      %3840 = vmatprep.mubr.f32.mxu0 0.0
      %3841 = vmatmul.mubr.f32.gmra.mrb[0].mxu0 %v591
      %v3842 = vpop.f32.mrb[0].mxu0
      %v3843 = vadd.f32 0.0, %v3842
      %v3844 = vpop.f32.mrb[0].mxu0
      %3845 = vmatprep.mubr.f32.mxu0 0.0
      %3846 = vmatmul.mubr.f32.gmra.mrb[0].mxu0 %v592
      %v3847 = vpop.f32.mrb[0].mxu0
      %v3848 = vadd.f32 0.0, %v3847
      %v3849 = vpop.f32.mrb[0].mxu0
      %3850 = vmatprep.mubr.f32.mxu0 0.0
      %3851 = vmatmul.mubr.f32.gmra.mrb[0].mxu0 %v593
      %v3852 = vpop.f32.mrb[0].mxu0
      %v3853 = vadd.f32 0.0, %v3852
      %v3854 = vpop.f32.mrb[0].mxu0
      %3855 = vmatprep.mubr.f32.mxu0 0.0
      %3856 = vmatmul.mubr.f32.gmra.mrb[0].mxu0 %v594
      %v3857 = vpop.f32.mrb[0].mxu0
      %v3858 = vadd.f32 0.0, %v3857
      %v3859 = vpop.f32.mrb[0].mxu0
      %3860 = vmatprep.mubr.f32.mxu0 0.0
      %3861 = vmatmul.mubr.f32.gmra.mrb[0].mxu0 %v595
      %v3862 = vpop.f32.mrb[0].mxu0
      %v3863 = vadd.f32 0.0, %v3862
      %v3864 = vpop.f32.mrb[0].mxu0
      %3865 = vmatprep.mubr.f32.mxu0 0.0
      %3866 = vmatmul.mubr.f32.gmra.mrb[0].mxu0 %v596
      %v3867 = vpop.f32.mrb[0].mxu0
      %v3868 = vadd.f32 0.0, %v3867
      %v3869 = vpop.f32.mrb[0].mxu0
      %3870 = vmatprep.mubr.f32.mxu0 0.0
      %3871 = vmatmul.mubr.f32.gmra.mrb[0].mxu0 %v597
      %v3872 = vpop.f32.mrb[0].mxu0
      %v3873 = vadd.f32 0.0, %v3872
      %v3874 = vpop.f32.mrb[0].mxu0
      %3875 = vmatprep.mubr.f32.mxu0 0.0
      %3876 = vmatmul.mubr.f32.gmra.mrb[0].mxu0 %v598
      %v3877 = vpop.f32.mrb[0].mxu0
      %v3878 = vadd.f32 0.0, %v3877
      %v3879 = vpop.f32.mrb[0].mxu0
      %3880 = vmatprep.mubr.f32.mxu0 0.0
      %3881 = vmatmul.mubr.f32.gmra.mrb[0].mxu0 %v599
      %v3882 = vpop.f32.mrb[0].mxu0
      %v3883 = vadd.f32 0.0, %v3882
      %v3884 = vpop.f32.mrb[0].mxu0
      %3885 = vmatprep.mubr.f32.mxu0 0.0
      %3886 = vmatmul.mubr.f32.gmra.mrb[0].mxu0 %v600
      %v3887 = vpop.f32.mrb[0].mxu0
      %v3888 = vadd.f32 0.0, %v3887
      %v3889 = vpop.f32.mrb[0].mxu0
      %3890 = vmatprep.mubr.f32.mxu0 0.0
      %3891 = vmatmul.mubr.f32.gmra.mrb[0].mxu0 %v601
      %v3892 = vpop.f32.mrb[0].mxu0
      %v3893 = vadd.f32 0.0, %v3892
      %v3894 = vpop.f32.mrb[0].mxu0
      %3895 = vmatprep.mubr.f32.mxu0 0.0
      %3896 = vmatmul.mubr.f32.gmra.mrb[0].mxu0 %v602
      %v3897 = vpop.f32.mrb[0].mxu0
      %v3898 = vadd.f32 0.0, %v3897
      %v3899 = vpop.f32.mrb[0].mxu0
      %3900 = vmatprep.mubr.f32.mxu0 0.0
      %3901 = vmatmul.mubr.f32.gmra.mrb[0].mxu0 %v603
      %v3902 = vpop.f32.mrb[0].mxu0
      %v3903 = vadd.f32 0.0, %v3902
      %v3904 = vpop.f32.mrb[0].mxu0
      %3905 = vmatprep.mubr.f32.mxu0 0.0
      %3906 = vmatmul.mubr.f32.gmra.mrb[0].mxu0 %v604
      %v3907 = vpop.f32.mrb[0].mxu0
      %v3908 = vadd.f32 0.0, %v3907
      %v3909 = vpop.f32.mrb[0].mxu0
      %3910 = vdwg.mxu0
      %3911 = vmatprep.subr.mxu0 0.0
      %3912 = vmatpush1.msra.mxu0 %v3009
      %3913 = vmatprep.subr.mxu0 0.0
      %3914 = vmatpush1.msra.mxu0 %v3010
      %3915 = vmatprep.subr.mxu0 0.0
      %3916 = vmatpush1.msra.mxu0 %v3011
      %3917 = vmatprep.subr.mxu0 0.0
      %3918 = vmatpush1.msra.mxu0 %v3012
      %3919 = vmatprep.subr.mxu0 0.0
      %3920 = vmatpush1.msra.mxu0 %v3013
      %3921 = vmatprep.subr.mxu0 0.0
      %3922 = vmatpush1.msra.mxu0 %v3014
      %3923 = vmatprep.subr.mxu0 0.0
      %3924 = vmatpush1.msra.mxu0 %v3015
      %3925 = vmatprep.subr.mxu0 0.0
      %3926 = vmatpush1.msra.mxu0 %v3016
      %3927 = vmatprep.subr.mxu0 0.0
      %3928 = vmatpush1.msra.mxu0 %v3017
      %3929 = vmatprep.subr.mxu0 0.0
      %3930 = vmatpush1.msra.mxu0 %v3018
      %3931 = vmatprep.subr.mxu0 0.0
      %3932 = vmatpush1.msra.mxu0 %v3019
      %3933 = vmatprep.subr.mxu0 0.0
      %3934 = vmatpush1.msra.mxu0 %v3020
      %3935 = vmatprep.subr.mxu0 0.0
      %3936 = vmatpush1.msra.mxu0 %v3021
      %3937 = vmatprep.subr.mxu0 0.0
      %3938 = vmatpush1.msra.mxu0 %v3022
      %3939 = vmatprep.subr.mxu0 0.0
      %3940 = vmatpush1.msra.mxu0 %v3023
      %3941 = vmatprep.subr.mxu0 0.0
      %3942 = vmatpush1.msra.mxu0 %v3024
      %3943 = vmatprep.subr.mxu0 0.0
      %3944 = vmatpush1.msra.mxu0 0.0
      %3945 = vmatprep.subr.mxu0 0.0
      %3946 = vmatpush1.msra.mxu0 0.0
      %3947 = vmatprep.subr.mxu0 0.0
      %3948 = vmatpush1.msra.mxu0 0.0
      %3949 = vmatprep.subr.mxu0 0.0
      %3950 = vmatpush1.msra.mxu0 0.0
      %3951 = vmatprep.subr.mxu0 0.0
      %3952 = vmatpush1.msra.mxu0 0.0
      %3953 = vmatprep.subr.mxu0 0.0
      %3954 = vmatpush1.msra.mxu0 0.0
      %3955 = vmatprep.subr.mxu0 0.0
      %3956 = vmatpush1.msra.mxu0 0.0
      %3957 = vmatprep.subr.mxu0 0.0
      %3958 = vmatpush1.msra.mxu0 0.0
      %3959 = vmatprep.subr.mxu0 0.0
      %3960 = vmatpush1.msra.mxu0 0.0
      %3961 = vmatprep.subr.mxu0 0.0
      %3962 = vmatpush1.msra.mxu0 0.0
      %3963 = vmatprep.subr.mxu0 0.0
      %3964 = vmatpush1.msra.mxu0 0.0
      %3965 = vmatprep.subr.mxu0 0.0
      %3966 = vmatpush1.msra.mxu0 0.0
      %3967 = vmatprep.subr.mxu0 0.0
      %3968 = vmatpush1.msra.mxu0 0.0
      %3969 = vmatprep.subr.mxu0 0.0
      %3970 = vmatpush1.msra.mxu0 0.0
      %3971 = vmatprep.subr.mxu0 0.0
      %3972 = vmatpush1.msra.mxu0 0.0
      %3973 = vmatprep.subr.mxu0 0.0
      %3974 = vmatpush1.msra.mxu0 0.0
      %3975 = vmatprep.mubr.f32.mxu0 0.0
      %3976 = vmatmul.mubr.f32.gmra.mrb[0].mxu0 %v621
      %v3977 = vpop.f32.mrb[0].mxu0
      %v3978 = vadd.f32 0.0, %v3977
      %v3979 = vpop.f32.mrb[0].mxu0
      %3980 = vmatprep.mubr.f32.mxu0 0.0
      %3981 = vmatmul.mubr.f32.gmra.mrb[0].mxu0 %v622
      %v3982 = vpop.f32.mrb[0].mxu0
      %v3983 = vadd.f32 0.0, %v3982
      %v3984 = vpop.f32.mrb[0].mxu0
      %3985 = vmatprep.mubr.f32.mxu0 0.0
      %3986 = vmatmul.mubr.f32.gmra.mrb[0].mxu0 %v623
      %v3987 = vpop.f32.mrb[0].mxu0
      %v3988 = vadd.f32 0.0, %v3987
      %v3989 = vpop.f32.mrb[0].mxu0
      %3990 = vmatprep.mubr.f32.mxu0 0.0
      %3991 = vmatmul.mubr.f32.gmra.mrb[0].mxu0 %v624
      %v3992 = vpop.f32.mrb[0].mxu0
      %v3993 = vadd.f32 0.0, %v3992
      %v3994 = vpop.f32.mrb[0].mxu0
      %3995 = vmatprep.mubr.f32.mxu0 0.0
      %3996 = vmatmul.mubr.f32.gmra.mrb[0].mxu0 %v625
      %v3997 = vpop.f32.mrb[0].mxu0
      %v3998 = vadd.f32 0.0, %v3997
      %v3999 = vpop.f32.mrb[0].mxu0
      %4000 = vmatprep.mubr.f32.mxu0 0.0
      %4001 = vmatmul.mubr.f32.gmra.mrb[0].mxu0 %v626
      %v4002 = vpop.f32.mrb[0].mxu0
      %v4003 = vadd.f32 0.0, %v4002
      %v4004 = vpop.f32.mrb[0].mxu0
      %4005 = vmatprep.mubr.f32.mxu0 0.0
      %4006 = vmatmul.mubr.f32.gmra.mrb[0].mxu0 %v627
      %v4007 = vpop.f32.mrb[0].mxu0
      %v4008 = vadd.f32 0.0, %v4007
      %v4009 = vpop.f32.mrb[0].mxu0
      %4010 = vmatprep.mubr.f32.mxu0 0.0
      %4011 = vmatmul.mubr.f32.gmra.mrb[0].mxu0 %v628
      %v4012 = vpop.f32.mrb[0].mxu0
      %v4013 = vadd.f32 0.0, %v4012
      %v4014 = vpop.f32.mrb[0].mxu0
      %4015 = vmatprep.mubr.f32.mxu0 0.0
      %4016 = vmatmul.mubr.f32.gmra.mrb[0].mxu0 %v629
      %v4017 = vpop.f32.mrb[0].mxu0
      %v4018 = vadd.f32 0.0, %v4017
      %v4019 = vpop.f32.mrb[0].mxu0
      %4020 = vmatprep.mubr.f32.mxu0 0.0
      %4021 = vmatmul.mubr.f32.gmra.mrb[0].mxu0 %v630
      %v4022 = vpop.f32.mrb[0].mxu0
      %v4023 = vadd.f32 0.0, %v4022
      %v4024 = vpop.f32.mrb[0].mxu0
      %4025 = vmatprep.mubr.f32.mxu0 0.0
      %4026 = vmatmul.mubr.f32.gmra.mrb[0].mxu0 %v631
      %v4027 = vpop.f32.mrb[0].mxu0
      %v4028 = vadd.f32 0.0, %v4027
      %v4029 = vpop.f32.mrb[0].mxu0
      %4030 = vmatprep.mubr.f32.mxu0 0.0
      %4031 = vmatmul.mubr.f32.gmra.mrb[0].mxu0 %v632
      %v4032 = vpop.f32.mrb[0].mxu0
      %v4033 = vadd.f32 0.0, %v4032
      %v4034 = vpop.f32.mrb[0].mxu0
      %4035 = vmatprep.mubr.f32.mxu0 0.0
      %4036 = vmatmul.mubr.f32.gmra.mrb[0].mxu0 %v633
      %v4037 = vpop.f32.mrb[0].mxu0
      %v4038 = vadd.f32 0.0, %v4037
      %v4039 = vpop.f32.mrb[0].mxu0
      %4040 = vmatprep.mubr.f32.mxu0 0.0
      %4041 = vmatmul.mubr.f32.gmra.mrb[0].mxu0 %v634
      %v4042 = vpop.f32.mrb[0].mxu0
      %v4043 = vadd.f32 0.0, %v4042
      %v4044 = vpop.f32.mrb[0].mxu0
      %4045 = vmatprep.mubr.f32.mxu0 0.0
      %4046 = vmatmul.mubr.f32.gmra.mrb[0].mxu0 %v635
      %v4047 = vpop.f32.mrb[0].mxu0
      %v4048 = vadd.f32 0.0, %v4047
      %v4049 = vpop.f32.mrb[0].mxu0
      %4050 = vmatprep.mubr.f32.mxu0 0.0
      %4051 = vmatmul.mubr.f32.gmra.mrb[0].mxu0 %v636
      %v4052 = vpop.f32.mrb[0].mxu0
      %v4053 = vadd.f32 0.0, %v4052
      %v4054 = vpop.f32.mrb[0].mxu0
      %4055 = vdwg.mxu0
      %4056 = vmatprep.subr.mxu0 0.0
      %4057 = vmatpush1.msra.mxu0 %v3025
      %4058 = vmatprep.subr.mxu0 0.0
      %4059 = vmatpush1.msra.mxu0 %v3026
      %4060 = vmatprep.subr.mxu0 0.0
      %4061 = vmatpush1.msra.mxu0 %v3027
      %4062 = vmatprep.subr.mxu0 0.0
      %4063 = vmatpush1.msra.mxu0 %v3028
      %4064 = vmatprep.subr.mxu0 0.0
      %4065 = vmatpush1.msra.mxu0 %v3029
      %4066 = vmatprep.subr.mxu0 0.0
      %4067 = vmatpush1.msra.mxu0 %v3030
      %4068 = vmatprep.subr.mxu0 0.0
      %4069 = vmatpush1.msra.mxu0 %v3031
      %4070 = vmatprep.subr.mxu0 0.0
      %4071 = vmatpush1.msra.mxu0 %v3032
      %4072 = vmatprep.subr.mxu0 0.0
      %4073 = vmatpush1.msra.mxu0 %v3033
      %4074 = vmatprep.subr.mxu0 0.0
      %4075 = vmatpush1.msra.mxu0 %v3034
      %4076 = vmatprep.subr.mxu0 0.0
      %4077 = vmatpush1.msra.mxu0 %v3035
      %4078 = vmatprep.subr.mxu0 0.0
      %4079 = vmatpush1.msra.mxu0 %v3036
      %4080 = vmatprep.subr.mxu0 0.0
      %4081 = vmatpush1.msra.mxu0 %v3037
      %4082 = vmatprep.subr.mxu0 0.0
      %4083 = vmatpush1.msra.mxu0 %v3038
      %4084 = vmatprep.subr.mxu0 0.0
      %4085 = vmatpush1.msra.mxu0 %v3039
      %4086 = vmatprep.subr.mxu0 0.0
      %4087 = vmatpush1.msra.mxu0 %v3040
      %4088 = vmatprep.subr.mxu0 0.0
      %4089 = vmatpush1.msra.mxu0 0.0
      %4090 = vmatprep.subr.mxu0 0.0
      %4091 = vmatpush1.msra.mxu0 0.0
      %4092 = vmatprep.subr.mxu0 0.0
      %4093 = vmatpush1.msra.mxu0 0.0
      %4094 = vmatprep.subr.mxu0 0.0
      %4095 = vmatpush1.msra.mxu0 0.0
      %4096 = vmatprep.subr.mxu0 0.0
      %4097 = vmatpush1.msra.mxu0 0.0
      %4098 = vmatprep.subr.mxu0 0.0
      %4099 = vmatpush1.msra.mxu0 0.0
      %4100 = vmatprep.subr.mxu0 0.0
      %4101 = vmatpush1.msra.mxu0 0.0
      %4102 = vmatprep.subr.mxu0 0.0
      %4103 = vmatpush1.msra.mxu0 0.0
      %4104 = vmatprep.subr.mxu0 0.0
      %4105 = vmatpush1.msra.mxu0 0.0
      %4106 = vmatprep.subr.mxu0 0.0
      %4107 = vmatpush1.msra.mxu0 0.0
      %4108 = vmatprep.subr.mxu0 0.0
      %4109 = vmatpush1.msra.mxu0 0.0
      %4110 = vmatprep.subr.mxu0 0.0
      %4111 = vmatpush1.msra.mxu0 0.0
      %4112 = vmatprep.subr.mxu0 0.0
      %4113 = vmatpush1.msra.mxu0 0.0
      %4114 = vmatprep.subr.mxu0 0.0
      %4115 = vmatpush1.msra.mxu0 0.0
      %4116 = vmatprep.subr.mxu0 0.0
      %4117 = vmatpush1.msra.mxu0 0.0
      %4118 = vmatprep.subr.mxu0 0.0
      %4119 = vmatpush1.msra.mxu0 0.0
      %4120 = vmatprep.mubr.f32.mxu0 0.0
      %4121 = vmatmul.mubr.f32.gmra.mrb[0].mxu0 %v653
      %v4122 = vpop.f32.mrb[0].mxu0
      %v4123 = vadd.f32 0.0, %v4122
      %v4124 = vpop.f32.mrb[0].mxu0
      %4125 = vmatprep.mubr.f32.mxu0 0.0
      %4126 = vmatmul.mubr.f32.gmra.mrb[0].mxu0 %v654
      %v4127 = vpop.f32.mrb[0].mxu0
      %v4128 = vadd.f32 0.0, %v4127
      %v4129 = vpop.f32.mrb[0].mxu0
      %4130 = vmatprep.mubr.f32.mxu0 0.0
      %4131 = vmatmul.mubr.f32.gmra.mrb[0].mxu0 %v655
      %v4132 = vpop.f32.mrb[0].mxu0
      %v4133 = vadd.f32 0.0, %v4132
      %v4134 = vpop.f32.mrb[0].mxu0
      %4135 = vmatprep.mubr.f32.mxu0 0.0
      %4136 = vmatmul.mubr.f32.gmra.mrb[0].mxu0 %v656
      %v4137 = vpop.f32.mrb[0].mxu0
      %v4138 = vadd.f32 0.0, %v4137
      %v4139 = vpop.f32.mrb[0].mxu0
      %4140 = vmatprep.mubr.f32.mxu0 0.0
      %4141 = vmatmul.mubr.f32.gmra.mrb[0].mxu0 %v657
      %v4142 = vpop.f32.mrb[0].mxu0
      %v4143 = vadd.f32 0.0, %v4142
      %v4144 = vpop.f32.mrb[0].mxu0
      %4145 = vmatprep.mubr.f32.mxu0 0.0
      %4146 = vmatmul.mubr.f32.gmra.mrb[0].mxu0 %v658
      %v4147 = vpop.f32.mrb[0].mxu0
      %v4148 = vadd.f32 0.0, %v4147
      %v4149 = vpop.f32.mrb[0].mxu0
      %4150 = vmatprep.mubr.f32.mxu0 0.0
      %4151 = vmatmul.mubr.f32.gmra.mrb[0].mxu0 %v659
      %v4152 = vpop.f32.mrb[0].mxu0
      %v4153 = vadd.f32 0.0, %v4152
      %v4154 = vpop.f32.mrb[0].mxu0
      %4155 = vmatprep.mubr.f32.mxu0 0.0
      %4156 = vmatmul.mubr.f32.gmra.mrb[0].mxu0 %v660
      %v4157 = vpop.f32.mrb[0].mxu0
      %v4158 = vadd.f32 0.0, %v4157
      %v4159 = vpop.f32.mrb[0].mxu0
      %4160 = vmatprep.mubr.f32.mxu0 0.0
      %4161 = vmatmul.mubr.f32.gmra.mrb[0].mxu0 %v661
      %v4162 = vpop.f32.mrb[0].mxu0
      %v4163 = vadd.f32 0.0, %v4162
      %v4164 = vpop.f32.mrb[0].mxu0
      %4165 = vmatprep.mubr.f32.mxu0 0.0
      %4166 = vmatmul.mubr.f32.gmra.mrb[0].mxu0 %v662
      %v4167 = vpop.f32.mrb[0].mxu0
      %v4168 = vadd.f32 0.0, %v4167
      %v4169 = vpop.f32.mrb[0].mxu0
      %4170 = vmatprep.mubr.f32.mxu0 0.0
      %4171 = vmatmul.mubr.f32.gmra.mrb[0].mxu0 %v663
      %v4172 = vpop.f32.mrb[0].mxu0
      %v4173 = vadd.f32 0.0, %v4172
      %v4174 = vpop.f32.mrb[0].mxu0
      %4175 = vmatprep.mubr.f32.mxu0 0.0
      %4176 = vmatmul.mubr.f32.gmra.mrb[0].mxu0 %v664
      %v4177 = vpop.f32.mrb[0].mxu0
      %v4178 = vadd.f32 0.0, %v4177
      %v4179 = vpop.f32.mrb[0].mxu0
      %4180 = vmatprep.mubr.f32.mxu0 0.0
      %4181 = vmatmul.mubr.f32.gmra.mrb[0].mxu0 %v665
      %v4182 = vpop.f32.mrb[0].mxu0
      %v4183 = vadd.f32 0.0, %v4182
      %v4184 = vpop.f32.mrb[0].mxu0
      %4185 = vmatprep.mubr.f32.mxu0 0.0
      %4186 = vmatmul.mubr.f32.gmra.mrb[0].mxu0 %v666
      %v4187 = vpop.f32.mrb[0].mxu0
      %v4188 = vadd.f32 0.0, %v4187
      %v4189 = vpop.f32.mrb[0].mxu0
      %4190 = vmatprep.mubr.f32.mxu0 0.0
      %4191 = vmatmul.mubr.f32.gmra.mrb[0].mxu0 %v667
      %v4192 = vpop.f32.mrb[0].mxu0
      %v4193 = vadd.f32 0.0, %v4192
      %v4194 = vpop.f32.mrb[0].mxu0
      %4195 = vmatprep.mubr.f32.mxu0 0.0
      %4196 = vmatmul.mubr.f32.gmra.mrb[0].mxu0 %v668
      %v4197 = vpop.f32.mrb[0].mxu0
      %v4198 = vadd.f32 0.0, %v4197
      %v4199 = vpop.f32.mrb[0].mxu0
      %4200 = vdwg.mxu0
      %v4201 = vmul.f32 %v3108, %v1565
      %v4202 = vmul.f32 %v3113, %v1566
      %v4203 = vmul.f32 %v3118, %v1567
      %v4204 = vmul.f32 %v3123, %v1568
      %v4205 = vmul.f32 %v3128, %v1569
      %v4206 = vmul.f32 %v3133, %v1570
      %v4207 = vmul.f32 %v3138, %v1571
      %v4208 = vmul.f32 %v3143, %v1572
      %v4209 = vmul.f32 %v3148, %v1573
      %v4210 = vmul.f32 %v3153, %v1574
      %v4211 = vmul.f32 %v3158, %v1575
      %v4212 = vmul.f32 %v3163, %v1576
      %v4213 = vmul.f32 %v3168, %v1577
      %v4214 = vmul.f32 %v3173, %v1578
      %v4215 = vmul.f32 %v3178, %v1579
      %v4216 = vmul.f32 %v3183, %v1580
      %v4217 = vmul.f32 %v3253, %v1581
      %v4218 = vmul.f32 %v3258, %v1582
      %v4219 = vmul.f32 %v3263, %v1583
      %v4220 = vmul.f32 %v3268, %v1584
      %v4221 = vmul.f32 %v3273, %v1585
      %v4222 = vmul.f32 %v3278, %v1586
      %v4223 = vmul.f32 %v3283, %v1587
      %v4224 = vmul.f32 %v3288, %v1588
      %v4225 = vmul.f32 %v3293, %v1589
      %v4226 = vmul.f32 %v3298, %v1590
      %v4227 = vmul.f32 %v3303, %v1591
      %v4228 = vmul.f32 %v3308, %v1592
      %v4229 = vmul.f32 %v3313, %v1593
      %v4230 = vmul.f32 %v3318, %v1594
      %v4231 = vmul.f32 %v3323, %v1595
      %v4232 = vmul.f32 %v3328, %v1596
      %v4233 = vmul.f32 %v3398, %v1597
      %v4234 = vmul.f32 %v3403, %v1598
      %v4235 = vmul.f32 %v3408, %v1599
      %v4236 = vmul.f32 %v3413, %v1600
      %v4237 = vmul.f32 %v3418, %v1601
      %v4238 = vmul.f32 %v3423, %v1602
      %v4239 = vmul.f32 %v3428, %v1603
      %v4240 = vmul.f32 %v3433, %v1604
      %v4241 = vmul.f32 %v3438, %v1605
      %v4242 = vmul.f32 %v3443, %v1606
      %v4243 = vmul.f32 %v3448, %v1607
      %v4244 = vmul.f32 %v3453, %v1608
      %v4245 = vmul.f32 %v3458, %v1609
      %v4246 = vmul.f32 %v3463, %v1610
      %v4247 = vmul.f32 %v3468, %v1611
      %v4248 = vmul.f32 %v3473, %v1612
      %v4249 = vmul.f32 %v3543, %v1613
      %v4250 = vmul.f32 %v3548, %v1614
      %v4251 = vmul.f32 %v3553, %v1615
      %v4252 = vmul.f32 %v3558, %v1616
      %v4253 = vmul.f32 %v3563, %v1617
      %v4254 = vmul.f32 %v3568, %v1618
      %v4255 = vmul.f32 %v3573, %v1619
      %v4256 = vmul.f32 %v3578, %v1620
      %v4257 = vmul.f32 %v3583, %v1621
      %v4258 = vmul.f32 %v3588, %v1622
      %v4259 = vmul.f32 %v3593, %v1623
      %v4260 = vmul.f32 %v3598, %v1624
      %v4261 = vmul.f32 %v3603, %v1625
      %v4262 = vmul.f32 %v3608, %v1626
      %v4263 = vmul.f32 %v3613, %v1627
      %v4264 = vmul.f32 %v3618, %v1628
      %v4265 = vmul.f32 %v3688, %v1629
      %v4266 = vmul.f32 %v3693, %v1630
      %v4267 = vmul.f32 %v3698, %v1631
      %v4268 = vmul.f32 %v3703, %v1632
      %v4269 = vmul.f32 %v3708, %v1633
      %v4270 = vmul.f32 %v3713, %v1634
      %v4271 = vmul.f32 %v3718, %v1635
      %v4272 = vmul.f32 %v3723, %v1636
      %v4273 = vmul.f32 %v3728, %v1637
      %v4274 = vmul.f32 %v3733, %v1638
      %v4275 = vmul.f32 %v3738, %v1639
      %v4276 = vmul.f32 %v3743, %v1640
      %v4277 = vmul.f32 %v3748, %v1641
      %v4278 = vmul.f32 %v3753, %v1642
      %v4279 = vmul.f32 %v3758, %v1643
      %v4280 = vmul.f32 %v3763, %v1644
      %v4281 = vmul.f32 %v3833, %v1645
      %v4282 = vmul.f32 %v3838, %v1646
      %v4283 = vmul.f32 %v3843, %v1647
      %v4284 = vmul.f32 %v3848, %v1648
      %v4285 = vmul.f32 %v3853, %v1649
      %v4286 = vmul.f32 %v3858, %v1650
      %v4287 = vmul.f32 %v3863, %v1651
      %v4288 = vmul.f32 %v3868, %v1652
      %v4289 = vmul.f32 %v3873, %v1653
      %v4290 = vmul.f32 %v3878, %v1654
      %v4291 = vmul.f32 %v3883, %v1655
      %v4292 = vmul.f32 %v3888, %v1656
      %v4293 = vmul.f32 %v3893, %v1657
      %v4294 = vmul.f32 %v3898, %v1658
      %v4295 = vmul.f32 %v3903, %v1659
      %v4296 = vmul.f32 %v3908, %v1660
      %v4297 = vmul.f32 %v3978, %v1661
      %v4298 = vmul.f32 %v3983, %v1662
      %v4299 = vmul.f32 %v3988, %v1663
      %v4300 = vmul.f32 %v3993, %v1664
      %v4301 = vmul.f32 %v3998, %v1665
      %v4302 = vmul.f32 %v4003, %v1666
      %v4303 = vmul.f32 %v4008, %v1667
      %v4304 = vmul.f32 %v4013, %v1668
      %v4305 = vmul.f32 %v4018, %v1669
      %v4306 = vmul.f32 %v4023, %v1670
      %v4307 = vmul.f32 %v4028, %v1671
      %v4308 = vmul.f32 %v4033, %v1672
      %v4309 = vmul.f32 %v4038, %v1673
      %v4310 = vmul.f32 %v4043, %v1674
      %v4311 = vmul.f32 %v4048, %v1675
      %v4312 = vmul.f32 %v4053, %v1676
      %v4313 = vmul.f32 %v4123, %v1677
      %v4314 = vmul.f32 %v4128, %v1678
      %v4315 = vmul.f32 %v4133, %v1679
      %v4316 = vmul.f32 %v4138, %v1680
      %v4317 = vmul.f32 %v4143, %v1681
      %v4318 = vmul.f32 %v4148, %v1682
      %v4319 = vmul.f32 %v4153, %v1683
      %v4320 = vmul.f32 %v4158, %v1684
      %v4321 = vmul.f32 %v4163, %v1685
      %v4322 = vmul.f32 %v4168, %v1686
      %v4323 = vmul.f32 %v4173, %v1687
      %v4324 = vmul.f32 %v4178, %v1688
      %v4325 = vmul.f32 %v4183, %v1689
      %v4326 = vmul.f32 %v4188, %v1690
      %v4327 = vmul.f32 %v4193, %v1691
      %v4328 = vmul.f32 %v4198, %v1692
      %v4329 = vld [vmem:[%s3] sm:$0x1]
      %v4331 = vlaneseq
      %v4332 = vshrl.u32 %v4331, 7
      %v4333 = vsub.s32 0, %v4332
      %v4334 = vrot.slane %v4329, %v4333
      %v4336 = vadd.f32 %v4201, %v4334
      %v4337 = vadd.f32 %v4202, %v4334
      %v4338 = vadd.f32 %v4203, %v4334
      %v4339 = vadd.f32 %v4204, %v4334
      %v4340 = vadd.f32 %v4205, %v4334
      %v4341 = vadd.f32 %v4206, %v4334
      %v4342 = vadd.f32 %v4207, %v4334
      %v4343 = vadd.f32 %v4208, %v4334
      %v4344 = vadd.f32 %v4209, %v4334
      %v4345 = vadd.f32 %v4210, %v4334
      %v4346 = vadd.f32 %v4211, %v4334
      %v4347 = vadd.f32 %v4212, %v4334
      %v4348 = vadd.f32 %v4213, %v4334
      %v4349 = vadd.f32 %v4214, %v4334
      %v4350 = vadd.f32 %v4215, %v4334
      %v4351 = vadd.f32 %v4216, %v4334
      %v4352 = vadd.f32 %v4217, %v4334
      %v4353 = vadd.f32 %v4218, %v4334
      %v4354 = vadd.f32 %v4219, %v4334
      %v4355 = vadd.f32 %v4220, %v4334
      %v4356 = vadd.f32 %v4221, %v4334
      %v4357 = vadd.f32 %v4222, %v4334
      %v4358 = vadd.f32 %v4223, %v4334
      %v4359 = vadd.f32 %v4224, %v4334
      %v4360 = vadd.f32 %v4225, %v4334
      %v4361 = vadd.f32 %v4226, %v4334
      %v4362 = vadd.f32 %v4227, %v4334
      %v4363 = vadd.f32 %v4228, %v4334
      %v4364 = vadd.f32 %v4229, %v4334
      %v4365 = vadd.f32 %v4230, %v4334
      %v4366 = vadd.f32 %v4231, %v4334
      %v4367 = vadd.f32 %v4232, %v4334
      %v4368 = vadd.f32 %v4233, %v4334
      %v4369 = vadd.f32 %v4234, %v4334
      %v4370 = vadd.f32 %v4235, %v4334
      %v4371 = vadd.f32 %v4236, %v4334
      %v4372 = vadd.f32 %v4237, %v4334
      %v4373 = vadd.f32 %v4238, %v4334
      %v4374 = vadd.f32 %v4239, %v4334
      %v4375 = vadd.f32 %v4240, %v4334
      %v4376 = vadd.f32 %v4241, %v4334
      %v4377 = vadd.f32 %v4242, %v4334
      %v4378 = vadd.f32 %v4243, %v4334
      %v4379 = vadd.f32 %v4244, %v4334
      %v4380 = vadd.f32 %v4245, %v4334
      %v4381 = vadd.f32 %v4246, %v4334
      %v4382 = vadd.f32 %v4247, %v4334
      %v4383 = vadd.f32 %v4248, %v4334
      %v4384 = vadd.f32 %v4249, %v4334
      %v4385 = vadd.f32 %v4250, %v4334
      %v4386 = vadd.f32 %v4251, %v4334
      %v4387 = vadd.f32 %v4252, %v4334
      %v4388 = vadd.f32 %v4253, %v4334
      %v4389 = vadd.f32 %v4254, %v4334
      %v4390 = vadd.f32 %v4255, %v4334
      %v4391 = vadd.f32 %v4256, %v4334
      %v4392 = vadd.f32 %v4257, %v4334
      %v4393 = vadd.f32 %v4258, %v4334
      %v4394 = vadd.f32 %v4259, %v4334
      %v4395 = vadd.f32 %v4260, %v4334
      %v4396 = vadd.f32 %v4261, %v4334
      %v4397 = vadd.f32 %v4262, %v4334
      %v4398 = vadd.f32 %v4263, %v4334
      %v4399 = vadd.f32 %v4264, %v4334
      %v4400 = vadd.f32 %v4265, %v4334
      %v4401 = vadd.f32 %v4266, %v4334
      %v4402 = vadd.f32 %v4267, %v4334
      %v4403 = vadd.f32 %v4268, %v4334
      %v4404 = vadd.f32 %v4269, %v4334
      %v4405 = vadd.f32 %v4270, %v4334
      %v4406 = vadd.f32 %v4271, %v4334
      %v4407 = vadd.f32 %v4272, %v4334
      %v4408 = vadd.f32 %v4273, %v4334
      %v4409 = vadd.f32 %v4274, %v4334
      %v4410 = vadd.f32 %v4275, %v4334
      %v4411 = vadd.f32 %v4276, %v4334
      %v4412 = vadd.f32 %v4277, %v4334
      %v4413 = vadd.f32 %v4278, %v4334
      %v4414 = vadd.f32 %v4279, %v4334
      %v4415 = vadd.f32 %v4280, %v4334
      %v4416 = vadd.f32 %v4281, %v4334
      %v4417 = vadd.f32 %v4282, %v4334
      %v4418 = vadd.f32 %v4283, %v4334
      %v4419 = vadd.f32 %v4284, %v4334
      %v4420 = vadd.f32 %v4285, %v4334
      %v4421 = vadd.f32 %v4286, %v4334
      %v4422 = vadd.f32 %v4287, %v4334
      %v4423 = vadd.f32 %v4288, %v4334
      %v4424 = vadd.f32 %v4289, %v4334
      %v4425 = vadd.f32 %v4290, %v4334
      %v4426 = vadd.f32 %v4291, %v4334
      %v4427 = vadd.f32 %v4292, %v4334
      %v4428 = vadd.f32 %v4293, %v4334
      %v4429 = vadd.f32 %v4294, %v4334
      %v4430 = vadd.f32 %v4295, %v4334
      %v4431 = vadd.f32 %v4296, %v4334
      %v4432 = vadd.f32 %v4297, %v4334
      %v4433 = vadd.f32 %v4298, %v4334
      %v4434 = vadd.f32 %v4299, %v4334
      %v4435 = vadd.f32 %v4300, %v4334
      %v4436 = vadd.f32 %v4301, %v4334
      %v4437 = vadd.f32 %v4302, %v4334
      %v4438 = vadd.f32 %v4303, %v4334
      %v4439 = vadd.f32 %v4304, %v4334
      %v4440 = vadd.f32 %v4305, %v4334
      %v4441 = vadd.f32 %v4306, %v4334
      %v4442 = vadd.f32 %v4307, %v4334
      %v4443 = vadd.f32 %v4308, %v4334
      %v4444 = vadd.f32 %v4309, %v4334
      %v4445 = vadd.f32 %v4310, %v4334
      %v4446 = vadd.f32 %v4311, %v4334
      %v4447 = vadd.f32 %v4312, %v4334
      %v4448 = vadd.f32 %v4313, %v4334
      %v4449 = vadd.f32 %v4314, %v4334
      %v4450 = vadd.f32 %v4315, %v4334
      %v4451 = vadd.f32 %v4316, %v4334
      %v4452 = vadd.f32 %v4317, %v4334
      %v4453 = vadd.f32 %v4318, %v4334
      %v4454 = vadd.f32 %v4319, %v4334
      %v4455 = vadd.f32 %v4320, %v4334
      %v4456 = vadd.f32 %v4321, %v4334
      %v4457 = vadd.f32 %v4322, %v4334
      %v4458 = vadd.f32 %v4323, %v4334
      %v4459 = vadd.f32 %v4324, %v4334
      %v4460 = vadd.f32 %v4325, %v4334
      %v4461 = vadd.f32 %v4326, %v4334
      %v4462 = vadd.f32 %v4327, %v4334
      %v4463 = vadd.f32 %v4328, %v4334
      %v4464 = vmax.f32 %v4336, 0.0
      %v4465 = vmax.f32 %v4337, 0.0
      %v4466 = vmax.f32 %v4338, 0.0
      %v4467 = vmax.f32 %v4339, 0.0
      %v4468 = vmax.f32 %v4340, 0.0
      %v4469 = vmax.f32 %v4341, 0.0
      %v4470 = vmax.f32 %v4342, 0.0
      %v4471 = vmax.f32 %v4343, 0.0
      %v4472 = vmax.f32 %v4344, 0.0
      %v4473 = vmax.f32 %v4345, 0.0
      %v4474 = vmax.f32 %v4346, 0.0
      %v4475 = vmax.f32 %v4347, 0.0
      %v4476 = vmax.f32 %v4348, 0.0
      %v4477 = vmax.f32 %v4349, 0.0
      %v4478 = vmax.f32 %v4350, 0.0
      %v4479 = vmax.f32 %v4351, 0.0
      %v4480 = vmax.f32 %v4352, 0.0
      %v4481 = vmax.f32 %v4353, 0.0
      %v4482 = vmax.f32 %v4354, 0.0
      %v4483 = vmax.f32 %v4355, 0.0
      %v4484 = vmax.f32 %v4356, 0.0
      %v4485 = vmax.f32 %v4357, 0.0
      %v4486 = vmax.f32 %v4358, 0.0
      %v4487 = vmax.f32 %v4359, 0.0
      %v4488 = vmax.f32 %v4360, 0.0
      %v4489 = vmax.f32 %v4361, 0.0
      %v4490 = vmax.f32 %v4362, 0.0
      %v4491 = vmax.f32 %v4363, 0.0
      %v4492 = vmax.f32 %v4364, 0.0
      %v4493 = vmax.f32 %v4365, 0.0
      %v4494 = vmax.f32 %v4366, 0.0
      %v4495 = vmax.f32 %v4367, 0.0
      %v4496 = vmax.f32 %v4368, 0.0
      %v4497 = vmax.f32 %v4369, 0.0
      %v4498 = vmax.f32 %v4370, 0.0
      %v4499 = vmax.f32 %v4371, 0.0
      %v4500 = vmax.f32 %v4372, 0.0
      %v4501 = vmax.f32 %v4373, 0.0
      %v4502 = vmax.f32 %v4374, 0.0
      %v4503 = vmax.f32 %v4375, 0.0
      %v4504 = vmax.f32 %v4376, 0.0
      %v4505 = vmax.f32 %v4377, 0.0
      %v4506 = vmax.f32 %v4378, 0.0
      %v4507 = vmax.f32 %v4379, 0.0
      %v4508 = vmax.f32 %v4380, 0.0
      %v4509 = vmax.f32 %v4381, 0.0
      %v4510 = vmax.f32 %v4382, 0.0
      %v4511 = vmax.f32 %v4383, 0.0
      %v4512 = vmax.f32 %v4384, 0.0
      %v4513 = vmax.f32 %v4385, 0.0
      %v4514 = vmax.f32 %v4386, 0.0
      %v4515 = vmax.f32 %v4387, 0.0
      %v4516 = vmax.f32 %v4388, 0.0
      %v4517 = vmax.f32 %v4389, 0.0
      %v4518 = vmax.f32 %v4390, 0.0
      %v4519 = vmax.f32 %v4391, 0.0
      %v4520 = vmax.f32 %v4392, 0.0
      %v4521 = vmax.f32 %v4393, 0.0
      %v4522 = vmax.f32 %v4394, 0.0
      %v4523 = vmax.f32 %v4395, 0.0
      %v4524 = vmax.f32 %v4396, 0.0
      %v4525 = vmax.f32 %v4397, 0.0
      %v4526 = vmax.f32 %v4398, 0.0
      %v4527 = vmax.f32 %v4399, 0.0
      %v4528 = vmax.f32 %v4400, 0.0
      %v4529 = vmax.f32 %v4401, 0.0
      %v4530 = vmax.f32 %v4402, 0.0
      %v4531 = vmax.f32 %v4403, 0.0
      %v4532 = vmax.f32 %v4404, 0.0
      %v4533 = vmax.f32 %v4405, 0.0
      %v4534 = vmax.f32 %v4406, 0.0
      %v4535 = vmax.f32 %v4407, 0.0
      %v4536 = vmax.f32 %v4408, 0.0
      %v4537 = vmax.f32 %v4409, 0.0
      %v4538 = vmax.f32 %v4410, 0.0
      %v4539 = vmax.f32 %v4411, 0.0
      %v4540 = vmax.f32 %v4412, 0.0
      %v4541 = vmax.f32 %v4413, 0.0
      %v4542 = vmax.f32 %v4414, 0.0
      %v4543 = vmax.f32 %v4415, 0.0
      %v4544 = vmax.f32 %v4416, 0.0
      %v4545 = vmax.f32 %v4417, 0.0
      %v4546 = vmax.f32 %v4418, 0.0
      %v4547 = vmax.f32 %v4419, 0.0
      %v4548 = vmax.f32 %v4420, 0.0
      %v4549 = vmax.f32 %v4421, 0.0
      %v4550 = vmax.f32 %v4422, 0.0
      %v4551 = vmax.f32 %v4423, 0.0
      %v4552 = vmax.f32 %v4424, 0.0
      %v4553 = vmax.f32 %v4425, 0.0
      %v4554 = vmax.f32 %v4426, 0.0
      %v4555 = vmax.f32 %v4427, 0.0
      %v4556 = vmax.f32 %v4428, 0.0
      %v4557 = vmax.f32 %v4429, 0.0
      %v4558 = vmax.f32 %v4430, 0.0
      %v4559 = vmax.f32 %v4431, 0.0
      %v4560 = vmax.f32 %v4432, 0.0
      %v4561 = vmax.f32 %v4433, 0.0
      %v4562 = vmax.f32 %v4434, 0.0
      %v4563 = vmax.f32 %v4435, 0.0
      %v4564 = vmax.f32 %v4436, 0.0
      %v4565 = vmax.f32 %v4437, 0.0
      %v4566 = vmax.f32 %v4438, 0.0
      %v4567 = vmax.f32 %v4439, 0.0
      %v4568 = vmax.f32 %v4440, 0.0
      %v4569 = vmax.f32 %v4441, 0.0
      %v4570 = vmax.f32 %v4442, 0.0
      %v4571 = vmax.f32 %v4443, 0.0
      %v4572 = vmax.f32 %v4444, 0.0
      %v4573 = vmax.f32 %v4445, 0.0
      %v4574 = vmax.f32 %v4446, 0.0
      %v4575 = vmax.f32 %v4447, 0.0
      %v4576 = vmax.f32 %v4448, 0.0
      %v4577 = vmax.f32 %v4449, 0.0
      %v4578 = vmax.f32 %v4450, 0.0
      %v4579 = vmax.f32 %v4451, 0.0
      %v4580 = vmax.f32 %v4452, 0.0
      %v4581 = vmax.f32 %v4453, 0.0
      %v4582 = vmax.f32 %v4454, 0.0
      %v4583 = vmax.f32 %v4455, 0.0
      %v4584 = vmax.f32 %v4456, 0.0
      %v4585 = vmax.f32 %v4457, 0.0
      %v4586 = vmax.f32 %v4458, 0.0
      %v4587 = vmax.f32 %v4459, 0.0
      %v4588 = vmax.f32 %v4460, 0.0
      %v4589 = vmax.f32 %v4461, 0.0
      %v4590 = vmax.f32 %v4462, 0.0
      %v4591 = vmax.f32 %v4463, 0.0
      %v4592 = vld [vmem:[%s4] sm:$0xff]
      %v4593 = vld [vmem:[%s4 + $0x8] sm:$0xff]
      %v4594 = vld [vmem:[%s4 + $0x10] sm:$0xff]
      %v4595 = vld [vmem:[%s4 + $0x18] sm:$0xff]
      %vm4596 = vcmask 261120
      %v4598 = vsel %vm4596, %v4464, 0
      %v4601 = vsel %vm4596, %v4465, 0
      %v4604 = vsel %vm4596, %v4466, 0
      %v4607 = vsel %vm4596, %v4467, 0
      %v4610 = vsel %vm4596, %v4468, 0
      %v4613 = vsel %vm4596, %v4469, 0
      %v4616 = vsel %vm4596, %v4470, 0
      %v4619 = vsel %vm4596, %v4471, 0
      %v4622 = vsel %vm4596, %v4472, 0
      %v4625 = vsel %vm4596, %v4473, 0
      %v4628 = vsel %vm4596, %v4474, 0
      %v4631 = vsel %vm4596, %v4475, 0
      %v4634 = vsel %vm4596, %v4476, 0
      %v4637 = vsel %vm4596, %v4477, 0
      %v4640 = vsel %vm4596, %v4478, 0
      %v4643 = vsel %vm4596, %v4479, 0
      %v4646 = vsel %vm4596, %v4480, 0
      %v4649 = vsel %vm4596, %v4481, 0
      %v4652 = vsel %vm4596, %v4482, 0
      %v4655 = vsel %vm4596, %v4483, 0
      %v4658 = vsel %vm4596, %v4484, 0
      %v4661 = vsel %vm4596, %v4485, 0
      %v4664 = vsel %vm4596, %v4486, 0
      %v4667 = vsel %vm4596, %v4487, 0
      %v4670 = vsel %vm4596, %v4488, 0
      %v4673 = vsel %vm4596, %v4489, 0
      %v4676 = vsel %vm4596, %v4490, 0
      %v4679 = vsel %vm4596, %v4491, 0
      %v4682 = vsel %vm4596, %v4492, 0
      %v4685 = vsel %vm4596, %v4493, 0
      %v4688 = vsel %vm4596, %v4494, 0
      %v4691 = vsel %vm4596, %v4495, 0
      %v4694 = vsel %vm4596, %v4496, 0
      %v4697 = vsel %vm4596, %v4497, 0
      %v4700 = vsel %vm4596, %v4498, 0
      %v4703 = vsel %vm4596, %v4499, 0
      %v4706 = vsel %vm4596, %v4500, 0
      %v4709 = vsel %vm4596, %v4501, 0
      %v4712 = vsel %vm4596, %v4502, 0
      %v4715 = vsel %vm4596, %v4503, 0
      %v4718 = vsel %vm4596, %v4504, 0
      %v4721 = vsel %vm4596, %v4505, 0
      %v4724 = vsel %vm4596, %v4506, 0
      %v4727 = vsel %vm4596, %v4507, 0
      %v4730 = vsel %vm4596, %v4508, 0
      %v4733 = vsel %vm4596, %v4509, 0
      %v4736 = vsel %vm4596, %v4510, 0
      %v4739 = vsel %vm4596, %v4511, 0
      %v4742 = vsel %vm4596, %v4512, 0
      %v4745 = vsel %vm4596, %v4513, 0
      %v4748 = vsel %vm4596, %v4514, 0
      %v4751 = vsel %vm4596, %v4515, 0
      %v4754 = vsel %vm4596, %v4516, 0
      %v4757 = vsel %vm4596, %v4517, 0
      %v4760 = vsel %vm4596, %v4518, 0
      %v4763 = vsel %vm4596, %v4519, 0
      %v4766 = vsel %vm4596, %v4520, 0
      %v4769 = vsel %vm4596, %v4521, 0
      %v4772 = vsel %vm4596, %v4522, 0
      %v4775 = vsel %vm4596, %v4523, 0
      %v4778 = vsel %vm4596, %v4524, 0
      %v4781 = vsel %vm4596, %v4525, 0
      %v4784 = vsel %vm4596, %v4526, 0
      %v4787 = vsel %vm4596, %v4527, 0
      %v4790 = vsel %vm4596, %v4528, 0
      %v4793 = vsel %vm4596, %v4529, 0
      %v4796 = vsel %vm4596, %v4530, 0
      %v4799 = vsel %vm4596, %v4531, 0
      %v4802 = vsel %vm4596, %v4532, 0
      %v4805 = vsel %vm4596, %v4533, 0
      %v4808 = vsel %vm4596, %v4534, 0
      %v4811 = vsel %vm4596, %v4535, 0
      %v4814 = vsel %vm4596, %v4536, 0
      %v4817 = vsel %vm4596, %v4537, 0
      %v4820 = vsel %vm4596, %v4538, 0
      %v4823 = vsel %vm4596, %v4539, 0
      %v4826 = vsel %vm4596, %v4540, 0
      %v4829 = vsel %vm4596, %v4541, 0
      %v4832 = vsel %vm4596, %v4542, 0
      %v4835 = vsel %vm4596, %v4543, 0
      %v4838 = vsel %vm4596, %v4544, 0
      %v4841 = vsel %vm4596, %v4545, 0
      %v4844 = vsel %vm4596, %v4546, 0
      %v4847 = vsel %vm4596, %v4547, 0
      %v4850 = vsel %vm4596, %v4548, 0
      %v4853 = vsel %vm4596, %v4549, 0
      %v4856 = vsel %vm4596, %v4550, 0
      %v4859 = vsel %vm4596, %v4551, 0
      %v4862 = vsel %vm4596, %v4552, 0
      %v4865 = vsel %vm4596, %v4553, 0
      %v4868 = vsel %vm4596, %v4554, 0
      %v4871 = vsel %vm4596, %v4555, 0
      %v4874 = vsel %vm4596, %v4556, 0
      %v4877 = vsel %vm4596, %v4557, 0
      %v4880 = vsel %vm4596, %v4558, 0
      %v4883 = vsel %vm4596, %v4559, 0
      %v4886 = vsel %vm4596, %v4560, 0
      %v4889 = vsel %vm4596, %v4561, 0
      %v4892 = vsel %vm4596, %v4562, 0
      %v4895 = vsel %vm4596, %v4563, 0
      %v4898 = vsel %vm4596, %v4564, 0
      %v4901 = vsel %vm4596, %v4565, 0
      %v4904 = vsel %vm4596, %v4566, 0
      %v4907 = vsel %vm4596, %v4567, 0
      %v4910 = vsel %vm4596, %v4568, 0
      %v4913 = vsel %vm4596, %v4569, 0
      %v4916 = vsel %vm4596, %v4570, 0
      %v4919 = vsel %vm4596, %v4571, 0
      %v4922 = vsel %vm4596, %v4572, 0
      %v4925 = vsel %vm4596, %v4573, 0
      %v4928 = vsel %vm4596, %v4574, 0
      %v4931 = vsel %vm4596, %v4575, 0
      %v4934 = vsel %vm4596, %v4576, 0
      %v4937 = vsel %vm4596, %v4577, 0
      %v4940 = vsel %vm4596, %v4578, 0
      %v4943 = vsel %vm4596, %v4579, 0
      %v4946 = vsel %vm4596, %v4580, 0
      %v4949 = vsel %vm4596, %v4581, 0
      %v4952 = vsel %vm4596, %v4582, 0
      %v4955 = vsel %vm4596, %v4583, 0
      %v4958 = vsel %vm4596, %v4584, 0
      %v4961 = vsel %vm4596, %v4585, 0
      %v4964 = vsel %vm4596, %v4586, 0
      %v4967 = vsel %vm4596, %v4587, 0
      %v4970 = vsel %vm4596, %v4588, 0
      %v4973 = vsel %vm4596, %v4589, 0
      %v4976 = vsel %vm4596, %v4590, 0
      %v4979 = vsel %vm4596, %v4591, 0
      %4981 = vmatprep.subr.mxu0 0.0
      %4982 = vmatpush1.msra.mxu0 %v4592
      %4983 = vmatprep.subr.mxu0 0.0
      %4984 = vmatpush1.msra.mxu0 %v4593
      %4985 = vmatprep.subr.mxu0 0.0
      %4986 = vmatpush1.msra.mxu0 %v4594
      %4987 = vmatprep.subr.mxu0 0.0
      %4988 = vmatpush1.msra.mxu0 %v4595
      %4989 = vmatprep.subr.mxu0 0.0
      %4990 = vmatpush1.msra.mxu0 0.0
      %4991 = vmatprep.subr.mxu0 0.0
      %4992 = vmatpush1.msra.mxu0 0.0
      %4993 = vmatprep.subr.mxu0 0.0
      %4994 = vmatpush1.msra.mxu0 0.0
      %4995 = vmatprep.subr.mxu0 0.0
      %4996 = vmatpush1.msra.mxu0 0.0
      %4997 = vmatprep.subr.mxu0 0.0
      %4998 = vmatpush1.msra.mxu0 0.0
      %4999 = vmatprep.subr.mxu0 0.0
      %5000 = vmatpush1.msra.mxu0 0.0
      %5001 = vmatprep.subr.mxu0 0.0
      %5002 = vmatpush1.msra.mxu0 0.0
      %5003 = vmatprep.subr.mxu0 0.0
      %5004 = vmatpush1.msra.mxu0 0.0
      %5005 = vmatprep.subr.mxu0 0.0
      %5006 = vmatpush1.msra.mxu0 0.0
      %5007 = vmatprep.subr.mxu0 0.0
      %5008 = vmatpush1.msra.mxu0 0.0
      %5009 = vmatprep.subr.mxu0 0.0
      %5010 = vmatpush1.msra.mxu0 0.0
      %5011 = vmatprep.subr.mxu0 0.0
      %5012 = vmatpush1.msra.mxu0 0.0
      %5013 = vmatprep.subr.mxu0 0.0
      %5014 = vmatpush1.msra.mxu0 0.0
      %5015 = vmatprep.subr.mxu0 0.0
      %5016 = vmatpush1.msra.mxu0 0.0
      %5017 = vmatprep.subr.mxu0 0.0
      %5018 = vmatpush1.msra.mxu0 0.0
      %5019 = vmatprep.subr.mxu0 0.0
      %5020 = vmatpush1.msra.mxu0 0.0
      %5021 = vmatprep.subr.mxu0 0.0
      %5022 = vmatpush1.msra.mxu0 0.0
      %5023 = vmatprep.subr.mxu0 0.0
      %5024 = vmatpush1.msra.mxu0 0.0
      %5025 = vmatprep.subr.mxu0 0.0
      %5026 = vmatpush1.msra.mxu0 0.0
      %5027 = vmatprep.subr.mxu0 0.0
      %5028 = vmatpush1.msra.mxu0 0.0
      %5029 = vmatprep.subr.mxu0 0.0
      %5030 = vmatpush1.msra.mxu0 0.0
      %5031 = vmatprep.subr.mxu0 0.0
      %5032 = vmatpush1.msra.mxu0 0.0
      %5033 = vmatprep.subr.mxu0 0.0
      %5034 = vmatpush1.msra.mxu0 0.0
      %5035 = vmatprep.subr.mxu0 0.0
      %5036 = vmatpush1.msra.mxu0 0.0
      %5037 = vmatprep.subr.mxu0 0.0
      %5038 = vmatpush1.msra.mxu0 0.0
      %5039 = vmatprep.subr.mxu0 0.0
      %5040 = vmatpush1.msra.mxu0 0.0
      %5041 = vmatprep.subr.mxu0 0.0
      %5042 = vmatpush1.msra.mxu0 0.0
      %5043 = vmatprep.subr.mxu0 0.0
      %5044 = vmatpush1.msra.mxu0 0.0
      %5045 = vmatprep.mubr.f32.mxu0 0.0
      %5046 = vmatmul.mubr.f32.gmra.mrb[0].mxu0 %v4598
      %v5047 = vpop.f32.mrb[0].mxu0
      %v5048 = vadd.f32 0.0, %v5047
      %v5049 = vpop.f32.mrb[0].mxu0
      %5050 = vmatprep.mubr.f32.mxu0 0.0
      %5051 = vmatmul.mubr.f32.gmra.mrb[0].mxu0 %v4601
      %v5052 = vpop.f32.mrb[0].mxu0
      %v5053 = vadd.f32 0.0, %v5052
      %v5054 = vpop.f32.mrb[0].mxu0
      %5055 = vmatprep.mubr.f32.mxu0 0.0
      %5056 = vmatmul.mubr.f32.gmra.mrb[0].mxu0 %v4604
      %v5057 = vpop.f32.mrb[0].mxu0
      %v5058 = vadd.f32 0.0, %v5057
      %v5059 = vpop.f32.mrb[0].mxu0
      %5060 = vmatprep.mubr.f32.mxu0 0.0
      %5061 = vmatmul.mubr.f32.gmra.mrb[0].mxu0 %v4607
      %v5062 = vpop.f32.mrb[0].mxu0
      %v5063 = vadd.f32 0.0, %v5062
      %v5064 = vpop.f32.mrb[0].mxu0
      %5065 = vmatprep.mubr.f32.mxu0 0.0
      %5066 = vmatmul.mubr.f32.gmra.mrb[0].mxu0 %v4610
      %v5067 = vpop.f32.mrb[0].mxu0
      %v5068 = vadd.f32 0.0, %v5067
      %v5069 = vpop.f32.mrb[0].mxu0
      %5070 = vmatprep.mubr.f32.mxu0 0.0
      %5071 = vmatmul.mubr.f32.gmra.mrb[0].mxu0 %v4613
      %v5072 = vpop.f32.mrb[0].mxu0
      %v5073 = vadd.f32 0.0, %v5072
      %v5074 = vpop.f32.mrb[0].mxu0
      %5075 = vmatprep.mubr.f32.mxu0 0.0
      %5076 = vmatmul.mubr.f32.gmra.mrb[0].mxu0 %v4616
      %v5077 = vpop.f32.mrb[0].mxu0
      %v5078 = vadd.f32 0.0, %v5077
      %v5079 = vpop.f32.mrb[0].mxu0
      %5080 = vmatprep.mubr.f32.mxu0 0.0
      %5081 = vmatmul.mubr.f32.gmra.mrb[0].mxu0 %v4619
      %v5082 = vpop.f32.mrb[0].mxu0
      %v5083 = vadd.f32 0.0, %v5082
      %v5084 = vpop.f32.mrb[0].mxu0
      %5085 = vmatprep.mubr.f32.mxu0 0.0
      %5086 = vmatmul.mubr.f32.gmra.mrb[0].mxu0 %v4622
      %v5087 = vpop.f32.mrb[0].mxu0
      %v5088 = vadd.f32 0.0, %v5087
      %v5089 = vpop.f32.mrb[0].mxu0
      %5090 = vmatprep.mubr.f32.mxu0 0.0
      %5091 = vmatmul.mubr.f32.gmra.mrb[0].mxu0 %v4625
      %v5092 = vpop.f32.mrb[0].mxu0
      %v5093 = vadd.f32 0.0, %v5092
      %v5094 = vpop.f32.mrb[0].mxu0
      %5095 = vmatprep.mubr.f32.mxu0 0.0
      %5096 = vmatmul.mubr.f32.gmra.mrb[0].mxu0 %v4628
      %v5097 = vpop.f32.mrb[0].mxu0
      %v5098 = vadd.f32 0.0, %v5097
      %v5099 = vpop.f32.mrb[0].mxu0
      %5100 = vmatprep.mubr.f32.mxu0 0.0
      %5101 = vmatmul.mubr.f32.gmra.mrb[0].mxu0 %v4631
      %v5102 = vpop.f32.mrb[0].mxu0
      %v5103 = vadd.f32 0.0, %v5102
      %v5104 = vpop.f32.mrb[0].mxu0
      %5105 = vmatprep.mubr.f32.mxu0 0.0
      %5106 = vmatmul.mubr.f32.gmra.mrb[0].mxu0 %v4634
      %v5107 = vpop.f32.mrb[0].mxu0
      %v5108 = vadd.f32 0.0, %v5107
      %v5109 = vpop.f32.mrb[0].mxu0
      %5110 = vmatprep.mubr.f32.mxu0 0.0
      %5111 = vmatmul.mubr.f32.gmra.mrb[0].mxu0 %v4637
      %v5112 = vpop.f32.mrb[0].mxu0
      %v5113 = vadd.f32 0.0, %v5112
      %v5114 = vpop.f32.mrb[0].mxu0
      %5115 = vmatprep.mubr.f32.mxu0 0.0
      %5116 = vmatmul.mubr.f32.gmra.mrb[0].mxu0 %v4640
      %v5117 = vpop.f32.mrb[0].mxu0
      %v5118 = vadd.f32 0.0, %v5117
      %v5119 = vpop.f32.mrb[0].mxu0
      %5120 = vmatprep.mubr.f32.mxu0 0.0
      %5121 = vmatmul.mubr.f32.gmra.mrb[0].mxu0 %v4643
      %v5122 = vpop.f32.mrb[0].mxu0
      %v5123 = vadd.f32 0.0, %v5122
      %v5124 = vpop.f32.mrb[0].mxu0
      %5125 = vmatprep.mubr.f32.mxu0 0.0
      %5126 = vmatmul.mubr.f32.gmra.mrb[0].mxu0 %v4646
      %v5127 = vpop.f32.mrb[0].mxu0
      %v5128 = vadd.f32 0.0, %v5127
      %v5129 = vpop.f32.mrb[0].mxu0
      %5130 = vmatprep.mubr.f32.mxu0 0.0
      %5131 = vmatmul.mubr.f32.gmra.mrb[0].mxu0 %v4649
      %v5132 = vpop.f32.mrb[0].mxu0
      %v5133 = vadd.f32 0.0, %v5132
      %v5134 = vpop.f32.mrb[0].mxu0
      %5135 = vmatprep.mubr.f32.mxu0 0.0
      %5136 = vmatmul.mubr.f32.gmra.mrb[0].mxu0 %v4652
      %v5137 = vpop.f32.mrb[0].mxu0
      %v5138 = vadd.f32 0.0, %v5137
      %v5139 = vpop.f32.mrb[0].mxu0
      %5140 = vmatprep.mubr.f32.mxu0 0.0
      %5141 = vmatmul.mubr.f32.gmra.mrb[0].mxu0 %v4655
      %v5142 = vpop.f32.mrb[0].mxu0
      %v5143 = vadd.f32 0.0, %v5142
      %v5144 = vpop.f32.mrb[0].mxu0
      %5145 = vmatprep.mubr.f32.mxu0 0.0
      %5146 = vmatmul.mubr.f32.gmra.mrb[0].mxu0 %v4658
      %v5147 = vpop.f32.mrb[0].mxu0
      %v5148 = vadd.f32 0.0, %v5147
      %v5149 = vpop.f32.mrb[0].mxu0
      %5150 = vmatprep.mubr.f32.mxu0 0.0
      %5151 = vmatmul.mubr.f32.gmra.mrb[0].mxu0 %v4661
      %v5152 = vpop.f32.mrb[0].mxu0
      %v5153 = vadd.f32 0.0, %v5152
      %v5154 = vpop.f32.mrb[0].mxu0
      %5155 = vmatprep.mubr.f32.mxu0 0.0
      %5156 = vmatmul.mubr.f32.gmra.mrb[0].mxu0 %v4664
      %v5157 = vpop.f32.mrb[0].mxu0
      %v5158 = vadd.f32 0.0, %v5157
      %v5159 = vpop.f32.mrb[0].mxu0
      %5160 = vmatprep.mubr.f32.mxu0 0.0
      %5161 = vmatmul.mubr.f32.gmra.mrb[0].mxu0 %v4667
      %v5162 = vpop.f32.mrb[0].mxu0
      %v5163 = vadd.f32 0.0, %v5162
      %v5164 = vpop.f32.mrb[0].mxu0
      %5165 = vmatprep.mubr.f32.mxu0 0.0
      %5166 = vmatmul.mubr.f32.gmra.mrb[0].mxu0 %v4670
      %v5167 = vpop.f32.mrb[0].mxu0
      %v5168 = vadd.f32 0.0, %v5167
      %v5169 = vpop.f32.mrb[0].mxu0
      %5170 = vmatprep.mubr.f32.mxu0 0.0
      %5171 = vmatmul.mubr.f32.gmra.mrb[0].mxu0 %v4673
      %v5172 = vpop.f32.mrb[0].mxu0
      %v5173 = vadd.f32 0.0, %v5172
      %v5174 = vpop.f32.mrb[0].mxu0
      %5175 = vmatprep.mubr.f32.mxu0 0.0
      %5176 = vmatmul.mubr.f32.gmra.mrb[0].mxu0 %v4676
      %v5177 = vpop.f32.mrb[0].mxu0
      %v5178 = vadd.f32 0.0, %v5177
      %v5179 = vpop.f32.mrb[0].mxu0
      %5180 = vmatprep.mubr.f32.mxu0 0.0
      %5181 = vmatmul.mubr.f32.gmra.mrb[0].mxu0 %v4679
      %v5182 = vpop.f32.mrb[0].mxu0
      %v5183 = vadd.f32 0.0, %v5182
      %v5184 = vpop.f32.mrb[0].mxu0
      %5185 = vmatprep.mubr.f32.mxu0 0.0
      %5186 = vmatmul.mubr.f32.gmra.mrb[0].mxu0 %v4682
      %v5187 = vpop.f32.mrb[0].mxu0
      %v5188 = vadd.f32 0.0, %v5187
      %v5189 = vpop.f32.mrb[0].mxu0
      %5190 = vmatprep.mubr.f32.mxu0 0.0
      %5191 = vmatmul.mubr.f32.gmra.mrb[0].mxu0 %v4685
      %v5192 = vpop.f32.mrb[0].mxu0
      %v5193 = vadd.f32 0.0, %v5192
      %v5194 = vpop.f32.mrb[0].mxu0
      %5195 = vmatprep.mubr.f32.mxu0 0.0
      %5196 = vmatmul.mubr.f32.gmra.mrb[0].mxu0 %v4688
      %v5197 = vpop.f32.mrb[0].mxu0
      %v5198 = vadd.f32 0.0, %v5197
      %v5199 = vpop.f32.mrb[0].mxu0
      %5200 = vmatprep.mubr.f32.mxu0 0.0
      %5201 = vmatmul.mubr.f32.gmra.mrb[0].mxu0 %v4691
      %v5202 = vpop.f32.mrb[0].mxu0
      %v5203 = vadd.f32 0.0, %v5202
      %v5204 = vpop.f32.mrb[0].mxu0
      %5205 = vmatprep.mubr.f32.mxu0 0.0
      %5206 = vmatmul.mubr.f32.gmra.mrb[0].mxu0 %v4694
      %v5207 = vpop.f32.mrb[0].mxu0
      %v5208 = vadd.f32 0.0, %v5207
      %v5209 = vpop.f32.mrb[0].mxu0
      %5210 = vmatprep.mubr.f32.mxu0 0.0
      %5211 = vmatmul.mubr.f32.gmra.mrb[0].mxu0 %v4697
      %v5212 = vpop.f32.mrb[0].mxu0
      %v5213 = vadd.f32 0.0, %v5212
      %v5214 = vpop.f32.mrb[0].mxu0
      %5215 = vmatprep.mubr.f32.mxu0 0.0
      %5216 = vmatmul.mubr.f32.gmra.mrb[0].mxu0 %v4700
      %v5217 = vpop.f32.mrb[0].mxu0
      %v5218 = vadd.f32 0.0, %v5217
      %v5219 = vpop.f32.mrb[0].mxu0
      %5220 = vmatprep.mubr.f32.mxu0 0.0
      %5221 = vmatmul.mubr.f32.gmra.mrb[0].mxu0 %v4703
      %v5222 = vpop.f32.mrb[0].mxu0
      %v5223 = vadd.f32 0.0, %v5222
      %v5224 = vpop.f32.mrb[0].mxu0
      %5225 = vmatprep.mubr.f32.mxu0 0.0
      %5226 = vmatmul.mubr.f32.gmra.mrb[0].mxu0 %v4706
      %v5227 = vpop.f32.mrb[0].mxu0
      %v5228 = vadd.f32 0.0, %v5227
      %v5229 = vpop.f32.mrb[0].mxu0
      %5230 = vmatprep.mubr.f32.mxu0 0.0
      %5231 = vmatmul.mubr.f32.gmra.mrb[0].mxu0 %v4709
      %v5232 = vpop.f32.mrb[0].mxu0
      %v5233 = vadd.f32 0.0, %v5232
      %v5234 = vpop.f32.mrb[0].mxu0
      %5235 = vmatprep.mubr.f32.mxu0 0.0
      %5236 = vmatmul.mubr.f32.gmra.mrb[0].mxu0 %v4712
      %v5237 = vpop.f32.mrb[0].mxu0
      %v5238 = vadd.f32 0.0, %v5237
      %v5239 = vpop.f32.mrb[0].mxu0
      %5240 = vmatprep.mubr.f32.mxu0 0.0
      %5241 = vmatmul.mubr.f32.gmra.mrb[0].mxu0 %v4715
      %v5242 = vpop.f32.mrb[0].mxu0
      %v5243 = vadd.f32 0.0, %v5242
      %v5244 = vpop.f32.mrb[0].mxu0
      %5245 = vmatprep.mubr.f32.mxu0 0.0
      %5246 = vmatmul.mubr.f32.gmra.mrb[0].mxu0 %v4718
      %v5247 = vpop.f32.mrb[0].mxu0
      %v5248 = vadd.f32 0.0, %v5247
      %v5249 = vpop.f32.mrb[0].mxu0
      %5250 = vmatprep.mubr.f32.mxu0 0.0
      %5251 = vmatmul.mubr.f32.gmra.mrb[0].mxu0 %v4721
      %v5252 = vpop.f32.mrb[0].mxu0
      %v5253 = vadd.f32 0.0, %v5252
      %v5254 = vpop.f32.mrb[0].mxu0
      %5255 = vmatprep.mubr.f32.mxu0 0.0
      %5256 = vmatmul.mubr.f32.gmra.mrb[0].mxu0 %v4724
      %v5257 = vpop.f32.mrb[0].mxu0
      %v5258 = vadd.f32 0.0, %v5257
      %v5259 = vpop.f32.mrb[0].mxu0
      %5260 = vmatprep.mubr.f32.mxu0 0.0
      %5261 = vmatmul.mubr.f32.gmra.mrb[0].mxu0 %v4727
      %v5262 = vpop.f32.mrb[0].mxu0
      %v5263 = vadd.f32 0.0, %v5262
      %v5264 = vpop.f32.mrb[0].mxu0
      %5265 = vmatprep.mubr.f32.mxu0 0.0
      %5266 = vmatmul.mubr.f32.gmra.mrb[0].mxu0 %v4730
      %v5267 = vpop.f32.mrb[0].mxu0
      %v5268 = vadd.f32 0.0, %v5267
      %v5269 = vpop.f32.mrb[0].mxu0
      %5270 = vmatprep.mubr.f32.mxu0 0.0
      %5271 = vmatmul.mubr.f32.gmra.mrb[0].mxu0 %v4733
      %v5272 = vpop.f32.mrb[0].mxu0
      %v5273 = vadd.f32 0.0, %v5272
      %v5274 = vpop.f32.mrb[0].mxu0
      %5275 = vmatprep.mubr.f32.mxu0 0.0
      %5276 = vmatmul.mubr.f32.gmra.mrb[0].mxu0 %v4736
      %v5277 = vpop.f32.mrb[0].mxu0
      %v5278 = vadd.f32 0.0, %v5277
      %v5279 = vpop.f32.mrb[0].mxu0
      %5280 = vmatprep.mubr.f32.mxu0 0.0
      %5281 = vmatmul.mubr.f32.gmra.mrb[0].mxu0 %v4739
      %v5282 = vpop.f32.mrb[0].mxu0
      %v5283 = vadd.f32 0.0, %v5282
      %v5284 = vpop.f32.mrb[0].mxu0
      %5285 = vmatprep.mubr.f32.mxu0 0.0
      %5286 = vmatmul.mubr.f32.gmra.mrb[0].mxu0 %v4742
      %v5287 = vpop.f32.mrb[0].mxu0
      %v5288 = vadd.f32 0.0, %v5287
      %v5289 = vpop.f32.mrb[0].mxu0
      %5290 = vmatprep.mubr.f32.mxu0 0.0
      %5291 = vmatmul.mubr.f32.gmra.mrb[0].mxu0 %v4745
      %v5292 = vpop.f32.mrb[0].mxu0
      %v5293 = vadd.f32 0.0, %v5292
      %v5294 = vpop.f32.mrb[0].mxu0
      %5295 = vmatprep.mubr.f32.mxu0 0.0
      %5296 = vmatmul.mubr.f32.gmra.mrb[0].mxu0 %v4748
      %v5297 = vpop.f32.mrb[0].mxu0
      %v5298 = vadd.f32 0.0, %v5297
      %v5299 = vpop.f32.mrb[0].mxu0
      %5300 = vmatprep.mubr.f32.mxu0 0.0
      %5301 = vmatmul.mubr.f32.gmra.mrb[0].mxu0 %v4751
      %v5302 = vpop.f32.mrb[0].mxu0
      %v5303 = vadd.f32 0.0, %v5302
      %v5304 = vpop.f32.mrb[0].mxu0
      %5305 = vmatprep.mubr.f32.mxu0 0.0
      %5306 = vmatmul.mubr.f32.gmra.mrb[0].mxu0 %v4754
      %v5307 = vpop.f32.mrb[0].mxu0
      %v5308 = vadd.f32 0.0, %v5307
      %v5309 = vpop.f32.mrb[0].mxu0
      %5310 = vmatprep.mubr.f32.mxu0 0.0
      %5311 = vmatmul.mubr.f32.gmra.mrb[0].mxu0 %v4757
      %v5312 = vpop.f32.mrb[0].mxu0
      %v5313 = vadd.f32 0.0, %v5312
      %v5314 = vpop.f32.mrb[0].mxu0
      %5315 = vmatprep.mubr.f32.mxu0 0.0
      %5316 = vmatmul.mubr.f32.gmra.mrb[0].mxu0 %v4760
      %v5317 = vpop.f32.mrb[0].mxu0
      %v5318 = vadd.f32 0.0, %v5317
      %v5319 = vpop.f32.mrb[0].mxu0
      %5320 = vmatprep.mubr.f32.mxu0 0.0
      %5321 = vmatmul.mubr.f32.gmra.mrb[0].mxu0 %v4763
      %v5322 = vpop.f32.mrb[0].mxu0
      %v5323 = vadd.f32 0.0, %v5322
      %v5324 = vpop.f32.mrb[0].mxu0
      %5325 = vmatprep.mubr.f32.mxu0 0.0
      %5326 = vmatmul.mubr.f32.gmra.mrb[0].mxu0 %v4766
      %v5327 = vpop.f32.mrb[0].mxu0
      %v5328 = vadd.f32 0.0, %v5327
      %v5329 = vpop.f32.mrb[0].mxu0
      %5330 = vmatprep.mubr.f32.mxu0 0.0
      %5331 = vmatmul.mubr.f32.gmra.mrb[0].mxu0 %v4769
      %v5332 = vpop.f32.mrb[0].mxu0
      %v5333 = vadd.f32 0.0, %v5332
      %v5334 = vpop.f32.mrb[0].mxu0
      %5335 = vmatprep.mubr.f32.mxu0 0.0
      %5336 = vmatmul.mubr.f32.gmra.mrb[0].mxu0 %v4772
      %v5337 = vpop.f32.mrb[0].mxu0
      %v5338 = vadd.f32 0.0, %v5337
      %v5339 = vpop.f32.mrb[0].mxu0
      %5340 = vmatprep.mubr.f32.mxu0 0.0
      %5341 = vmatmul.mubr.f32.gmra.mrb[0].mxu0 %v4775
      %v5342 = vpop.f32.mrb[0].mxu0
      %v5343 = vadd.f32 0.0, %v5342
      %v5344 = vpop.f32.mrb[0].mxu0
      %5345 = vmatprep.mubr.f32.mxu0 0.0
      %5346 = vmatmul.mubr.f32.gmra.mrb[0].mxu0 %v4778
      %v5347 = vpop.f32.mrb[0].mxu0
      %v5348 = vadd.f32 0.0, %v5347
      %v5349 = vpop.f32.mrb[0].mxu0
      %5350 = vmatprep.mubr.f32.mxu0 0.0
      %5351 = vmatmul.mubr.f32.gmra.mrb[0].mxu0 %v4781
      %v5352 = vpop.f32.mrb[0].mxu0
      %v5353 = vadd.f32 0.0, %v5352
      %v5354 = vpop.f32.mrb[0].mxu0
      %5355 = vmatprep.mubr.f32.mxu0 0.0
      %5356 = vmatmul.mubr.f32.gmra.mrb[0].mxu0 %v4784
      %v5357 = vpop.f32.mrb[0].mxu0
      %v5358 = vadd.f32 0.0, %v5357
      %v5359 = vpop.f32.mrb[0].mxu0
      %5360 = vmatprep.mubr.f32.mxu0 0.0
      %5361 = vmatmul.mubr.f32.gmra.mrb[0].mxu0 %v4787
      %v5362 = vpop.f32.mrb[0].mxu0
      %v5363 = vadd.f32 0.0, %v5362
      %v5364 = vpop.f32.mrb[0].mxu0
      %5365 = vmatprep.mubr.f32.mxu0 0.0
      %5366 = vmatmul.mubr.f32.gmra.mrb[0].mxu0 %v4790
      %v5367 = vpop.f32.mrb[0].mxu0
      %v5368 = vadd.f32 0.0, %v5367
      %v5369 = vpop.f32.mrb[0].mxu0
      %5370 = vmatprep.mubr.f32.mxu0 0.0
      %5371 = vmatmul.mubr.f32.gmra.mrb[0].mxu0 %v4793
      %v5372 = vpop.f32.mrb[0].mxu0
      %v5373 = vadd.f32 0.0, %v5372
      %v5374 = vpop.f32.mrb[0].mxu0
      %5375 = vmatprep.mubr.f32.mxu0 0.0
      %5376 = vmatmul.mubr.f32.gmra.mrb[0].mxu0 %v4796
      %v5377 = vpop.f32.mrb[0].mxu0
      %v5378 = vadd.f32 0.0, %v5377
      %v5379 = vpop.f32.mrb[0].mxu0
      %5380 = vmatprep.mubr.f32.mxu0 0.0
      %5381 = vmatmul.mubr.f32.gmra.mrb[0].mxu0 %v4799
      %v5382 = vpop.f32.mrb[0].mxu0
      %v5383 = vadd.f32 0.0, %v5382
      %v5384 = vpop.f32.mrb[0].mxu0
      %5385 = vmatprep.mubr.f32.mxu0 0.0
      %5386 = vmatmul.mubr.f32.gmra.mrb[0].mxu0 %v4802
      %v5387 = vpop.f32.mrb[0].mxu0
      %v5388 = vadd.f32 0.0, %v5387
      %v5389 = vpop.f32.mrb[0].mxu0
      %5390 = vmatprep.mubr.f32.mxu0 0.0
      %5391 = vmatmul.mubr.f32.gmra.mrb[0].mxu0 %v4805
      %v5392 = vpop.f32.mrb[0].mxu0
      %v5393 = vadd.f32 0.0, %v5392
      %v5394 = vpop.f32.mrb[0].mxu0
      %5395 = vmatprep.mubr.f32.mxu0 0.0
      %5396 = vmatmul.mubr.f32.gmra.mrb[0].mxu0 %v4808
      %v5397 = vpop.f32.mrb[0].mxu0
      %v5398 = vadd.f32 0.0, %v5397
      %v5399 = vpop.f32.mrb[0].mxu0
      %5400 = vmatprep.mubr.f32.mxu0 0.0
      %5401 = vmatmul.mubr.f32.gmra.mrb[0].mxu0 %v4811
      %v5402 = vpop.f32.mrb[0].mxu0
      %v5403 = vadd.f32 0.0, %v5402
      %v5404 = vpop.f32.mrb[0].mxu0
      %5405 = vmatprep.mubr.f32.mxu0 0.0
      %5406 = vmatmul.mubr.f32.gmra.mrb[0].mxu0 %v4814
      %v5407 = vpop.f32.mrb[0].mxu0
      %v5408 = vadd.f32 0.0, %v5407
      %v5409 = vpop.f32.mrb[0].mxu0
      %5410 = vmatprep.mubr.f32.mxu0 0.0
      %5411 = vmatmul.mubr.f32.gmra.mrb[0].mxu0 %v4817
      %v5412 = vpop.f32.mrb[0].mxu0
      %v5413 = vadd.f32 0.0, %v5412
      %v5414 = vpop.f32.mrb[0].mxu0
      %5415 = vmatprep.mubr.f32.mxu0 0.0
      %5416 = vmatmul.mubr.f32.gmra.mrb[0].mxu0 %v4820
      %v5417 = vpop.f32.mrb[0].mxu0
      %v5418 = vadd.f32 0.0, %v5417
      %v5419 = vpop.f32.mrb[0].mxu0
      %5420 = vmatprep.mubr.f32.mxu0 0.0
      %5421 = vmatmul.mubr.f32.gmra.mrb[0].mxu0 %v4823
      %v5422 = vpop.f32.mrb[0].mxu0
      %v5423 = vadd.f32 0.0, %v5422
      %v5424 = vpop.f32.mrb[0].mxu0
      %5425 = vmatprep.mubr.f32.mxu0 0.0
      %5426 = vmatmul.mubr.f32.gmra.mrb[0].mxu0 %v4826
      %v5427 = vpop.f32.mrb[0].mxu0
      %v5428 = vadd.f32 0.0, %v5427
      %v5429 = vpop.f32.mrb[0].mxu0
      %5430 = vmatprep.mubr.f32.mxu0 0.0
      %5431 = vmatmul.mubr.f32.gmra.mrb[0].mxu0 %v4829
      %v5432 = vpop.f32.mrb[0].mxu0
      %v5433 = vadd.f32 0.0, %v5432
      %v5434 = vpop.f32.mrb[0].mxu0
      %5435 = vmatprep.mubr.f32.mxu0 0.0
      %5436 = vmatmul.mubr.f32.gmra.mrb[0].mxu0 %v4832
      %v5437 = vpop.f32.mrb[0].mxu0
      %v5438 = vadd.f32 0.0, %v5437
      %v5439 = vpop.f32.mrb[0].mxu0
      %5440 = vmatprep.mubr.f32.mxu0 0.0
      %5441 = vmatmul.mubr.f32.gmra.mrb[0].mxu0 %v4835
      %v5442 = vpop.f32.mrb[0].mxu0
      %v5443 = vadd.f32 0.0, %v5442
      %v5444 = vpop.f32.mrb[0].mxu0
      %5445 = vmatprep.mubr.f32.mxu0 0.0
      %5446 = vmatmul.mubr.f32.gmra.mrb[0].mxu0 %v4838
      %v5447 = vpop.f32.mrb[0].mxu0
      %v5448 = vadd.f32 0.0, %v5447
      %v5449 = vpop.f32.mrb[0].mxu0
      %5450 = vmatprep.mubr.f32.mxu0 0.0
      %5451 = vmatmul.mubr.f32.gmra.mrb[0].mxu0 %v4841
      %v5452 = vpop.f32.mrb[0].mxu0
      %v5453 = vadd.f32 0.0, %v5452
      %v5454 = vpop.f32.mrb[0].mxu0
      %5455 = vmatprep.mubr.f32.mxu0 0.0
      %5456 = vmatmul.mubr.f32.gmra.mrb[0].mxu0 %v4844
      %v5457 = vpop.f32.mrb[0].mxu0
      %v5458 = vadd.f32 0.0, %v5457
      %v5459 = vpop.f32.mrb[0].mxu0
      %5460 = vmatprep.mubr.f32.mxu0 0.0
      %5461 = vmatmul.mubr.f32.gmra.mrb[0].mxu0 %v4847
      %v5462 = vpop.f32.mrb[0].mxu0
      %v5463 = vadd.f32 0.0, %v5462
      %v5464 = vpop.f32.mrb[0].mxu0
      %5465 = vmatprep.mubr.f32.mxu0 0.0
      %5466 = vmatmul.mubr.f32.gmra.mrb[0].mxu0 %v4850
      %v5467 = vpop.f32.mrb[0].mxu0
      %v5468 = vadd.f32 0.0, %v5467
      %v5469 = vpop.f32.mrb[0].mxu0
      %5470 = vmatprep.mubr.f32.mxu0 0.0
      %5471 = vmatmul.mubr.f32.gmra.mrb[0].mxu0 %v4853
      %v5472 = vpop.f32.mrb[0].mxu0
      %v5473 = vadd.f32 0.0, %v5472
      %v5474 = vpop.f32.mrb[0].mxu0
      %5475 = vmatprep.mubr.f32.mxu0 0.0
      %5476 = vmatmul.mubr.f32.gmra.mrb[0].mxu0 %v4856
      %v5477 = vpop.f32.mrb[0].mxu0
      %v5478 = vadd.f32 0.0, %v5477
      %v5479 = vpop.f32.mrb[0].mxu0
      %5480 = vmatprep.mubr.f32.mxu0 0.0
      %5481 = vmatmul.mubr.f32.gmra.mrb[0].mxu0 %v4859
      %v5482 = vpop.f32.mrb[0].mxu0
      %v5483 = vadd.f32 0.0, %v5482
      %v5484 = vpop.f32.mrb[0].mxu0
      %5485 = vmatprep.mubr.f32.mxu0 0.0
      %5486 = vmatmul.mubr.f32.gmra.mrb[0].mxu0 %v4862
      %v5487 = vpop.f32.mrb[0].mxu0
      %v5488 = vadd.f32 0.0, %v5487
      %v5489 = vpop.f32.mrb[0].mxu0
      %5490 = vmatprep.mubr.f32.mxu0 0.0
      %5491 = vmatmul.mubr.f32.gmra.mrb[0].mxu0 %v4865
      %v5492 = vpop.f32.mrb[0].mxu0
      %v5493 = vadd.f32 0.0, %v5492
      %v5494 = vpop.f32.mrb[0].mxu0
      %5495 = vmatprep.mubr.f32.mxu0 0.0
      %5496 = vmatmul.mubr.f32.gmra.mrb[0].mxu0 %v4868
      %v5497 = vpop.f32.mrb[0].mxu0
      %v5498 = vadd.f32 0.0, %v5497
      %v5499 = vpop.f32.mrb[0].mxu0
      %5500 = vmatprep.mubr.f32.mxu0 0.0
      %5501 = vmatmul.mubr.f32.gmra.mrb[0].mxu0 %v4871
      %v5502 = vpop.f32.mrb[0].mxu0
      %v5503 = vadd.f32 0.0, %v5502
      %v5504 = vpop.f32.mrb[0].mxu0
      %5505 = vmatprep.mubr.f32.mxu0 0.0
      %5506 = vmatmul.mubr.f32.gmra.mrb[0].mxu0 %v4874
      %v5507 = vpop.f32.mrb[0].mxu0
      %v5508 = vadd.f32 0.0, %v5507
      %v5509 = vpop.f32.mrb[0].mxu0
      %5510 = vmatprep.mubr.f32.mxu0 0.0
      %5511 = vmatmul.mubr.f32.gmra.mrb[0].mxu0 %v4877
      %v5512 = vpop.f32.mrb[0].mxu0
      %v5513 = vadd.f32 0.0, %v5512
      %v5514 = vpop.f32.mrb[0].mxu0
      %5515 = vmatprep.mubr.f32.mxu0 0.0
      %5516 = vmatmul.mubr.f32.gmra.mrb[0].mxu0 %v4880
      %v5517 = vpop.f32.mrb[0].mxu0
      %v5518 = vadd.f32 0.0, %v5517
      %v5519 = vpop.f32.mrb[0].mxu0
      %5520 = vmatprep.mubr.f32.mxu0 0.0
      %5521 = vmatmul.mubr.f32.gmra.mrb[0].mxu0 %v4883
      %v5522 = vpop.f32.mrb[0].mxu0
      %v5523 = vadd.f32 0.0, %v5522
      %v5524 = vpop.f32.mrb[0].mxu0
      %5525 = vmatprep.mubr.f32.mxu0 0.0
      %5526 = vmatmul.mubr.f32.gmra.mrb[0].mxu0 %v4886
      %v5527 = vpop.f32.mrb[0].mxu0
      %v5528 = vadd.f32 0.0, %v5527
      %v5529 = vpop.f32.mrb[0].mxu0
      %5530 = vmatprep.mubr.f32.mxu0 0.0
      %5531 = vmatmul.mubr.f32.gmra.mrb[0].mxu0 %v4889
      %v5532 = vpop.f32.mrb[0].mxu0
      %v5533 = vadd.f32 0.0, %v5532
      %v5534 = vpop.f32.mrb[0].mxu0
      %5535 = vmatprep.mubr.f32.mxu0 0.0
      %5536 = vmatmul.mubr.f32.gmra.mrb[0].mxu0 %v4892
      %v5537 = vpop.f32.mrb[0].mxu0
      %v5538 = vadd.f32 0.0, %v5537
      %v5539 = vpop.f32.mrb[0].mxu0
      %5540 = vmatprep.mubr.f32.mxu0 0.0
      %5541 = vmatmul.mubr.f32.gmra.mrb[0].mxu0 %v4895
      %v5542 = vpop.f32.mrb[0].mxu0
      %v5543 = vadd.f32 0.0, %v5542
      %v5544 = vpop.f32.mrb[0].mxu0
      %5545 = vmatprep.mubr.f32.mxu0 0.0
      %5546 = vmatmul.mubr.f32.gmra.mrb[0].mxu0 %v4898
      %v5547 = vpop.f32.mrb[0].mxu0
      %v5548 = vadd.f32 0.0, %v5547
      %v5549 = vpop.f32.mrb[0].mxu0
      %5550 = vmatprep.mubr.f32.mxu0 0.0
      %5551 = vmatmul.mubr.f32.gmra.mrb[0].mxu0 %v4901
      %v5552 = vpop.f32.mrb[0].mxu0
      %v5553 = vadd.f32 0.0, %v5552
      %v5554 = vpop.f32.mrb[0].mxu0
      %5555 = vmatprep.mubr.f32.mxu0 0.0
      %5556 = vmatmul.mubr.f32.gmra.mrb[0].mxu0 %v4904
      %v5557 = vpop.f32.mrb[0].mxu0
      %v5558 = vadd.f32 0.0, %v5557
      %v5559 = vpop.f32.mrb[0].mxu0
      %5560 = vmatprep.mubr.f32.mxu0 0.0
      %5561 = vmatmul.mubr.f32.gmra.mrb[0].mxu0 %v4907
      %v5562 = vpop.f32.mrb[0].mxu0
      %v5563 = vadd.f32 0.0, %v5562
      %v5564 = vpop.f32.mrb[0].mxu0
      %5565 = vmatprep.mubr.f32.mxu0 0.0
      %5566 = vmatmul.mubr.f32.gmra.mrb[0].mxu0 %v4910
      %v5567 = vpop.f32.mrb[0].mxu0
      %v5568 = vadd.f32 0.0, %v5567
      %v5569 = vpop.f32.mrb[0].mxu0
      %5570 = vmatprep.mubr.f32.mxu0 0.0
      %5571 = vmatmul.mubr.f32.gmra.mrb[0].mxu0 %v4913
      %v5572 = vpop.f32.mrb[0].mxu0
      %v5573 = vadd.f32 0.0, %v5572
      %v5574 = vpop.f32.mrb[0].mxu0
      %5575 = vmatprep.mubr.f32.mxu0 0.0
      %5576 = vmatmul.mubr.f32.gmra.mrb[0].mxu0 %v4916
      %v5577 = vpop.f32.mrb[0].mxu0
      %v5578 = vadd.f32 0.0, %v5577
      %v5579 = vpop.f32.mrb[0].mxu0
      %5580 = vmatprep.mubr.f32.mxu0 0.0
      %5581 = vmatmul.mubr.f32.gmra.mrb[0].mxu0 %v4919
      %v5582 = vpop.f32.mrb[0].mxu0
      %v5583 = vadd.f32 0.0, %v5582
      %v5584 = vpop.f32.mrb[0].mxu0
      %5585 = vmatprep.mubr.f32.mxu0 0.0
      %5586 = vmatmul.mubr.f32.gmra.mrb[0].mxu0 %v4922
      %v5587 = vpop.f32.mrb[0].mxu0
      %v5588 = vadd.f32 0.0, %v5587
      %v5589 = vpop.f32.mrb[0].mxu0
      %5590 = vmatprep.mubr.f32.mxu0 0.0
      %5591 = vmatmul.mubr.f32.gmra.mrb[0].mxu0 %v4925
      %v5592 = vpop.f32.mrb[0].mxu0
      %v5593 = vadd.f32 0.0, %v5592
      %v5594 = vpop.f32.mrb[0].mxu0
      %5595 = vmatprep.mubr.f32.mxu0 0.0
      %5596 = vmatmul.mubr.f32.gmra.mrb[0].mxu0 %v4928
      %v5597 = vpop.f32.mrb[0].mxu0
      %v5598 = vadd.f32 0.0, %v5597
      %v5599 = vpop.f32.mrb[0].mxu0
      %5600 = vmatprep.mubr.f32.mxu0 0.0
      %5601 = vmatmul.mubr.f32.gmra.mrb[0].mxu0 %v4931
      %v5602 = vpop.f32.mrb[0].mxu0
      %v5603 = vadd.f32 0.0, %v5602
      %v5604 = vpop.f32.mrb[0].mxu0
      %5605 = vmatprep.mubr.f32.mxu0 0.0
      %5606 = vmatmul.mubr.f32.gmra.mrb[0].mxu0 %v4934
      %v5607 = vpop.f32.mrb[0].mxu0
      %v5608 = vadd.f32 0.0, %v5607
      %v5609 = vpop.f32.mrb[0].mxu0
      %5610 = vmatprep.mubr.f32.mxu0 0.0
      %5611 = vmatmul.mubr.f32.gmra.mrb[0].mxu0 %v4937
      %v5612 = vpop.f32.mrb[0].mxu0
      %v5613 = vadd.f32 0.0, %v5612
      %v5614 = vpop.f32.mrb[0].mxu0
      %5615 = vmatprep.mubr.f32.mxu0 0.0
      %5616 = vmatmul.mubr.f32.gmra.mrb[0].mxu0 %v4940
      %v5617 = vpop.f32.mrb[0].mxu0
      %v5618 = vadd.f32 0.0, %v5617
      %v5619 = vpop.f32.mrb[0].mxu0
      %5620 = vmatprep.mubr.f32.mxu0 0.0
      %5621 = vmatmul.mubr.f32.gmra.mrb[0].mxu0 %v4943
      %v5622 = vpop.f32.mrb[0].mxu0
      %v5623 = vadd.f32 0.0, %v5622
      %v5624 = vpop.f32.mrb[0].mxu0
      %5625 = vmatprep.mubr.f32.mxu0 0.0
      %5626 = vmatmul.mubr.f32.gmra.mrb[0].mxu0 %v4946
      %v5627 = vpop.f32.mrb[0].mxu0
      %v5628 = vadd.f32 0.0, %v5627
      %v5629 = vpop.f32.mrb[0].mxu0
      %5630 = vmatprep.mubr.f32.mxu0 0.0
      %5631 = vmatmul.mubr.f32.gmra.mrb[0].mxu0 %v4949
      %v5632 = vpop.f32.mrb[0].mxu0
      %v5633 = vadd.f32 0.0, %v5632
      %v5634 = vpop.f32.mrb[0].mxu0
      %5635 = vmatprep.mubr.f32.mxu0 0.0
      %5636 = vmatmul.mubr.f32.gmra.mrb[0].mxu0 %v4952
      %v5637 = vpop.f32.mrb[0].mxu0
      %v5638 = vadd.f32 0.0, %v5637
      %v5639 = vpop.f32.mrb[0].mxu0
      %5640 = vmatprep.mubr.f32.mxu0 0.0
      %5641 = vmatmul.mubr.f32.gmra.mrb[0].mxu0 %v4955
      %v5642 = vpop.f32.mrb[0].mxu0
      %v5643 = vadd.f32 0.0, %v5642
      %v5644 = vpop.f32.mrb[0].mxu0
      %5645 = vmatprep.mubr.f32.mxu0 0.0
      %5646 = vmatmul.mubr.f32.gmra.mrb[0].mxu0 %v4958
      %v5647 = vpop.f32.mrb[0].mxu0
      %v5648 = vadd.f32 0.0, %v5647
      %v5649 = vpop.f32.mrb[0].mxu0
      %5650 = vmatprep.mubr.f32.mxu0 0.0
      %5651 = vmatmul.mubr.f32.gmra.mrb[0].mxu0 %v4961
      %v5652 = vpop.f32.mrb[0].mxu0
      %v5653 = vadd.f32 0.0, %v5652
      %v5654 = vpop.f32.mrb[0].mxu0
      %5655 = vmatprep.mubr.f32.mxu0 0.0
      %5656 = vmatmul.mubr.f32.gmra.mrb[0].mxu0 %v4964
      %v5657 = vpop.f32.mrb[0].mxu0
      %v5658 = vadd.f32 0.0, %v5657
      %v5659 = vpop.f32.mrb[0].mxu0
      %5660 = vmatprep.mubr.f32.mxu0 0.0
      %5661 = vmatmul.mubr.f32.gmra.mrb[0].mxu0 %v4967
      %v5662 = vpop.f32.mrb[0].mxu0
      %v5663 = vadd.f32 0.0, %v5662
      %v5664 = vpop.f32.mrb[0].mxu0
      %5665 = vmatprep.mubr.f32.mxu0 0.0
      %5666 = vmatmul.mubr.f32.gmra.mrb[0].mxu0 %v4970
      %v5667 = vpop.f32.mrb[0].mxu0
      %v5668 = vadd.f32 0.0, %v5667
      %v5669 = vpop.f32.mrb[0].mxu0
      %5670 = vmatprep.mubr.f32.mxu0 0.0
      %5671 = vmatmul.mubr.f32.gmra.mrb[0].mxu0 %v4973
      %v5672 = vpop.f32.mrb[0].mxu0
      %v5673 = vadd.f32 0.0, %v5672
      %v5674 = vpop.f32.mrb[0].mxu0
      %5675 = vmatprep.mubr.f32.mxu0 0.0
      %5676 = vmatmul.mubr.f32.gmra.mrb[0].mxu0 %v4976
      %v5677 = vpop.f32.mrb[0].mxu0
      %v5678 = vadd.f32 0.0, %v5677
      %v5679 = vpop.f32.mrb[0].mxu0
      %5680 = vmatprep.mubr.f32.mxu0 0.0
      %5681 = vmatmul.mubr.f32.gmra.mrb[0].mxu0 %v4979
      %v5682 = vpop.f32.mrb[0].mxu0
      %v5683 = vadd.f32 0.0, %v5682
      %v5684 = vpop.f32.mrb[0].mxu0
      %5685 = vdwg.mxu0
      %v5686 = vmul.f32 %v5048, %v1309
      %v5687 = vmul.f32 %v5053, %v1310
      %v5688 = vmul.f32 %v5058, %v1311
      %v5689 = vmul.f32 %v5063, %v1312
      %v5690 = vmul.f32 %v5068, %v1313
      %v5691 = vmul.f32 %v5073, %v1314
      %v5692 = vmul.f32 %v5078, %v1315
      %v5693 = vmul.f32 %v5083, %v1316
      %v5694 = vmul.f32 %v5088, %v1317
      %v5695 = vmul.f32 %v5093, %v1318
      %v5696 = vmul.f32 %v5098, %v1319
      %v5697 = vmul.f32 %v5103, %v1320
      %v5698 = vmul.f32 %v5108, %v1321
      %v5699 = vmul.f32 %v5113, %v1322
      %v5700 = vmul.f32 %v5118, %v1323
      %v5701 = vmul.f32 %v5123, %v1324
      %v5702 = vmul.f32 %v5128, %v1325
      %v5703 = vmul.f32 %v5133, %v1326
      %v5704 = vmul.f32 %v5138, %v1327
      %v5705 = vmul.f32 %v5143, %v1328
      %v5706 = vmul.f32 %v5148, %v1329
      %v5707 = vmul.f32 %v5153, %v1330
      %v5708 = vmul.f32 %v5158, %v1331
      %v5709 = vmul.f32 %v5163, %v1332
      %v5710 = vmul.f32 %v5168, %v1333
      %v5711 = vmul.f32 %v5173, %v1334
      %v5712 = vmul.f32 %v5178, %v1335
      %v5713 = vmul.f32 %v5183, %v1336
      %v5714 = vmul.f32 %v5188, %v1337
      %v5715 = vmul.f32 %v5193, %v1338
      %v5716 = vmul.f32 %v5198, %v1339
      %v5717 = vmul.f32 %v5203, %v1340
      %v5718 = vmul.f32 %v5208, %v1341
      %v5719 = vmul.f32 %v5213, %v1342
      %v5720 = vmul.f32 %v5218, %v1343
      %v5721 = vmul.f32 %v5223, %v1344
      %v5722 = vmul.f32 %v5228, %v1345
      %v5723 = vmul.f32 %v5233, %v1346
      %v5724 = vmul.f32 %v5238, %v1347
      %v5725 = vmul.f32 %v5243, %v1348
      %v5726 = vmul.f32 %v5248, %v1349
      %v5727 = vmul.f32 %v5253, %v1350
      %v5728 = vmul.f32 %v5258, %v1351
      %v5729 = vmul.f32 %v5263, %v1352
      %v5730 = vmul.f32 %v5268, %v1353
      %v5731 = vmul.f32 %v5273, %v1354
      %v5732 = vmul.f32 %v5278, %v1355
      %v5733 = vmul.f32 %v5283, %v1356
      %v5734 = vmul.f32 %v5288, %v1357
      %v5735 = vmul.f32 %v5293, %v1358
      %v5736 = vmul.f32 %v5298, %v1359
      %v5737 = vmul.f32 %v5303, %v1360
      %v5738 = vmul.f32 %v5308, %v1361
      %v5739 = vmul.f32 %v5313, %v1362
      %v5740 = vmul.f32 %v5318, %v1363
      %v5741 = vmul.f32 %v5323, %v1364
      %v5742 = vmul.f32 %v5328, %v1365
      %v5743 = vmul.f32 %v5333, %v1366
      %v5744 = vmul.f32 %v5338, %v1367
      %v5745 = vmul.f32 %v5343, %v1368
      %v5746 = vmul.f32 %v5348, %v1369
      %v5747 = vmul.f32 %v5353, %v1370
      %v5748 = vmul.f32 %v5358, %v1371
      %v5749 = vmul.f32 %v5363, %v1372
      %v5750 = vmul.f32 %v5368, %v1373
      %v5751 = vmul.f32 %v5373, %v1374
      %v5752 = vmul.f32 %v5378, %v1375
      %v5753 = vmul.f32 %v5383, %v1376
      %v5754 = vmul.f32 %v5388, %v1377
      %v5755 = vmul.f32 %v5393, %v1378
      %v5756 = vmul.f32 %v5398, %v1379
      %v5757 = vmul.f32 %v5403, %v1380
      %v5758 = vmul.f32 %v5408, %v1381
      %v5759 = vmul.f32 %v5413, %v1382
      %v5760 = vmul.f32 %v5418, %v1383
      %v5761 = vmul.f32 %v5423, %v1384
      %v5762 = vmul.f32 %v5428, %v1385
      %v5763 = vmul.f32 %v5433, %v1386
      %v5764 = vmul.f32 %v5438, %v1387
      %v5765 = vmul.f32 %v5443, %v1388
      %v5766 = vmul.f32 %v5448, %v1389
      %v5767 = vmul.f32 %v5453, %v1390
      %v5768 = vmul.f32 %v5458, %v1391
      %v5769 = vmul.f32 %v5463, %v1392
      %v5770 = vmul.f32 %v5468, %v1393
      %v5771 = vmul.f32 %v5473, %v1394
      %v5772 = vmul.f32 %v5478, %v1395
      %v5773 = vmul.f32 %v5483, %v1396
      %v5774 = vmul.f32 %v5488, %v1397
      %v5775 = vmul.f32 %v5493, %v1398
      %v5776 = vmul.f32 %v5498, %v1399
      %v5777 = vmul.f32 %v5503, %v1400
      %v5778 = vmul.f32 %v5508, %v1401
      %v5779 = vmul.f32 %v5513, %v1402
      %v5780 = vmul.f32 %v5518, %v1403
      %v5781 = vmul.f32 %v5523, %v1404
      %v5782 = vmul.f32 %v5528, %v1405
      %v5783 = vmul.f32 %v5533, %v1406
      %v5784 = vmul.f32 %v5538, %v1407
      %v5785 = vmul.f32 %v5543, %v1408
      %v5786 = vmul.f32 %v5548, %v1409
      %v5787 = vmul.f32 %v5553, %v1410
      %v5788 = vmul.f32 %v5558, %v1411
      %v5789 = vmul.f32 %v5563, %v1412
      %v5790 = vmul.f32 %v5568, %v1413
      %v5791 = vmul.f32 %v5573, %v1414
      %v5792 = vmul.f32 %v5578, %v1415
      %v5793 = vmul.f32 %v5583, %v1416
      %v5794 = vmul.f32 %v5588, %v1417
      %v5795 = vmul.f32 %v5593, %v1418
      %v5796 = vmul.f32 %v5598, %v1419
      %v5797 = vmul.f32 %v5603, %v1420
      %v5798 = vmul.f32 %v5608, %v1421
      %v5799 = vmul.f32 %v5613, %v1422
      %v5800 = vmul.f32 %v5618, %v1423
      %v5801 = vmul.f32 %v5623, %v1424
      %v5802 = vmul.f32 %v5628, %v1425
      %v5803 = vmul.f32 %v5633, %v1426
      %v5804 = vmul.f32 %v5638, %v1427
      %v5805 = vmul.f32 %v5643, %v1428
      %v5806 = vmul.f32 %v5648, %v1429
      %v5807 = vmul.f32 %v5653, %v1430
      %v5808 = vmul.f32 %v5658, %v1431
      %v5809 = vmul.f32 %v5663, %v1432
      %v5810 = vmul.f32 %v5668, %v1433
      %v5811 = vmul.f32 %v5673, %v1434
      %v5812 = vmul.f32 %v5678, %v1435
      %v5813 = vmul.f32 %v5683, %v1436
      %5814 = vmatprep.subr.mxu0 0.0
      %5815 = vmatpush1.msra.mxu0 %v5686
      %5816 = vmatprep.subr.mxu0 0.0
      %5817 = vmatpush1.msra.mxu0 %v5687
      %5818 = vmatprep.subr.mxu0 0.0
      %5819 = vmatpush1.msra.mxu0 %v5688
      %5820 = vmatprep.subr.mxu0 0.0
      %5821 = vmatpush1.msra.mxu0 %v5689
      %5822 = vmatprep.subr.mxu0 0.0
      %5823 = vmatpush1.msra.mxu0 %v5690
      %5824 = vmatprep.subr.mxu0 0.0
      %5825 = vmatpush1.msra.mxu0 %v5691
      %5826 = vmatprep.subr.mxu0 0.0
      %5827 = vmatpush1.msra.mxu0 %v5692
      %5828 = vmatprep.subr.mxu0 0.0
      %5829 = vmatpush1.msra.mxu0 %v5693
      %5830 = vmatprep.subr.mxu0 0.0
      %5831 = vmatpush1.msra.mxu0 %v5694
      %5832 = vmatprep.subr.mxu0 0.0
      %5833 = vmatpush1.msra.mxu0 %v5695
      %5834 = vmatprep.subr.mxu0 0.0
      %5835 = vmatpush1.msra.mxu0 %v5696
      %5836 = vmatprep.subr.mxu0 0.0
      %5837 = vmatpush1.msra.mxu0 %v5697
      %5838 = vmatprep.subr.mxu0 0.0
      %5839 = vmatpush1.msra.mxu0 %v5698
      %5840 = vmatprep.subr.mxu0 0.0
      %5841 = vmatpush1.msra.mxu0 %v5699
      %5842 = vmatprep.subr.mxu0 0.0
      %5843 = vmatpush1.msra.mxu0 %v5700
      %5844 = vmatprep.subr.mxu0 0.0
      %5845 = vmatpush1.msra.mxu0 %v5701
      %5846 = vmatprep.subr.mxu0 0.0
      %5847 = vmatpush1.msra.mxu0 0.0
      %5848 = vmatprep.subr.mxu0 0.0
      %5849 = vmatpush1.msra.mxu0 0.0
      %5850 = vmatprep.subr.mxu0 0.0
      %5851 = vmatpush1.msra.mxu0 0.0
      %5852 = vmatprep.subr.mxu0 0.0
      %5853 = vmatpush1.msra.mxu0 0.0
      %5854 = vmatprep.subr.mxu0 0.0
      %5855 = vmatpush1.msra.mxu0 0.0
      %5856 = vmatprep.subr.mxu0 0.0
      %5857 = vmatpush1.msra.mxu0 0.0
      %5858 = vmatprep.subr.mxu0 0.0
      %5859 = vmatpush1.msra.mxu0 0.0
      %5860 = vmatprep.subr.mxu0 0.0
      %5861 = vmatpush1.msra.mxu0 0.0
      %5862 = vmatprep.subr.mxu0 0.0
      %5863 = vmatpush1.msra.mxu0 0.0
      %5864 = vmatprep.subr.mxu0 0.0
      %5865 = vmatpush1.msra.mxu0 0.0
      %5866 = vmatprep.subr.mxu0 0.0
      %5867 = vmatpush1.msra.mxu0 0.0
      %5868 = vmatprep.subr.mxu0 0.0
      %5869 = vmatpush1.msra.mxu0 0.0
      %5870 = vmatprep.subr.mxu0 0.0
      %5871 = vmatpush1.msra.mxu0 0.0
      %5872 = vmatprep.subr.mxu0 0.0
      %5873 = vmatpush1.msra.mxu0 0.0
      %5874 = vmatprep.subr.mxu0 0.0
      %5875 = vmatpush1.msra.mxu0 0.0
      %5876 = vmatprep.subr.mxu0 0.0
      %5877 = vmatpush1.msra.mxu0 0.0
      %5878 = vmatprep.mubr.f32.mxu0 0.0
      %5879 = vmatmul.mubr.f32.gmra.mrb[0].mxu0 %v429
      %v5880 = vpop.f32.mrb[0].mxu0
      %v5881 = vadd.f32 0.0, %v5880
      %v5882 = vpop.f32.mrb[0].mxu0
      %5883 = vmatprep.mubr.f32.mxu0 0.0
      %5884 = vmatmul.mubr.f32.gmra.mrb[0].mxu0 %v430
      %v5885 = vpop.f32.mrb[0].mxu0
      %v5886 = vadd.f32 0.0, %v5885
      %v5887 = vpop.f32.mrb[0].mxu0
      %5888 = vmatprep.mubr.f32.mxu0 0.0
      %5889 = vmatmul.mubr.f32.gmra.mrb[0].mxu0 %v431
      %v5890 = vpop.f32.mrb[0].mxu0
      %v5891 = vadd.f32 0.0, %v5890
      %v5892 = vpop.f32.mrb[0].mxu0
      %5893 = vmatprep.mubr.f32.mxu0 0.0
      %5894 = vmatmul.mubr.f32.gmra.mrb[0].mxu0 %v432
      %v5895 = vpop.f32.mrb[0].mxu0
      %v5896 = vadd.f32 0.0, %v5895
      %v5897 = vpop.f32.mrb[0].mxu0
      %5898 = vmatprep.mubr.f32.mxu0 0.0
      %5899 = vmatmul.mubr.f32.gmra.mrb[0].mxu0 %v433
      %v5900 = vpop.f32.mrb[0].mxu0
      %v5901 = vadd.f32 0.0, %v5900
      %v5902 = vpop.f32.mrb[0].mxu0
      %5903 = vmatprep.mubr.f32.mxu0 0.0
      %5904 = vmatmul.mubr.f32.gmra.mrb[0].mxu0 %v434
      %v5905 = vpop.f32.mrb[0].mxu0
      %v5906 = vadd.f32 0.0, %v5905
      %v5907 = vpop.f32.mrb[0].mxu0
      %5908 = vmatprep.mubr.f32.mxu0 0.0
      %5909 = vmatmul.mubr.f32.gmra.mrb[0].mxu0 %v435
      %v5910 = vpop.f32.mrb[0].mxu0
      %v5911 = vadd.f32 0.0, %v5910
      %v5912 = vpop.f32.mrb[0].mxu0
      %5913 = vmatprep.mubr.f32.mxu0 0.0
      %5914 = vmatmul.mubr.f32.gmra.mrb[0].mxu0 %v436
      %v5915 = vpop.f32.mrb[0].mxu0
      %v5916 = vadd.f32 0.0, %v5915
      %v5917 = vpop.f32.mrb[0].mxu0
      %5918 = vmatprep.mubr.f32.mxu0 0.0
      %5919 = vmatmul.mubr.f32.gmra.mrb[0].mxu0 %v437
      %v5920 = vpop.f32.mrb[0].mxu0
      %v5921 = vadd.f32 0.0, %v5920
      %v5922 = vpop.f32.mrb[0].mxu0
      %5923 = vmatprep.mubr.f32.mxu0 0.0
      %5924 = vmatmul.mubr.f32.gmra.mrb[0].mxu0 %v438
      %v5925 = vpop.f32.mrb[0].mxu0
      %v5926 = vadd.f32 0.0, %v5925
      %v5927 = vpop.f32.mrb[0].mxu0
      %5928 = vmatprep.mubr.f32.mxu0 0.0
      %5929 = vmatmul.mubr.f32.gmra.mrb[0].mxu0 %v439
      %v5930 = vpop.f32.mrb[0].mxu0
      %v5931 = vadd.f32 0.0, %v5930
      %v5932 = vpop.f32.mrb[0].mxu0
      %5933 = vmatprep.mubr.f32.mxu0 0.0
      %5934 = vmatmul.mubr.f32.gmra.mrb[0].mxu0 %v440
      %v5935 = vpop.f32.mrb[0].mxu0
      %v5936 = vadd.f32 0.0, %v5935
      %v5937 = vpop.f32.mrb[0].mxu0
      %5938 = vmatprep.mubr.f32.mxu0 0.0
      %5939 = vmatmul.mubr.f32.gmra.mrb[0].mxu0 %v441
      %v5940 = vpop.f32.mrb[0].mxu0
      %v5941 = vadd.f32 0.0, %v5940
      %v5942 = vpop.f32.mrb[0].mxu0
      %5943 = vmatprep.mubr.f32.mxu0 0.0
      %5944 = vmatmul.mubr.f32.gmra.mrb[0].mxu0 %v442
      %v5945 = vpop.f32.mrb[0].mxu0
      %v5946 = vadd.f32 0.0, %v5945
      %v5947 = vpop.f32.mrb[0].mxu0
      %5948 = vmatprep.mubr.f32.mxu0 0.0
      %5949 = vmatmul.mubr.f32.gmra.mrb[0].mxu0 %v443
      %v5950 = vpop.f32.mrb[0].mxu0
      %v5951 = vadd.f32 0.0, %v5950
      %v5952 = vpop.f32.mrb[0].mxu0
      %5953 = vmatprep.mubr.f32.mxu0 0.0
      %5954 = vmatmul.mubr.f32.gmra.mrb[0].mxu0 %v444
      %v5955 = vpop.f32.mrb[0].mxu0
      %v5956 = vadd.f32 0.0, %v5955
      %v5957 = vpop.f32.mrb[0].mxu0
      %5958 = vdwg.mxu0
      %5959 = vmatprep.subr.mxu0 0.0
      %5960 = vmatpush1.msra.mxu0 %v5702
      %5961 = vmatprep.subr.mxu0 0.0
      %5962 = vmatpush1.msra.mxu0 %v5703
      %5963 = vmatprep.subr.mxu0 0.0
      %5964 = vmatpush1.msra.mxu0 %v5704
      %5965 = vmatprep.subr.mxu0 0.0
      %5966 = vmatpush1.msra.mxu0 %v5705
      %5967 = vmatprep.subr.mxu0 0.0
      %5968 = vmatpush1.msra.mxu0 %v5706
      %5969 = vmatprep.subr.mxu0 0.0
      %5970 = vmatpush1.msra.mxu0 %v5707
      %5971 = vmatprep.subr.mxu0 0.0
      %5972 = vmatpush1.msra.mxu0 %v5708
      %5973 = vmatprep.subr.mxu0 0.0
      %5974 = vmatpush1.msra.mxu0 %v5709
      %5975 = vmatprep.subr.mxu0 0.0
      %5976 = vmatpush1.msra.mxu0 %v5710
      %5977 = vmatprep.subr.mxu0 0.0
      %5978 = vmatpush1.msra.mxu0 %v5711
      %5979 = vmatprep.subr.mxu0 0.0
      %5980 = vmatpush1.msra.mxu0 %v5712
      %5981 = vmatprep.subr.mxu0 0.0
      %5982 = vmatpush1.msra.mxu0 %v5713
      %5983 = vmatprep.subr.mxu0 0.0
      %5984 = vmatpush1.msra.mxu0 %v5714
      %5985 = vmatprep.subr.mxu0 0.0
      %5986 = vmatpush1.msra.mxu0 %v5715
      %5987 = vmatprep.subr.mxu0 0.0
      %5988 = vmatpush1.msra.mxu0 %v5716
      %5989 = vmatprep.subr.mxu0 0.0
      %5990 = vmatpush1.msra.mxu0 %v5717
      %5991 = vmatprep.subr.mxu0 0.0
      %5992 = vmatpush1.msra.mxu0 0.0
      %5993 = vmatprep.subr.mxu0 0.0
      %5994 = vmatpush1.msra.mxu0 0.0
      %5995 = vmatprep.subr.mxu0 0.0
      %5996 = vmatpush1.msra.mxu0 0.0
      %5997 = vmatprep.subr.mxu0 0.0
      %5998 = vmatpush1.msra.mxu0 0.0
      %5999 = vmatprep.subr.mxu0 0.0
      %6000 = vmatpush1.msra.mxu0 0.0
      %6001 = vmatprep.subr.mxu0 0.0
      %6002 = vmatpush1.msra.mxu0 0.0
      %6003 = vmatprep.subr.mxu0 0.0
      %6004 = vmatpush1.msra.mxu0 0.0
      %6005 = vmatprep.subr.mxu0 0.0
      %6006 = vmatpush1.msra.mxu0 0.0
      %6007 = vmatprep.subr.mxu0 0.0
      %6008 = vmatpush1.msra.mxu0 0.0
      %6009 = vmatprep.subr.mxu0 0.0
      %6010 = vmatpush1.msra.mxu0 0.0
      %6011 = vmatprep.subr.mxu0 0.0
      %6012 = vmatpush1.msra.mxu0 0.0
      %6013 = vmatprep.subr.mxu0 0.0
      %6014 = vmatpush1.msra.mxu0 0.0
      %6015 = vmatprep.subr.mxu0 0.0
      %6016 = vmatpush1.msra.mxu0 0.0
      %6017 = vmatprep.subr.mxu0 0.0
      %6018 = vmatpush1.msra.mxu0 0.0
      %6019 = vmatprep.subr.mxu0 0.0
      %6020 = vmatpush1.msra.mxu0 0.0
      %6021 = vmatprep.subr.mxu0 0.0
      %6022 = vmatpush1.msra.mxu0 0.0
      %6023 = vmatprep.mubr.f32.mxu0 0.0
      %6024 = vmatmul.mubr.f32.gmra.mrb[0].mxu0 %v461
      %v6025 = vpop.f32.mrb[0].mxu0
      %v6026 = vadd.f32 0.0, %v6025
      %v6027 = vpop.f32.mrb[0].mxu0
      %6028 = vmatprep.mubr.f32.mxu0 0.0
      %6029 = vmatmul.mubr.f32.gmra.mrb[0].mxu0 %v462
      %v6030 = vpop.f32.mrb[0].mxu0
      %v6031 = vadd.f32 0.0, %v6030
      %v6032 = vpop.f32.mrb[0].mxu0
      %6033 = vmatprep.mubr.f32.mxu0 0.0
      %6034 = vmatmul.mubr.f32.gmra.mrb[0].mxu0 %v463
      %v6035 = vpop.f32.mrb[0].mxu0
      %v6036 = vadd.f32 0.0, %v6035
      %v6037 = vpop.f32.mrb[0].mxu0
      %6038 = vmatprep.mubr.f32.mxu0 0.0
      %6039 = vmatmul.mubr.f32.gmra.mrb[0].mxu0 %v464
      %v6040 = vpop.f32.mrb[0].mxu0
      %v6041 = vadd.f32 0.0, %v6040
      %v6042 = vpop.f32.mrb[0].mxu0
      %6043 = vmatprep.mubr.f32.mxu0 0.0
      %6044 = vmatmul.mubr.f32.gmra.mrb[0].mxu0 %v465
      %v6045 = vpop.f32.mrb[0].mxu0
      %v6046 = vadd.f32 0.0, %v6045
      %v6047 = vpop.f32.mrb[0].mxu0
      %6048 = vmatprep.mubr.f32.mxu0 0.0
      %6049 = vmatmul.mubr.f32.gmra.mrb[0].mxu0 %v466
      %v6050 = vpop.f32.mrb[0].mxu0
      %v6051 = vadd.f32 0.0, %v6050
      %v6052 = vpop.f32.mrb[0].mxu0
      %6053 = vmatprep.mubr.f32.mxu0 0.0
      %6054 = vmatmul.mubr.f32.gmra.mrb[0].mxu0 %v467
      %v6055 = vpop.f32.mrb[0].mxu0
      %v6056 = vadd.f32 0.0, %v6055
      %v6057 = vpop.f32.mrb[0].mxu0
      %6058 = vmatprep.mubr.f32.mxu0 0.0
      %6059 = vmatmul.mubr.f32.gmra.mrb[0].mxu0 %v468
      %v6060 = vpop.f32.mrb[0].mxu0
      %v6061 = vadd.f32 0.0, %v6060
      %v6062 = vpop.f32.mrb[0].mxu0
      %6063 = vmatprep.mubr.f32.mxu0 0.0
      %6064 = vmatmul.mubr.f32.gmra.mrb[0].mxu0 %v469
      %v6065 = vpop.f32.mrb[0].mxu0
      %v6066 = vadd.f32 0.0, %v6065
      %v6067 = vpop.f32.mrb[0].mxu0
      %6068 = vmatprep.mubr.f32.mxu0 0.0
      %6069 = vmatmul.mubr.f32.gmra.mrb[0].mxu0 %v470
      %v6070 = vpop.f32.mrb[0].mxu0
      %v6071 = vadd.f32 0.0, %v6070
      %v6072 = vpop.f32.mrb[0].mxu0
      %6073 = vmatprep.mubr.f32.mxu0 0.0
      %6074 = vmatmul.mubr.f32.gmra.mrb[0].mxu0 %v471
      %v6075 = vpop.f32.mrb[0].mxu0
      %v6076 = vadd.f32 0.0, %v6075
      %v6077 = vpop.f32.mrb[0].mxu0
      %6078 = vmatprep.mubr.f32.mxu0 0.0
      %6079 = vmatmul.mubr.f32.gmra.mrb[0].mxu0 %v472
      %v6080 = vpop.f32.mrb[0].mxu0
      %v6081 = vadd.f32 0.0, %v6080
      %v6082 = vpop.f32.mrb[0].mxu0
      %6083 = vmatprep.mubr.f32.mxu0 0.0
      %6084 = vmatmul.mubr.f32.gmra.mrb[0].mxu0 %v473
      %v6085 = vpop.f32.mrb[0].mxu0
      %v6086 = vadd.f32 0.0, %v6085
      %v6087 = vpop.f32.mrb[0].mxu0
      %6088 = vmatprep.mubr.f32.mxu0 0.0
      %6089 = vmatmul.mubr.f32.gmra.mrb[0].mxu0 %v474
      %v6090 = vpop.f32.mrb[0].mxu0
      %v6091 = vadd.f32 0.0, %v6090
      %v6092 = vpop.f32.mrb[0].mxu0
      %6093 = vmatprep.mubr.f32.mxu0 0.0
      %6094 = vmatmul.mubr.f32.gmra.mrb[0].mxu0 %v475
      %v6095 = vpop.f32.mrb[0].mxu0
      %v6096 = vadd.f32 0.0, %v6095
      %v6097 = vpop.f32.mrb[0].mxu0
      %6098 = vmatprep.mubr.f32.mxu0 0.0
      %6099 = vmatmul.mubr.f32.gmra.mrb[0].mxu0 %v476
      %v6100 = vpop.f32.mrb[0].mxu0
      %v6101 = vadd.f32 0.0, %v6100
      %v6102 = vpop.f32.mrb[0].mxu0
      %6103 = vdwg.mxu0
      %6104 = vmatprep.subr.mxu0 0.0
      %6105 = vmatpush1.msra.mxu0 %v5718
      %6106 = vmatprep.subr.mxu0 0.0
      %6107 = vmatpush1.msra.mxu0 %v5719
      %6108 = vmatprep.subr.mxu0 0.0
      %6109 = vmatpush1.msra.mxu0 %v5720
      %6110 = vmatprep.subr.mxu0 0.0
      %6111 = vmatpush1.msra.mxu0 %v5721
      %6112 = vmatprep.subr.mxu0 0.0
      %6113 = vmatpush1.msra.mxu0 %v5722
      %6114 = vmatprep.subr.mxu0 0.0
      %6115 = vmatpush1.msra.mxu0 %v5723
      %6116 = vmatprep.subr.mxu0 0.0
      %6117 = vmatpush1.msra.mxu0 %v5724
      %6118 = vmatprep.subr.mxu0 0.0
      %6119 = vmatpush1.msra.mxu0 %v5725
      %6120 = vmatprep.subr.mxu0 0.0
      %6121 = vmatpush1.msra.mxu0 %v5726
      %6122 = vmatprep.subr.mxu0 0.0
      %6123 = vmatpush1.msra.mxu0 %v5727
      %6124 = vmatprep.subr.mxu0 0.0
      %6125 = vmatpush1.msra.mxu0 %v5728
      %6126 = vmatprep.subr.mxu0 0.0
      %6127 = vmatpush1.msra.mxu0 %v5729
      %6128 = vmatprep.subr.mxu0 0.0
      %6129 = vmatpush1.msra.mxu0 %v5730
      %6130 = vmatprep.subr.mxu0 0.0
      %6131 = vmatpush1.msra.mxu0 %v5731
      %6132 = vmatprep.subr.mxu0 0.0
      %6133 = vmatpush1.msra.mxu0 %v5732
      %6134 = vmatprep.subr.mxu0 0.0
      %6135 = vmatpush1.msra.mxu0 %v5733
      %6136 = vmatprep.subr.mxu0 0.0
      %6137 = vmatpush1.msra.mxu0 0.0
      %6138 = vmatprep.subr.mxu0 0.0
      %6139 = vmatpush1.msra.mxu0 0.0
      %6140 = vmatprep.subr.mxu0 0.0
      %6141 = vmatpush1.msra.mxu0 0.0
      %6142 = vmatprep.subr.mxu0 0.0
      %6143 = vmatpush1.msra.mxu0 0.0
      %6144 = vmatprep.subr.mxu0 0.0
      %6145 = vmatpush1.msra.mxu0 0.0
      %6146 = vmatprep.subr.mxu0 0.0
      %6147 = vmatpush1.msra.mxu0 0.0
      %6148 = vmatprep.subr.mxu0 0.0
      %6149 = vmatpush1.msra.mxu0 0.0
      %6150 = vmatprep.subr.mxu0 0.0
      %6151 = vmatpush1.msra.mxu0 0.0
      %6152 = vmatprep.subr.mxu0 0.0
      %6153 = vmatpush1.msra.mxu0 0.0
      %6154 = vmatprep.subr.mxu0 0.0
      %6155 = vmatpush1.msra.mxu0 0.0
      %6156 = vmatprep.subr.mxu0 0.0
      %6157 = vmatpush1.msra.mxu0 0.0
      %6158 = vmatprep.subr.mxu0 0.0
      %6159 = vmatpush1.msra.mxu0 0.0
      %6160 = vmatprep.subr.mxu0 0.0
      %6161 = vmatpush1.msra.mxu0 0.0
      %6162 = vmatprep.subr.mxu0 0.0
      %6163 = vmatpush1.msra.mxu0 0.0
      %6164 = vmatprep.subr.mxu0 0.0
      %6165 = vmatpush1.msra.mxu0 0.0
      %6166 = vmatprep.subr.mxu0 0.0
      %6167 = vmatpush1.msra.mxu0 0.0
      %6168 = vmatprep.mubr.f32.mxu0 0.0
      %6169 = vmatmul.mubr.f32.gmra.mrb[0].mxu0 %v493
      %v6170 = vpop.f32.mrb[0].mxu0
      %v6171 = vadd.f32 0.0, %v6170
      %v6172 = vpop.f32.mrb[0].mxu0
      %6173 = vmatprep.mubr.f32.mxu0 0.0
      %6174 = vmatmul.mubr.f32.gmra.mrb[0].mxu0 %v494
      %v6175 = vpop.f32.mrb[0].mxu0
      %v6176 = vadd.f32 0.0, %v6175
      %v6177 = vpop.f32.mrb[0].mxu0
      %6178 = vmatprep.mubr.f32.mxu0 0.0
      %6179 = vmatmul.mubr.f32.gmra.mrb[0].mxu0 %v495
      %v6180 = vpop.f32.mrb[0].mxu0
      %v6181 = vadd.f32 0.0, %v6180
      %v6182 = vpop.f32.mrb[0].mxu0
      %6183 = vmatprep.mubr.f32.mxu0 0.0
      %6184 = vmatmul.mubr.f32.gmra.mrb[0].mxu0 %v496
      %v6185 = vpop.f32.mrb[0].mxu0
      %v6186 = vadd.f32 0.0, %v6185
      %v6187 = vpop.f32.mrb[0].mxu0
      %6188 = vmatprep.mubr.f32.mxu0 0.0
      %6189 = vmatmul.mubr.f32.gmra.mrb[0].mxu0 %v497
      %v6190 = vpop.f32.mrb[0].mxu0
      %v6191 = vadd.f32 0.0, %v6190
      %v6192 = vpop.f32.mrb[0].mxu0
      %6193 = vmatprep.mubr.f32.mxu0 0.0
      %6194 = vmatmul.mubr.f32.gmra.mrb[0].mxu0 %v498
      %v6195 = vpop.f32.mrb[0].mxu0
      %v6196 = vadd.f32 0.0, %v6195
      %v6197 = vpop.f32.mrb[0].mxu0
      %6198 = vmatprep.mubr.f32.mxu0 0.0
      %6199 = vmatmul.mubr.f32.gmra.mrb[0].mxu0 %v499
      %v6200 = vpop.f32.mrb[0].mxu0
      %v6201 = vadd.f32 0.0, %v6200
      %v6202 = vpop.f32.mrb[0].mxu0
      %6203 = vmatprep.mubr.f32.mxu0 0.0
      %6204 = vmatmul.mubr.f32.gmra.mrb[0].mxu0 %v500
      %v6205 = vpop.f32.mrb[0].mxu0
      %v6206 = vadd.f32 0.0, %v6205
      %v6207 = vpop.f32.mrb[0].mxu0
      %6208 = vmatprep.mubr.f32.mxu0 0.0
      %6209 = vmatmul.mubr.f32.gmra.mrb[0].mxu0 %v501
      %v6210 = vpop.f32.mrb[0].mxu0
      %v6211 = vadd.f32 0.0, %v6210
      %v6212 = vpop.f32.mrb[0].mxu0
      %6213 = vmatprep.mubr.f32.mxu0 0.0
      %6214 = vmatmul.mubr.f32.gmra.mrb[0].mxu0 %v502
      %v6215 = vpop.f32.mrb[0].mxu0
      %v6216 = vadd.f32 0.0, %v6215
      %v6217 = vpop.f32.mrb[0].mxu0
      %6218 = vmatprep.mubr.f32.mxu0 0.0
      %6219 = vmatmul.mubr.f32.gmra.mrb[0].mxu0 %v503
      %v6220 = vpop.f32.mrb[0].mxu0
      %v6221 = vadd.f32 0.0, %v6220
      %v6222 = vpop.f32.mrb[0].mxu0
      %6223 = vmatprep.mubr.f32.mxu0 0.0
      %6224 = vmatmul.mubr.f32.gmra.mrb[0].mxu0 %v504
      %v6225 = vpop.f32.mrb[0].mxu0
      %v6226 = vadd.f32 0.0, %v6225
      %v6227 = vpop.f32.mrb[0].mxu0
      %6228 = vmatprep.mubr.f32.mxu0 0.0
      %6229 = vmatmul.mubr.f32.gmra.mrb[0].mxu0 %v505
      %v6230 = vpop.f32.mrb[0].mxu0
      %v6231 = vadd.f32 0.0, %v6230
      %v6232 = vpop.f32.mrb[0].mxu0
      %6233 = vmatprep.mubr.f32.mxu0 0.0
      %6234 = vmatmul.mubr.f32.gmra.mrb[0].mxu0 %v506
      %v6235 = vpop.f32.mrb[0].mxu0
      %v6236 = vadd.f32 0.0, %v6235
      %v6237 = vpop.f32.mrb[0].mxu0
      %6238 = vmatprep.mubr.f32.mxu0 0.0
      %6239 = vmatmul.mubr.f32.gmra.mrb[0].mxu0 %v507
      %v6240 = vpop.f32.mrb[0].mxu0
      %v6241 = vadd.f32 0.0, %v6240
      %v6242 = vpop.f32.mrb[0].mxu0
      %6243 = vmatprep.mubr.f32.mxu0 0.0
      %6244 = vmatmul.mubr.f32.gmra.mrb[0].mxu0 %v508
      %v6245 = vpop.f32.mrb[0].mxu0
      %v6246 = vadd.f32 0.0, %v6245
      %v6247 = vpop.f32.mrb[0].mxu0
      %6248 = vdwg.mxu0
      %6249 = vmatprep.subr.mxu0 0.0
      %6250 = vmatpush1.msra.mxu0 %v5734
      %6251 = vmatprep.subr.mxu0 0.0
      %6252 = vmatpush1.msra.mxu0 %v5735
      %6253 = vmatprep.subr.mxu0 0.0
      %6254 = vmatpush1.msra.mxu0 %v5736
      %6255 = vmatprep.subr.mxu0 0.0
      %6256 = vmatpush1.msra.mxu0 %v5737
      %6257 = vmatprep.subr.mxu0 0.0
      %6258 = vmatpush1.msra.mxu0 %v5738
      %6259 = vmatprep.subr.mxu0 0.0
      %6260 = vmatpush1.msra.mxu0 %v5739
      %6261 = vmatprep.subr.mxu0 0.0
      %6262 = vmatpush1.msra.mxu0 %v5740
      %6263 = vmatprep.subr.mxu0 0.0
      %6264 = vmatpush1.msra.mxu0 %v5741
      %6265 = vmatprep.subr.mxu0 0.0
      %6266 = vmatpush1.msra.mxu0 %v5742
      %6267 = vmatprep.subr.mxu0 0.0
      %6268 = vmatpush1.msra.mxu0 %v5743
      %6269 = vmatprep.subr.mxu0 0.0
      %6270 = vmatpush1.msra.mxu0 %v5744
      %6271 = vmatprep.subr.mxu0 0.0
      %6272 = vmatpush1.msra.mxu0 %v5745
      %6273 = vmatprep.subr.mxu0 0.0
      %6274 = vmatpush1.msra.mxu0 %v5746
      %6275 = vmatprep.subr.mxu0 0.0
      %6276 = vmatpush1.msra.mxu0 %v5747
      %6277 = vmatprep.subr.mxu0 0.0
      %6278 = vmatpush1.msra.mxu0 %v5748
      %6279 = vmatprep.subr.mxu0 0.0
      %6280 = vmatpush1.msra.mxu0 %v5749
      %6281 = vmatprep.subr.mxu0 0.0
      %6282 = vmatpush1.msra.mxu0 0.0
      %6283 = vmatprep.subr.mxu0 0.0
      %6284 = vmatpush1.msra.mxu0 0.0
      %6285 = vmatprep.subr.mxu0 0.0
      %6286 = vmatpush1.msra.mxu0 0.0
      %6287 = vmatprep.subr.mxu0 0.0
      %6288 = vmatpush1.msra.mxu0 0.0
      %6289 = vmatprep.subr.mxu0 0.0
      %6290 = vmatpush1.msra.mxu0 0.0
      %6291 = vmatprep.subr.mxu0 0.0
      %6292 = vmatpush1.msra.mxu0 0.0
      %6293 = vmatprep.subr.mxu0 0.0
      %6294 = vmatpush1.msra.mxu0 0.0
      %6295 = vmatprep.subr.mxu0 0.0
      %6296 = vmatpush1.msra.mxu0 0.0
      %6297 = vmatprep.subr.mxu0 0.0
      %6298 = vmatpush1.msra.mxu0 0.0
      %6299 = vmatprep.subr.mxu0 0.0
      %6300 = vmatpush1.msra.mxu0 0.0
      %6301 = vmatprep.subr.mxu0 0.0
      %6302 = vmatpush1.msra.mxu0 0.0
      %6303 = vmatprep.subr.mxu0 0.0
      %6304 = vmatpush1.msra.mxu0 0.0
      %6305 = vmatprep.subr.mxu0 0.0
      %6306 = vmatpush1.msra.mxu0 0.0
      %6307 = vmatprep.subr.mxu0 0.0
      %6308 = vmatpush1.msra.mxu0 0.0
      %6309 = vmatprep.subr.mxu0 0.0
      %6310 = vmatpush1.msra.mxu0 0.0
      %6311 = vmatprep.subr.mxu0 0.0
      %6312 = vmatpush1.msra.mxu0 0.0
      %6313 = vmatprep.mubr.f32.mxu0 0.0
      %6314 = vmatmul.mubr.f32.gmra.mrb[0].mxu0 %v525
      %v6315 = vpop.f32.mrb[0].mxu0
      %v6316 = vadd.f32 0.0, %v6315
      %v6317 = vpop.f32.mrb[0].mxu0
      %6318 = vmatprep.mubr.f32.mxu0 0.0
      %6319 = vmatmul.mubr.f32.gmra.mrb[0].mxu0 %v526
      %v6320 = vpop.f32.mrb[0].mxu0
      %v6321 = vadd.f32 0.0, %v6320
      %v6322 = vpop.f32.mrb[0].mxu0
      %6323 = vmatprep.mubr.f32.mxu0 0.0
      %6324 = vmatmul.mubr.f32.gmra.mrb[0].mxu0 %v527
      %v6325 = vpop.f32.mrb[0].mxu0
      %v6326 = vadd.f32 0.0, %v6325
      %v6327 = vpop.f32.mrb[0].mxu0
      %6328 = vmatprep.mubr.f32.mxu0 0.0
      %6329 = vmatmul.mubr.f32.gmra.mrb[0].mxu0 %v528
      %v6330 = vpop.f32.mrb[0].mxu0
      %v6331 = vadd.f32 0.0, %v6330
      %v6332 = vpop.f32.mrb[0].mxu0
      %6333 = vmatprep.mubr.f32.mxu0 0.0
      %6334 = vmatmul.mubr.f32.gmra.mrb[0].mxu0 %v529
      %v6335 = vpop.f32.mrb[0].mxu0
      %v6336 = vadd.f32 0.0, %v6335
      %v6337 = vpop.f32.mrb[0].mxu0
      %6338 = vmatprep.mubr.f32.mxu0 0.0
      %6339 = vmatmul.mubr.f32.gmra.mrb[0].mxu0 %v530
      %v6340 = vpop.f32.mrb[0].mxu0
      %v6341 = vadd.f32 0.0, %v6340
      %v6342 = vpop.f32.mrb[0].mxu0
      %6343 = vmatprep.mubr.f32.mxu0 0.0
      %6344 = vmatmul.mubr.f32.gmra.mrb[0].mxu0 %v531
      %v6345 = vpop.f32.mrb[0].mxu0
      %v6346 = vadd.f32 0.0, %v6345
      %v6347 = vpop.f32.mrb[0].mxu0
      %6348 = vmatprep.mubr.f32.mxu0 0.0
      %6349 = vmatmul.mubr.f32.gmra.mrb[0].mxu0 %v532
      %v6350 = vpop.f32.mrb[0].mxu0
      %v6351 = vadd.f32 0.0, %v6350
      %v6352 = vpop.f32.mrb[0].mxu0
      %6353 = vmatprep.mubr.f32.mxu0 0.0
      %6354 = vmatmul.mubr.f32.gmra.mrb[0].mxu0 %v533
      %v6355 = vpop.f32.mrb[0].mxu0
      %v6356 = vadd.f32 0.0, %v6355
      %v6357 = vpop.f32.mrb[0].mxu0
      %6358 = vmatprep.mubr.f32.mxu0 0.0
      %6359 = vmatmul.mubr.f32.gmra.mrb[0].mxu0 %v534
      %v6360 = vpop.f32.mrb[0].mxu0
      %v6361 = vadd.f32 0.0, %v6360
      %v6362 = vpop.f32.mrb[0].mxu0
      %6363 = vmatprep.mubr.f32.mxu0 0.0
      %6364 = vmatmul.mubr.f32.gmra.mrb[0].mxu0 %v535
      %v6365 = vpop.f32.mrb[0].mxu0
      %v6366 = vadd.f32 0.0, %v6365
      %v6367 = vpop.f32.mrb[0].mxu0
      %6368 = vmatprep.mubr.f32.mxu0 0.0
      %6369 = vmatmul.mubr.f32.gmra.mrb[0].mxu0 %v536
      %v6370 = vpop.f32.mrb[0].mxu0
      %v6371 = vadd.f32 0.0, %v6370
      %v6372 = vpop.f32.mrb[0].mxu0
      %6373 = vmatprep.mubr.f32.mxu0 0.0
      %6374 = vmatmul.mubr.f32.gmra.mrb[0].mxu0 %v537
      %v6375 = vpop.f32.mrb[0].mxu0
      %v6376 = vadd.f32 0.0, %v6375
      %v6377 = vpop.f32.mrb[0].mxu0
      %6378 = vmatprep.mubr.f32.mxu0 0.0
      %6379 = vmatmul.mubr.f32.gmra.mrb[0].mxu0 %v538
      %v6380 = vpop.f32.mrb[0].mxu0
      %v6381 = vadd.f32 0.0, %v6380
      %v6382 = vpop.f32.mrb[0].mxu0
      %6383 = vmatprep.mubr.f32.mxu0 0.0
      %6384 = vmatmul.mubr.f32.gmra.mrb[0].mxu0 %v539
      %v6385 = vpop.f32.mrb[0].mxu0
      %v6386 = vadd.f32 0.0, %v6385
      %v6387 = vpop.f32.mrb[0].mxu0
      %6388 = vmatprep.mubr.f32.mxu0 0.0
      %6389 = vmatmul.mubr.f32.gmra.mrb[0].mxu0 %v540
      %v6390 = vpop.f32.mrb[0].mxu0
      %v6391 = vadd.f32 0.0, %v6390
      %v6392 = vpop.f32.mrb[0].mxu0
      %6393 = vdwg.mxu0
      %6394 = vmatprep.subr.mxu0 0.0
      %6395 = vmatpush1.msra.mxu0 %v5750
      %6396 = vmatprep.subr.mxu0 0.0
      %6397 = vmatpush1.msra.mxu0 %v5751
      %6398 = vmatprep.subr.mxu0 0.0
      %6399 = vmatpush1.msra.mxu0 %v5752
      %6400 = vmatprep.subr.mxu0 0.0
      %6401 = vmatpush1.msra.mxu0 %v5753
      %6402 = vmatprep.subr.mxu0 0.0
      %6403 = vmatpush1.msra.mxu0 %v5754
      %6404 = vmatprep.subr.mxu0 0.0
      %6405 = vmatpush1.msra.mxu0 %v5755
      %6406 = vmatprep.subr.mxu0 0.0
      %6407 = vmatpush1.msra.mxu0 %v5756
      %6408 = vmatprep.subr.mxu0 0.0
      %6409 = vmatpush1.msra.mxu0 %v5757
      %6410 = vmatprep.subr.mxu0 0.0
      %6411 = vmatpush1.msra.mxu0 %v5758
      %6412 = vmatprep.subr.mxu0 0.0
      %6413 = vmatpush1.msra.mxu0 %v5759
      %6414 = vmatprep.subr.mxu0 0.0
      %6415 = vmatpush1.msra.mxu0 %v5760
      %6416 = vmatprep.subr.mxu0 0.0
      %6417 = vmatpush1.msra.mxu0 %v5761
      %6418 = vmatprep.subr.mxu0 0.0
      %6419 = vmatpush1.msra.mxu0 %v5762
      %6420 = vmatprep.subr.mxu0 0.0
      %6421 = vmatpush1.msra.mxu0 %v5763
      %6422 = vmatprep.subr.mxu0 0.0
      %6423 = vmatpush1.msra.mxu0 %v5764
      %6424 = vmatprep.subr.mxu0 0.0
      %6425 = vmatpush1.msra.mxu0 %v5765
      %6426 = vmatprep.subr.mxu0 0.0
      %6427 = vmatpush1.msra.mxu0 0.0
      %6428 = vmatprep.subr.mxu0 0.0
      %6429 = vmatpush1.msra.mxu0 0.0
      %6430 = vmatprep.subr.mxu0 0.0
      %6431 = vmatpush1.msra.mxu0 0.0
      %6432 = vmatprep.subr.mxu0 0.0
      %6433 = vmatpush1.msra.mxu0 0.0
      %6434 = vmatprep.subr.mxu0 0.0
      %6435 = vmatpush1.msra.mxu0 0.0
      %6436 = vmatprep.subr.mxu0 0.0
      %6437 = vmatpush1.msra.mxu0 0.0
      %6438 = vmatprep.subr.mxu0 0.0
      %6439 = vmatpush1.msra.mxu0 0.0
      %6440 = vmatprep.subr.mxu0 0.0
      %6441 = vmatpush1.msra.mxu0 0.0
      %6442 = vmatprep.subr.mxu0 0.0
      %6443 = vmatpush1.msra.mxu0 0.0
      %6444 = vmatprep.subr.mxu0 0.0
      %6445 = vmatpush1.msra.mxu0 0.0
      %6446 = vmatprep.subr.mxu0 0.0
      %6447 = vmatpush1.msra.mxu0 0.0
      %6448 = vmatprep.subr.mxu0 0.0
      %6449 = vmatpush1.msra.mxu0 0.0
      %6450 = vmatprep.subr.mxu0 0.0
      %6451 = vmatpush1.msra.mxu0 0.0
      %6452 = vmatprep.subr.mxu0 0.0
      %6453 = vmatpush1.msra.mxu0 0.0
      %6454 = vmatprep.subr.mxu0 0.0
      %6455 = vmatpush1.msra.mxu0 0.0
      %6456 = vmatprep.subr.mxu0 0.0
      %6457 = vmatpush1.msra.mxu0 0.0
      %6458 = vmatprep.mubr.f32.mxu0 0.0
      %6459 = vmatmul.mubr.f32.gmra.mrb[0].mxu0 %v557
      %v6460 = vpop.f32.mrb[0].mxu0
      %v6461 = vadd.f32 0.0, %v6460
      %v6462 = vpop.f32.mrb[0].mxu0
      %6463 = vmatprep.mubr.f32.mxu0 0.0
      %6464 = vmatmul.mubr.f32.gmra.mrb[0].mxu0 %v558
      %v6465 = vpop.f32.mrb[0].mxu0
      %v6466 = vadd.f32 0.0, %v6465
      %v6467 = vpop.f32.mrb[0].mxu0
      %6468 = vmatprep.mubr.f32.mxu0 0.0
      %6469 = vmatmul.mubr.f32.gmra.mrb[0].mxu0 %v559
      %v6470 = vpop.f32.mrb[0].mxu0
      %v6471 = vadd.f32 0.0, %v6470
      %v6472 = vpop.f32.mrb[0].mxu0
      %6473 = vmatprep.mubr.f32.mxu0 0.0
      %6474 = vmatmul.mubr.f32.gmra.mrb[0].mxu0 %v560
      %v6475 = vpop.f32.mrb[0].mxu0
      %v6476 = vadd.f32 0.0, %v6475
      %v6477 = vpop.f32.mrb[0].mxu0
      %6478 = vmatprep.mubr.f32.mxu0 0.0
      %6479 = vmatmul.mubr.f32.gmra.mrb[0].mxu0 %v561
      %v6480 = vpop.f32.mrb[0].mxu0
      %v6481 = vadd.f32 0.0, %v6480
      %v6482 = vpop.f32.mrb[0].mxu0
      %6483 = vmatprep.mubr.f32.mxu0 0.0
      %6484 = vmatmul.mubr.f32.gmra.mrb[0].mxu0 %v562
      %v6485 = vpop.f32.mrb[0].mxu0
      %v6486 = vadd.f32 0.0, %v6485
      %v6487 = vpop.f32.mrb[0].mxu0
      %6488 = vmatprep.mubr.f32.mxu0 0.0
      %6489 = vmatmul.mubr.f32.gmra.mrb[0].mxu0 %v563
      %v6490 = vpop.f32.mrb[0].mxu0
      %v6491 = vadd.f32 0.0, %v6490
      %v6492 = vpop.f32.mrb[0].mxu0
      %6493 = vmatprep.mubr.f32.mxu0 0.0
      %6494 = vmatmul.mubr.f32.gmra.mrb[0].mxu0 %v564
      %v6495 = vpop.f32.mrb[0].mxu0
      %v6496 = vadd.f32 0.0, %v6495
      %v6497 = vpop.f32.mrb[0].mxu0
      %6498 = vmatprep.mubr.f32.mxu0 0.0
      %6499 = vmatmul.mubr.f32.gmra.mrb[0].mxu0 %v565
      %v6500 = vpop.f32.mrb[0].mxu0
      %v6501 = vadd.f32 0.0, %v6500
      %v6502 = vpop.f32.mrb[0].mxu0
      %6503 = vmatprep.mubr.f32.mxu0 0.0
      %6504 = vmatmul.mubr.f32.gmra.mrb[0].mxu0 %v566
      %v6505 = vpop.f32.mrb[0].mxu0
      %v6506 = vadd.f32 0.0, %v6505
      %v6507 = vpop.f32.mrb[0].mxu0
      %6508 = vmatprep.mubr.f32.mxu0 0.0
      %6509 = vmatmul.mubr.f32.gmra.mrb[0].mxu0 %v567
      %v6510 = vpop.f32.mrb[0].mxu0
      %v6511 = vadd.f32 0.0, %v6510
      %v6512 = vpop.f32.mrb[0].mxu0
      %6513 = vmatprep.mubr.f32.mxu0 0.0
      %6514 = vmatmul.mubr.f32.gmra.mrb[0].mxu0 %v568
      %v6515 = vpop.f32.mrb[0].mxu0
      %v6516 = vadd.f32 0.0, %v6515
      %v6517 = vpop.f32.mrb[0].mxu0
      %6518 = vmatprep.mubr.f32.mxu0 0.0
      %6519 = vmatmul.mubr.f32.gmra.mrb[0].mxu0 %v569
      %v6520 = vpop.f32.mrb[0].mxu0
      %v6521 = vadd.f32 0.0, %v6520
      %v6522 = vpop.f32.mrb[0].mxu0
      %6523 = vmatprep.mubr.f32.mxu0 0.0
      %6524 = vmatmul.mubr.f32.gmra.mrb[0].mxu0 %v570
      %v6525 = vpop.f32.mrb[0].mxu0
      %v6526 = vadd.f32 0.0, %v6525
      %v6527 = vpop.f32.mrb[0].mxu0
      %6528 = vmatprep.mubr.f32.mxu0 0.0
      %6529 = vmatmul.mubr.f32.gmra.mrb[0].mxu0 %v571
      %v6530 = vpop.f32.mrb[0].mxu0
      %v6531 = vadd.f32 0.0, %v6530
      %v6532 = vpop.f32.mrb[0].mxu0
      %6533 = vmatprep.mubr.f32.mxu0 0.0
      %6534 = vmatmul.mubr.f32.gmra.mrb[0].mxu0 %v572
      %v6535 = vpop.f32.mrb[0].mxu0
      %v6536 = vadd.f32 0.0, %v6535
      %v6537 = vpop.f32.mrb[0].mxu0
      %6538 = vdwg.mxu0
      %6539 = vmatprep.subr.mxu0 0.0
      %6540 = vmatpush1.msra.mxu0 %v5766
      %6541 = vmatprep.subr.mxu0 0.0
      %6542 = vmatpush1.msra.mxu0 %v5767
      %6543 = vmatprep.subr.mxu0 0.0
      %6544 = vmatpush1.msra.mxu0 %v5768
      %6545 = vmatprep.subr.mxu0 0.0
      %6546 = vmatpush1.msra.mxu0 %v5769
      %6547 = vmatprep.subr.mxu0 0.0
      %6548 = vmatpush1.msra.mxu0 %v5770
      %6549 = vmatprep.subr.mxu0 0.0
      %6550 = vmatpush1.msra.mxu0 %v5771
      %6551 = vmatprep.subr.mxu0 0.0
      %6552 = vmatpush1.msra.mxu0 %v5772
      %6553 = vmatprep.subr.mxu0 0.0
      %6554 = vmatpush1.msra.mxu0 %v5773
      %6555 = vmatprep.subr.mxu0 0.0
      %6556 = vmatpush1.msra.mxu0 %v5774
      %6557 = vmatprep.subr.mxu0 0.0
      %6558 = vmatpush1.msra.mxu0 %v5775
      %6559 = vmatprep.subr.mxu0 0.0
      %6560 = vmatpush1.msra.mxu0 %v5776
      %6561 = vmatprep.subr.mxu0 0.0
      %6562 = vmatpush1.msra.mxu0 %v5777
      %6563 = vmatprep.subr.mxu0 0.0
      %6564 = vmatpush1.msra.mxu0 %v5778
      %6565 = vmatprep.subr.mxu0 0.0
      %6566 = vmatpush1.msra.mxu0 %v5779
      %6567 = vmatprep.subr.mxu0 0.0
      %6568 = vmatpush1.msra.mxu0 %v5780
      %6569 = vmatprep.subr.mxu0 0.0
      %6570 = vmatpush1.msra.mxu0 %v5781
      %6571 = vmatprep.subr.mxu0 0.0
      %6572 = vmatpush1.msra.mxu0 0.0
      %6573 = vmatprep.subr.mxu0 0.0
      %6574 = vmatpush1.msra.mxu0 0.0
      %6575 = vmatprep.subr.mxu0 0.0
      %6576 = vmatpush1.msra.mxu0 0.0
      %6577 = vmatprep.subr.mxu0 0.0
      %6578 = vmatpush1.msra.mxu0 0.0
      %6579 = vmatprep.subr.mxu0 0.0
      %6580 = vmatpush1.msra.mxu0 0.0
      %6581 = vmatprep.subr.mxu0 0.0
      %6582 = vmatpush1.msra.mxu0 0.0
      %6583 = vmatprep.subr.mxu0 0.0
      %6584 = vmatpush1.msra.mxu0 0.0
      %6585 = vmatprep.subr.mxu0 0.0
      %6586 = vmatpush1.msra.mxu0 0.0
      %6587 = vmatprep.subr.mxu0 0.0
      %6588 = vmatpush1.msra.mxu0 0.0
      %6589 = vmatprep.subr.mxu0 0.0
      %6590 = vmatpush1.msra.mxu0 0.0
      %6591 = vmatprep.subr.mxu0 0.0
      %6592 = vmatpush1.msra.mxu0 0.0
      %6593 = vmatprep.subr.mxu0 0.0
      %6594 = vmatpush1.msra.mxu0 0.0
      %6595 = vmatprep.subr.mxu0 0.0
      %6596 = vmatpush1.msra.mxu0 0.0
      %6597 = vmatprep.subr.mxu0 0.0
      %6598 = vmatpush1.msra.mxu0 0.0
      %6599 = vmatprep.subr.mxu0 0.0
      %6600 = vmatpush1.msra.mxu0 0.0
      %6601 = vmatprep.subr.mxu0 0.0
      %6602 = vmatpush1.msra.mxu0 0.0
      %6603 = vmatprep.mubr.f32.mxu0 0.0
      %6604 = vmatmul.mubr.f32.gmra.mrb[0].mxu0 %v589
      %v6605 = vpop.f32.mrb[0].mxu0
      %v6606 = vadd.f32 0.0, %v6605
      %v6607 = vpop.f32.mrb[0].mxu0
      %6608 = vmatprep.mubr.f32.mxu0 0.0
      %6609 = vmatmul.mubr.f32.gmra.mrb[0].mxu0 %v590
      %v6610 = vpop.f32.mrb[0].mxu0
      %v6611 = vadd.f32 0.0, %v6610
      %v6612 = vpop.f32.mrb[0].mxu0
      %6613 = vmatprep.mubr.f32.mxu0 0.0
      %6614 = vmatmul.mubr.f32.gmra.mrb[0].mxu0 %v591
      %v6615 = vpop.f32.mrb[0].mxu0
      %v6616 = vadd.f32 0.0, %v6615
      %v6617 = vpop.f32.mrb[0].mxu0
      %6618 = vmatprep.mubr.f32.mxu0 0.0
      %6619 = vmatmul.mubr.f32.gmra.mrb[0].mxu0 %v592
      %v6620 = vpop.f32.mrb[0].mxu0
      %v6621 = vadd.f32 0.0, %v6620
      %v6622 = vpop.f32.mrb[0].mxu0
      %6623 = vmatprep.mubr.f32.mxu0 0.0
      %6624 = vmatmul.mubr.f32.gmra.mrb[0].mxu0 %v593
      %v6625 = vpop.f32.mrb[0].mxu0
      %v6626 = vadd.f32 0.0, %v6625
      %v6627 = vpop.f32.mrb[0].mxu0
      %6628 = vmatprep.mubr.f32.mxu0 0.0
      %6629 = vmatmul.mubr.f32.gmra.mrb[0].mxu0 %v594
      %v6630 = vpop.f32.mrb[0].mxu0
      %v6631 = vadd.f32 0.0, %v6630
      %v6632 = vpop.f32.mrb[0].mxu0
      %6633 = vmatprep.mubr.f32.mxu0 0.0
      %6634 = vmatmul.mubr.f32.gmra.mrb[0].mxu0 %v595
      %v6635 = vpop.f32.mrb[0].mxu0
      %v6636 = vadd.f32 0.0, %v6635
      %v6637 = vpop.f32.mrb[0].mxu0
      %6638 = vmatprep.mubr.f32.mxu0 0.0
      %6639 = vmatmul.mubr.f32.gmra.mrb[0].mxu0 %v596
      %v6640 = vpop.f32.mrb[0].mxu0
      %v6641 = vadd.f32 0.0, %v6640
      %v6642 = vpop.f32.mrb[0].mxu0
      %6643 = vmatprep.mubr.f32.mxu0 0.0
      %6644 = vmatmul.mubr.f32.gmra.mrb[0].mxu0 %v597
      %v6645 = vpop.f32.mrb[0].mxu0
      %v6646 = vadd.f32 0.0, %v6645
      %v6647 = vpop.f32.mrb[0].mxu0
      %6648 = vmatprep.mubr.f32.mxu0 0.0
      %6649 = vmatmul.mubr.f32.gmra.mrb[0].mxu0 %v598
      %v6650 = vpop.f32.mrb[0].mxu0
      %v6651 = vadd.f32 0.0, %v6650
      %v6652 = vpop.f32.mrb[0].mxu0
      %6653 = vmatprep.mubr.f32.mxu0 0.0
      %6654 = vmatmul.mubr.f32.gmra.mrb[0].mxu0 %v599
      %v6655 = vpop.f32.mrb[0].mxu0
      %v6656 = vadd.f32 0.0, %v6655
      %v6657 = vpop.f32.mrb[0].mxu0
      %6658 = vmatprep.mubr.f32.mxu0 0.0
      %6659 = vmatmul.mubr.f32.gmra.mrb[0].mxu0 %v600
      %v6660 = vpop.f32.mrb[0].mxu0
      %v6661 = vadd.f32 0.0, %v6660
      %v6662 = vpop.f32.mrb[0].mxu0
      %6663 = vmatprep.mubr.f32.mxu0 0.0
      %6664 = vmatmul.mubr.f32.gmra.mrb[0].mxu0 %v601
      %v6665 = vpop.f32.mrb[0].mxu0
      %v6666 = vadd.f32 0.0, %v6665
      %v6667 = vpop.f32.mrb[0].mxu0
      %6668 = vmatprep.mubr.f32.mxu0 0.0
      %6669 = vmatmul.mubr.f32.gmra.mrb[0].mxu0 %v602
      %v6670 = vpop.f32.mrb[0].mxu0
      %v6671 = vadd.f32 0.0, %v6670
      %v6672 = vpop.f32.mrb[0].mxu0
      %6673 = vmatprep.mubr.f32.mxu0 0.0
      %6674 = vmatmul.mubr.f32.gmra.mrb[0].mxu0 %v603
      %v6675 = vpop.f32.mrb[0].mxu0
      %v6676 = vadd.f32 0.0, %v6675
      %v6677 = vpop.f32.mrb[0].mxu0
      %6678 = vmatprep.mubr.f32.mxu0 0.0
      %6679 = vmatmul.mubr.f32.gmra.mrb[0].mxu0 %v604
      %v6680 = vpop.f32.mrb[0].mxu0
      %v6681 = vadd.f32 0.0, %v6680
      %v6682 = vpop.f32.mrb[0].mxu0
      %6683 = vdwg.mxu0
      %6684 = vmatprep.subr.mxu0 0.0
      %6685 = vmatpush1.msra.mxu0 %v5782
      %6686 = vmatprep.subr.mxu0 0.0
      %6687 = vmatpush1.msra.mxu0 %v5783
      %6688 = vmatprep.subr.mxu0 0.0
      %6689 = vmatpush1.msra.mxu0 %v5784
      %6690 = vmatprep.subr.mxu0 0.0
      %6691 = vmatpush1.msra.mxu0 %v5785
      %6692 = vmatprep.subr.mxu0 0.0
      %6693 = vmatpush1.msra.mxu0 %v5786
      %6694 = vmatprep.subr.mxu0 0.0
      %6695 = vmatpush1.msra.mxu0 %v5787
      %6696 = vmatprep.subr.mxu0 0.0
      %6697 = vmatpush1.msra.mxu0 %v5788
      %6698 = vmatprep.subr.mxu0 0.0
      %6699 = vmatpush1.msra.mxu0 %v5789
      %6700 = vmatprep.subr.mxu0 0.0
      %6701 = vmatpush1.msra.mxu0 %v5790
      %6702 = vmatprep.subr.mxu0 0.0
      %6703 = vmatpush1.msra.mxu0 %v5791
      %6704 = vmatprep.subr.mxu0 0.0
      %6705 = vmatpush1.msra.mxu0 %v5792
      %6706 = vmatprep.subr.mxu0 0.0
      %6707 = vmatpush1.msra.mxu0 %v5793
      %6708 = vmatprep.subr.mxu0 0.0
      %6709 = vmatpush1.msra.mxu0 %v5794
      %6710 = vmatprep.subr.mxu0 0.0
      %6711 = vmatpush1.msra.mxu0 %v5795
      %6712 = vmatprep.subr.mxu0 0.0
      %6713 = vmatpush1.msra.mxu0 %v5796
      %6714 = vmatprep.subr.mxu0 0.0
      %6715 = vmatpush1.msra.mxu0 %v5797
      %6716 = vmatprep.subr.mxu0 0.0
      %6717 = vmatpush1.msra.mxu0 0.0
      %6718 = vmatprep.subr.mxu0 0.0
      %6719 = vmatpush1.msra.mxu0 0.0
      %6720 = vmatprep.subr.mxu0 0.0
      %6721 = vmatpush1.msra.mxu0 0.0
      %6722 = vmatprep.subr.mxu0 0.0
      %6723 = vmatpush1.msra.mxu0 0.0
      %6724 = vmatprep.subr.mxu0 0.0
      %6725 = vmatpush1.msra.mxu0 0.0
      %6726 = vmatprep.subr.mxu0 0.0
      %6727 = vmatpush1.msra.mxu0 0.0
      %6728 = vmatprep.subr.mxu0 0.0
      %6729 = vmatpush1.msra.mxu0 0.0
      %6730 = vmatprep.subr.mxu0 0.0
      %6731 = vmatpush1.msra.mxu0 0.0
      %6732 = vmatprep.subr.mxu0 0.0
      %6733 = vmatpush1.msra.mxu0 0.0
      %6734 = vmatprep.subr.mxu0 0.0
      %6735 = vmatpush1.msra.mxu0 0.0
      %6736 = vmatprep.subr.mxu0 0.0
      %6737 = vmatpush1.msra.mxu0 0.0
      %6738 = vmatprep.subr.mxu0 0.0
      %6739 = vmatpush1.msra.mxu0 0.0
      %6740 = vmatprep.subr.mxu0 0.0
      %6741 = vmatpush1.msra.mxu0 0.0
      %6742 = vmatprep.subr.mxu0 0.0
      %6743 = vmatpush1.msra.mxu0 0.0
      %6744 = vmatprep.subr.mxu0 0.0
      %6745 = vmatpush1.msra.mxu0 0.0
      %6746 = vmatprep.subr.mxu0 0.0
      %6747 = vmatpush1.msra.mxu0 0.0
      %6748 = vmatprep.mubr.f32.mxu0 0.0
      %6749 = vmatmul.mubr.f32.gmra.mrb[0].mxu0 %v621
      %v6750 = vpop.f32.mrb[0].mxu0
      %v6751 = vadd.f32 0.0, %v6750
      %v6752 = vpop.f32.mrb[0].mxu0
      %6753 = vmatprep.mubr.f32.mxu0 0.0
      %6754 = vmatmul.mubr.f32.gmra.mrb[0].mxu0 %v622
      %v6755 = vpop.f32.mrb[0].mxu0
      %v6756 = vadd.f32 0.0, %v6755
      %v6757 = vpop.f32.mrb[0].mxu0
      %6758 = vmatprep.mubr.f32.mxu0 0.0
      %6759 = vmatmul.mubr.f32.gmra.mrb[0].mxu0 %v623
      %v6760 = vpop.f32.mrb[0].mxu0
      %v6761 = vadd.f32 0.0, %v6760
      %v6762 = vpop.f32.mrb[0].mxu0
      %6763 = vmatprep.mubr.f32.mxu0 0.0
      %6764 = vmatmul.mubr.f32.gmra.mrb[0].mxu0 %v624
      %v6765 = vpop.f32.mrb[0].mxu0
      %v6766 = vadd.f32 0.0, %v6765
      %v6767 = vpop.f32.mrb[0].mxu0
      %6768 = vmatprep.mubr.f32.mxu0 0.0
      %6769 = vmatmul.mubr.f32.gmra.mrb[0].mxu0 %v625
      %v6770 = vpop.f32.mrb[0].mxu0
      %v6771 = vadd.f32 0.0, %v6770
      %v6772 = vpop.f32.mrb[0].mxu0
      %6773 = vmatprep.mubr.f32.mxu0 0.0
      %6774 = vmatmul.mubr.f32.gmra.mrb[0].mxu0 %v626
      %v6775 = vpop.f32.mrb[0].mxu0
      %v6776 = vadd.f32 0.0, %v6775
      %v6777 = vpop.f32.mrb[0].mxu0
      %6778 = vmatprep.mubr.f32.mxu0 0.0
      %6779 = vmatmul.mubr.f32.gmra.mrb[0].mxu0 %v627
      %v6780 = vpop.f32.mrb[0].mxu0
      %v6781 = vadd.f32 0.0, %v6780
      %v6782 = vpop.f32.mrb[0].mxu0
      %6783 = vmatprep.mubr.f32.mxu0 0.0
      %6784 = vmatmul.mubr.f32.gmra.mrb[0].mxu0 %v628
      %v6785 = vpop.f32.mrb[0].mxu0
      %v6786 = vadd.f32 0.0, %v6785
      %v6787 = vpop.f32.mrb[0].mxu0
      %6788 = vmatprep.mubr.f32.mxu0 0.0
      %6789 = vmatmul.mubr.f32.gmra.mrb[0].mxu0 %v629
      %v6790 = vpop.f32.mrb[0].mxu0
      %v6791 = vadd.f32 0.0, %v6790
      %v6792 = vpop.f32.mrb[0].mxu0
      %6793 = vmatprep.mubr.f32.mxu0 0.0
      %6794 = vmatmul.mubr.f32.gmra.mrb[0].mxu0 %v630
      %v6795 = vpop.f32.mrb[0].mxu0
      %v6796 = vadd.f32 0.0, %v6795
      %v6797 = vpop.f32.mrb[0].mxu0
      %6798 = vmatprep.mubr.f32.mxu0 0.0
      %6799 = vmatmul.mubr.f32.gmra.mrb[0].mxu0 %v631
      %v6800 = vpop.f32.mrb[0].mxu0
      %v6801 = vadd.f32 0.0, %v6800
      %v6802 = vpop.f32.mrb[0].mxu0
      %6803 = vmatprep.mubr.f32.mxu0 0.0
      %6804 = vmatmul.mubr.f32.gmra.mrb[0].mxu0 %v632
      %v6805 = vpop.f32.mrb[0].mxu0
      %v6806 = vadd.f32 0.0, %v6805
      %v6807 = vpop.f32.mrb[0].mxu0
      %6808 = vmatprep.mubr.f32.mxu0 0.0
      %6809 = vmatmul.mubr.f32.gmra.mrb[0].mxu0 %v633
      %v6810 = vpop.f32.mrb[0].mxu0
      %v6811 = vadd.f32 0.0, %v6810
      %v6812 = vpop.f32.mrb[0].mxu0
      %6813 = vmatprep.mubr.f32.mxu0 0.0
      %6814 = vmatmul.mubr.f32.gmra.mrb[0].mxu0 %v634
      %v6815 = vpop.f32.mrb[0].mxu0
      %v6816 = vadd.f32 0.0, %v6815
      %v6817 = vpop.f32.mrb[0].mxu0
      %6818 = vmatprep.mubr.f32.mxu0 0.0
      %6819 = vmatmul.mubr.f32.gmra.mrb[0].mxu0 %v635
      %v6820 = vpop.f32.mrb[0].mxu0
      %v6821 = vadd.f32 0.0, %v6820
      %v6822 = vpop.f32.mrb[0].mxu0
      %6823 = vmatprep.mubr.f32.mxu0 0.0
      %6824 = vmatmul.mubr.f32.gmra.mrb[0].mxu0 %v636
      %v6825 = vpop.f32.mrb[0].mxu0
      %v6826 = vadd.f32 0.0, %v6825
      %v6827 = vpop.f32.mrb[0].mxu0
      %6828 = vdwg.mxu0
      %6829 = vmatprep.subr.mxu0 0.0
      %6830 = vmatpush1.msra.mxu0 %v5798
      %6831 = vmatprep.subr.mxu0 0.0
      %6832 = vmatpush1.msra.mxu0 %v5799
      %6833 = vmatprep.subr.mxu0 0.0
      %6834 = vmatpush1.msra.mxu0 %v5800
      %6835 = vmatprep.subr.mxu0 0.0
      %6836 = vmatpush1.msra.mxu0 %v5801
      %6837 = vmatprep.subr.mxu0 0.0
      %6838 = vmatpush1.msra.mxu0 %v5802
      %6839 = vmatprep.subr.mxu0 0.0
      %6840 = vmatpush1.msra.mxu0 %v5803
      %6841 = vmatprep.subr.mxu0 0.0
      %6842 = vmatpush1.msra.mxu0 %v5804
      %6843 = vmatprep.subr.mxu0 0.0
      %6844 = vmatpush1.msra.mxu0 %v5805
      %6845 = vmatprep.subr.mxu0 0.0
      %6846 = vmatpush1.msra.mxu0 %v5806
      %6847 = vmatprep.subr.mxu0 0.0
      %6848 = vmatpush1.msra.mxu0 %v5807
      %6849 = vmatprep.subr.mxu0 0.0
      %6850 = vmatpush1.msra.mxu0 %v5808
      %6851 = vmatprep.subr.mxu0 0.0
      %6852 = vmatpush1.msra.mxu0 %v5809
      %6853 = vmatprep.subr.mxu0 0.0
      %6854 = vmatpush1.msra.mxu0 %v5810
      %6855 = vmatprep.subr.mxu0 0.0
      %6856 = vmatpush1.msra.mxu0 %v5811
      %6857 = vmatprep.subr.mxu0 0.0
      %6858 = vmatpush1.msra.mxu0 %v5812
      %6859 = vmatprep.subr.mxu0 0.0
      %6860 = vmatpush1.msra.mxu0 %v5813
      %6861 = vmatprep.subr.mxu0 0.0
      %6862 = vmatpush1.msra.mxu0 0.0
      %6863 = vmatprep.subr.mxu0 0.0
      %6864 = vmatpush1.msra.mxu0 0.0
      %6865 = vmatprep.subr.mxu0 0.0
      %6866 = vmatpush1.msra.mxu0 0.0
      %6867 = vmatprep.subr.mxu0 0.0
      %6868 = vmatpush1.msra.mxu0 0.0
      %6869 = vmatprep.subr.mxu0 0.0
      %6870 = vmatpush1.msra.mxu0 0.0
      %6871 = vmatprep.subr.mxu0 0.0
      %6872 = vmatpush1.msra.mxu0 0.0
      %6873 = vmatprep.subr.mxu0 0.0
      %6874 = vmatpush1.msra.mxu0 0.0
      %6875 = vmatprep.subr.mxu0 0.0
      %6876 = vmatpush1.msra.mxu0 0.0
      %6877 = vmatprep.subr.mxu0 0.0
      %6878 = vmatpush1.msra.mxu0 0.0
      %6879 = vmatprep.subr.mxu0 0.0
      %6880 = vmatpush1.msra.mxu0 0.0
      %6881 = vmatprep.subr.mxu0 0.0
      %6882 = vmatpush1.msra.mxu0 0.0
      %6883 = vmatprep.subr.mxu0 0.0
      %6884 = vmatpush1.msra.mxu0 0.0
      %6885 = vmatprep.subr.mxu0 0.0
      %6886 = vmatpush1.msra.mxu0 0.0
      %6887 = vmatprep.subr.mxu0 0.0
      %6888 = vmatpush1.msra.mxu0 0.0
      %6889 = vmatprep.subr.mxu0 0.0
      %6890 = vmatpush1.msra.mxu0 0.0
      %6891 = vmatprep.subr.mxu0 0.0
      %6892 = vmatpush1.msra.mxu0 0.0
      %6893 = vmatprep.mubr.f32.mxu0 0.0
      %6894 = vmatmul.mubr.f32.gmra.mrb[0].mxu0 %v653
      %v6895 = vpop.f32.mrb[0].mxu0
      %v6896 = vadd.f32 0.0, %v6895
      %v6897 = vpop.f32.mrb[0].mxu0
      %6898 = vmatprep.mubr.f32.mxu0 0.0
      %6899 = vmatmul.mubr.f32.gmra.mrb[0].mxu0 %v654
      %v6900 = vpop.f32.mrb[0].mxu0
      %v6901 = vadd.f32 0.0, %v6900
      %v6902 = vpop.f32.mrb[0].mxu0
      %6903 = vmatprep.mubr.f32.mxu0 0.0
      %6904 = vmatmul.mubr.f32.gmra.mrb[0].mxu0 %v655
      %v6905 = vpop.f32.mrb[0].mxu0
      %v6906 = vadd.f32 0.0, %v6905
      %v6907 = vpop.f32.mrb[0].mxu0
      %6908 = vmatprep.mubr.f32.mxu0 0.0
      %6909 = vmatmul.mubr.f32.gmra.mrb[0].mxu0 %v656
      %v6910 = vpop.f32.mrb[0].mxu0
      %v6911 = vadd.f32 0.0, %v6910
      %v6912 = vpop.f32.mrb[0].mxu0
      %6913 = vmatprep.mubr.f32.mxu0 0.0
      %6914 = vmatmul.mubr.f32.gmra.mrb[0].mxu0 %v657
      %v6915 = vpop.f32.mrb[0].mxu0
      %v6916 = vadd.f32 0.0, %v6915
      %v6917 = vpop.f32.mrb[0].mxu0
      %6918 = vmatprep.mubr.f32.mxu0 0.0
      %6919 = vmatmul.mubr.f32.gmra.mrb[0].mxu0 %v658
      %v6920 = vpop.f32.mrb[0].mxu0
      %v6921 = vadd.f32 0.0, %v6920
      %v6922 = vpop.f32.mrb[0].mxu0
      %6923 = vmatprep.mubr.f32.mxu0 0.0
      %6924 = vmatmul.mubr.f32.gmra.mrb[0].mxu0 %v659
      %v6925 = vpop.f32.mrb[0].mxu0
      %v6926 = vadd.f32 0.0, %v6925
      %v6927 = vpop.f32.mrb[0].mxu0
      %6928 = vmatprep.mubr.f32.mxu0 0.0
      %6929 = vmatmul.mubr.f32.gmra.mrb[0].mxu0 %v660
      %v6930 = vpop.f32.mrb[0].mxu0
      %v6931 = vadd.f32 0.0, %v6930
      %v6932 = vpop.f32.mrb[0].mxu0
      %6933 = vmatprep.mubr.f32.mxu0 0.0
      %6934 = vmatmul.mubr.f32.gmra.mrb[0].mxu0 %v661
      %v6935 = vpop.f32.mrb[0].mxu0
      %v6936 = vadd.f32 0.0, %v6935
      %v6937 = vpop.f32.mrb[0].mxu0
      %6938 = vmatprep.mubr.f32.mxu0 0.0
      %6939 = vmatmul.mubr.f32.gmra.mrb[0].mxu0 %v662
      %v6940 = vpop.f32.mrb[0].mxu0
      %v6941 = vadd.f32 0.0, %v6940
      %v6942 = vpop.f32.mrb[0].mxu0
      %6943 = vmatprep.mubr.f32.mxu0 0.0
      %6944 = vmatmul.mubr.f32.gmra.mrb[0].mxu0 %v663
      %v6945 = vpop.f32.mrb[0].mxu0
      %v6946 = vadd.f32 0.0, %v6945
      %v6947 = vpop.f32.mrb[0].mxu0
      %6948 = vmatprep.mubr.f32.mxu0 0.0
      %6949 = vmatmul.mubr.f32.gmra.mrb[0].mxu0 %v664
      %v6950 = vpop.f32.mrb[0].mxu0
      %v6951 = vadd.f32 0.0, %v6950
      %v6952 = vpop.f32.mrb[0].mxu0
      %6953 = vmatprep.mubr.f32.mxu0 0.0
      %6954 = vmatmul.mubr.f32.gmra.mrb[0].mxu0 %v665
      %v6955 = vpop.f32.mrb[0].mxu0
      %v6956 = vadd.f32 0.0, %v6955
      %v6957 = vpop.f32.mrb[0].mxu0
      %6958 = vmatprep.mubr.f32.mxu0 0.0
      %6959 = vmatmul.mubr.f32.gmra.mrb[0].mxu0 %v666
      %v6960 = vpop.f32.mrb[0].mxu0
      %v6961 = vadd.f32 0.0, %v6960
      %v6962 = vpop.f32.mrb[0].mxu0
      %6963 = vmatprep.mubr.f32.mxu0 0.0
      %6964 = vmatmul.mubr.f32.gmra.mrb[0].mxu0 %v667
      %v6965 = vpop.f32.mrb[0].mxu0
      %v6966 = vadd.f32 0.0, %v6965
      %v6967 = vpop.f32.mrb[0].mxu0
      %6968 = vmatprep.mubr.f32.mxu0 0.0
      %6969 = vmatmul.mubr.f32.gmra.mrb[0].mxu0 %v668
      %v6970 = vpop.f32.mrb[0].mxu0
      %v6971 = vadd.f32 0.0, %v6970
      %v6972 = vpop.f32.mrb[0].mxu0
      %6973 = vdwg.mxu0
      %v6974 = vmul.f32 %v5881, %v1565
      %v6975 = vmul.f32 %v5886, %v1566
      %v6976 = vmul.f32 %v5891, %v1567
      %v6977 = vmul.f32 %v5896, %v1568
      %v6978 = vmul.f32 %v5901, %v1569
      %v6979 = vmul.f32 %v5906, %v1570
      %v6980 = vmul.f32 %v5911, %v1571
      %v6981 = vmul.f32 %v5916, %v1572
      %v6982 = vmul.f32 %v5921, %v1573
      %v6983 = vmul.f32 %v5926, %v1574
      %v6984 = vmul.f32 %v5931, %v1575
      %v6985 = vmul.f32 %v5936, %v1576
      %v6986 = vmul.f32 %v5941, %v1577
      %v6987 = vmul.f32 %v5946, %v1578
      %v6988 = vmul.f32 %v5951, %v1579
      %v6989 = vmul.f32 %v5956, %v1580
      %v6990 = vmul.f32 %v6026, %v1581
      %v6991 = vmul.f32 %v6031, %v1582
      %v6992 = vmul.f32 %v6036, %v1583
      %v6993 = vmul.f32 %v6041, %v1584
      %v6994 = vmul.f32 %v6046, %v1585
      %v6995 = vmul.f32 %v6051, %v1586
      %v6996 = vmul.f32 %v6056, %v1587
      %v6997 = vmul.f32 %v6061, %v1588
      %v6998 = vmul.f32 %v6066, %v1589
      %v6999 = vmul.f32 %v6071, %v1590
      %v7000 = vmul.f32 %v6076, %v1591
      %v7001 = vmul.f32 %v6081, %v1592
      %v7002 = vmul.f32 %v6086, %v1593
      %v7003 = vmul.f32 %v6091, %v1594
      %v7004 = vmul.f32 %v6096, %v1595
      %v7005 = vmul.f32 %v6101, %v1596
      %v7006 = vmul.f32 %v6171, %v1597
      %v7007 = vmul.f32 %v6176, %v1598
      %v7008 = vmul.f32 %v6181, %v1599
      %v7009 = vmul.f32 %v6186, %v1600
      %v7010 = vmul.f32 %v6191, %v1601
      %v7011 = vmul.f32 %v6196, %v1602
      %v7012 = vmul.f32 %v6201, %v1603
      %v7013 = vmul.f32 %v6206, %v1604
      %v7014 = vmul.f32 %v6211, %v1605
      %v7015 = vmul.f32 %v6216, %v1606
      %v7016 = vmul.f32 %v6221, %v1607
      %v7017 = vmul.f32 %v6226, %v1608
      %v7018 = vmul.f32 %v6231, %v1609
      %v7019 = vmul.f32 %v6236, %v1610
      %v7020 = vmul.f32 %v6241, %v1611
      %v7021 = vmul.f32 %v6246, %v1612
      %v7022 = vmul.f32 %v6316, %v1613
      %v7023 = vmul.f32 %v6321, %v1614
      %v7024 = vmul.f32 %v6326, %v1615
      %v7025 = vmul.f32 %v6331, %v1616
      %v7026 = vmul.f32 %v6336, %v1617
      %v7027 = vmul.f32 %v6341, %v1618
      %v7028 = vmul.f32 %v6346, %v1619
      %v7029 = vmul.f32 %v6351, %v1620
      %v7030 = vmul.f32 %v6356, %v1621
      %v7031 = vmul.f32 %v6361, %v1622
      %v7032 = vmul.f32 %v6366, %v1623
      %v7033 = vmul.f32 %v6371, %v1624
      %v7034 = vmul.f32 %v6376, %v1625
      %v7035 = vmul.f32 %v6381, %v1626
      %v7036 = vmul.f32 %v6386, %v1627
      %v7037 = vmul.f32 %v6391, %v1628
      %v7038 = vmul.f32 %v6461, %v1629
      %v7039 = vmul.f32 %v6466, %v1630
      %v7040 = vmul.f32 %v6471, %v1631
      %v7041 = vmul.f32 %v6476, %v1632
      %v7042 = vmul.f32 %v6481, %v1633
      %v7043 = vmul.f32 %v6486, %v1634
      %v7044 = vmul.f32 %v6491, %v1635
      %v7045 = vmul.f32 %v6496, %v1636
      %v7046 = vmul.f32 %v6501, %v1637
      %v7047 = vmul.f32 %v6506, %v1638
      %v7048 = vmul.f32 %v6511, %v1639
      %v7049 = vmul.f32 %v6516, %v1640
      %v7050 = vmul.f32 %v6521, %v1641
      %v7051 = vmul.f32 %v6526, %v1642
      %v7052 = vmul.f32 %v6531, %v1643
      %v7053 = vmul.f32 %v6536, %v1644
      %v7054 = vmul.f32 %v6606, %v1645
      %v7055 = vmul.f32 %v6611, %v1646
      %v7056 = vmul.f32 %v6616, %v1647
      %v7057 = vmul.f32 %v6621, %v1648
      %v7058 = vmul.f32 %v6626, %v1649
      %v7059 = vmul.f32 %v6631, %v1650
      %v7060 = vmul.f32 %v6636, %v1651
      %v7061 = vmul.f32 %v6641, %v1652
      %v7062 = vmul.f32 %v6646, %v1653
      %v7063 = vmul.f32 %v6651, %v1654
      %v7064 = vmul.f32 %v6656, %v1655
      %v7065 = vmul.f32 %v6661, %v1656
      %v7066 = vmul.f32 %v6666, %v1657
      %v7067 = vmul.f32 %v6671, %v1658
      %v7068 = vmul.f32 %v6676, %v1659
      %v7069 = vmul.f32 %v6681, %v1660
      %v7070 = vmul.f32 %v6751, %v1661
      %v7071 = vmul.f32 %v6756, %v1662
      %v7072 = vmul.f32 %v6761, %v1663
      %v7073 = vmul.f32 %v6766, %v1664
      %v7074 = vmul.f32 %v6771, %v1665
      %v7075 = vmul.f32 %v6776, %v1666
      %v7076 = vmul.f32 %v6781, %v1667
      %v7077 = vmul.f32 %v6786, %v1668
      %v7078 = vmul.f32 %v6791, %v1669
      %v7079 = vmul.f32 %v6796, %v1670
      %v7080 = vmul.f32 %v6801, %v1671
      %v7081 = vmul.f32 %v6806, %v1672
      %v7082 = vmul.f32 %v6811, %v1673
      %v7083 = vmul.f32 %v6816, %v1674
      %v7084 = vmul.f32 %v6821, %v1675
      %v7085 = vmul.f32 %v6826, %v1676
      %v7086 = vmul.f32 %v6896, %v1677
      %v7087 = vmul.f32 %v6901, %v1678
      %v7088 = vmul.f32 %v6906, %v1679
      %v7089 = vmul.f32 %v6911, %v1680
      %v7090 = vmul.f32 %v6916, %v1681
      %v7091 = vmul.f32 %v6921, %v1682
      %v7092 = vmul.f32 %v6926, %v1683
      %v7093 = vmul.f32 %v6931, %v1684
      %v7094 = vmul.f32 %v6936, %v1685
      %v7095 = vmul.f32 %v6941, %v1686
      %v7096 = vmul.f32 %v6946, %v1687
      %v7097 = vmul.f32 %v6951, %v1688
      %v7098 = vmul.f32 %v6956, %v1689
      %v7099 = vmul.f32 %v6961, %v1690
      %v7100 = vmul.f32 %v6966, %v1691
      %v7101 = vmul.f32 %v6971, %v1692
      %v7102 = vld [vmem:[%s5] sm:$0x1]
      %v7104 = vlaneseq
      %v7105 = vshrl.u32 %v7104, 7
      %v7106 = vsub.s32 0, %v7105
      %v7107 = vrot.slane %v7102, %v7106
      %v7109 = vadd.f32 %v6974, %v7107
      %v7110 = vadd.f32 %v6975, %v7107
      %v7111 = vadd.f32 %v6976, %v7107
      %v7112 = vadd.f32 %v6977, %v7107
      %v7113 = vadd.f32 %v6978, %v7107
      %v7114 = vadd.f32 %v6979, %v7107
      %v7115 = vadd.f32 %v6980, %v7107
      %v7116 = vadd.f32 %v6981, %v7107
      %v7117 = vadd.f32 %v6982, %v7107
      %v7118 = vadd.f32 %v6983, %v7107
      %v7119 = vadd.f32 %v6984, %v7107
      %v7120 = vadd.f32 %v6985, %v7107
      %v7121 = vadd.f32 %v6986, %v7107
      %v7122 = vadd.f32 %v6987, %v7107
      %v7123 = vadd.f32 %v6988, %v7107
      %v7124 = vadd.f32 %v6989, %v7107
      %v7125 = vadd.f32 %v6990, %v7107
      %v7126 = vadd.f32 %v6991, %v7107
      %v7127 = vadd.f32 %v6992, %v7107
      %v7128 = vadd.f32 %v6993, %v7107
      %v7129 = vadd.f32 %v6994, %v7107
      %v7130 = vadd.f32 %v6995, %v7107
      %v7131 = vadd.f32 %v6996, %v7107
      %v7132 = vadd.f32 %v6997, %v7107
      %v7133 = vadd.f32 %v6998, %v7107
      %v7134 = vadd.f32 %v6999, %v7107
      %v7135 = vadd.f32 %v7000, %v7107
      %v7136 = vadd.f32 %v7001, %v7107
      %v7137 = vadd.f32 %v7002, %v7107
      %v7138 = vadd.f32 %v7003, %v7107
      %v7139 = vadd.f32 %v7004, %v7107
      %v7140 = vadd.f32 %v7005, %v7107
      %v7141 = vadd.f32 %v7006, %v7107
      %v7142 = vadd.f32 %v7007, %v7107
      %v7143 = vadd.f32 %v7008, %v7107
      %v7144 = vadd.f32 %v7009, %v7107
      %v7145 = vadd.f32 %v7010, %v7107
      %v7146 = vadd.f32 %v7011, %v7107
      %v7147 = vadd.f32 %v7012, %v7107
      %v7148 = vadd.f32 %v7013, %v7107
      %v7149 = vadd.f32 %v7014, %v7107
      %v7150 = vadd.f32 %v7015, %v7107
      %v7151 = vadd.f32 %v7016, %v7107
      %v7152 = vadd.f32 %v7017, %v7107
      %v7153 = vadd.f32 %v7018, %v7107
      %v7154 = vadd.f32 %v7019, %v7107
      %v7155 = vadd.f32 %v7020, %v7107
      %v7156 = vadd.f32 %v7021, %v7107
      %v7157 = vadd.f32 %v7022, %v7107
      %v7158 = vadd.f32 %v7023, %v7107
      %v7159 = vadd.f32 %v7024, %v7107
      %v7160 = vadd.f32 %v7025, %v7107
      %v7161 = vadd.f32 %v7026, %v7107
      %v7162 = vadd.f32 %v7027, %v7107
      %v7163 = vadd.f32 %v7028, %v7107
      %v7164 = vadd.f32 %v7029, %v7107
      %v7165 = vadd.f32 %v7030, %v7107
      %v7166 = vadd.f32 %v7031, %v7107
      %v7167 = vadd.f32 %v7032, %v7107
      %v7168 = vadd.f32 %v7033, %v7107
      %v7169 = vadd.f32 %v7034, %v7107
      %v7170 = vadd.f32 %v7035, %v7107
      %v7171 = vadd.f32 %v7036, %v7107
      %v7172 = vadd.f32 %v7037, %v7107
      %v7173 = vadd.f32 %v7038, %v7107
      %v7174 = vadd.f32 %v7039, %v7107
      %v7175 = vadd.f32 %v7040, %v7107
      %v7176 = vadd.f32 %v7041, %v7107
      %v7177 = vadd.f32 %v7042, %v7107
      %v7178 = vadd.f32 %v7043, %v7107
      %v7179 = vadd.f32 %v7044, %v7107
      %v7180 = vadd.f32 %v7045, %v7107
      %v7181 = vadd.f32 %v7046, %v7107
      %v7182 = vadd.f32 %v7047, %v7107
      %v7183 = vadd.f32 %v7048, %v7107
      %v7184 = vadd.f32 %v7049, %v7107
      %v7185 = vadd.f32 %v7050, %v7107
      %v7186 = vadd.f32 %v7051, %v7107
      %v7187 = vadd.f32 %v7052, %v7107
      %v7188 = vadd.f32 %v7053, %v7107
      %v7189 = vadd.f32 %v7054, %v7107
      %v7190 = vadd.f32 %v7055, %v7107
      %v7191 = vadd.f32 %v7056, %v7107
      %v7192 = vadd.f32 %v7057, %v7107
      %v7193 = vadd.f32 %v7058, %v7107
      %v7194 = vadd.f32 %v7059, %v7107
      %v7195 = vadd.f32 %v7060, %v7107
      %v7196 = vadd.f32 %v7061, %v7107
      %v7197 = vadd.f32 %v7062, %v7107
      %v7198 = vadd.f32 %v7063, %v7107
      %v7199 = vadd.f32 %v7064, %v7107
      %v7200 = vadd.f32 %v7065, %v7107
      %v7201 = vadd.f32 %v7066, %v7107
      %v7202 = vadd.f32 %v7067, %v7107
      %v7203 = vadd.f32 %v7068, %v7107
      %v7204 = vadd.f32 %v7069, %v7107
      %v7205 = vadd.f32 %v7070, %v7107
      %v7206 = vadd.f32 %v7071, %v7107
      %v7207 = vadd.f32 %v7072, %v7107
      %v7208 = vadd.f32 %v7073, %v7107
      %v7209 = vadd.f32 %v7074, %v7107
      %v7210 = vadd.f32 %v7075, %v7107
      %v7211 = vadd.f32 %v7076, %v7107
      %v7212 = vadd.f32 %v7077, %v7107
      %v7213 = vadd.f32 %v7078, %v7107
      %v7214 = vadd.f32 %v7079, %v7107
      %v7215 = vadd.f32 %v7080, %v7107
      %v7216 = vadd.f32 %v7081, %v7107
      %v7217 = vadd.f32 %v7082, %v7107
      %v7218 = vadd.f32 %v7083, %v7107
      %v7219 = vadd.f32 %v7084, %v7107
      %v7220 = vadd.f32 %v7085, %v7107
      %v7221 = vadd.f32 %v7086, %v7107
      %v7222 = vadd.f32 %v7087, %v7107
      %v7223 = vadd.f32 %v7088, %v7107
      %v7224 = vadd.f32 %v7089, %v7107
      %v7225 = vadd.f32 %v7090, %v7107
      %v7226 = vadd.f32 %v7091, %v7107
      %v7227 = vadd.f32 %v7092, %v7107
      %v7228 = vadd.f32 %v7093, %v7107
      %v7229 = vadd.f32 %v7094, %v7107
      %v7230 = vadd.f32 %v7095, %v7107
      %v7231 = vadd.f32 %v7096, %v7107
      %v7232 = vadd.f32 %v7097, %v7107
      %v7233 = vadd.f32 %v7098, %v7107
      %v7234 = vadd.f32 %v7099, %v7107
      %v7235 = vadd.f32 %v7100, %v7107
      %v7236 = vadd.f32 %v7101, %v7107
      %v7237 = vpack.c.bf16 %v7110, %v7109
      %v7238 = vpack.c.bf16 %v7112, %v7111
      %v7239 = vpack.c.bf16 %v7114, %v7113
      %v7240 = vpack.c.bf16 %v7116, %v7115
      %v7241 = vpack.c.bf16 %v7118, %v7117
      %v7242 = vpack.c.bf16 %v7120, %v7119
      %v7243 = vpack.c.bf16 %v7122, %v7121
      %v7244 = vpack.c.bf16 %v7124, %v7123
      %v7245 = vpack.c.bf16 %v7126, %v7125
      %v7246 = vpack.c.bf16 %v7128, %v7127
      %v7247 = vpack.c.bf16 %v7130, %v7129
      %v7248 = vpack.c.bf16 %v7132, %v7131
      %v7249 = vpack.c.bf16 %v7134, %v7133
      %v7250 = vpack.c.bf16 %v7136, %v7135
      %v7251 = vpack.c.bf16 %v7138, %v7137
      %v7252 = vpack.c.bf16 %v7140, %v7139
      %v7253 = vpack.c.bf16 %v7142, %v7141
      %v7254 = vpack.c.bf16 %v7144, %v7143
      %v7255 = vpack.c.bf16 %v7146, %v7145
      %v7256 = vpack.c.bf16 %v7148, %v7147
      %v7257 = vpack.c.bf16 %v7150, %v7149
      %v7258 = vpack.c.bf16 %v7152, %v7151
      %v7259 = vpack.c.bf16 %v7154, %v7153
      %v7260 = vpack.c.bf16 %v7156, %v7155
      %v7261 = vpack.c.bf16 %v7158, %v7157
      %v7262 = vpack.c.bf16 %v7160, %v7159
      %v7263 = vpack.c.bf16 %v7162, %v7161
      %v7264 = vpack.c.bf16 %v7164, %v7163
      %v7265 = vpack.c.bf16 %v7166, %v7165
      %v7266 = vpack.c.bf16 %v7168, %v7167
      %v7267 = vpack.c.bf16 %v7170, %v7169
      %v7268 = vpack.c.bf16 %v7172, %v7171
      %v7269 = vpack.c.bf16 %v7174, %v7173
      %v7270 = vpack.c.bf16 %v7176, %v7175
      %v7271 = vpack.c.bf16 %v7178, %v7177
      %v7272 = vpack.c.bf16 %v7180, %v7179
      %v7273 = vpack.c.bf16 %v7182, %v7181
      %v7274 = vpack.c.bf16 %v7184, %v7183
      %v7275 = vpack.c.bf16 %v7186, %v7185
      %v7276 = vpack.c.bf16 %v7188, %v7187
      %v7277 = vpack.c.bf16 %v7190, %v7189
      %v7278 = vpack.c.bf16 %v7192, %v7191
      %v7279 = vpack.c.bf16 %v7194, %v7193
      %v7280 = vpack.c.bf16 %v7196, %v7195
      %v7281 = vpack.c.bf16 %v7198, %v7197
      %v7282 = vpack.c.bf16 %v7200, %v7199
      %v7283 = vpack.c.bf16 %v7202, %v7201
      %v7284 = vpack.c.bf16 %v7204, %v7203
      %v7285 = vpack.c.bf16 %v7206, %v7205
      %v7286 = vpack.c.bf16 %v7208, %v7207
      %v7287 = vpack.c.bf16 %v7210, %v7209
      %v7288 = vpack.c.bf16 %v7212, %v7211
      %v7289 = vpack.c.bf16 %v7214, %v7213
      %v7290 = vpack.c.bf16 %v7216, %v7215
      %v7291 = vpack.c.bf16 %v7218, %v7217
      %v7292 = vpack.c.bf16 %v7220, %v7219
      %v7293 = vpack.c.bf16 %v7222, %v7221
      %v7294 = vpack.c.bf16 %v7224, %v7223
      %v7295 = vpack.c.bf16 %v7226, %v7225
      %v7296 = vpack.c.bf16 %v7228, %v7227
      %v7297 = vpack.c.bf16 %v7230, %v7229
      %v7298 = vpack.c.bf16 %v7232, %v7231
      %v7299 = vpack.c.bf16 %v7234, %v7233
      %v7300 = vpack.c.bf16 %v7236, %v7235
      %v7365 = vunpack.c.l.b16 %v7237
      %v7366 = vunpack.c.h.b16 %v7237
      %v7367 = vunpack.c.l.b16 %v7238
      %v7368 = vunpack.c.h.b16 %v7238
      %v7369 = vunpack.c.l.b16 %v7239
      %v7370 = vunpack.c.h.b16 %v7239
      %v7371 = vunpack.c.l.b16 %v7240
      %v7372 = vunpack.c.h.b16 %v7240
      %v7373 = vunpack.c.l.b16 %v7241
      %v7374 = vunpack.c.h.b16 %v7241
      %v7375 = vunpack.c.l.b16 %v7242
      %v7376 = vunpack.c.h.b16 %v7242
      %v7377 = vunpack.c.l.b16 %v7243
      %v7378 = vunpack.c.h.b16 %v7243
      %v7379 = vunpack.c.l.b16 %v7244
      %v7380 = vunpack.c.h.b16 %v7244
      %v7381 = vunpack.c.l.b16 %v7245
      %v7382 = vunpack.c.h.b16 %v7245
      %v7383 = vunpack.c.l.b16 %v7246
      %v7384 = vunpack.c.h.b16 %v7246
      %v7385 = vunpack.c.l.b16 %v7247
      %v7386 = vunpack.c.h.b16 %v7247
      %v7387 = vunpack.c.l.b16 %v7248
      %v7388 = vunpack.c.h.b16 %v7248
      %v7389 = vunpack.c.l.b16 %v7249
      %v7390 = vunpack.c.h.b16 %v7249
      %v7391 = vunpack.c.l.b16 %v7250
      %v7392 = vunpack.c.h.b16 %v7250
      %v7393 = vunpack.c.l.b16 %v7251
      %v7394 = vunpack.c.h.b16 %v7251
      %v7395 = vunpack.c.l.b16 %v7252
      %v7396 = vunpack.c.h.b16 %v7252
      %v7397 = vunpack.c.l.b16 %v7253
      %v7398 = vunpack.c.h.b16 %v7253
      %v7399 = vunpack.c.l.b16 %v7254
      %v7400 = vunpack.c.h.b16 %v7254
      %v7401 = vunpack.c.l.b16 %v7255
      %v7402 = vunpack.c.h.b16 %v7255
      %v7403 = vunpack.c.l.b16 %v7256
      %v7404 = vunpack.c.h.b16 %v7256
      %v7405 = vunpack.c.l.b16 %v7257
      %v7406 = vunpack.c.h.b16 %v7257
      %v7407 = vunpack.c.l.b16 %v7258
      %v7408 = vunpack.c.h.b16 %v7258
      %v7409 = vunpack.c.l.b16 %v7259
      %v7410 = vunpack.c.h.b16 %v7259
      %v7411 = vunpack.c.l.b16 %v7260
      %v7412 = vunpack.c.h.b16 %v7260
      %v7413 = vunpack.c.l.b16 %v7261
      %v7414 = vunpack.c.h.b16 %v7261
      %v7415 = vunpack.c.l.b16 %v7262
      %v7416 = vunpack.c.h.b16 %v7262
      %v7417 = vunpack.c.l.b16 %v7263
      %v7418 = vunpack.c.h.b16 %v7263
      %v7419 = vunpack.c.l.b16 %v7264
      %v7420 = vunpack.c.h.b16 %v7264
      %v7421 = vunpack.c.l.b16 %v7265
      %v7422 = vunpack.c.h.b16 %v7265
      %v7423 = vunpack.c.l.b16 %v7266
      %v7424 = vunpack.c.h.b16 %v7266
      %v7425 = vunpack.c.l.b16 %v7267
      %v7426 = vunpack.c.h.b16 %v7267
      %v7427 = vunpack.c.l.b16 %v7268
      %v7428 = vunpack.c.h.b16 %v7268
      %v7429 = vunpack.c.l.b16 %v7269
      %v7430 = vunpack.c.h.b16 %v7269
      %v7431 = vunpack.c.l.b16 %v7270
      %v7432 = vunpack.c.h.b16 %v7270
      %v7433 = vunpack.c.l.b16 %v7271
      %v7434 = vunpack.c.h.b16 %v7271
      %v7435 = vunpack.c.l.b16 %v7272
      %v7436 = vunpack.c.h.b16 %v7272
      %v7437 = vunpack.c.l.b16 %v7273
      %v7438 = vunpack.c.h.b16 %v7273
      %v7439 = vunpack.c.l.b16 %v7274
      %v7440 = vunpack.c.h.b16 %v7274
      %v7441 = vunpack.c.l.b16 %v7275
      %v7442 = vunpack.c.h.b16 %v7275
      %v7443 = vunpack.c.l.b16 %v7276
      %v7444 = vunpack.c.h.b16 %v7276
      %v7445 = vunpack.c.l.b16 %v7277
      %v7446 = vunpack.c.h.b16 %v7277
      %v7447 = vunpack.c.l.b16 %v7278
      %v7448 = vunpack.c.h.b16 %v7278
      %v7449 = vunpack.c.l.b16 %v7279
      %v7450 = vunpack.c.h.b16 %v7279
      %v7451 = vunpack.c.l.b16 %v7280
      %v7452 = vunpack.c.h.b16 %v7280
      %v7453 = vunpack.c.l.b16 %v7281
      %v7454 = vunpack.c.h.b16 %v7281
      %v7455 = vunpack.c.l.b16 %v7282
      %v7456 = vunpack.c.h.b16 %v7282
      %v7457 = vunpack.c.l.b16 %v7283
      %v7458 = vunpack.c.h.b16 %v7283
      %v7459 = vunpack.c.l.b16 %v7284
      %v7460 = vunpack.c.h.b16 %v7284
      %v7461 = vunpack.c.l.b16 %v7285
      %v7462 = vunpack.c.h.b16 %v7285
      %v7463 = vunpack.c.l.b16 %v7286
      %v7464 = vunpack.c.h.b16 %v7286
      %v7465 = vunpack.c.l.b16 %v7287
      %v7466 = vunpack.c.h.b16 %v7287
      %v7467 = vunpack.c.l.b16 %v7288
      %v7468 = vunpack.c.h.b16 %v7288
      %v7469 = vunpack.c.l.b16 %v7289
      %v7470 = vunpack.c.h.b16 %v7289
      %v7471 = vunpack.c.l.b16 %v7290
      %v7472 = vunpack.c.h.b16 %v7290
      %v7473 = vunpack.c.l.b16 %v7291
      %v7474 = vunpack.c.h.b16 %v7291
      %v7475 = vunpack.c.l.b16 %v7292
      %v7476 = vunpack.c.h.b16 %v7292
      %v7477 = vunpack.c.l.b16 %v7293
      %v7478 = vunpack.c.h.b16 %v7293
      %v7479 = vunpack.c.l.b16 %v7294
      %v7480 = vunpack.c.h.b16 %v7294
      %v7481 = vunpack.c.l.b16 %v7295
      %v7482 = vunpack.c.h.b16 %v7295
      %v7483 = vunpack.c.l.b16 %v7296
      %v7484 = vunpack.c.h.b16 %v7296
      %v7485 = vunpack.c.l.b16 %v7297
      %v7486 = vunpack.c.h.b16 %v7297
      %v7487 = vunpack.c.l.b16 %v7298
      %v7488 = vunpack.c.h.b16 %v7298
      %v7489 = vunpack.c.l.b16 %v7299
      %v7490 = vunpack.c.h.b16 %v7299
      %v7491 = vunpack.c.l.b16 %v7300
      %v7492 = vunpack.c.h.b16 %v7300
      %v7493 = vpack.c.b16 %v7365, %v7365
      %v7494 = vpack.c.b16 %v7366, %v7366
      %v7495 = vpack.c.b16 %v7367, %v7367
      %v7496 = vpack.c.b16 %v7368, %v7368
      %v7497 = vpack.c.b16 %v7369, %v7369
      %v7498 = vpack.c.b16 %v7370, %v7370
      %v7499 = vpack.c.b16 %v7371, %v7371
      %v7500 = vpack.c.b16 %v7372, %v7372
      %v7501 = vpack.c.b16 %v7373, %v7373
      %v7502 = vpack.c.b16 %v7374, %v7374
      %v7503 = vpack.c.b16 %v7375, %v7375
      %v7504 = vpack.c.b16 %v7376, %v7376
      %v7505 = vpack.c.b16 %v7377, %v7377
      %v7506 = vpack.c.b16 %v7378, %v7378
      %v7507 = vpack.c.b16 %v7379, %v7379
      %v7508 = vpack.c.b16 %v7380, %v7380
      %v7509 = vpack.c.b16 %v7381, %v7381
      %v7510 = vpack.c.b16 %v7382, %v7382
      %v7511 = vpack.c.b16 %v7383, %v7383
      %v7512 = vpack.c.b16 %v7384, %v7384
      %v7513 = vpack.c.b16 %v7385, %v7385
      %v7514 = vpack.c.b16 %v7386, %v7386
      %v7515 = vpack.c.b16 %v7387, %v7387
      %v7516 = vpack.c.b16 %v7388, %v7388
      %v7517 = vpack.c.b16 %v7389, %v7389
      %v7518 = vpack.c.b16 %v7390, %v7390
      %v7519 = vpack.c.b16 %v7391, %v7391
      %v7520 = vpack.c.b16 %v7392, %v7392
      %v7521 = vpack.c.b16 %v7393, %v7393
      %v7522 = vpack.c.b16 %v7394, %v7394
      %v7523 = vpack.c.b16 %v7395, %v7395
      %v7524 = vpack.c.b16 %v7396, %v7396
      %v7525 = vpack.c.b16 %v7397, %v7397
      %v7526 = vpack.c.b16 %v7398, %v7398
      %v7527 = vpack.c.b16 %v7399, %v7399
      %v7528 = vpack.c.b16 %v7400, %v7400
      %v7529 = vpack.c.b16 %v7401, %v7401
      %v7530 = vpack.c.b16 %v7402, %v7402
      %v7531 = vpack.c.b16 %v7403, %v7403
      %v7532 = vpack.c.b16 %v7404, %v7404
      %v7533 = vpack.c.b16 %v7405, %v7405
      %v7534 = vpack.c.b16 %v7406, %v7406
      %v7535 = vpack.c.b16 %v7407, %v7407
      %v7536 = vpack.c.b16 %v7408, %v7408
      %v7537 = vpack.c.b16 %v7409, %v7409
      %v7538 = vpack.c.b16 %v7410, %v7410
      %v7539 = vpack.c.b16 %v7411, %v7411
      %v7540 = vpack.c.b16 %v7412, %v7412
      %v7541 = vpack.c.b16 %v7413, %v7413
      %v7542 = vpack.c.b16 %v7414, %v7414
      %v7543 = vpack.c.b16 %v7415, %v7415
      %v7544 = vpack.c.b16 %v7416, %v7416
      %v7545 = vpack.c.b16 %v7417, %v7417
      %v7546 = vpack.c.b16 %v7418, %v7418
      %v7547 = vpack.c.b16 %v7419, %v7419
      %v7548 = vpack.c.b16 %v7420, %v7420
      %v7549 = vpack.c.b16 %v7421, %v7421
      %v7550 = vpack.c.b16 %v7422, %v7422
      %v7551 = vpack.c.b16 %v7423, %v7423
      %v7552 = vpack.c.b16 %v7424, %v7424
      %v7553 = vpack.c.b16 %v7425, %v7425
      %v7554 = vpack.c.b16 %v7426, %v7426
      %v7555 = vpack.c.b16 %v7427, %v7427
      %v7556 = vpack.c.b16 %v7428, %v7428
      %v7557 = vpack.c.b16 %v7429, %v7429
      %v7558 = vpack.c.b16 %v7430, %v7430
      %v7559 = vpack.c.b16 %v7431, %v7431
      %v7560 = vpack.c.b16 %v7432, %v7432
      %v7561 = vpack.c.b16 %v7433, %v7433
      %v7562 = vpack.c.b16 %v7434, %v7434
      %v7563 = vpack.c.b16 %v7435, %v7435
      %v7564 = vpack.c.b16 %v7436, %v7436
      %v7565 = vpack.c.b16 %v7437, %v7437
      %v7566 = vpack.c.b16 %v7438, %v7438
      %v7567 = vpack.c.b16 %v7439, %v7439
      %v7568 = vpack.c.b16 %v7440, %v7440
      %v7569 = vpack.c.b16 %v7441, %v7441
      %v7570 = vpack.c.b16 %v7442, %v7442
      %v7571 = vpack.c.b16 %v7443, %v7443
      %v7572 = vpack.c.b16 %v7444, %v7444
      %v7573 = vpack.c.b16 %v7445, %v7445
      %v7574 = vpack.c.b16 %v7446, %v7446
      %v7575 = vpack.c.b16 %v7447, %v7447
      %v7576 = vpack.c.b16 %v7448, %v7448
      %v7577 = vpack.c.b16 %v7449, %v7449
      %v7578 = vpack.c.b16 %v7450, %v7450
      %v7579 = vpack.c.b16 %v7451, %v7451
      %v7580 = vpack.c.b16 %v7452, %v7452
      %v7581 = vpack.c.b16 %v7453, %v7453
      %v7582 = vpack.c.b16 %v7454, %v7454
      %v7583 = vpack.c.b16 %v7455, %v7455
      %v7584 = vpack.c.b16 %v7456, %v7456
      %v7585 = vpack.c.b16 %v7457, %v7457
      %v7586 = vpack.c.b16 %v7458, %v7458
      %v7587 = vpack.c.b16 %v7459, %v7459
      %v7588 = vpack.c.b16 %v7460, %v7460
      %v7589 = vpack.c.b16 %v7461, %v7461
      %v7590 = vpack.c.b16 %v7462, %v7462
      %v7591 = vpack.c.b16 %v7463, %v7463
      %v7592 = vpack.c.b16 %v7464, %v7464
      %v7593 = vpack.c.b16 %v7465, %v7465
      %v7594 = vpack.c.b16 %v7466, %v7466
      %v7595 = vpack.c.b16 %v7467, %v7467
      %v7596 = vpack.c.b16 %v7468, %v7468
      %v7597 = vpack.c.b16 %v7469, %v7469
      %v7598 = vpack.c.b16 %v7470, %v7470
      %v7599 = vpack.c.b16 %v7471, %v7471
      %v7600 = vpack.c.b16 %v7472, %v7472
      %v7601 = vpack.c.b16 %v7473, %v7473
      %v7602 = vpack.c.b16 %v7474, %v7474
      %v7603 = vpack.c.b16 %v7475, %v7475
      %v7604 = vpack.c.b16 %v7476, %v7476
      %v7605 = vpack.c.b16 %v7477, %v7477
      %v7606 = vpack.c.b16 %v7478, %v7478
      %v7607 = vpack.c.b16 %v7479, %v7479
      %v7608 = vpack.c.b16 %v7480, %v7480
      %v7609 = vpack.c.b16 %v7481, %v7481
      %v7610 = vpack.c.b16 %v7482, %v7482
      %v7611 = vpack.c.b16 %v7483, %v7483
      %v7612 = vpack.c.b16 %v7484, %v7484
      %v7613 = vpack.c.b16 %v7485, %v7485
      %v7614 = vpack.c.b16 %v7486, %v7486
      %v7615 = vpack.c.b16 %v7487, %v7487
      %v7616 = vpack.c.b16 %v7488, %v7488
      %v7617 = vpack.c.b16 %v7489, %v7489
      %v7618 = vpack.c.b16 %v7490, %v7490
      %v7619 = vpack.c.b16 %v7491, %v7491
      %v7620 = vpack.c.b16 %v7492, %v7492
      %vm7749 = vcmask 125952
      %7750 = vst.msk [vmem:[%s283] sm:$0xf] %vm7749, %v7493
      %7751 = vst.msk [vmem:[%s283 + $0x4] sm:$0xf] %vm7749, %v7494
      %7752 = vst.msk [vmem:[%s283 + $0x8] sm:$0xf] %vm7749, %v7495
      %7753 = vst.msk [vmem:[%s283 + $0xc] sm:$0xf] %vm7749, %v7496
      %7754 = vst.msk [vmem:[%s283 + $0x10] sm:$0xf] %vm7749, %v7497
      %7755 = vst.msk [vmem:[%s283 + $0x14] sm:$0xf] %vm7749, %v7498
      %7756 = vst.msk [vmem:[%s283 + $0x18] sm:$0xf] %vm7749, %v7499
      %7757 = vst.msk [vmem:[%s283 + $0x1c] sm:$0xf] %vm7749, %v7500
      %7758 = vst.msk [vmem:[%s283 + $0x20] sm:$0xf] %vm7749, %v7501
      %7759 = vst.msk [vmem:[%s283 + $0x24] sm:$0xf] %vm7749, %v7502
      %7760 = vst.msk [vmem:[%s283 + $0x28] sm:$0xf] %vm7749, %v7503
      %7761 = vst.msk [vmem:[%s283 + $0x2c] sm:$0xf] %vm7749, %v7504
      %7762 = vst.msk [vmem:[%s283 + $0x30] sm:$0xf] %vm7749, %v7505
      %7763 = vst.msk [vmem:[%s283 + $0x34] sm:$0xf] %vm7749, %v7506
      %7764 = vst.msk [vmem:[%s283 + $0x38] sm:$0xf] %vm7749, %v7507
      %7765 = vst.msk [vmem:[%s283 + $0x3c] sm:$0xf] %vm7749, %v7508
      %7766 = vst.msk [vmem:[%s283 + $0x40] sm:$0xf] %vm7749, %v7509
      %7767 = vst.msk [vmem:[%s283 + $0x44] sm:$0xf] %vm7749, %v7510
      %7768 = vst.msk [vmem:[%s283 + $0x48] sm:$0xf] %vm7749, %v7511
      %7769 = vst.msk [vmem:[%s283 + $0x4c] sm:$0xf] %vm7749, %v7512
      %7770 = vst.msk [vmem:[%s283 + $0x50] sm:$0xf] %vm7749, %v7513
      %7771 = vst.msk [vmem:[%s283 + $0x54] sm:$0xf] %vm7749, %v7514
      %7772 = vst.msk [vmem:[%s283 + $0x58] sm:$0xf] %vm7749, %v7515
      %7773 = vst.msk [vmem:[%s283 + $0x5c] sm:$0xf] %vm7749, %v7516
      %7774 = vst.msk [vmem:[%s283 + $0x60] sm:$0xf] %vm7749, %v7517
      %7775 = vst.msk [vmem:[%s283 + $0x64] sm:$0xf] %vm7749, %v7518
      %7776 = vst.msk [vmem:[%s283 + $0x68] sm:$0xf] %vm7749, %v7519
      %7777 = vst.msk [vmem:[%s283 + $0x6c] sm:$0xf] %vm7749, %v7520
      %7778 = vst.msk [vmem:[%s283 + $0x70] sm:$0xf] %vm7749, %v7521
      %7779 = vst.msk [vmem:[%s283 + $0x74] sm:$0xf] %vm7749, %v7522
      %7780 = vst.msk [vmem:[%s283 + $0x78] sm:$0xf] %vm7749, %v7523
      %7781 = vst.msk [vmem:[%s283 + $0x7c] sm:$0xf] %vm7749, %v7524
      %7782 = vst.msk [vmem:[%s283 + $0x80] sm:$0xf] %vm7749, %v7525
      %7783 = vst.msk [vmem:[%s283 + $0x84] sm:$0xf] %vm7749, %v7526
      %7784 = vst.msk [vmem:[%s283 + $0x88] sm:$0xf] %vm7749, %v7527
      %7785 = vst.msk [vmem:[%s283 + $0x8c] sm:$0xf] %vm7749, %v7528
      %7786 = vst.msk [vmem:[%s283 + $0x90] sm:$0xf] %vm7749, %v7529
      %7787 = vst.msk [vmem:[%s283 + $0x94] sm:$0xf] %vm7749, %v7530
      %7788 = vst.msk [vmem:[%s283 + $0x98] sm:$0xf] %vm7749, %v7531
      %7789 = vst.msk [vmem:[%s283 + $0x9c] sm:$0xf] %vm7749, %v7532
      %7790 = vst.msk [vmem:[%s283 + $0xa0] sm:$0xf] %vm7749, %v7533
      %7791 = vst.msk [vmem:[%s283 + $0xa4] sm:$0xf] %vm7749, %v7534
      %7792 = vst.msk [vmem:[%s283 + $0xa8] sm:$0xf] %vm7749, %v7535
      %7793 = vst.msk [vmem:[%s283 + $0xac] sm:$0xf] %vm7749, %v7536
      %7794 = vst.msk [vmem:[%s283 + $0xb0] sm:$0xf] %vm7749, %v7537
      %7795 = vst.msk [vmem:[%s283 + $0xb4] sm:$0xf] %vm7749, %v7538
      %7796 = vst.msk [vmem:[%s283 + $0xb8] sm:$0xf] %vm7749, %v7539
      %7797 = vst.msk [vmem:[%s283 + $0xbc] sm:$0xf] %vm7749, %v7540
      %7798 = vst.msk [vmem:[%s283 + $0xc0] sm:$0xf] %vm7749, %v7541
      %7799 = vst.msk [vmem:[%s283 + $0xc4] sm:$0xf] %vm7749, %v7542
      %7800 = vst.msk [vmem:[%s283 + $0xc8] sm:$0xf] %vm7749, %v7543
      %7801 = vst.msk [vmem:[%s283 + $0xcc] sm:$0xf] %vm7749, %v7544
      %7802 = vst.msk [vmem:[%s283 + $0xd0] sm:$0xf] %vm7749, %v7545
      %7803 = vst.msk [vmem:[%s283 + $0xd4] sm:$0xf] %vm7749, %v7546
      %7804 = vst.msk [vmem:[%s283 + $0xd8] sm:$0xf] %vm7749, %v7547
      %7805 = vst.msk [vmem:[%s283 + $0xdc] sm:$0xf] %vm7749, %v7548
      %7806 = vst.msk [vmem:[%s283 + $0xe0] sm:$0xf] %vm7749, %v7549
      %7807 = vst.msk [vmem:[%s283 + $0xe4] sm:$0xf] %vm7749, %v7550
      %7808 = vst.msk [vmem:[%s283 + $0xe8] sm:$0xf] %vm7749, %v7551
      %7809 = vst.msk [vmem:[%s283 + $0xec] sm:$0xf] %vm7749, %v7552
      %7810 = vst.msk [vmem:[%s283 + $0xf0] sm:$0xf] %vm7749, %v7553
      %7811 = vst.msk [vmem:[%s283 + $0xf4] sm:$0xf] %vm7749, %v7554
      %7812 = vst.msk [vmem:[%s283 + $0xf8] sm:$0xf] %vm7749, %v7555
      %7813 = vst.msk [vmem:[%s283 + $0xfc] sm:$0xf] %vm7749, %v7556
      %7814 = vst.msk [vmem:[%s283 + $0x100] sm:$0xf] %vm7749, %v7557
      %7815 = vst.msk [vmem:[%s283 + $0x104] sm:$0xf] %vm7749, %v7558
      %7816 = vst.msk [vmem:[%s283 + $0x108] sm:$0xf] %vm7749, %v7559
      %7817 = vst.msk [vmem:[%s283 + $0x10c] sm:$0xf] %vm7749, %v7560
      %7818 = vst.msk [vmem:[%s283 + $0x110] sm:$0xf] %vm7749, %v7561
      %7819 = vst.msk [vmem:[%s283 + $0x114] sm:$0xf] %vm7749, %v7562
      %7820 = vst.msk [vmem:[%s283 + $0x118] sm:$0xf] %vm7749, %v7563
      %7821 = vst.msk [vmem:[%s283 + $0x11c] sm:$0xf] %vm7749, %v7564
      %7822 = vst.msk [vmem:[%s283 + $0x120] sm:$0xf] %vm7749, %v7565
      %7823 = vst.msk [vmem:[%s283 + $0x124] sm:$0xf] %vm7749, %v7566
      %7824 = vst.msk [vmem:[%s283 + $0x128] sm:$0xf] %vm7749, %v7567
      %7825 = vst.msk [vmem:[%s283 + $0x12c] sm:$0xf] %vm7749, %v7568
      %7826 = vst.msk [vmem:[%s283 + $0x130] sm:$0xf] %vm7749, %v7569
      %7827 = vst.msk [vmem:[%s283 + $0x134] sm:$0xf] %vm7749, %v7570
      %7828 = vst.msk [vmem:[%s283 + $0x138] sm:$0xf] %vm7749, %v7571
      %7829 = vst.msk [vmem:[%s283 + $0x13c] sm:$0xf] %vm7749, %v7572
      %7830 = vst.msk [vmem:[%s283 + $0x140] sm:$0xf] %vm7749, %v7573
      %7831 = vst.msk [vmem:[%s283 + $0x144] sm:$0xf] %vm7749, %v7574
      %7832 = vst.msk [vmem:[%s283 + $0x148] sm:$0xf] %vm7749, %v7575
      %7833 = vst.msk [vmem:[%s283 + $0x14c] sm:$0xf] %vm7749, %v7576
      %7834 = vst.msk [vmem:[%s283 + $0x150] sm:$0xf] %vm7749, %v7577
      %7835 = vst.msk [vmem:[%s283 + $0x154] sm:$0xf] %vm7749, %v7578
      %7836 = vst.msk [vmem:[%s283 + $0x158] sm:$0xf] %vm7749, %v7579
      %7837 = vst.msk [vmem:[%s283 + $0x15c] sm:$0xf] %vm7749, %v7580
      %7838 = vst.msk [vmem:[%s283 + $0x160] sm:$0xf] %vm7749, %v7581
      %7839 = vst.msk [vmem:[%s283 + $0x164] sm:$0xf] %vm7749, %v7582
      %7840 = vst.msk [vmem:[%s283 + $0x168] sm:$0xf] %vm7749, %v7583
      %7841 = vst.msk [vmem:[%s283 + $0x16c] sm:$0xf] %vm7749, %v7584
      %7842 = vst.msk [vmem:[%s283 + $0x170] sm:$0xf] %vm7749, %v7585
      %7843 = vst.msk [vmem:[%s283 + $0x174] sm:$0xf] %vm7749, %v7586
      %7844 = vst.msk [vmem:[%s283 + $0x178] sm:$0xf] %vm7749, %v7587
      %7845 = vst.msk [vmem:[%s283 + $0x17c] sm:$0xf] %vm7749, %v7588
      %7846 = vst.msk [vmem:[%s283 + $0x180] sm:$0xf] %vm7749, %v7589
      %7847 = vst.msk [vmem:[%s283 + $0x184] sm:$0xf] %vm7749, %v7590
      %7848 = vst.msk [vmem:[%s283 + $0x188] sm:$0xf] %vm7749, %v7591
      %7849 = vst.msk [vmem:[%s283 + $0x18c] sm:$0xf] %vm7749, %v7592
      %7850 = vst.msk [vmem:[%s283 + $0x190] sm:$0xf] %vm7749, %v7593
      %7851 = vst.msk [vmem:[%s283 + $0x194] sm:$0xf] %vm7749, %v7594
      %7852 = vst.msk [vmem:[%s283 + $0x198] sm:$0xf] %vm7749, %v7595
      %7853 = vst.msk [vmem:[%s283 + $0x19c] sm:$0xf] %vm7749, %v7596
      %7854 = vst.msk [vmem:[%s283 + $0x1a0] sm:$0xf] %vm7749, %v7597
      %7855 = vst.msk [vmem:[%s283 + $0x1a4] sm:$0xf] %vm7749, %v7598
      %7856 = vst.msk [vmem:[%s283 + $0x1a8] sm:$0xf] %vm7749, %v7599
      %7857 = vst.msk [vmem:[%s283 + $0x1ac] sm:$0xf] %vm7749, %v7600
      %7858 = vst.msk [vmem:[%s283 + $0x1b0] sm:$0xf] %vm7749, %v7601
      %7859 = vst.msk [vmem:[%s283 + $0x1b4] sm:$0xf] %vm7749, %v7602
      %7860 = vst.msk [vmem:[%s283 + $0x1b8] sm:$0xf] %vm7749, %v7603
      %7861 = vst.msk [vmem:[%s283 + $0x1bc] sm:$0xf] %vm7749, %v7604
      %7862 = vst.msk [vmem:[%s283 + $0x1c0] sm:$0xf] %vm7749, %v7605
      %7863 = vst.msk [vmem:[%s283 + $0x1c4] sm:$0xf] %vm7749, %v7606
      %7864 = vst.msk [vmem:[%s283 + $0x1c8] sm:$0xf] %vm7749, %v7607
      %7865 = vst.msk [vmem:[%s283 + $0x1cc] sm:$0xf] %vm7749, %v7608
      %7866 = vst.msk [vmem:[%s283 + $0x1d0] sm:$0xf] %vm7749, %v7609
      %7867 = vst.msk [vmem:[%s283 + $0x1d4] sm:$0xf] %vm7749, %v7610
      %7868 = vst.msk [vmem:[%s283 + $0x1d8] sm:$0xf] %vm7749, %v7611
      %7869 = vst.msk [vmem:[%s283 + $0x1dc] sm:$0xf] %vm7749, %v7612
      %7870 = vst.msk [vmem:[%s283 + $0x1e0] sm:$0xf] %vm7749, %v7613
      %7871 = vst.msk [vmem:[%s283 + $0x1e4] sm:$0xf] %vm7749, %v7614
      %7872 = vst.msk [vmem:[%s283 + $0x1e8] sm:$0xf] %vm7749, %v7615
      %7873 = vst.msk [vmem:[%s283 + $0x1ec] sm:$0xf] %vm7749, %v7616
      %7874 = vst.msk [vmem:[%s283 + $0x1f0] sm:$0xf] %vm7749, %v7617
      %7875 = vst.msk [vmem:[%s283 + $0x1f4] sm:$0xf] %vm7749, %v7618
      %7876 = vst.msk [vmem:[%s283 + $0x1f8] sm:$0xf] %vm7749, %v7619
      %7877 = vst.msk [vmem:[%s283 + $0x1fc] sm:$0xf] %vm7749, %v7620
      %s7878 = smul.u32 8, %s17
      %p7879 = scmp.lt.s32.totalorder %s7878, 15
      %s7880 = scalar_select %p7879, %s7878, 15
      %s7881 = smul.addr %s7880, 16
      %s7882 = smul.addr %s7881, 4
      %s7883 = scalar_lea.vmem %s6, %s7882
      // Predicated region
      $region45: #{tpu_custom_call.1} parent=43 // pred_check
        %p7884 = pneg %p171
      $region46: #{tpu_custom_call.1} parent=43 // pred_check_branch
        %7886 = sbr.rel (%p7884) target = $region48
      $region47: #{tpu_custom_call.1} parent=43 // pred_region
        %s7887 = smul.u32 8, %s17
      $region48: #{tpu_custom_call.1} parent=43 // pred_fallthru
        _
    $region44: #{tpu_custom_call.1} parent=5 // pred_fallthru
      _
    %p7888 = scmp.le.s32.totalorder 2, %s12
    // Predicated region
    $region49: #{tpu_custom_call.1} parent=5 // pred_check
      %p7889 = pneg %p7888
    $region50: #{tpu_custom_call.1} parent=5 // pred_check_branch
      %7891 = sbr.rel (%p7889) target = $region52
    $region51: #{tpu_custom_call.1} parent=5 // pred_region
      %s7892 = ssub.s32 %s12, 2
      // Predicated region
      $region53: #{tpu_custom_call.1} parent=51 // pred_check
        %p7893 = pneg %p177
      $region54: #{tpu_custom_call.1} parent=51 // pred_check_branch
        %7895 = sbr.rel (%p7893) target = $region56
      $region55: #{tpu_custom_call.1} parent=51 // pred_region
        %s7896 = smul.u32 8, %s18
        %p7897 = scmp.lt.s32.totalorder %s7896, 15
        %s7898 = scalar_select %p7897, %s7896, 15
        %s7899 = smul.addr %s7898, 16
        %s7900 = smul.addr %s7899, 4
        %s7901 = scalar_lea.vmem %s6, %s7900
      $region56: #{tpu_custom_call.1} parent=51 // pred_fallthru
        _
    $region52: #{tpu_custom_call.1} parent=5 // pred_fallthru
      _
  $region6: #{tpu_custom_call.1} parent=0 // loop_footer
    %s16 = sadd.s32 1, %s12
  $region7: #{tpu_custom_call.1} parent=0 // loop_footer_branch
    %11 = sbr.rel target = $region3
  $region8: #{tpu_custom_call.1} parent=0 // loop_exit
    _

</llo_original>
